<compile_context>
chip_gen: v7x
topology: tpu7x:2x2x1
jax: 0.10.0
libtpu: 0.0.40
codegen_flags: <defaults>
</compile_context>

<pallas_src>
import jax
import jax.numpy as jnp
import numpy as np
from jax.experimental import pallas as pl
from jax.experimental.pallas import tpu as pltpu


# ------------------------------ fused kernel --------------------------------

def _hybrid_dqn_kernel(x_ref, feat_ref,
                       wc1_ref, bc1_ref, wc2_ref, bc2_ref, wc3_ref, bc3_ref,
                       wf_ref, bf_ref, w1a_ref, w1b_ref, b1_ref, w2_ref, b2_ref,
                       o_ref,
                       pad1_scr, pad2_scr, pad3_scr, y_scr):
    H, W = x_ref.shape[1], x_ref.shape[2]

    def conv3x3_relu(pad_ref, x_hwc, w_ref, b_ref):
        # pad_ref: (H+2, W+2, Cin) f32 scratch; x_hwc: (H, W, Cin) f32 value;
        # w_ref: (9, Cin, Cout) bf16; b_ref: (1, Cout) f32.
        cin = pad_ref.shape[-1]
        cout = w_ref.shape[-1]
        pad_ref[...] = jnp.zeros_like(pad_ref)          # zero borders in VMEM
        pad_ref[1:H + 1, 1:W + 1, :] = x_hwc
        acc = jnp.zeros((H * W, cout), jnp.float32)
        # 3x3 "same" conv as 9 shifted bf16 MXU matmuls, f32 accumulation.
        for dh in range(3):
            for dw in range(3):
                patch = pad_ref[dh:dh + H, dw:dw + W, :].reshape(H * W, cin)
                acc = acc + jnp.dot(patch.astype(jnp.bfloat16),
                                    w_ref[dh * 3 + dw],
                                    preferred_element_type=jnp.float32)
        return jnp.maximum(acc + b_ref[...], 0.0)        # (H*W, Cout) f32

    # --- conv stack: activations never leave VMEM ----------------------------
    y = conv3x3_relu(pad1_scr, x_ref[0], wc1_ref, bc1_ref)
    y = conv3x3_relu(pad2_scr, y.reshape(H, W, y.shape[-1]), wc2_ref, bc2_ref)
    y = conv3x3_relu(pad3_scr, y.reshape(H, W, y.shape[-1]), wc3_ref, bc3_ref)
    y_scr[...] = y                                       # (H*W, 64) f32
    c3 = y_scr.shape[-1]

    # --- feature_fc: relu(feat @ wf + bf) -------------------------------------
    x2 = jnp.maximum(
        jnp.dot(feat_ref[0].astype(jnp.bfloat16), wf_ref[...],
                preferred_element_type=jnp.float32) + bf_ref[...], 0.0)  # (1,64)

    # --- fc1 over concat([flatten(conv), x2]) as a split matmul ---------------
    # Flatten is folded into w1a's row order ((h,w,c)); the 4096-wide K dim is
    # accumulated position-by-position (one 64-row slice of w1a per spatial
    # position), so the conv activation is only ever touched as (1, 64) rows.
    h = jnp.dot(x2.astype(jnp.bfloat16), w1b_ref[...],
                preferred_element_type=jnp.float32)                       # (1,128)
    for p in range(H * W):
        row = y_scr[p:p + 1, :].astype(jnp.bfloat16)                      # (1,c3)
        h = h + jnp.dot(row, w1a_ref[p * c3:(p + 1) * c3, :],
                        preferred_element_type=jnp.float32)
    h = jnp.maximum(h + b1_ref[...], 0.0)                                 # (1,128)

    # --- output layer ---------------------------------------------------------
    o_ref[0] = (jnp.dot(h.astype(jnp.bfloat16), w2_ref[...],
                        preferred_element_type=jnp.float32) + b2_ref[...])


# ------------------------------ wrapper / glue -------------------------------

def hybrid_dqn_forward(matrix_nchw, feature_input, params):
    """HybridDQN forward (dueling=False, the module default) as one Pallas call."""
    # TODO(synk): dueling head (value/advantage streams + mean subtraction) not
    # wired up; module default is dueling=False which is what's implemented.
    x = jnp.transpose(matrix_nchw, (0, 2, 3, 1))          # NCHW -> NHWC once
    N, H, W, Cin = x.shape
    F = feature_input.shape[-1]
    A = params["w2"].shape[-1]
    c1 = params["wc1"].shape[-1]
    c2 = params["wc2"].shape[-1]
    c3 = params["wc3"].shape[-1]
    feat3 = feature_input.reshape(N, 1, F)

    out = pl.pallas_call(
        _hybrid_dqn_kernel,
        out_shape=jax.ShapeDtypeStruct((N, 1, A), jnp.float32),
        grid=(N,),
        in_specs=[
            pl.BlockSpec((1, H, W, Cin), lambda n: (n, 0, 0, 0)),
            pl.BlockSpec((1, 1, F), lambda n: (n, 0, 0)),
            pl.BlockSpec((9, Cin, c1), lambda n: (0, 0, 0)),
            pl.BlockSpec((1, c1), lambda n: (0, 0)),
            pl.BlockSpec((9, c1, c2), lambda n: (0, 0, 0)),
            pl.BlockSpec((1, c2), lambda n: (0, 0)),
            pl.BlockSpec((9, c2, c3), lambda n: (0, 0, 0)),
            pl.BlockSpec((1, c3), lambda n: (0, 0)),
            pl.BlockSpec((F, 64), lambda n: (0, 0)),
            pl.BlockSpec((1, 64), lambda n: (0, 0)),
            pl.BlockSpec((H * W * c3, 128), lambda n: (0, 0)),
            pl.BlockSpec((64, 128), lambda n: (0, 0)),
            pl.BlockSpec((1, 128), lambda n: (0, 0)),
            pl.BlockSpec((128, A), lambda n: (0, 0)),
            pl.BlockSpec((1, A), lambda n: (0, 0)),
        ],
        out_specs=pl.BlockSpec((1, 1, A), lambda n: (n, 0, 0)),
        scratch_shapes=[
            pltpu.VMEM((H + 2, W + 2, Cin), jnp.float32),
            pltpu.VMEM((H + 2, W + 2, c1), jnp.float32),
            pltpu.VMEM((H + 2, W + 2, c2), jnp.float32),
            pltpu.VMEM((H * W, c3), jnp.float32),
        ],
        compiler_params=pltpu.CompilerParams(
            dimension_semantics=("parallel",),
            vmem_limit_bytes=32 * 1024 * 1024),
    )(x, feat3,
      params["wc1"], params["bc1"], params["wc2"], params["bc2"],
      params["wc3"], params["bc3"],
      params["wf"], params["bf"],
      params["w1a"], params["w1b"], params["b1"],
      params["w2"], params["b2"])
    return out.reshape(N, A)


def init_params(key, matrix_channels, feature_size, action_size, H, W):
    """PyTorch-style U(+/- 1/sqrt(fan_in)) init.

    Matmul weights are stored in bf16 (f32 accumulation in-kernel).  w1a's rows
    are permuted ONCE here from torch's Flatten(NCHW) order (c,h,w) to the
    kernel's NHWC order (h,w,c) so the kernel never transposes activations.
    """
    def uniform(k, shape, bound):
        return jax.random.uniform(k, shape, jnp.float32, -bound, bound)

    ks = jax.random.split(key, 16)
    p = {}
    cin = matrix_channels
    for idx, (wn, bn, cout) in enumerate(
            [("wc1", "bc1", 32), ("wc2", "bc2", 64), ("wc3", "bc3", 64)]):
        bound = 1.0 / np.sqrt(cin * 9)
        w_hwio = uniform(ks[2 * idx], (3, 3, cin, cout), bound)   # HWIO
        p[wn + "_hwio"] = w_hwio                                   # f32, reference
        p[wn] = w_hwio.reshape(9, cin, cout).astype(jnp.bfloat16)  # kernel layout
        p[bn] = uniform(ks[2 * idx + 1], (1, cout), bound)
        cin = cout

    conv_out = cin * H * W
    combined = conv_out + 64
    bf_bound = 1.0 / np.sqrt(feature_size)
    b1_bound = 1.0 / np.sqrt(combined)
    b2_bound = 1.0 / np.sqrt(128)

    p["wf"] = uniform(ks[6], (feature_size, 64), bf_bound).astype(jnp.bfloat16)
    p["bf"] = uniform(ks[7], (1, 64), bf_bound)

    # fc1 weight split into conv part (w1a) and feature part (w1b).
    w1a_chw = uniform(ks[8], (conv_out, 128), b1_bound)            # torch row order
    p["w1a_chw"] = w1a_chw                                         # reference copy
    perm = np.arange(conv_out).reshape(cin, H, W).transpose(1, 2, 0).reshape(-1)
    p["w1a"] = w1a_chw[perm].astype(jnp.bfloat16)                  # (h,w,c) rows
    p["w1b"] = uniform(ks[9], (64, 128), b1_bound).astype(jnp.bfloat16)
    p["b1"] = uniform(ks[10], (1, 128), b1_bound)

    p["w2"] = uniform(ks[11], (128, action_size), b2_bound).astype(jnp.bfloat16)
    p["b2"] = uniform(ks[12], (1, action_size), b2_bound)
    return p


def ref_forward(matrix_nchw, feature_input, params):
    """Pure-JAX reference mirroring the kernel's bf16-operand / f32-accumulate
    math.  Uses the UN-permuted w1a with a torch-style NCHW flatten, which
    independently validates the row permutation folded into the kernel weight."""
    f32 = jnp.float32
    hi = jax.lax.Precision.HIGHEST

    def r(v):   # round like the kernel's bf16 casts before every matmul
        return v.astype(jnp.bfloat16).astype(f32)

    x = jnp.transpose(matrix_nchw, (0, 2, 3, 1))                   # NHWC
    for wn, bn in (("wc1", "bc1"), ("wc2", "bc2"), ("wc3", "bc3")):
        x = jax.lax.conv_general_dilated(
            r(x), r(params[wn + "_hwio"]), (1, 1), "SAME",
            dimension_numbers=("NHWC", "HWIO", "NHWC"), precision=hi)
        x = jnp.maximum(x + params[bn], 0.0)
    N = x.shape[0]
    x1 = jnp.transpose(x, (0, 3, 1, 2)).reshape(N, -1)             # Flatten(NCHW)
    x2 = jnp.maximum(
        jnp.dot(r(feature_input), params["wf"].astype(f32), precision=hi)
        + params["bf"], 0.0)
    h = (jnp.dot(r(x1), r(params["w1a_chw"]), precision=hi)
         + jnp.dot(r(x2), params["w1b"].astype(f32), precision=hi)
         + params["b1"])
    h = jnp.maximum(h, 0.0)
    return (jnp.dot(r(h), params["w2"].astype(f32), precision=hi)
            + params["b2"])


# --------------------------------- driver ------------------------------------

if __name__ == "__main__":
    N, C, H, W = 2, 4, 8, 8           # batch, matrix_channels, spatial
    F, A = 8, 6                       # feature_size, action_size

    key = jax.random.PRNGKey(0)
    k_m, k_f, k_p = jax.random.split(key, 3)
    matrix_input = jax.random.normal(k_m, (N, C, H, W), jnp.float32)   # NCHW
    feature_input = jax.random.normal(k_f, (N, F), jnp.float32)
    params = init_params(k_p, C, F, A, H, W)

    out = jax.block_until_ready(
        hybrid_dqn_forward(matrix_input, feature_input, params))
    ref = jax.block_until_ready(
        ref_forward(matrix_input, feature_input, params))

    # bf16 matmul operands are mirrored exactly in the reference, so only f32
    # accumulation-order differences remain -> tight tolerance.
    np.testing.assert_allclose(np.asarray(out), np.asarray(ref),
                               rtol=2e-3, atol=2e-3)
    assert out.shape == (N, A) and out.dtype == jnp.float32
    print("KERNEL_OK")
</pallas_src>

<mosaic_0001>
module attributes {stable_mosaic.version = 11 : i64} {
  func.func @_hybrid_dqn_kernel(%arg0: i32, %arg1: memref<1x8x8x4xf32, #tpu.memory_space<vmem>>, %arg2: memref<1x1x8xf32, #tpu.memory_space<vmem>>, %arg3: memref<9x4x32xbf16, #tpu.memory_space<vmem>>, %arg4: memref<1x32xf32, #tpu.memory_space<vmem>>, %arg5: memref<9x32x64xbf16, #tpu.memory_space<vmem>>, %arg6: memref<1x64xf32, #tpu.memory_space<vmem>>, %arg7: memref<9x64x64xbf16, #tpu.memory_space<vmem>>, %arg8: memref<1x64xf32, #tpu.memory_space<vmem>>, %arg9: memref<8x64xbf16, #tpu.memory_space<vmem>>, %arg10: memref<1x64xf32, #tpu.memory_space<vmem>>, %arg11: memref<4096x128xbf16, #tpu.memory_space<vmem>>, %arg12: memref<64x128xbf16, #tpu.memory_space<vmem>>, %arg13: memref<1x128xf32, #tpu.memory_space<vmem>>, %arg14: memref<128x6xbf16, #tpu.memory_space<vmem>>, %arg15: memref<1x6xf32, #tpu.memory_space<vmem>>, %arg16: memref<1x1x6xf32, #tpu.memory_space<vmem>>, %arg17: memref<10x10x4xf32, #tpu.memory_space<vmem>>, %arg18: memref<10x10x32xf32, #tpu.memory_space<vmem>>, %arg19: memref<10x10x64xf32, #tpu.memory_space<vmem>>, %arg20: memref<64x64xf32, #tpu.memory_space<vmem>>) attributes {dimension_semantics = [#tpu.dimension_semantics<parallel>], iteration_bounds = array<i64: 2>, scalar_prefetch = 0 : i64, scratch_operands = 4 : i64, tpu.core_type = #tpu.core_type<tc>, window_params = [{transform_indices = @transform_0, window_bounds = array<i64: 1, 8, 8, 4>}, {transform_indices = @transform_1, window_bounds = array<i64: 1, 1, 8>}, {pipeline_mode = #tpu.pipeline_mode<synchronous>, transform_indices = @transform_2, window_bounds = array<i64: 9, 4, 32>}, {pipeline_mode = #tpu.pipeline_mode<synchronous>, transform_indices = @transform_3, window_bounds = array<i64: 1, 32>}, {pipeline_mode = #tpu.pipeline_mode<synchronous>, transform_indices = @transform_4, window_bounds = array<i64: 9, 32, 64>}, {pipeline_mode = #tpu.pipeline_mode<synchronous>, transform_indices = @transform_5, window_bounds = array<i64: 1, 64>}, {pipeline_mode = #tpu.pipeline_mode<synchronous>, transform_indices = @transform_6, window_bounds = array<i64: 9, 64, 64>}, {pipeline_mode = #tpu.pipeline_mode<synchronous>, transform_indices = @transform_7, window_bounds = array<i64: 1, 64>}, {pipeline_mode = #tpu.pipeline_mode<synchronous>, transform_indices = @transform_8, window_bounds = array<i64: 8, 64>}, {pipeline_mode = #tpu.pipeline_mode<synchronous>, transform_indices = @transform_9, window_bounds = array<i64: 1, 64>}, {pipeline_mode = #tpu.pipeline_mode<synchronous>, transform_indices = @transform_10, window_bounds = array<i64: 4096, 128>}, {pipeline_mode = #tpu.pipeline_mode<synchronous>, transform_indices = @transform_11, window_bounds = array<i64: 64, 128>}, {pipeline_mode = #tpu.pipeline_mode<synchronous>, transform_indices = @transform_12, window_bounds = array<i64: 1, 128>}, {pipeline_mode = #tpu.pipeline_mode<synchronous>, transform_indices = @transform_13, window_bounds = array<i64: 128, 6>}, {pipeline_mode = #tpu.pipeline_mode<synchronous>, transform_indices = @transform_14, window_bounds = array<i64: 1, 6>}, {transform_indices = @transform_15, window_bounds = array<i64: 1, 1, 6>}]} {
    %c0 = arith.constant 0 : index
    %c0_0 = arith.constant 0 : index
    %c0_1 = arith.constant 0 : index
    %c0_2 = arith.constant 0 : index
    %0 = vector.load %arg1[%c0, %c0_0, %c0_1, %c0_2] : memref<1x8x8x4xf32, #tpu.memory_space<vmem>>, vector<1x8x8x4xf32>
    %1 = vector.shape_cast %0 : vector<1x8x8x4xf32> to vector<8x8x4xf32>
    %cst = arith.constant 0.000000e+00 : f32
    %2 = vector.broadcast %cst : f32 to vector<10x10x4xf32>
    %c0_3 = arith.constant 0 : index
    %c0_4 = arith.constant 0 : index
    %c0_5 = arith.constant 0 : index
    %3 = vector.load %arg17[%c0_3, %c0_4, %c0_5] : memref<10x10x4xf32, #tpu.memory_space<vmem>>, vector<10x10x4xf32>
    tpu.vector_store %arg17[%c0_3, %c0_4, %c0_5], %2 {strides = array<i32>} : memref<10x10x4xf32, #tpu.memory_space<vmem>>, vector<10x10x4xf32>,
    %c1 = arith.constant 1 : index
    %c1_6 = arith.constant 1 : index
    %c0_7 = arith.constant 0 : index
    %4 = vector.load %arg17[%c1, %c1_6, %c0_7] : memref<10x10x4xf32, #tpu.memory_space<vmem>>, vector<8x8x4xf32>
    tpu.vector_store %arg17[%c1, %c1_6, %c0_7], %1 {strides = array<i32>} : memref<10x10x4xf32, #tpu.memory_space<vmem>>, vector<8x8x4xf32>,
    %cst_8 = arith.constant 0.000000e+00 : f32
    %5 = vector.broadcast %cst_8 : f32 to vector<64x32xf32>
    %c0_9 = arith.constant 0 : index
    %c0_10 = arith.constant 0 : index
    %c0_11 = arith.constant 0 : index
    %6 = vector.load %arg17[%c0_9, %c0_10, %c0_11] : memref<10x10x4xf32, #tpu.memory_space<vmem>>, vector<8x8x4xf32>
    %7 = vector.shape_cast %6 : vector<8x8x4xf32> to vector<64x4xf32>
    %8 = arith.truncf %7 : vector<64x4xf32> to vector<64x4xbf16>
    %c0_12 = arith.constant 0 : index
    %c0_13 = arith.constant 0 : index
    %c0_14 = arith.constant 0 : index
    %9 = vector.load %arg3[%c0_12, %c0_13, %c0_14] : memref<9x4x32xbf16, #tpu.memory_space<vmem>>, vector<1x4x32xbf16>
    %10 = vector.shape_cast %9 : vector<1x4x32xbf16> to vector<4x32xbf16>
    %cst_15 = arith.constant dense<0.000000e+00> : vector<64x32xf32>
    %11 = tpu.matmul %8, %10, %cst_15 {dimension_numbers = #tpu.dot_dimension_numbers<[1], [0], [0], [1], [0, 0, 1, 1], [], []>} : vector<64x4xbf16>, vector<4x32xbf16>, vector<64x32xf32> -> vector<64x32xf32>
    %12 = arith.addf %5, %11 : vector<64x32xf32>
    %c0_16 = arith.constant 0 : index
    %c1_17 = arith.constant 1 : index
    %c0_18 = arith.constant 0 : index
    %13 = vector.load %arg17[%c0_16, %c1_17, %c0_18] : memref<10x10x4xf32, #tpu.memory_space<vmem>>, vector<8x8x4xf32>
    %14 = vector.shape_cast %13 : vector<8x8x4xf32> to vector<64x4xf32>
    %15 = arith.truncf %14 : vector<64x4xf32> to vector<64x4xbf16>
    %c1_19 = arith.constant 1 : index
    %c0_20 = arith.constant 0 : index
    %c0_21 = arith.constant 0 : index
    %16 = vector.load %arg3[%c1_19, %c0_20, %c0_21] : memref<9x4x32xbf16, #tpu.memory_space<vmem>>, vector<1x4x32xbf16>
    %17 = vector.shape_cast %16 : vector<1x4x32xbf16> to vector<4x32xbf16>
    %cst_22 = arith.constant dense<0.000000e+00> : vector<64x32xf32>
    %18 = tpu.matmul %15, %17, %cst_22 {dimension_numbers = #tpu.dot_dimension_numbers<[1], [0], [0], [1], [0, 0, 1, 1], [], []>} : vector<64x4xbf16>, vector<4x32xbf16>, vector<64x32xf32> -> vector<64x32xf32>
    %19 = arith.addf %12, %18 : vector<64x32xf32>
    %c0_23 = arith.constant 0 : index
    %c2 = arith.constant 2 : index
    %c0_24 = arith.constant 0 : index
    %20 = vector.load %arg17[%c0_23, %c2, %c0_24] : memref<10x10x4xf32, #tpu.memory_space<vmem>>, vector<8x8x4xf32>
    %21 = vector.shape_cast %20 : vector<8x8x4xf32> to vector<64x4xf32>
    %22 = arith.truncf %21 : vector<64x4xf32> to vector<64x4xbf16>
    %c2_25 = arith.constant 2 : index
    %c0_26 = arith.constant 0 : index
    %c0_27 = arith.constant 0 : index
    %23 = vector.load %arg3[%c2_25, %c0_26, %c0_27] : memref<9x4x32xbf16, #tpu.memory_space<vmem>>, vector<1x4x32xbf16>
    %24 = vector.shape_cast %23 : vector<1x4x32xbf16> to vector<4x32xbf16>
    %cst_28 = arith.constant dense<0.000000e+00> : vector<64x32xf32>
    %25 = tpu.matmul %22, %24, %cst_28 {dimension_numbers = #tpu.dot_dimension_numbers<[1], [0], [0], [1], [0, 0, 1, 1], [], []>} : vector<64x4xbf16>, vector<4x32xbf16>, vector<64x32xf32> -> vector<64x32xf32>
    %26 = arith.addf %19, %25 : vector<64x32xf32>
    %c1_29 = arith.constant 1 : index
    %c0_30 = arith.constant 0 : index
    %c0_31 = arith.constant 0 : index
    %27 = vector.load %arg17[%c1_29, %c0_30, %c0_31] : memref<10x10x4xf32, #tpu.memory_space<vmem>>, vector<8x8x4xf32>
    %28 = vector.shape_cast %27 : vector<8x8x4xf32> to vector<64x4xf32>
    %29 = arith.truncf %28 : vector<64x4xf32> to vector<64x4xbf16>
    %c3 = arith.constant 3 : index
    %c0_32 = arith.constant 0 : index
    %c0_33 = arith.constant 0 : index
    %30 = vector.load %arg3[%c3, %c0_32, %c0_33] : memref<9x4x32xbf16, #tpu.memory_space<vmem>>, vector<1x4x32xbf16>
    %31 = vector.shape_cast %30 : vector<1x4x32xbf16> to vector<4x32xbf16>
    %cst_34 = arith.constant dense<0.000000e+00> : vector<64x32xf32>
    %32 = tpu.matmul %29, %31, %cst_34 {dimension_numbers = #tpu.dot_dimension_numbers<[1], [0], [0], [1], [0, 0, 1, 1], [], []>} : vector<64x4xbf16>, vector<4x32xbf16>, vector<64x32xf32> -> vector<64x32xf32>
    %33 = arith.addf %26, %32 : vector<64x32xf32>
    %c1_35 = arith.constant 1 : index
    %c1_36 = arith.constant 1 : index
    %c0_37 = arith.constant 0 : index
    %34 = vector.load %arg17[%c1_35, %c1_36, %c0_37] : memref<10x10x4xf32, #tpu.memory_space<vmem>>, vector<8x8x4xf32>
    %35 = vector.shape_cast %34 : vector<8x8x4xf32> to vector<64x4xf32>
    %36 = arith.truncf %35 : vector<64x4xf32> to vector<64x4xbf16>
    %c4 = arith.constant 4 : index
    %c0_38 = arith.constant 0 : index
    %c0_39 = arith.constant 0 : index
    %37 = vector.load %arg3[%c4, %c0_38, %c0_39] : memref<9x4x32xbf16, #tpu.memory_space<vmem>>, vector<1x4x32xbf16>
    %38 = vector.shape_cast %37 : vector<1x4x32xbf16> to vector<4x32xbf16>
    %cst_40 = arith.constant dense<0.000000e+00> : vector<64x32xf32>
    %39 = tpu.matmul %36, %38, %cst_40 {dimension_numbers = #tpu.dot_dimension_numbers<[1], [0], [0], [1], [0, 0, 1, 1], [], []>} : vector<64x4xbf16>, vector<4x32xbf16>, vector<64x32xf32> -> vector<64x32xf32>
    %40 = arith.addf %33, %39 : vector<64x32xf32>
    %c1_41 = arith.constant 1 : index
    %c2_42 = arith.constant 2 : index
    %c0_43 = arith.constant 0 : index
    %41 = vector.load %arg17[%c1_41, %c2_42, %c0_43] : memref<10x10x4xf32, #tpu.memory_space<vmem>>, vector<8x8x4xf32>
    %42 = vector.shape_cast %41 : vector<8x8x4xf32> to vector<64x4xf32>
    %43 = arith.truncf %42 : vector<64x4xf32> to vector<64x4xbf16>
    %c5 = arith.constant 5 : index
    %c0_44 = arith.constant 0 : index
    %c0_45 = arith.constant 0 : index
    %44 = vector.load %arg3[%c5, %c0_44, %c0_45] : memref<9x4x32xbf16, #tpu.memory_space<vmem>>, vector<1x4x32xbf16>
    %45 = vector.shape_cast %44 : vector<1x4x32xbf16> to vector<4x32xbf16>
    %cst_46 = arith.constant dense<0.000000e+00> : vector<64x32xf32>
    %46 = tpu.matmul %43, %45, %cst_46 {dimension_numbers = #tpu.dot_dimension_numbers<[1], [0], [0], [1], [0, 0, 1, 1], [], []>} : vector<64x4xbf16>, vector<4x32xbf16>, vector<64x32xf32> -> vector<64x32xf32>
    %47 = arith.addf %40, %46 : vector<64x32xf32>
    %c2_47 = arith.constant 2 : index
    %c0_48 = arith.constant 0 : index
    %c0_49 = arith.constant 0 : index
    %48 = vector.load %arg17[%c2_47, %c0_48, %c0_49] : memref<10x10x4xf32, #tpu.memory_space<vmem>>, vector<8x8x4xf32>
    %49 = vector.shape_cast %48 : vector<8x8x4xf32> to vector<64x4xf32>
    %50 = arith.truncf %49 : vector<64x4xf32> to vector<64x4xbf16>
    %c6 = arith.constant 6 : index
    %c0_50 = arith.constant 0 : index
    %c0_51 = arith.constant 0 : index
    %51 = vector.load %arg3[%c6, %c0_50, %c0_51] : memref<9x4x32xbf16, #tpu.memory_space<vmem>>, vector<1x4x32xbf16>
    %52 = vector.shape_cast %51 : vector<1x4x32xbf16> to vector<4x32xbf16>
    %cst_52 = arith.constant dense<0.000000e+00> : vector<64x32xf32>
    %53 = tpu.matmul %50, %52, %cst_52 {dimension_numbers = #tpu.dot_dimension_numbers<[1], [0], [0], [1], [0, 0, 1, 1], [], []>} : vector<64x4xbf16>, vector<4x32xbf16>, vector<64x32xf32> -> vector<64x32xf32>
    %54 = arith.addf %47, %53 : vector<64x32xf32>
    %c2_53 = arith.constant 2 : index
    %c1_54 = arith.constant 1 : index
    %c0_55 = arith.constant 0 : index
    %55 = vector.load %arg17[%c2_53, %c1_54, %c0_55] : memref<10x10x4xf32, #tpu.memory_space<vmem>>, vector<8x8x4xf32>
    %56 = vector.shape_cast %55 : vector<8x8x4xf32> to vector<64x4xf32>
    %57 = arith.truncf %56 : vector<64x4xf32> to vector<64x4xbf16>
    %c7 = arith.constant 7 : index
    %c0_56 = arith.constant 0 : index
    %c0_57 = arith.constant 0 : index
    %58 = vector.load %arg3[%c7, %c0_56, %c0_57] : memref<9x4x32xbf16, #tpu.memory_space<vmem>>, vector<1x4x32xbf16>
    %59 = vector.shape_cast %58 : vector<1x4x32xbf16> to vector<4x32xbf16>
    %cst_58 = arith.constant dense<0.000000e+00> : vector<64x32xf32>
    %60 = tpu.matmul %57, %59, %cst_58 {dimension_numbers = #tpu.dot_dimension_numbers<[1], [0], [0], [1], [0, 0, 1, 1], [], []>} : vector<64x4xbf16>, vector<4x32xbf16>, vector<64x32xf32> -> vector<64x32xf32>
    %61 = arith.addf %54, %60 : vector<64x32xf32>
    %c2_59 = arith.constant 2 : index
    %c2_60 = arith.constant 2 : index
    %c0_61 = arith.constant 0 : index
    %62 = vector.load %arg17[%c2_59, %c2_60, %c0_61] : memref<10x10x4xf32, #tpu.memory_space<vmem>>, vector<8x8x4xf32>
    %63 = vector.shape_cast %62 : vector<8x8x4xf32> to vector<64x4xf32>
    %64 = arith.truncf %63 : vector<64x4xf32> to vector<64x4xbf16>
    %c8 = arith.constant 8 : index
    %c0_62 = arith.constant 0 : index
    %c0_63 = arith.constant 0 : index
    %65 = vector.load %arg3[%c8, %c0_62, %c0_63] : memref<9x4x32xbf16, #tpu.memory_space<vmem>>, vector<1x4x32xbf16>
    %66 = vector.shape_cast %65 : vector<1x4x32xbf16> to vector<4x32xbf16>
    %cst_64 = arith.constant dense<0.000000e+00> : vector<64x32xf32>
    %67 = tpu.matmul %64, %66, %cst_64 {dimension_numbers = #tpu.dot_dimension_numbers<[1], [0], [0], [1], [0, 0, 1, 1], [], []>} : vector<64x4xbf16>, vector<4x32xbf16>, vector<64x32xf32> -> vector<64x32xf32>
    %68 = arith.addf %61, %67 : vector<64x32xf32>
    %c0_65 = arith.constant 0 : index
    %c0_66 = arith.constant 0 : index
    %69 = vector.load %arg4[%c0_65, %c0_66] : memref<1x32xf32, #tpu.memory_space<vmem>>, vector<1x32xf32>
    %70 = vector.broadcast %69 : vector<1x32xf32> to vector<64x32xf32>
    %71 = arith.addf %68, %70 : vector<64x32xf32>
    %cst_67 = arith.constant 0.000000e+00 : f32
    %72 = vector.broadcast %cst_67 : f32 to vector<64x32xf32>
    %73 = arith.maximumf %71, %72 : vector<64x32xf32>
    %74 = vector.shape_cast %73 : vector<64x32xf32> to vector<8x8x32xf32>
    %cst_68 = arith.constant 0.000000e+00 : f32
    %75 = vector.broadcast %cst_68 : f32 to vector<10x10x32xf32>
    %c0_69 = arith.constant 0 : index
    %c0_70 = arith.constant 0 : index
    %c0_71 = arith.constant 0 : index
    %76 = vector.load %arg18[%c0_69, %c0_70, %c0_71] : memref<10x10x32xf32, #tpu.memory_space<vmem>>, vector<10x10x32xf32>
    tpu.vector_store %arg18[%c0_69, %c0_70, %c0_71], %75 {strides = array<i32>} : memref<10x10x32xf32, #tpu.memory_space<vmem>>, vector<10x10x32xf32>,
    %c1_72 = arith.constant 1 : index
    %c1_73 = arith.constant 1 : index
    %c0_74 = arith.constant 0 : index
    %77 = vector.load %arg18[%c1_72, %c1_73, %c0_74] : memref<10x10x32xf32, #tpu.memory_space<vmem>>, vector<8x8x32xf32>
    tpu.vector_store %arg18[%c1_72, %c1_73, %c0_74], %74 {strides = array<i32>} : memref<10x10x32xf32, #tpu.memory_space<vmem>>, vector<8x8x32xf32>,
    %cst_75 = arith.constant 0.000000e+00 : f32
    %78 = vector.broadcast %cst_75 : f32 to vector<64x64xf32>
    %c0_76 = arith.constant 0 : index
    %c0_77 = arith.constant 0 : index
    %c0_78 = arith.constant 0 : index
    %79 = vector.load %arg18[%c0_76, %c0_77, %c0_78] : memref<10x10x32xf32, #tpu.memory_space<vmem>>, vector<8x8x32xf32>
    %80 = vector.shape_cast %79 : vector<8x8x32xf32> to vector<64x32xf32>
    %81 = arith.truncf %80 : vector<64x32xf32> to vector<64x32xbf16>
    %c0_79 = arith.constant 0 : index
    %c0_80 = arith.constant 0 : index
    %c0_81 = arith.constant 0 : index
    %82 = vector.load %arg5[%c0_79, %c0_80, %c0_81] : memref<9x32x64xbf16, #tpu.memory_space<vmem>>, vector<1x32x64xbf16>
    %83 = vector.shape_cast %82 : vector<1x32x64xbf16> to vector<32x64xbf16>
    %cst_82 = arith.constant dense<0.000000e+00> : vector<64x64xf32>
    %84 = tpu.matmul %81, %83, %cst_82 {dimension_numbers = #tpu.dot_dimension_numbers<[1], [0], [0], [1], [0, 0, 1, 1], [], []>} : vector<64x32xbf16>, vector<32x64xbf16>, vector<64x64xf32> -> vector<64x64xf32>
    %85 = arith.addf %78, %84 : vector<64x64xf32>
    %c0_83 = arith.constant 0 : index
    %c1_84 = arith.constant 1 : index
    %c0_85 = arith.constant 0 : index
    %86 = vector.load %arg18[%c0_83, %c1_84, %c0_85] : memref<10x10x32xf32, #tpu.memory_space<vmem>>, vector<8x8x32xf32>
    %87 = vector.shape_cast %86 : vector<8x8x32xf32> to vector<64x32xf32>
    %88 = arith.truncf %87 : vector<64x32xf32> to vector<64x32xbf16>
    %c1_86 = arith.constant 1 : index
    %c0_87 = arith.constant 0 : index
    %c0_88 = arith.constant 0 : index
    %89 = vector.load %arg5[%c1_86, %c0_87, %c0_88] : memref<9x32x64xbf16, #tpu.memory_space<vmem>>, vector<1x32x64xbf16>
    %90 = vector.shape_cast %89 : vector<1x32x64xbf16> to vector<32x64xbf16>
    %cst_89 = arith.constant dense<0.000000e+00> : vector<64x64xf32>
    %91 = tpu.matmul %88, %90, %cst_89 {dimension_numbers = #tpu.dot_dimension_numbers<[1], [0], [0], [1], [0, 0, 1, 1], [], []>} : vector<64x32xbf16>, vector<32x64xbf16>, vector<64x64xf32> -> vector<64x64xf32>
    %92 = arith.addf %85, %91 : vector<64x64xf32>
    %c0_90 = arith.constant 0 : index
    %c2_91 = arith.constant 2 : index
    %c0_92 = arith.constant 0 : index
    %93 = vector.load %arg18[%c0_90, %c2_91, %c0_92] : memref<10x10x32xf32, #tpu.memory_space<vmem>>, vector<8x8x32xf32>
    %94 = vector.shape_cast %93 : vector<8x8x32xf32> to vector<64x32xf32>
    %95 = arith.truncf %94 : vector<64x32xf32> to vector<64x32xbf16>
    %c2_93 = arith.constant 2 : index
    %c0_94 = arith.constant 0 : index
    %c0_95 = arith.constant 0 : index
    %96 = vector.load %arg5[%c2_93, %c0_94, %c0_95] : memref<9x32x64xbf16, #tpu.memory_space<vmem>>, vector<1x32x64xbf16>
    %97 = vector.shape_cast %96 : vector<1x32x64xbf16> to vector<32x64xbf16>
    %cst_96 = arith.constant dense<0.000000e+00> : vector<64x64xf32>
    %98 = tpu.matmul %95, %97, %cst_96 {dimension_numbers = #tpu.dot_dimension_numbers<[1], [0], [0], [1], [0, 0, 1, 1], [], []>} : vector<64x32xbf16>, vector<32x64xbf16>, vector<64x64xf32> -> vector<64x64xf32>
    %99 = arith.addf %92, %98 : vector<64x64xf32>
    %c1_97 = arith.constant 1 : index
    %c0_98 = arith.constant 0 : index
    %c0_99 = arith.constant 0 : index
    %100 = vector.load %arg18[%c1_97, %c0_98, %c0_99] : memref<10x10x32xf32, #tpu.memory_space<vmem>>, vector<8x8x32xf32>
    %101 = vector.shape_cast %100 : vector<8x8x32xf32> to vector<64x32xf32>
    %102 = arith.truncf %101 : vector<64x32xf32> to vector<64x32xbf16>
    %c3_100 = arith.constant 3 : index
    %c0_101 = arith.constant 0 : index
    %c0_102 = arith.constant 0 : index
    %103 = vector.load %arg5[%c3_100, %c0_101, %c0_102] : memref<9x32x64xbf16, #tpu.memory_space<vmem>>, vector<1x32x64xbf16>
    %104 = vector.shape_cast %103 : vector<1x32x64xbf16> to vector<32x64xbf16>
    %cst_103 = arith.constant dense<0.000000e+00> : vector<64x64xf32>
    %105 = tpu.matmul %102, %104, %cst_103 {dimension_numbers = #tpu.dot_dimension_numbers<[1], [0], [0], [1], [0, 0, 1, 1], [], []>} : vector<64x32xbf16>, vector<32x64xbf16>, vector<64x64xf32> -> vector<64x64xf32>
    %106 = arith.addf %99, %105 : vector<64x64xf32>
    %c1_104 = arith.constant 1 : index
    %c1_105 = arith.constant 1 : index
    %c0_106 = arith.constant 0 : index
    %107 = vector.load %arg18[%c1_104, %c1_105, %c0_106] : memref<10x10x32xf32, #tpu.memory_space<vmem>>, vector<8x8x32xf32>
    %108 = vector.shape_cast %107 : vector<8x8x32xf32> to vector<64x32xf32>
    %109 = arith.truncf %108 : vector<64x32xf32> to vector<64x32xbf16>
    %c4_107 = arith.constant 4 : index
    %c0_108 = arith.constant 0 : index
    %c0_109 = arith.constant 0 : index
    %110 = vector.load %arg5[%c4_107, %c0_108, %c0_109] : memref<9x32x64xbf16, #tpu.memory_space<vmem>>, vector<1x32x64xbf16>
    %111 = vector.shape_cast %110 : vector<1x32x64xbf16> to vector<32x64xbf16>
    %cst_110 = arith.constant dense<0.000000e+00> : vector<64x64xf32>
    %112 = tpu.matmul %109, %111, %cst_110 {dimension_numbers = #tpu.dot_dimension_numbers<[1], [0], [0], [1], [0, 0, 1, 1], [], []>} : vector<64x32xbf16>, vector<32x64xbf16>, vector<64x64xf32> -> vector<64x64xf32>
    %113 = arith.addf %106, %112 : vector<64x64xf32>
    %c1_111 = arith.constant 1 : index
    %c2_112 = arith.constant 2 : index
    %c0_113 = arith.constant 0 : index
    %114 = vector.load %arg18[%c1_111, %c2_112, %c0_113] : memref<10x10x32xf32, #tpu.memory_space<vmem>>, vector<8x8x32xf32>
    %115 = vector.shape_cast %114 : vector<8x8x32xf32> to vector<64x32xf32>
    %116 = arith.truncf %115 : vector<64x32xf32> to vector<64x32xbf16>
    %c5_114 = arith.constant 5 : index
    %c0_115 = arith.constant 0 : index
    %c0_116 = arith.constant 0 : index
    %117 = vector.load %arg5[%c5_114, %c0_115, %c0_116] : memref<9x32x64xbf16, #tpu.memory_space<vmem>>, vector<1x32x64xbf16>
    %118 = vector.shape_cast %117 : vector<1x32x64xbf16> to vector<32x64xbf16>
    %cst_117 = arith.constant dense<0.000000e+00> : vector<64x64xf32>
    %119 = tpu.matmul %116, %118, %cst_117 {dimension_numbers = #tpu.dot_dimension_numbers<[1], [0], [0], [1], [0, 0, 1, 1], [], []>} : vector<64x32xbf16>, vector<32x64xbf16>, vector<64x64xf32> -> vector<64x64xf32>
    %120 = arith.addf %113, %119 : vector<64x64xf32>
    %c2_118 = arith.constant 2 : index
    %c0_119 = arith.constant 0 : index
    %c0_120 = arith.constant 0 : index
    %121 = vector.load %arg18[%c2_118, %c0_119, %c0_120] : memref<10x10x32xf32, #tpu.memory_space<vmem>>, vector<8x8x32xf32>
    %122 = vector.shape_cast %121 : vector<8x8x32xf32> to vector<64x32xf32>
    %123 = arith.truncf %122 : vector<64x32xf32> to vector<64x32xbf16>
    %c6_121 = arith.constant 6 : index
    %c0_122 = arith.constant 0 : index
    %c0_123 = arith.constant 0 : index
    %124 = vector.load %arg5[%c6_121, %c0_122, %c0_123] : memref<9x32x64xbf16, #tpu.memory_space<vmem>>, vector<1x32x64xbf16>
    %125 = vector.shape_cast %124 : vector<1x32x64xbf16> to vector<32x64xbf16>
    %cst_124 = arith.constant dense<0.000000e+00> : vector<64x64xf32>
    %126 = tpu.matmul %123, %125, %cst_124 {dimension_numbers = #tpu.dot_dimension_numbers<[1], [0], [0], [1], [0, 0, 1, 1], [], []>} : vector<64x32xbf16>, vector<32x64xbf16>, vector<64x64xf32> -> vector<64x64xf32>
    %127 = arith.addf %120, %126 : vector<64x64xf32>
    %c2_125 = arith.constant 2 : index
    %c1_126 = arith.constant 1 : index
    %c0_127 = arith.constant 0 : index
    %128 = vector.load %arg18[%c2_125, %c1_126, %c0_127] : memref<10x10x32xf32, #tpu.memory_space<vmem>>, vector<8x8x32xf32>
    %129 = vector.shape_cast %128 : vector<8x8x32xf32> to vector<64x32xf32>
    %130 = arith.truncf %129 : vector<64x32xf32> to vector<64x32xbf16>
    %c7_128 = arith.constant 7 : index
    %c0_129 = arith.constant 0 : index
    %c0_130 = arith.constant 0 : index
    %131 = vector.load %arg5[%c7_128, %c0_129, %c0_130] : memref<9x32x64xbf16, #tpu.memory_space<vmem>>, vector<1x32x64xbf16>
    %132 = vector.shape_cast %131 : vector<1x32x64xbf16> to vector<32x64xbf16>
    %cst_131 = arith.constant dense<0.000000e+00> : vector<64x64xf32>
    %133 = tpu.matmul %130, %132, %cst_131 {dimension_numbers = #tpu.dot_dimension_numbers<[1], [0], [0], [1], [0, 0, 1, 1], [], []>} : vector<64x32xbf16>, vector<32x64xbf16>, vector<64x64xf32> -> vector<64x64xf32>
    %134 = arith.addf %127, %133 : vector<64x64xf32>
    %c2_132 = arith.constant 2 : index
    %c2_133 = arith.constant 2 : index
    %c0_134 = arith.constant 0 : index
    %135 = vector.load %arg18[%c2_132, %c2_133, %c0_134] : memref<10x10x32xf32, #tpu.memory_space<vmem>>, vector<8x8x32xf32>
    %136 = vector.shape_cast %135 : vector<8x8x32xf32> to vector<64x32xf32>
    %137 = arith.truncf %136 : vector<64x32xf32> to vector<64x32xbf16>
    %c8_135 = arith.constant 8 : index
    %c0_136 = arith.constant 0 : index
    %c0_137 = arith.constant 0 : index
    %138 = vector.load %arg5[%c8_135, %c0_136, %c0_137] : memref<9x32x64xbf16, #tpu.memory_space<vmem>>, vector<1x32x64xbf16>
    %139 = vector.shape_cast %138 : vector<1x32x64xbf16> to vector<32x64xbf16>
    %cst_138 = arith.constant dense<0.000000e+00> : vector<64x64xf32>
    %140 = tpu.matmul %137, %139, %cst_138 {dimension_numbers = #tpu.dot_dimension_numbers<[1], [0], [0], [1], [0, 0, 1, 1], [], []>} : vector<64x32xbf16>, vector<32x64xbf16>, vector<64x64xf32> -> vector<64x64xf32>
    %141 = arith.addf %134, %140 : vector<64x64xf32>
    %c0_139 = arith.constant 0 : index
    %c0_140 = arith.constant 0 : index
    %142 = vector.load %arg6[%c0_139, %c0_140] : memref<1x64xf32, #tpu.memory_space<vmem>>, vector<1x64xf32>
    %143 = vector.broadcast %142 : vector<1x64xf32> to vector<64x64xf32>
    %144 = arith.addf %141, %143 : vector<64x64xf32>
    %cst_141 = arith.constant 0.000000e+00 : f32
    %145 = vector.broadcast %cst_141 : f32 to vector<64x64xf32>
    %146 = arith.maximumf %144, %145 : vector<64x64xf32>
    %147 = vector.shape_cast %146 : vector<64x64xf32> to vector<8x8x64xf32>
    %cst_142 = arith.constant 0.000000e+00 : f32
    %148 = vector.broadcast %cst_142 : f32 to vector<10x10x64xf32>
    %c0_143 = arith.constant 0 : index
    %c0_144 = arith.constant 0 : index
    %c0_145 = arith.constant 0 : index
    %149 = vector.load %arg19[%c0_143, %c0_144, %c0_145] : memref<10x10x64xf32, #tpu.memory_space<vmem>>, vector<10x10x64xf32>
    tpu.vector_store %arg19[%c0_143, %c0_144, %c0_145], %148 {strides = array<i32>} : memref<10x10x64xf32, #tpu.memory_space<vmem>>, vector<10x10x64xf32>,
    %c1_146 = arith.constant 1 : index
    %c1_147 = arith.constant 1 : index
    %c0_148 = arith.constant 0 : index
    %150 = vector.load %arg19[%c1_146, %c1_147, %c0_148] : memref<10x10x64xf32, #tpu.memory_space<vmem>>, vector<8x8x64xf32>
    tpu.vector_store %arg19[%c1_146, %c1_147, %c0_148], %147 {strides = array<i32>} : memref<10x10x64xf32, #tpu.memory_space<vmem>>, vector<8x8x64xf32>,
    %cst_149 = arith.constant 0.000000e+00 : f32
    %151 = vector.broadcast %cst_149 : f32 to vector<64x64xf32>
    %c0_150 = arith.constant 0 : index
    %c0_151 = arith.constant 0 : index
    %c0_152 = arith.constant 0 : index
    %152 = vector.load %arg19[%c0_150, %c0_151, %c0_152] : memref<10x10x64xf32, #tpu.memory_space<vmem>>, vector<8x8x64xf32>
    %153 = vector.shape_cast %152 : vector<8x8x64xf32> to vector<64x64xf32>
    %154 = arith.truncf %153 : vector<64x64xf32> to vector<64x64xbf16>
    %c0_153 = arith.constant 0 : index
    %c0_154 = arith.constant 0 : index
    %c0_155 = arith.constant 0 : index
    %155 = vector.load %arg7[%c0_153, %c0_154, %c0_155] : memref<9x64x64xbf16, #tpu.memory_space<vmem>>, vector<1x64x64xbf16>
    %156 = vector.shape_cast %155 : vector<1x64x64xbf16> to vector<64x64xbf16>
    %cst_156 = arith.constant dense<0.000000e+00> : vector<64x64xf32>
    %157 = tpu.matmul %154, %156, %cst_156 {dimension_numbers = #tpu.dot_dimension_numbers<[1], [0], [0], [1], [0, 0, 1, 1], [], []>} : vector<64x64xbf16>, vector<64x64xbf16>, vector<64x64xf32> -> vector<64x64xf32>
    %158 = arith.addf %151, %157 : vector<64x64xf32>
    %c0_157 = arith.constant 0 : index
    %c1_158 = arith.constant 1 : index
    %c0_159 = arith.constant 0 : index
    %159 = vector.load %arg19[%c0_157, %c1_158, %c0_159] : memref<10x10x64xf32, #tpu.memory_space<vmem>>, vector<8x8x64xf32>
    %160 = vector.shape_cast %159 : vector<8x8x64xf32> to vector<64x64xf32>
    %161 = arith.truncf %160 : vector<64x64xf32> to vector<64x64xbf16>
    %c1_160 = arith.constant 1 : index
    %c0_161 = arith.constant 0 : index
    %c0_162 = arith.constant 0 : index
    %162 = vector.load %arg7[%c1_160, %c0_161, %c0_162] : memref<9x64x64xbf16, #tpu.memory_space<vmem>>, vector<1x64x64xbf16>
    %163 = vector.shape_cast %162 : vector<1x64x64xbf16> to vector<64x64xbf16>
    %cst_163 = arith.constant dense<0.000000e+00> : vector<64x64xf32>
    %164 = tpu.matmul %161, %163, %cst_163 {dimension_numbers = #tpu.dot_dimension_numbers<[1], [0], [0], [1], [0, 0, 1, 1], [], []>} : vector<64x64xbf16>, vector<64x64xbf16>, vector<64x64xf32> -> vector<64x64xf32>
    %165 = arith.addf %158, %164 : vector<64x64xf32>
    %c0_164 = arith.constant 0 : index
    %c2_165 = arith.constant 2 : index
    %c0_166 = arith.constant 0 : index
    %166 = vector.load %arg19[%c0_164, %c2_165, %c0_166] : memref<10x10x64xf32, #tpu.memory_space<vmem>>, vector<8x8x64xf32>
    %167 = vector.shape_cast %166 : vector<8x8x64xf32> to vector<64x64xf32>
    %168 = arith.truncf %167 : vector<64x64xf32> to vector<64x64xbf16>
    %c2_167 = arith.constant 2 : index
    %c0_168 = arith.constant 0 : index
    %c0_169 = arith.constant 0 : index
    %169 = vector.load %arg7[%c2_167, %c0_168, %c0_169] : memref<9x64x64xbf16, #tpu.memory_space<vmem>>, vector<1x64x64xbf16>
    %170 = vector.shape_cast %169 : vector<1x64x64xbf16> to vector<64x64xbf16>
    %cst_170 = arith.constant dense<0.000000e+00> : vector<64x64xf32>
    %171 = tpu.matmul %168, %170, %cst_170 {dimension_numbers = #tpu.dot_dimension_numbers<[1], [0], [0], [1], [0, 0, 1, 1], [], []>} : vector<64x64xbf16>, vector<64x64xbf16>, vector<64x64xf32> -> vector<64x64xf32>
    %172 = arith.addf %165, %171 : vector<64x64xf32>
    %c1_171 = arith.constant 1 : index
    %c0_172 = arith.constant 0 : index
    %c0_173 = arith.constant 0 : index
    %173 = vector.load %arg19[%c1_171, %c0_172, %c0_173] : memref<10x10x64xf32, #tpu.memory_space<vmem>>, vector<8x8x64xf32>
    %174 = vector.shape_cast %173 : vector<8x8x64xf32> to vector<64x64xf32>
    %175 = arith.truncf %174 : vector<64x64xf32> to vector<64x64xbf16>
    %c3_174 = arith.constant 3 : index
    %c0_175 = arith.constant 0 : index
    %c0_176 = arith.constant 0 : index
    %176 = vector.load %arg7[%c3_174, %c0_175, %c0_176] : memref<9x64x64xbf16, #tpu.memory_space<vmem>>, vector<1x64x64xbf16>
    %177 = vector.shape_cast %176 : vector<1x64x64xbf16> to vector<64x64xbf16>
    %cst_177 = arith.constant dense<0.000000e+00> : vector<64x64xf32>
    %178 = tpu.matmul %175, %177, %cst_177 {dimension_numbers = #tpu.dot_dimension_numbers<[1], [0], [0], [1], [0, 0, 1, 1], [], []>} : vector<64x64xbf16>, vector<64x64xbf16>, vector<64x64xf32> -> vector<64x64xf32>
    %179 = arith.addf %172, %178 : vector<64x64xf32>
    %c1_178 = arith.constant 1 : index
    %c1_179 = arith.constant 1 : index
    %c0_180 = arith.constant 0 : index
    %180 = vector.load %arg19[%c1_178, %c1_179, %c0_180] : memref<10x10x64xf32, #tpu.memory_space<vmem>>, vector<8x8x64xf32>
    %181 = vector.shape_cast %180 : vector<8x8x64xf32> to vector<64x64xf32>
    %182 = arith.truncf %181 : vector<64x64xf32> to vector<64x64xbf16>
    %c4_181 = arith.constant 4 : index
    %c0_182 = arith.constant 0 : index
    %c0_183 = arith.constant 0 : index
    %183 = vector.load %arg7[%c4_181, %c0_182, %c0_183] : memref<9x64x64xbf16, #tpu.memory_space<vmem>>, vector<1x64x64xbf16>
    %184 = vector.shape_cast %183 : vector<1x64x64xbf16> to vector<64x64xbf16>
    %cst_184 = arith.constant dense<0.000000e+00> : vector<64x64xf32>
    %185 = tpu.matmul %182, %184, %cst_184 {dimension_numbers = #tpu.dot_dimension_numbers<[1], [0], [0], [1], [0, 0, 1, 1], [], []>} : vector<64x64xbf16>, vector<64x64xbf16>, vector<64x64xf32> -> vector<64x64xf32>
    %186 = arith.addf %179, %185 : vector<64x64xf32>
    %c1_185 = arith.constant 1 : index
    %c2_186 = arith.constant 2 : index
    %c0_187 = arith.constant 0 : index
    %187 = vector.load %arg19[%c1_185, %c2_186, %c0_187] : memref<10x10x64xf32, #tpu.memory_space<vmem>>, vector<8x8x64xf32>
    %188 = vector.shape_cast %187 : vector<8x8x64xf32> to vector<64x64xf32>
    %189 = arith.truncf %188 : vector<64x64xf32> to vector<64x64xbf16>
    %c5_188 = arith.constant 5 : index
    %c0_189 = arith.constant 0 : index
    %c0_190 = arith.constant 0 : index
    %190 = vector.load %arg7[%c5_188, %c0_189, %c0_190] : memref<9x64x64xbf16, #tpu.memory_space<vmem>>, vector<1x64x64xbf16>
    %191 = vector.shape_cast %190 : vector<1x64x64xbf16> to vector<64x64xbf16>
    %cst_191 = arith.constant dense<0.000000e+00> : vector<64x64xf32>
    %192 = tpu.matmul %189, %191, %cst_191 {dimension_numbers = #tpu.dot_dimension_numbers<[1], [0], [0], [1], [0, 0, 1, 1], [], []>} : vector<64x64xbf16>, vector<64x64xbf16>, vector<64x64xf32> -> vector<64x64xf32>
    %193 = arith.addf %186, %192 : vector<64x64xf32>
    %c2_192 = arith.constant 2 : index
    %c0_193 = arith.constant 0 : index
    %c0_194 = arith.constant 0 : index
    %194 = vector.load %arg19[%c2_192, %c0_193, %c0_194] : memref<10x10x64xf32, #tpu.memory_space<vmem>>, vector<8x8x64xf32>
    %195 = vector.shape_cast %194 : vector<8x8x64xf32> to vector<64x64xf32>
    %196 = arith.truncf %195 : vector<64x64xf32> to vector<64x64xbf16>
    %c6_195 = arith.constant 6 : index
    %c0_196 = arith.constant 0 : index
    %c0_197 = arith.constant 0 : index
    %197 = vector.load %arg7[%c6_195, %c0_196, %c0_197] : memref<9x64x64xbf16, #tpu.memory_space<vmem>>, vector<1x64x64xbf16>
    %198 = vector.shape_cast %197 : vector<1x64x64xbf16> to vector<64x64xbf16>
    %cst_198 = arith.constant dense<0.000000e+00> : vector<64x64xf32>
    %199 = tpu.matmul %196, %198, %cst_198 {dimension_numbers = #tpu.dot_dimension_numbers<[1], [0], [0], [1], [0, 0, 1, 1], [], []>} : vector<64x64xbf16>, vector<64x64xbf16>, vector<64x64xf32> -> vector<64x64xf32>
    %200 = arith.addf %193, %199 : vector<64x64xf32>
    %c2_199 = arith.constant 2 : index
    %c1_200 = arith.constant 1 : index
    %c0_201 = arith.constant 0 : index
    %201 = vector.load %arg19[%c2_199, %c1_200, %c0_201] : memref<10x10x64xf32, #tpu.memory_space<vmem>>, vector<8x8x64xf32>
    %202 = vector.shape_cast %201 : vector<8x8x64xf32> to vector<64x64xf32>
    %203 = arith.truncf %202 : vector<64x64xf32> to vector<64x64xbf16>
    %c7_202 = arith.constant 7 : index
    %c0_203 = arith.constant 0 : index
    %c0_204 = arith.constant 0 : index
    %204 = vector.load %arg7[%c7_202, %c0_203, %c0_204] : memref<9x64x64xbf16, #tpu.memory_space<vmem>>, vector<1x64x64xbf16>
    %205 = vector.shape_cast %204 : vector<1x64x64xbf16> to vector<64x64xbf16>
    %cst_205 = arith.constant dense<0.000000e+00> : vector<64x64xf32>
    %206 = tpu.matmul %203, %205, %cst_205 {dimension_numbers = #tpu.dot_dimension_numbers<[1], [0], [0], [1], [0, 0, 1, 1], [], []>} : vector<64x64xbf16>, vector<64x64xbf16>, vector<64x64xf32> -> vector<64x64xf32>
    %207 = arith.addf %200, %206 : vector<64x64xf32>
    %c2_206 = arith.constant 2 : index
    %c2_207 = arith.constant 2 : index
    %c0_208 = arith.constant 0 : index
    %208 = vector.load %arg19[%c2_206, %c2_207, %c0_208] : memref<10x10x64xf32, #tpu.memory_space<vmem>>, vector<8x8x64xf32>
    %209 = vector.shape_cast %208 : vector<8x8x64xf32> to vector<64x64xf32>
    %210 = arith.truncf %209 : vector<64x64xf32> to vector<64x64xbf16>
    %c8_209 = arith.constant 8 : index
    %c0_210 = arith.constant 0 : index
    %c0_211 = arith.constant 0 : index
    %211 = vector.load %arg7[%c8_209, %c0_210, %c0_211] : memref<9x64x64xbf16, #tpu.memory_space<vmem>>, vector<1x64x64xbf16>
    %212 = vector.shape_cast %211 : vector<1x64x64xbf16> to vector<64x64xbf16>
    %cst_212 = arith.constant dense<0.000000e+00> : vector<64x64xf32>
    %213 = tpu.matmul %210, %212, %cst_212 {dimension_numbers = #tpu.dot_dimension_numbers<[1], [0], [0], [1], [0, 0, 1, 1], [], []>} : vector<64x64xbf16>, vector<64x64xbf16>, vector<64x64xf32> -> vector<64x64xf32>
    %214 = arith.addf %207, %213 : vector<64x64xf32>
    %c0_213 = arith.constant 0 : index
    %c0_214 = arith.constant 0 : index
    %215 = vector.load %arg8[%c0_213, %c0_214] : memref<1x64xf32, #tpu.memory_space<vmem>>, vector<1x64xf32>
    %216 = vector.broadcast %215 : vector<1x64xf32> to vector<64x64xf32>
    %217 = arith.addf %214, %216 : vector<64x64xf32>
    %cst_215 = arith.constant 0.000000e+00 : f32
    %218 = vector.broadcast %cst_215 : f32 to vector<64x64xf32>
    %219 = arith.maximumf %217, %218 : vector<64x64xf32>
    %c0_216 = arith.constant 0 : index
    %c0_217 = arith.constant 0 : index
    %220 = vector.load %arg20[%c0_216, %c0_217] : memref<64x64xf32, #tpu.memory_space<vmem>>, vector<64x64xf32>
    tpu.vector_store %arg20[%c0_216, %c0_217], %219 {strides = array<i32>} : memref<64x64xf32, #tpu.memory_space<vmem>>, vector<64x64xf32>,
    %c0_218 = arith.constant 0 : index
    %c0_219 = arith.constant 0 : index
    %c0_220 = arith.constant 0 : index
    %221 = vector.load %arg2[%c0_218, %c0_219, %c0_220] : memref<1x1x8xf32, #tpu.memory_space<vmem>>, vector<1x1x8xf32>
    %222 = vector.shape_cast %221 : vector<1x1x8xf32> to vector<1x8xf32>
    %223 = arith.truncf %222 : vector<1x8xf32> to vector<1x8xbf16>
    %c0_221 = arith.constant 0 : index
    %c0_222 = arith.constant 0 : index
    %224 = vector.load %arg9[%c0_221, %c0_222] : memref<8x64xbf16, #tpu.memory_space<vmem>>, vector<8x64xbf16>
    %cst_223 = arith.constant dense<0.000000e+00> : vector<1x64xf32>
    %225 = tpu.matmul %223, %224, %cst_223 {dimension_numbers = #tpu.dot_dimension_numbers<[1], [0], [0], [1], [0, 0, 1, 1], [], []>} : vector<1x8xbf16>, vector<8x64xbf16>, vector<1x64xf32> -> vector<1x64xf32>
    %c0_224 = arith.constant 0 : index
    %c0_225 = arith.constant 0 : index
    %226 = vector.load %arg10[%c0_224, %c0_225] : memref<1x64xf32, #tpu.memory_space<vmem>>, vector<1x64xf32>
    %227 = arith.addf %225, %226 : vector<1x64xf32>
    %cst_226 = arith.constant 0.000000e+00 : f32
    %228 = vector.broadcast %cst_226 : f32 to vector<1x64xf32>
    %229 = arith.maximumf %227, %228 : vector<1x64xf32>
    %230 = arith.truncf %229 : vector<1x64xf32> to vector<1x64xbf16>
    %c0_227 = arith.constant 0 : index
    %c0_228 = arith.constant 0 : index
    %231 = vector.load %arg12[%c0_227, %c0_228] : memref<64x128xbf16, #tpu.memory_space<vmem>>, vector<64x128xbf16>
    %cst_229 = arith.constant dense<0.000000e+00> : vector<1x128xf32>
    %232 = tpu.matmul %230, %231, %cst_229 {dimension_numbers = #tpu.dot_dimension_numbers<[1], [0], [0], [1], [0, 0, 1, 1], [], []>} : vector<1x64xbf16>, vector<64x128xbf16>, vector<1x128xf32> -> vector<1x128xf32>
    %c0_230 = arith.constant 0 : index
    %c0_231 = arith.constant 0 : index
    %233 = vector.load %arg20[%c0_230, %c0_231] : memref<64x64xf32, #tpu.memory_space<vmem>>, vector<1x64xf32>
    %234 = arith.truncf %233 : vector<1x64xf32> to vector<1x64xbf16>
    %c0_232 = arith.constant 0 : index
    %c0_233 = arith.constant 0 : index
    %235 = vector.load %arg11[%c0_232, %c0_233] : memref<4096x128xbf16, #tpu.memory_space<vmem>>, vector<64x128xbf16>
    %cst_234 = arith.constant dense<0.000000e+00> : vector<1x128xf32>
    %236 = tpu.matmul %234, %235, %cst_234 {dimension_numbers = #tpu.dot_dimension_numbers<[1], [0], [0], [1], [0, 0, 1, 1], [], []>} : vector<1x64xbf16>, vector<64x128xbf16>, vector<1x128xf32> -> vector<1x128xf32>
    %237 = arith.addf %232, %236 : vector<1x128xf32>
    %c1_235 = arith.constant 1 : index
    %c0_236 = arith.constant 0 : index
    %238 = vector.load %arg20[%c1_235, %c0_236] : memref<64x64xf32, #tpu.memory_space<vmem>>, vector<1x64xf32>
    %239 = arith.truncf %238 : vector<1x64xf32> to vector<1x64xbf16>
    %c64 = arith.constant 64 : index
    %c0_237 = arith.constant 0 : index
    %240 = vector.load %arg11[%c64, %c0_237] : memref<4096x128xbf16, #tpu.memory_space<vmem>>, vector<64x128xbf16>
    %cst_238 = arith.constant dense<0.000000e+00> : vector<1x128xf32>
    %241 = tpu.matmul %239, %240, %cst_238 {dimension_numbers = #tpu.dot_dimension_numbers<[1], [0], [0], [1], [0, 0, 1, 1], [], []>} : vector<1x64xbf16>, vector<64x128xbf16>, vector<1x128xf32> -> vector<1x128xf32>
    %242 = arith.addf %237, %241 : vector<1x128xf32>
    %c2_239 = arith.constant 2 : index
    %c0_240 = arith.constant 0 : index
    %243 = vector.load %arg20[%c2_239, %c0_240] : memref<64x64xf32, #tpu.memory_space<vmem>>, vector<1x64xf32>
    %244 = arith.truncf %243 : vector<1x64xf32> to vector<1x64xbf16>
    %c128 = arith.constant 128 : index
    %c0_241 = arith.constant 0 : index
    %245 = vector.load %arg11[%c128, %c0_241] : memref<4096x128xbf16, #tpu.memory_space<vmem>>, vector<64x128xbf16>
    %cst_242 = arith.constant dense<0.000000e+00> : vector<1x128xf32>
    %246 = tpu.matmul %244, %245, %cst_242 {dimension_numbers = #tpu.dot_dimension_numbers<[1], [0], [0], [1], [0, 0, 1, 1], [], []>} : vector<1x64xbf16>, vector<64x128xbf16>, vector<1x128xf32> -> vector<1x128xf32>
    %247 = arith.addf %242, %246 : vector<1x128xf32>
    %c3_243 = arith.constant 3 : index
    %c0_244 = arith.constant 0 : index
    %248 = vector.load %arg20[%c3_243, %c0_244] : memref<64x64xf32, #tpu.memory_space<vmem>>, vector<1x64xf32>
    %249 = arith.truncf %248 : vector<1x64xf32> to vector<1x64xbf16>
    %c192 = arith.constant 192 : index
    %c0_245 = arith.constant 0 : index
    %250 = vector.load %arg11[%c192, %c0_245] : memref<4096x128xbf16, #tpu.memory_space<vmem>>, vector<64x128xbf16>
    %cst_246 = arith.constant dense<0.000000e+00> : vector<1x128xf32>
    %251 = tpu.matmul %249, %250, %cst_246 {dimension_numbers = #tpu.dot_dimension_numbers<[1], [0], [0], [1], [0, 0, 1, 1], [], []>} : vector<1x64xbf16>, vector<64x128xbf16>, vector<1x128xf32> -> vector<1x128xf32>
    %252 = arith.addf %247, %251 : vector<1x128xf32>
    %c4_247 = arith.constant 4 : index
    %c0_248 = arith.constant 0 : index
    %253 = vector.load %arg20[%c4_247, %c0_248] : memref<64x64xf32, #tpu.memory_space<vmem>>, vector<1x64xf32>
    %254 = arith.truncf %253 : vector<1x64xf32> to vector<1x64xbf16>
    %c256 = arith.constant 256 : index
    %c0_249 = arith.constant 0 : index
    %255 = vector.load %arg11[%c256, %c0_249] : memref<4096x128xbf16, #tpu.memory_space<vmem>>, vector<64x128xbf16>
    %cst_250 = arith.constant dense<0.000000e+00> : vector<1x128xf32>
    %256 = tpu.matmul %254, %255, %cst_250 {dimension_numbers = #tpu.dot_dimension_numbers<[1], [0], [0], [1], [0, 0, 1, 1], [], []>} : vector<1x64xbf16>, vector<64x128xbf16>, vector<1x128xf32> -> vector<1x128xf32>
    %257 = arith.addf %252, %256 : vector<1x128xf32>
    %c5_251 = arith.constant 5 : index
    %c0_252 = arith.constant 0 : index
    %258 = vector.load %arg20[%c5_251, %c0_252] : memref<64x64xf32, #tpu.memory_space<vmem>>, vector<1x64xf32>
    %259 = arith.truncf %258 : vector<1x64xf32> to vector<1x64xbf16>
    %c320 = arith.constant 320 : index
    %c0_253 = arith.constant 0 : index
    %260 = vector.load %arg11[%c320, %c0_253] : memref<4096x128xbf16, #tpu.memory_space<vmem>>, vector<64x128xbf16>
    %cst_254 = arith.constant dense<0.000000e+00> : vector<1x128xf32>
    %261 = tpu.matmul %259, %260, %cst_254 {dimension_numbers = #tpu.dot_dimension_numbers<[1], [0], [0], [1], [0, 0, 1, 1], [], []>} : vector<1x64xbf16>, vector<64x128xbf16>, vector<1x128xf32> -> vector<1x128xf32>
    %262 = arith.addf %257, %261 : vector<1x128xf32>
    %c6_255 = arith.constant 6 : index
    %c0_256 = arith.constant 0 : index
    %263 = vector.load %arg20[%c6_255, %c0_256] : memref<64x64xf32, #tpu.memory_space<vmem>>, vector<1x64xf32>
    %264 = arith.truncf %263 : vector<1x64xf32> to vector<1x64xbf16>
    %c384 = arith.constant 384 : index
    %c0_257 = arith.constant 0 : index
    %265 = vector.load %arg11[%c384, %c0_257] : memref<4096x128xbf16, #tpu.memory_space<vmem>>, vector<64x128xbf16>
    %cst_258 = arith.constant dense<0.000000e+00> : vector<1x128xf32>
    %266 = tpu.matmul %264, %265, %cst_258 {dimension_numbers = #tpu.dot_dimension_numbers<[1], [0], [0], [1], [0, 0, 1, 1], [], []>} : vector<1x64xbf16>, vector<64x128xbf16>, vector<1x128xf32> -> vector<1x128xf32>
    %267 = arith.addf %262, %266 : vector<1x128xf32>
    %c7_259 = arith.constant 7 : index
    %c0_260 = arith.constant 0 : index
    %268 = vector.load %arg20[%c7_259, %c0_260] : memref<64x64xf32, #tpu.memory_space<vmem>>, vector<1x64xf32>
    %269 = arith.truncf %268 : vector<1x64xf32> to vector<1x64xbf16>
    %c448 = arith.constant 448 : index
    %c0_261 = arith.constant 0 : index
    %270 = vector.load %arg11[%c448, %c0_261] : memref<4096x128xbf16, #tpu.memory_space<vmem>>, vector<64x128xbf16>
    %cst_262 = arith.constant dense<0.000000e+00> : vector<1x128xf32>
    %271 = tpu.matmul %269, %270, %cst_262 {dimension_numbers = #tpu.dot_dimension_numbers<[1], [0], [0], [1], [0, 0, 1, 1], [], []>} : vector<1x64xbf16>, vector<64x128xbf16>, vector<1x128xf32> -> vector<1x128xf32>
    %272 = arith.addf %267, %271 : vector<1x128xf32>
    %c8_263 = arith.constant 8 : index
    %c0_264 = arith.constant 0 : index
    %273 = vector.load %arg20[%c8_263, %c0_264] : memref<64x64xf32, #tpu.memory_space<vmem>>, vector<1x64xf32>
    %274 = arith.truncf %273 : vector<1x64xf32> to vector<1x64xbf16>
    %c512 = arith.constant 512 : index
    %c0_265 = arith.constant 0 : index
    %275 = vector.load %arg11[%c512, %c0_265] : memref<4096x128xbf16, #tpu.memory_space<vmem>>, vector<64x128xbf16>
    %cst_266 = arith.constant dense<0.000000e+00> : vector<1x128xf32>
    %276 = tpu.matmul %274, %275, %cst_266 {dimension_numbers = #tpu.dot_dimension_numbers<[1], [0], [0], [1], [0, 0, 1, 1], [], []>} : vector<1x64xbf16>, vector<64x128xbf16>, vector<1x128xf32> -> vector<1x128xf32>
    %277 = arith.addf %272, %276 : vector<1x128xf32>
    %c9 = arith.constant 9 : index
    %c0_267 = arith.constant 0 : index
    %278 = vector.load %arg20[%c9, %c0_267] : memref<64x64xf32, #tpu.memory_space<vmem>>, vector<1x64xf32>
    %279 = arith.truncf %278 : vector<1x64xf32> to vector<1x64xbf16>
    %c576 = arith.constant 576 : index
    %c0_268 = arith.constant 0 : index
    %280 = vector.load %arg11[%c576, %c0_268] : memref<4096x128xbf16, #tpu.memory_space<vmem>>, vector<64x128xbf16>
    %cst_269 = arith.constant dense<0.000000e+00> : vector<1x128xf32>
    %281 = tpu.matmul %279, %280, %cst_269 {dimension_numbers = #tpu.dot_dimension_numbers<[1], [0], [0], [1], [0, 0, 1, 1], [], []>} : vector<1x64xbf16>, vector<64x128xbf16>, vector<1x128xf32> -> vector<1x128xf32>
    %282 = arith.addf %277, %281 : vector<1x128xf32>
    %c10 = arith.constant 10 : index
    %c0_270 = arith.constant 0 : index
    %283 = vector.load %arg20[%c10, %c0_270] : memref<64x64xf32, #tpu.memory_space<vmem>>, vector<1x64xf32>
    %284 = arith.truncf %283 : vector<1x64xf32> to vector<1x64xbf16>
    %c640 = arith.constant 640 : index
    %c0_271 = arith.constant 0 : index
    %285 = vector.load %arg11[%c640, %c0_271] : memref<4096x128xbf16, #tpu.memory_space<vmem>>, vector<64x128xbf16>
    %cst_272 = arith.constant dense<0.000000e+00> : vector<1x128xf32>
    %286 = tpu.matmul %284, %285, %cst_272 {dimension_numbers = #tpu.dot_dimension_numbers<[1], [0], [0], [1], [0, 0, 1, 1], [], []>} : vector<1x64xbf16>, vector<64x128xbf16>, vector<1x128xf32> -> vector<1x128xf32>
    %287 = arith.addf %282, %286 : vector<1x128xf32>
    %c11 = arith.constant 11 : index
    %c0_273 = arith.constant 0 : index
    %288 = vector.load %arg20[%c11, %c0_273] : memref<64x64xf32, #tpu.memory_space<vmem>>, vector<1x64xf32>
    %289 = arith.truncf %288 : vector<1x64xf32> to vector<1x64xbf16>
    %c704 = arith.constant 704 : index
    %c0_274 = arith.constant 0 : index
    %290 = vector.load %arg11[%c704, %c0_274] : memref<4096x128xbf16, #tpu.memory_space<vmem>>, vector<64x128xbf16>
    %cst_275 = arith.constant dense<0.000000e+00> : vector<1x128xf32>
    %291 = tpu.matmul %289, %290, %cst_275 {dimension_numbers = #tpu.dot_dimension_numbers<[1], [0], [0], [1], [0, 0, 1, 1], [], []>} : vector<1x64xbf16>, vector<64x128xbf16>, vector<1x128xf32> -> vector<1x128xf32>
    %292 = arith.addf %287, %291 : vector<1x128xf32>
    %c12 = arith.constant 12 : index
    %c0_276 = arith.constant 0 : index
    %293 = vector.load %arg20[%c12, %c0_276] : memref<64x64xf32, #tpu.memory_space<vmem>>, vector<1x64xf32>
    %294 = arith.truncf %293 : vector<1x64xf32> to vector<1x64xbf16>
    %c768 = arith.constant 768 : index
    %c0_277 = arith.constant 0 : index
    %295 = vector.load %arg11[%c768, %c0_277] : memref<4096x128xbf16, #tpu.memory_space<vmem>>, vector<64x128xbf16>
    %cst_278 = arith.constant dense<0.000000e+00> : vector<1x128xf32>
    %296 = tpu.matmul %294, %295, %cst_278 {dimension_numbers = #tpu.dot_dimension_numbers<[1], [0], [0], [1], [0, 0, 1, 1], [], []>} : vector<1x64xbf16>, vector<64x128xbf16>, vector<1x128xf32> -> vector<1x128xf32>
    %297 = arith.addf %292, %296 : vector<1x128xf32>
    %c13 = arith.constant 13 : index
    %c0_279 = arith.constant 0 : index
    %298 = vector.load %arg20[%c13, %c0_279] : memref<64x64xf32, #tpu.memory_space<vmem>>, vector<1x64xf32>
    %299 = arith.truncf %298 : vector<1x64xf32> to vector<1x64xbf16>
    %c832 = arith.constant 832 : index
    %c0_280 = arith.constant 0 : index
    %300 = vector.load %arg11[%c832, %c0_280] : memref<4096x128xbf16, #tpu.memory_space<vmem>>, vector<64x128xbf16>
    %cst_281 = arith.constant dense<0.000000e+00> : vector<1x128xf32>
    %301 = tpu.matmul %299, %300, %cst_281 {dimension_numbers = #tpu.dot_dimension_numbers<[1], [0], [0], [1], [0, 0, 1, 1], [], []>} : vector<1x64xbf16>, vector<64x128xbf16>, vector<1x128xf32> -> vector<1x128xf32>
    %302 = arith.addf %297, %301 : vector<1x128xf32>
    %c14 = arith.constant 14 : index
    %c0_282 = arith.constant 0 : index
    %303 = vector.load %arg20[%c14, %c0_282] : memref<64x64xf32, #tpu.memory_space<vmem>>, vector<1x64xf32>
    %304 = arith.truncf %303 : vector<1x64xf32> to vector<1x64xbf16>
    %c896 = arith.constant 896 : index
    %c0_283 = arith.constant 0 : index
    %305 = vector.load %arg11[%c896, %c0_283] : memref<4096x128xbf16, #tpu.memory_space<vmem>>, vector<64x128xbf16>
    %cst_284 = arith.constant dense<0.000000e+00> : vector<1x128xf32>
    %306 = tpu.matmul %304, %305, %cst_284 {dimension_numbers = #tpu.dot_dimension_numbers<[1], [0], [0], [1], [0, 0, 1, 1], [], []>} : vector<1x64xbf16>, vector<64x128xbf16>, vector<1x128xf32> -> vector<1x128xf32>
    %307 = arith.addf %302, %306 : vector<1x128xf32>
    %c15 = arith.constant 15 : index
    %c0_285 = arith.constant 0 : index
    %308 = vector.load %arg20[%c15, %c0_285] : memref<64x64xf32, #tpu.memory_space<vmem>>, vector<1x64xf32>
    %309 = arith.truncf %308 : vector<1x64xf32> to vector<1x64xbf16>
    %c960 = arith.constant 960 : index
    %c0_286 = arith.constant 0 : index
    %310 = vector.load %arg11[%c960, %c0_286] : memref<4096x128xbf16, #tpu.memory_space<vmem>>, vector<64x128xbf16>
    %cst_287 = arith.constant dense<0.000000e+00> : vector<1x128xf32>
    %311 = tpu.matmul %309, %310, %cst_287 {dimension_numbers = #tpu.dot_dimension_numbers<[1], [0], [0], [1], [0, 0, 1, 1], [], []>} : vector<1x64xbf16>, vector<64x128xbf16>, vector<1x128xf32> -> vector<1x128xf32>
    %312 = arith.addf %307, %311 : vector<1x128xf32>
    %c16 = arith.constant 16 : index
    %c0_288 = arith.constant 0 : index
    %313 = vector.load %arg20[%c16, %c0_288] : memref<64x64xf32, #tpu.memory_space<vmem>>, vector<1x64xf32>
    %314 = arith.truncf %313 : vector<1x64xf32> to vector<1x64xbf16>
    %c1024 = arith.constant 1024 : index
    %c0_289 = arith.constant 0 : index
    %315 = vector.load %arg11[%c1024, %c0_289] : memref<4096x128xbf16, #tpu.memory_space<vmem>>, vector<64x128xbf16>
    %cst_290 = arith.constant dense<0.000000e+00> : vector<1x128xf32>
    %316 = tpu.matmul %314, %315, %cst_290 {dimension_numbers = #tpu.dot_dimension_numbers<[1], [0], [0], [1], [0, 0, 1, 1], [], []>} : vector<1x64xbf16>, vector<64x128xbf16>, vector<1x128xf32> -> vector<1x128xf32>
    %317 = arith.addf %312, %316 : vector<1x128xf32>
    %c17 = arith.constant 17 : index
    %c0_291 = arith.constant 0 : index
    %318 = vector.load %arg20[%c17, %c0_291] : memref<64x64xf32, #tpu.memory_space<vmem>>, vector<1x64xf32>
    %319 = arith.truncf %318 : vector<1x64xf32> to vector<1x64xbf16>
    %c1088 = arith.constant 1088 : index
    %c0_292 = arith.constant 0 : index
    %320 = vector.load %arg11[%c1088, %c0_292] : memref<4096x128xbf16, #tpu.memory_space<vmem>>, vector<64x128xbf16>
    %cst_293 = arith.constant dense<0.000000e+00> : vector<1x128xf32>
    %321 = tpu.matmul %319, %320, %cst_293 {dimension_numbers = #tpu.dot_dimension_numbers<[1], [0], [0], [1], [0, 0, 1, 1], [], []>} : vector<1x64xbf16>, vector<64x128xbf16>, vector<1x128xf32> -> vector<1x128xf32>
    %322 = arith.addf %317, %321 : vector<1x128xf32>
    %c18 = arith.constant 18 : index
    %c0_294 = arith.constant 0 : index
    %323 = vector.load %arg20[%c18, %c0_294] : memref<64x64xf32, #tpu.memory_space<vmem>>, vector<1x64xf32>
    %324 = arith.truncf %323 : vector<1x64xf32> to vector<1x64xbf16>
    %c1152 = arith.constant 1152 : index
    %c0_295 = arith.constant 0 : index
    %325 = vector.load %arg11[%c1152, %c0_295] : memref<4096x128xbf16, #tpu.memory_space<vmem>>, vector<64x128xbf16>
    %cst_296 = arith.constant dense<0.000000e+00> : vector<1x128xf32>
    %326 = tpu.matmul %324, %325, %cst_296 {dimension_numbers = #tpu.dot_dimension_numbers<[1], [0], [0], [1], [0, 0, 1, 1], [], []>} : vector<1x64xbf16>, vector<64x128xbf16>, vector<1x128xf32> -> vector<1x128xf32>
    %327 = arith.addf %322, %326 : vector<1x128xf32>
    %c19 = arith.constant 19 : index
    %c0_297 = arith.constant 0 : index
    %328 = vector.load %arg20[%c19, %c0_297] : memref<64x64xf32, #tpu.memory_space<vmem>>, vector<1x64xf32>
    %329 = arith.truncf %328 : vector<1x64xf32> to vector<1x64xbf16>
    %c1216 = arith.constant 1216 : index
    %c0_298 = arith.constant 0 : index
    %330 = vector.load %arg11[%c1216, %c0_298] : memref<4096x128xbf16, #tpu.memory_space<vmem>>, vector<64x128xbf16>
    %cst_299 = arith.constant dense<0.000000e+00> : vector<1x128xf32>
    %331 = tpu.matmul %329, %330, %cst_299 {dimension_numbers = #tpu.dot_dimension_numbers<[1], [0], [0], [1], [0, 0, 1, 1], [], []>} : vector<1x64xbf16>, vector<64x128xbf16>, vector<1x128xf32> -> vector<1x128xf32>
    %332 = arith.addf %327, %331 : vector<1x128xf32>
    %c20 = arith.constant 20 : index
    %c0_300 = arith.constant 0 : index
    %333 = vector.load %arg20[%c20, %c0_300] : memref<64x64xf32, #tpu.memory_space<vmem>>, vector<1x64xf32>
    %334 = arith.truncf %333 : vector<1x64xf32> to vector<1x64xbf16>
    %c1280 = arith.constant 1280 : index
    %c0_301 = arith.constant 0 : index
    %335 = vector.load %arg11[%c1280, %c0_301] : memref<4096x128xbf16, #tpu.memory_space<vmem>>, vector<64x128xbf16>
    %cst_302 = arith.constant dense<0.000000e+00> : vector<1x128xf32>
    %336 = tpu.matmul %334, %335, %cst_302 {dimension_numbers = #tpu.dot_dimension_numbers<[1], [0], [0], [1], [0, 0, 1, 1], [], []>} : vector<1x64xbf16>, vector<64x128xbf16>, vector<1x128xf32> -> vector<1x128xf32>
    %337 = arith.addf %332, %336 : vector<1x128xf32>
    %c21 = arith.constant 21 : index
    %c0_303 = arith.constant 0 : index
    %338 = vector.load %arg20[%c21, %c0_303] : memref<64x64xf32, #tpu.memory_space<vmem>>, vector<1x64xf32>
    %339 = arith.truncf %338 : vector<1x64xf32> to vector<1x64xbf16>
    %c1344 = arith.constant 1344 : index
    %c0_304 = arith.constant 0 : index
    %340 = vector.load %arg11[%c1344, %c0_304] : memref<4096x128xbf16, #tpu.memory_space<vmem>>, vector<64x128xbf16>
    %cst_305 = arith.constant dense<0.000000e+00> : vector<1x128xf32>
    %341 = tpu.matmul %339, %340, %cst_305 {dimension_numbers = #tpu.dot_dimension_numbers<[1], [0], [0], [1], [0, 0, 1, 1], [], []>} : vector<1x64xbf16>, vector<64x128xbf16>, vector<1x128xf32> -> vector<1x128xf32>
    %342 = arith.addf %337, %341 : vector<1x128xf32>
    %c22 = arith.constant 22 : index
    %c0_306 = arith.constant 0 : index
    %343 = vector.load %arg20[%c22, %c0_306] : memref<64x64xf32, #tpu.memory_space<vmem>>, vector<1x64xf32>
    %344 = arith.truncf %343 : vector<1x64xf32> to vector<1x64xbf16>
    %c1408 = arith.constant 1408 : index
    %c0_307 = arith.constant 0 : index
    %345 = vector.load %arg11[%c1408, %c0_307] : memref<4096x128xbf16, #tpu.memory_space<vmem>>, vector<64x128xbf16>
    %cst_308 = arith.constant dense<0.000000e+00> : vector<1x128xf32>
    %346 = tpu.matmul %344, %345, %cst_308 {dimension_numbers = #tpu.dot_dimension_numbers<[1], [0], [0], [1], [0, 0, 1, 1], [], []>} : vector<1x64xbf16>, vector<64x128xbf16>, vector<1x128xf32> -> vector<1x128xf32>
    %347 = arith.addf %342, %346 : vector<1x128xf32>
    %c23 = arith.constant 23 : index
    %c0_309 = arith.constant 0 : index
    %348 = vector.load %arg20[%c23, %c0_309] : memref<64x64xf32, #tpu.memory_space<vmem>>, vector<1x64xf32>
    %349 = arith.truncf %348 : vector<1x64xf32> to vector<1x64xbf16>
    %c1472 = arith.constant 1472 : index
    %c0_310 = arith.constant 0 : index
    %350 = vector.load %arg11[%c1472, %c0_310] : memref<4096x128xbf16, #tpu.memory_space<vmem>>, vector<64x128xbf16>
    %cst_311 = arith.constant dense<0.000000e+00> : vector<1x128xf32>
    %351 = tpu.matmul %349, %350, %cst_311 {dimension_numbers = #tpu.dot_dimension_numbers<[1], [0], [0], [1], [0, 0, 1, 1], [], []>} : vector<1x64xbf16>, vector<64x128xbf16>, vector<1x128xf32> -> vector<1x128xf32>
    %352 = arith.addf %347, %351 : vector<1x128xf32>
    %c24 = arith.constant 24 : index
    %c0_312 = arith.constant 0 : index
    %353 = vector.load %arg20[%c24, %c0_312] : memref<64x64xf32, #tpu.memory_space<vmem>>, vector<1x64xf32>
    %354 = arith.truncf %353 : vector<1x64xf32> to vector<1x64xbf16>
    %c1536 = arith.constant 1536 : index
    %c0_313 = arith.constant 0 : index
    %355 = vector.load %arg11[%c1536, %c0_313] : memref<4096x128xbf16, #tpu.memory_space<vmem>>, vector<64x128xbf16>
    %cst_314 = arith.constant dense<0.000000e+00> : vector<1x128xf32>
    %356 = tpu.matmul %354, %355, %cst_314 {dimension_numbers = #tpu.dot_dimension_numbers<[1], [0], [0], [1], [0, 0, 1, 1], [], []>} : vector<1x64xbf16>, vector<64x128xbf16>, vector<1x128xf32> -> vector<1x128xf32>
    %357 = arith.addf %352, %356 : vector<1x128xf32>
    %c25 = arith.constant 25 : index
    %c0_315 = arith.constant 0 : index
    %358 = vector.load %arg20[%c25, %c0_315] : memref<64x64xf32, #tpu.memory_space<vmem>>, vector<1x64xf32>
    %359 = arith.truncf %358 : vector<1x64xf32> to vector<1x64xbf16>
    %c1600 = arith.constant 1600 : index
    %c0_316 = arith.constant 0 : index
    %360 = vector.load %arg11[%c1600, %c0_316] : memref<4096x128xbf16, #tpu.memory_space<vmem>>, vector<64x128xbf16>
    %cst_317 = arith.constant dense<0.000000e+00> : vector<1x128xf32>
    %361 = tpu.matmul %359, %360, %cst_317 {dimension_numbers = #tpu.dot_dimension_numbers<[1], [0], [0], [1], [0, 0, 1, 1], [], []>} : vector<1x64xbf16>, vector<64x128xbf16>, vector<1x128xf32> -> vector<1x128xf32>
    %362 = arith.addf %357, %361 : vector<1x128xf32>
    %c26 = arith.constant 26 : index
    %c0_318 = arith.constant 0 : index
    %363 = vector.load %arg20[%c26, %c0_318] : memref<64x64xf32, #tpu.memory_space<vmem>>, vector<1x64xf32>
    %364 = arith.truncf %363 : vector<1x64xf32> to vector<1x64xbf16>
    %c1664 = arith.constant 1664 : index
    %c0_319 = arith.constant 0 : index
    %365 = vector.load %arg11[%c1664, %c0_319] : memref<4096x128xbf16, #tpu.memory_space<vmem>>, vector<64x128xbf16>
    %cst_320 = arith.constant dense<0.000000e+00> : vector<1x128xf32>
    %366 = tpu.matmul %364, %365, %cst_320 {dimension_numbers = #tpu.dot_dimension_numbers<[1], [0], [0], [1], [0, 0, 1, 1], [], []>} : vector<1x64xbf16>, vector<64x128xbf16>, vector<1x128xf32> -> vector<1x128xf32>
    %367 = arith.addf %362, %366 : vector<1x128xf32>
    %c27 = arith.constant 27 : index
    %c0_321 = arith.constant 0 : index
    %368 = vector.load %arg20[%c27, %c0_321] : memref<64x64xf32, #tpu.memory_space<vmem>>, vector<1x64xf32>
    %369 = arith.truncf %368 : vector<1x64xf32> to vector<1x64xbf16>
    %c1728 = arith.constant 1728 : index
    %c0_322 = arith.constant 0 : index
    %370 = vector.load %arg11[%c1728, %c0_322] : memref<4096x128xbf16, #tpu.memory_space<vmem>>, vector<64x128xbf16>
    %cst_323 = arith.constant dense<0.000000e+00> : vector<1x128xf32>
    %371 = tpu.matmul %369, %370, %cst_323 {dimension_numbers = #tpu.dot_dimension_numbers<[1], [0], [0], [1], [0, 0, 1, 1], [], []>} : vector<1x64xbf16>, vector<64x128xbf16>, vector<1x128xf32> -> vector<1x128xf32>
    %372 = arith.addf %367, %371 : vector<1x128xf32>
    %c28 = arith.constant 28 : index
    %c0_324 = arith.constant 0 : index
    %373 = vector.load %arg20[%c28, %c0_324] : memref<64x64xf32, #tpu.memory_space<vmem>>, vector<1x64xf32>
    %374 = arith.truncf %373 : vector<1x64xf32> to vector<1x64xbf16>
    %c1792 = arith.constant 1792 : index
    %c0_325 = arith.constant 0 : index
    %375 = vector.load %arg11[%c1792, %c0_325] : memref<4096x128xbf16, #tpu.memory_space<vmem>>, vector<64x128xbf16>
    %cst_326 = arith.constant dense<0.000000e+00> : vector<1x128xf32>
    %376 = tpu.matmul %374, %375, %cst_326 {dimension_numbers = #tpu.dot_dimension_numbers<[1], [0], [0], [1], [0, 0, 1, 1], [], []>} : vector<1x64xbf16>, vector<64x128xbf16>, vector<1x128xf32> -> vector<1x128xf32>
    %377 = arith.addf %372, %376 : vector<1x128xf32>
    %c29 = arith.constant 29 : index
    %c0_327 = arith.constant 0 : index
    %378 = vector.load %arg20[%c29, %c0_327] : memref<64x64xf32, #tpu.memory_space<vmem>>, vector<1x64xf32>
    %379 = arith.truncf %378 : vector<1x64xf32> to vector<1x64xbf16>
    %c1856 = arith.constant 1856 : index
    %c0_328 = arith.constant 0 : index
    %380 = vector.load %arg11[%c1856, %c0_328] : memref<4096x128xbf16, #tpu.memory_space<vmem>>, vector<64x128xbf16>
    %cst_329 = arith.constant dense<0.000000e+00> : vector<1x128xf32>
    %381 = tpu.matmul %379, %380, %cst_329 {dimension_numbers = #tpu.dot_dimension_numbers<[1], [0], [0], [1], [0, 0, 1, 1], [], []>} : vector<1x64xbf16>, vector<64x128xbf16>, vector<1x128xf32> -> vector<1x128xf32>
    %382 = arith.addf %377, %381 : vector<1x128xf32>
    %c30 = arith.constant 30 : index
    %c0_330 = arith.constant 0 : index
    %383 = vector.load %arg20[%c30, %c0_330] : memref<64x64xf32, #tpu.memory_space<vmem>>, vector<1x64xf32>
    %384 = arith.truncf %383 : vector<1x64xf32> to vector<1x64xbf16>
    %c1920 = arith.constant 1920 : index
    %c0_331 = arith.constant 0 : index
    %385 = vector.load %arg11[%c1920, %c0_331] : memref<4096x128xbf16, #tpu.memory_space<vmem>>, vector<64x128xbf16>
    %cst_332 = arith.constant dense<0.000000e+00> : vector<1x128xf32>
    %386 = tpu.matmul %384, %385, %cst_332 {dimension_numbers = #tpu.dot_dimension_numbers<[1], [0], [0], [1], [0, 0, 1, 1], [], []>} : vector<1x64xbf16>, vector<64x128xbf16>, vector<1x128xf32> -> vector<1x128xf32>
    %387 = arith.addf %382, %386 : vector<1x128xf32>
    %c31 = arith.constant 31 : index
    %c0_333 = arith.constant 0 : index
    %388 = vector.load %arg20[%c31, %c0_333] : memref<64x64xf32, #tpu.memory_space<vmem>>, vector<1x64xf32>
    %389 = arith.truncf %388 : vector<1x64xf32> to vector<1x64xbf16>
    %c1984 = arith.constant 1984 : index
    %c0_334 = arith.constant 0 : index
    %390 = vector.load %arg11[%c1984, %c0_334] : memref<4096x128xbf16, #tpu.memory_space<vmem>>, vector<64x128xbf16>
    %cst_335 = arith.constant dense<0.000000e+00> : vector<1x128xf32>
    %391 = tpu.matmul %389, %390, %cst_335 {dimension_numbers = #tpu.dot_dimension_numbers<[1], [0], [0], [1], [0, 0, 1, 1], [], []>} : vector<1x64xbf16>, vector<64x128xbf16>, vector<1x128xf32> -> vector<1x128xf32>
    %392 = arith.addf %387, %391 : vector<1x128xf32>
    %c32 = arith.constant 32 : index
    %c0_336 = arith.constant 0 : index
    %393 = vector.load %arg20[%c32, %c0_336] : memref<64x64xf32, #tpu.memory_space<vmem>>, vector<1x64xf32>
    %394 = arith.truncf %393 : vector<1x64xf32> to vector<1x64xbf16>
    %c2048 = arith.constant 2048 : index
    %c0_337 = arith.constant 0 : index
    %395 = vector.load %arg11[%c2048, %c0_337] : memref<4096x128xbf16, #tpu.memory_space<vmem>>, vector<64x128xbf16>
    %cst_338 = arith.constant dense<0.000000e+00> : vector<1x128xf32>
    %396 = tpu.matmul %394, %395, %cst_338 {dimension_numbers = #tpu.dot_dimension_numbers<[1], [0], [0], [1], [0, 0, 1, 1], [], []>} : vector<1x64xbf16>, vector<64x128xbf16>, vector<1x128xf32> -> vector<1x128xf32>
    %397 = arith.addf %392, %396 : vector<1x128xf32>
    %c33 = arith.constant 33 : index
    %c0_339 = arith.constant 0 : index
    %398 = vector.load %arg20[%c33, %c0_339] : memref<64x64xf32, #tpu.memory_space<vmem>>, vector<1x64xf32>
    %399 = arith.truncf %398 : vector<1x64xf32> to vector<1x64xbf16>
    %c2112 = arith.constant 2112 : index
    %c0_340 = arith.constant 0 : index
    %400 = vector.load %arg11[%c2112, %c0_340] : memref<4096x128xbf16, #tpu.memory_space<vmem>>, vector<64x128xbf16>
    %cst_341 = arith.constant dense<0.000000e+00> : vector<1x128xf32>
    %401 = tpu.matmul %399, %400, %cst_341 {dimension_numbers = #tpu.dot_dimension_numbers<[1], [0], [0], [1], [0, 0, 1, 1], [], []>} : vector<1x64xbf16>, vector<64x128xbf16>, vector<1x128xf32> -> vector<1x128xf32>
    %402 = arith.addf %397, %401 : vector<1x128xf32>
    %c34 = arith.constant 34 : index
    %c0_342 = arith.constant 0 : index
    %403 = vector.load %arg20[%c34, %c0_342] : memref<64x64xf32, #tpu.memory_space<vmem>>, vector<1x64xf32>
    %404 = arith.truncf %403 : vector<1x64xf32> to vector<1x64xbf16>
    %c2176 = arith.constant 2176 : index
    %c0_343 = arith.constant 0 : index
    %405 = vector.load %arg11[%c2176, %c0_343] : memref<4096x128xbf16, #tpu.memory_space<vmem>>, vector<64x128xbf16>
    %cst_344 = arith.constant dense<0.000000e+00> : vector<1x128xf32>
    %406 = tpu.matmul %404, %405, %cst_344 {dimension_numbers = #tpu.dot_dimension_numbers<[1], [0], [0], [1], [0, 0, 1, 1], [], []>} : vector<1x64xbf16>, vector<64x128xbf16>, vector<1x128xf32> -> vector<1x128xf32>
    %407 = arith.addf %402, %406 : vector<1x128xf32>
    %c35 = arith.constant 35 : index
    %c0_345 = arith.constant 0 : index
    %408 = vector.load %arg20[%c35, %c0_345] : memref<64x64xf32, #tpu.memory_space<vmem>>, vector<1x64xf32>
    %409 = arith.truncf %408 : vector<1x64xf32> to vector<1x64xbf16>
    %c2240 = arith.constant 2240 : index
    %c0_346 = arith.constant 0 : index
    %410 = vector.load %arg11[%c2240, %c0_346] : memref<4096x128xbf16, #tpu.memory_space<vmem>>, vector<64x128xbf16>
    %cst_347 = arith.constant dense<0.000000e+00> : vector<1x128xf32>
    %411 = tpu.matmul %409, %410, %cst_347 {dimension_numbers = #tpu.dot_dimension_numbers<[1], [0], [0], [1], [0, 0, 1, 1], [], []>} : vector<1x64xbf16>, vector<64x128xbf16>, vector<1x128xf32> -> vector<1x128xf32>
    %412 = arith.addf %407, %411 : vector<1x128xf32>
    %c36 = arith.constant 36 : index
    %c0_348 = arith.constant 0 : index
    %413 = vector.load %arg20[%c36, %c0_348] : memref<64x64xf32, #tpu.memory_space<vmem>>, vector<1x64xf32>
    %414 = arith.truncf %413 : vector<1x64xf32> to vector<1x64xbf16>
    %c2304 = arith.constant 2304 : index
    %c0_349 = arith.constant 0 : index
    %415 = vector.load %arg11[%c2304, %c0_349] : memref<4096x128xbf16, #tpu.memory_space<vmem>>, vector<64x128xbf16>
    %cst_350 = arith.constant dense<0.000000e+00> : vector<1x128xf32>
    %416 = tpu.matmul %414, %415, %cst_350 {dimension_numbers = #tpu.dot_dimension_numbers<[1], [0], [0], [1], [0, 0, 1, 1], [], []>} : vector<1x64xbf16>, vector<64x128xbf16>, vector<1x128xf32> -> vector<1x128xf32>
    %417 = arith.addf %412, %416 : vector<1x128xf32>
    %c37 = arith.constant 37 : index
    %c0_351 = arith.constant 0 : index
    %418 = vector.load %arg20[%c37, %c0_351] : memref<64x64xf32, #tpu.memory_space<vmem>>, vector<1x64xf32>
    %419 = arith.truncf %418 : vector<1x64xf32> to vector<1x64xbf16>
    %c2368 = arith.constant 2368 : index
    %c0_352 = arith.constant 0 : index
    %420 = vector.load %arg11[%c2368, %c0_352] : memref<4096x128xbf16, #tpu.memory_space<vmem>>, vector<64x128xbf16>
    %cst_353 = arith.constant dense<0.000000e+00> : vector<1x128xf32>
    %421 = tpu.matmul %419, %420, %cst_353 {dimension_numbers = #tpu.dot_dimension_numbers<[1], [0], [0], [1], [0, 0, 1, 1], [], []>} : vector<1x64xbf16>, vector<64x128xbf16>, vector<1x128xf32> -> vector<1x128xf32>
    %422 = arith.addf %417, %421 : vector<1x128xf32>
    %c38 = arith.constant 38 : index
    %c0_354 = arith.constant 0 : index
    %423 = vector.load %arg20[%c38, %c0_354] : memref<64x64xf32, #tpu.memory_space<vmem>>, vector<1x64xf32>
    %424 = arith.truncf %423 : vector<1x64xf32> to vector<1x64xbf16>
    %c2432 = arith.constant 2432 : index
    %c0_355 = arith.constant 0 : index
    %425 = vector.load %arg11[%c2432, %c0_355] : memref<4096x128xbf16, #tpu.memory_space<vmem>>, vector<64x128xbf16>
    %cst_356 = arith.constant dense<0.000000e+00> : vector<1x128xf32>
    %426 = tpu.matmul %424, %425, %cst_356 {dimension_numbers = #tpu.dot_dimension_numbers<[1], [0], [0], [1], [0, 0, 1, 1], [], []>} : vector<1x64xbf16>, vector<64x128xbf16>, vector<1x128xf32> -> vector<1x128xf32>
    %427 = arith.addf %422, %426 : vector<1x128xf32>
    %c39 = arith.constant 39 : index
    %c0_357 = arith.constant 0 : index
    %428 = vector.load %arg20[%c39, %c0_357] : memref<64x64xf32, #tpu.memory_space<vmem>>, vector<1x64xf32>
    %429 = arith.truncf %428 : vector<1x64xf32> to vector<1x64xbf16>
    %c2496 = arith.constant 2496 : index
    %c0_358 = arith.constant 0 : index
    %430 = vector.load %arg11[%c2496, %c0_358] : memref<4096x128xbf16, #tpu.memory_space<vmem>>, vector<64x128xbf16>
    %cst_359 = arith.constant dense<0.000000e+00> : vector<1x128xf32>
    %431 = tpu.matmul %429, %430, %cst_359 {dimension_numbers = #tpu.dot_dimension_numbers<[1], [0], [0], [1], [0, 0, 1, 1], [], []>} : vector<1x64xbf16>, vector<64x128xbf16>, vector<1x128xf32> -> vector<1x128xf32>
    %432 = arith.addf %427, %431 : vector<1x128xf32>
    %c40 = arith.constant 40 : index
    %c0_360 = arith.constant 0 : index
    %433 = vector.load %arg20[%c40, %c0_360] : memref<64x64xf32, #tpu.memory_space<vmem>>, vector<1x64xf32>
    %434 = arith.truncf %433 : vector<1x64xf32> to vector<1x64xbf16>
    %c2560 = arith.constant 2560 : index
    %c0_361 = arith.constant 0 : index
    %435 = vector.load %arg11[%c2560, %c0_361] : memref<4096x128xbf16, #tpu.memory_space<vmem>>, vector<64x128xbf16>
    %cst_362 = arith.constant dense<0.000000e+00> : vector<1x128xf32>
    %436 = tpu.matmul %434, %435, %cst_362 {dimension_numbers = #tpu.dot_dimension_numbers<[1], [0], [0], [1], [0, 0, 1, 1], [], []>} : vector<1x64xbf16>, vector<64x128xbf16>, vector<1x128xf32> -> vector<1x128xf32>
    %437 = arith.addf %432, %436 : vector<1x128xf32>
    %c41 = arith.constant 41 : index
    %c0_363 = arith.constant 0 : index
    %438 = vector.load %arg20[%c41, %c0_363] : memref<64x64xf32, #tpu.memory_space<vmem>>, vector<1x64xf32>
    %439 = arith.truncf %438 : vector<1x64xf32> to vector<1x64xbf16>
    %c2624 = arith.constant 2624 : index
    %c0_364 = arith.constant 0 : index
    %440 = vector.load %arg11[%c2624, %c0_364] : memref<4096x128xbf16, #tpu.memory_space<vmem>>, vector<64x128xbf16>
    %cst_365 = arith.constant dense<0.000000e+00> : vector<1x128xf32>
    %441 = tpu.matmul %439, %440, %cst_365 {dimension_numbers = #tpu.dot_dimension_numbers<[1], [0], [0], [1], [0, 0, 1, 1], [], []>} : vector<1x64xbf16>, vector<64x128xbf16>, vector<1x128xf32> -> vector<1x128xf32>
    %442 = arith.addf %437, %441 : vector<1x128xf32>
    %c42 = arith.constant 42 : index
    %c0_366 = arith.constant 0 : index
    %443 = vector.load %arg20[%c42, %c0_366] : memref<64x64xf32, #tpu.memory_space<vmem>>, vector<1x64xf32>
    %444 = arith.truncf %443 : vector<1x64xf32> to vector<1x64xbf16>
    %c2688 = arith.constant 2688 : index
    %c0_367 = arith.constant 0 : index
    %445 = vector.load %arg11[%c2688, %c0_367] : memref<4096x128xbf16, #tpu.memory_space<vmem>>, vector<64x128xbf16>
    %cst_368 = arith.constant dense<0.000000e+00> : vector<1x128xf32>
    %446 = tpu.matmul %444, %445, %cst_368 {dimension_numbers = #tpu.dot_dimension_numbers<[1], [0], [0], [1], [0, 0, 1, 1], [], []>} : vector<1x64xbf16>, vector<64x128xbf16>, vector<1x128xf32> -> vector<1x128xf32>
    %447 = arith.addf %442, %446 : vector<1x128xf32>
    %c43 = arith.constant 43 : index
    %c0_369 = arith.constant 0 : index
    %448 = vector.load %arg20[%c43, %c0_369] : memref<64x64xf32, #tpu.memory_space<vmem>>, vector<1x64xf32>
    %449 = arith.truncf %448 : vector<1x64xf32> to vector<1x64xbf16>
    %c2752 = arith.constant 2752 : index
    %c0_370 = arith.constant 0 : index
    %450 = vector.load %arg11[%c2752, %c0_370] : memref<4096x128xbf16, #tpu.memory_space<vmem>>, vector<64x128xbf16>
    %cst_371 = arith.constant dense<0.000000e+00> : vector<1x128xf32>
    %451 = tpu.matmul %449, %450, %cst_371 {dimension_numbers = #tpu.dot_dimension_numbers<[1], [0], [0], [1], [0, 0, 1, 1], [], []>} : vector<1x64xbf16>, vector<64x128xbf16>, vector<1x128xf32> -> vector<1x128xf32>
    %452 = arith.addf %447, %451 : vector<1x128xf32>
    %c44 = arith.constant 44 : index
    %c0_372 = arith.constant 0 : index
    %453 = vector.load %arg20[%c44, %c0_372] : memref<64x64xf32, #tpu.memory_space<vmem>>, vector<1x64xf32>
    %454 = arith.truncf %453 : vector<1x64xf32> to vector<1x64xbf16>
    %c2816 = arith.constant 2816 : index
    %c0_373 = arith.constant 0 : index
    %455 = vector.load %arg11[%c2816, %c0_373] : memref<4096x128xbf16, #tpu.memory_space<vmem>>, vector<64x128xbf16>
    %cst_374 = arith.constant dense<0.000000e+00> : vector<1x128xf32>
    %456 = tpu.matmul %454, %455, %cst_374 {dimension_numbers = #tpu.dot_dimension_numbers<[1], [0], [0], [1], [0, 0, 1, 1], [], []>} : vector<1x64xbf16>, vector<64x128xbf16>, vector<1x128xf32> -> vector<1x128xf32>
    %457 = arith.addf %452, %456 : vector<1x128xf32>
    %c45 = arith.constant 45 : index
    %c0_375 = arith.constant 0 : index
    %458 = vector.load %arg20[%c45, %c0_375] : memref<64x64xf32, #tpu.memory_space<vmem>>, vector<1x64xf32>
    %459 = arith.truncf %458 : vector<1x64xf32> to vector<1x64xbf16>
    %c2880 = arith.constant 2880 : index
    %c0_376 = arith.constant 0 : index
    %460 = vector.load %arg11[%c2880, %c0_376] : memref<4096x128xbf16, #tpu.memory_space<vmem>>, vector<64x128xbf16>
    %cst_377 = arith.constant dense<0.000000e+00> : vector<1x128xf32>
    %461 = tpu.matmul %459, %460, %cst_377 {dimension_numbers = #tpu.dot_dimension_numbers<[1], [0], [0], [1], [0, 0, 1, 1], [], []>} : vector<1x64xbf16>, vector<64x128xbf16>, vector<1x128xf32> -> vector<1x128xf32>
    %462 = arith.addf %457, %461 : vector<1x128xf32>
    %c46 = arith.constant 46 : index
    %c0_378 = arith.constant 0 : index
    %463 = vector.load %arg20[%c46, %c0_378] : memref<64x64xf32, #tpu.memory_space<vmem>>, vector<1x64xf32>
    %464 = arith.truncf %463 : vector<1x64xf32> to vector<1x64xbf16>
    %c2944 = arith.constant 2944 : index
    %c0_379 = arith.constant 0 : index
    %465 = vector.load %arg11[%c2944, %c0_379] : memref<4096x128xbf16, #tpu.memory_space<vmem>>, vector<64x128xbf16>
    %cst_380 = arith.constant dense<0.000000e+00> : vector<1x128xf32>
    %466 = tpu.matmul %464, %465, %cst_380 {dimension_numbers = #tpu.dot_dimension_numbers<[1], [0], [0], [1], [0, 0, 1, 1], [], []>} : vector<1x64xbf16>, vector<64x128xbf16>, vector<1x128xf32> -> vector<1x128xf32>
    %467 = arith.addf %462, %466 : vector<1x128xf32>
    %c47 = arith.constant 47 : index
    %c0_381 = arith.constant 0 : index
    %468 = vector.load %arg20[%c47, %c0_381] : memref<64x64xf32, #tpu.memory_space<vmem>>, vector<1x64xf32>
    %469 = arith.truncf %468 : vector<1x64xf32> to vector<1x64xbf16>
    %c3008 = arith.constant 3008 : index
    %c0_382 = arith.constant 0 : index
    %470 = vector.load %arg11[%c3008, %c0_382] : memref<4096x128xbf16, #tpu.memory_space<vmem>>, vector<64x128xbf16>
    %cst_383 = arith.constant dense<0.000000e+00> : vector<1x128xf32>
    %471 = tpu.matmul %469, %470, %cst_383 {dimension_numbers = #tpu.dot_dimension_numbers<[1], [0], [0], [1], [0, 0, 1, 1], [], []>} : vector<1x64xbf16>, vector<64x128xbf16>, vector<1x128xf32> -> vector<1x128xf32>
    %472 = arith.addf %467, %471 : vector<1x128xf32>
    %c48 = arith.constant 48 : index
    %c0_384 = arith.constant 0 : index
    %473 = vector.load %arg20[%c48, %c0_384] : memref<64x64xf32, #tpu.memory_space<vmem>>, vector<1x64xf32>
    %474 = arith.truncf %473 : vector<1x64xf32> to vector<1x64xbf16>
    %c3072 = arith.constant 3072 : index
    %c0_385 = arith.constant 0 : index
    %475 = vector.load %arg11[%c3072, %c0_385] : memref<4096x128xbf16, #tpu.memory_space<vmem>>, vector<64x128xbf16>
    %cst_386 = arith.constant dense<0.000000e+00> : vector<1x128xf32>
    %476 = tpu.matmul %474, %475, %cst_386 {dimension_numbers = #tpu.dot_dimension_numbers<[1], [0], [0], [1], [0, 0, 1, 1], [], []>} : vector<1x64xbf16>, vector<64x128xbf16>, vector<1x128xf32> -> vector<1x128xf32>
    %477 = arith.addf %472, %476 : vector<1x128xf32>
    %c49 = arith.constant 49 : index
    %c0_387 = arith.constant 0 : index
    %478 = vector.load %arg20[%c49, %c0_387] : memref<64x64xf32, #tpu.memory_space<vmem>>, vector<1x64xf32>
    %479 = arith.truncf %478 : vector<1x64xf32> to vector<1x64xbf16>
    %c3136 = arith.constant 3136 : index
    %c0_388 = arith.constant 0 : index
    %480 = vector.load %arg11[%c3136, %c0_388] : memref<4096x128xbf16, #tpu.memory_space<vmem>>, vector<64x128xbf16>
    %cst_389 = arith.constant dense<0.000000e+00> : vector<1x128xf32>
    %481 = tpu.matmul %479, %480, %cst_389 {dimension_numbers = #tpu.dot_dimension_numbers<[1], [0], [0], [1], [0, 0, 1, 1], [], []>} : vector<1x64xbf16>, vector<64x128xbf16>, vector<1x128xf32> -> vector<1x128xf32>
    %482 = arith.addf %477, %481 : vector<1x128xf32>
    %c50 = arith.constant 50 : index
    %c0_390 = arith.constant 0 : index
    %483 = vector.load %arg20[%c50, %c0_390] : memref<64x64xf32, #tpu.memory_space<vmem>>, vector<1x64xf32>
    %484 = arith.truncf %483 : vector<1x64xf32> to vector<1x64xbf16>
    %c3200 = arith.constant 3200 : index
    %c0_391 = arith.constant 0 : index
    %485 = vector.load %arg11[%c3200, %c0_391] : memref<4096x128xbf16, #tpu.memory_space<vmem>>, vector<64x128xbf16>
    %cst_392 = arith.constant dense<0.000000e+00> : vector<1x128xf32>
    %486 = tpu.matmul %484, %485, %cst_392 {dimension_numbers = #tpu.dot_dimension_numbers<[1], [0], [0], [1], [0, 0, 1, 1], [], []>} : vector<1x64xbf16>, vector<64x128xbf16>, vector<1x128xf32> -> vector<1x128xf32>
    %487 = arith.addf %482, %486 : vector<1x128xf32>
    %c51 = arith.constant 51 : index
    %c0_393 = arith.constant 0 : index
    %488 = vector.load %arg20[%c51, %c0_393] : memref<64x64xf32, #tpu.memory_space<vmem>>, vector<1x64xf32>
    %489 = arith.truncf %488 : vector<1x64xf32> to vector<1x64xbf16>
    %c3264 = arith.constant 3264 : index
    %c0_394 = arith.constant 0 : index
    %490 = vector.load %arg11[%c3264, %c0_394] : memref<4096x128xbf16, #tpu.memory_space<vmem>>, vector<64x128xbf16>
    %cst_395 = arith.constant dense<0.000000e+00> : vector<1x128xf32>
    %491 = tpu.matmul %489, %490, %cst_395 {dimension_numbers = #tpu.dot_dimension_numbers<[1], [0], [0], [1], [0, 0, 1, 1], [], []>} : vector<1x64xbf16>, vector<64x128xbf16>, vector<1x128xf32> -> vector<1x128xf32>
    %492 = arith.addf %487, %491 : vector<1x128xf32>
    %c52 = arith.constant 52 : index
    %c0_396 = arith.constant 0 : index
    %493 = vector.load %arg20[%c52, %c0_396] : memref<64x64xf32, #tpu.memory_space<vmem>>, vector<1x64xf32>
    %494 = arith.truncf %493 : vector<1x64xf32> to vector<1x64xbf16>
    %c3328 = arith.constant 3328 : index
    %c0_397 = arith.constant 0 : index
    %495 = vector.load %arg11[%c3328, %c0_397] : memref<4096x128xbf16, #tpu.memory_space<vmem>>, vector<64x128xbf16>
    %cst_398 = arith.constant dense<0.000000e+00> : vector<1x128xf32>
    %496 = tpu.matmul %494, %495, %cst_398 {dimension_numbers = #tpu.dot_dimension_numbers<[1], [0], [0], [1], [0, 0, 1, 1], [], []>} : vector<1x64xbf16>, vector<64x128xbf16>, vector<1x128xf32> -> vector<1x128xf32>
    %497 = arith.addf %492, %496 : vector<1x128xf32>
    %c53 = arith.constant 53 : index
    %c0_399 = arith.constant 0 : index
    %498 = vector.load %arg20[%c53, %c0_399] : memref<64x64xf32, #tpu.memory_space<vmem>>, vector<1x64xf32>
    %499 = arith.truncf %498 : vector<1x64xf32> to vector<1x64xbf16>
    %c3392 = arith.constant 3392 : index
    %c0_400 = arith.constant 0 : index
    %500 = vector.load %arg11[%c3392, %c0_400] : memref<4096x128xbf16, #tpu.memory_space<vmem>>, vector<64x128xbf16>
    %cst_401 = arith.constant dense<0.000000e+00> : vector<1x128xf32>
    %501 = tpu.matmul %499, %500, %cst_401 {dimension_numbers = #tpu.dot_dimension_numbers<[1], [0], [0], [1], [0, 0, 1, 1], [], []>} : vector<1x64xbf16>, vector<64x128xbf16>, vector<1x128xf32> -> vector<1x128xf32>
    %502 = arith.addf %497, %501 : vector<1x128xf32>
    %c54 = arith.constant 54 : index
    %c0_402 = arith.constant 0 : index
    %503 = vector.load %arg20[%c54, %c0_402] : memref<64x64xf32, #tpu.memory_space<vmem>>, vector<1x64xf32>
    %504 = arith.truncf %503 : vector<1x64xf32> to vector<1x64xbf16>
    %c3456 = arith.constant 3456 : index
    %c0_403 = arith.constant 0 : index
    %505 = vector.load %arg11[%c3456, %c0_403] : memref<4096x128xbf16, #tpu.memory_space<vmem>>, vector<64x128xbf16>
    %cst_404 = arith.constant dense<0.000000e+00> : vector<1x128xf32>
    %506 = tpu.matmul %504, %505, %cst_404 {dimension_numbers = #tpu.dot_dimension_numbers<[1], [0], [0], [1], [0, 0, 1, 1], [], []>} : vector<1x64xbf16>, vector<64x128xbf16>, vector<1x128xf32> -> vector<1x128xf32>
    %507 = arith.addf %502, %506 : vector<1x128xf32>
    %c55 = arith.constant 55 : index
    %c0_405 = arith.constant 0 : index
    %508 = vector.load %arg20[%c55, %c0_405] : memref<64x64xf32, #tpu.memory_space<vmem>>, vector<1x64xf32>
    %509 = arith.truncf %508 : vector<1x64xf32> to vector<1x64xbf16>
    %c3520 = arith.constant 3520 : index
    %c0_406 = arith.constant 0 : index
    %510 = vector.load %arg11[%c3520, %c0_406] : memref<4096x128xbf16, #tpu.memory_space<vmem>>, vector<64x128xbf16>
    %cst_407 = arith.constant dense<0.000000e+00> : vector<1x128xf32>
    %511 = tpu.matmul %509, %510, %cst_407 {dimension_numbers = #tpu.dot_dimension_numbers<[1], [0], [0], [1], [0, 0, 1, 1], [], []>} : vector<1x64xbf16>, vector<64x128xbf16>, vector<1x128xf32> -> vector<1x128xf32>
    %512 = arith.addf %507, %511 : vector<1x128xf32>
    %c56 = arith.constant 56 : index
    %c0_408 = arith.constant 0 : index
    %513 = vector.load %arg20[%c56, %c0_408] : memref<64x64xf32, #tpu.memory_space<vmem>>, vector<1x64xf32>
    %514 = arith.truncf %513 : vector<1x64xf32> to vector<1x64xbf16>
    %c3584 = arith.constant 3584 : index
    %c0_409 = arith.constant 0 : index
    %515 = vector.load %arg11[%c3584, %c0_409] : memref<4096x128xbf16, #tpu.memory_space<vmem>>, vector<64x128xbf16>
    %cst_410 = arith.constant dense<0.000000e+00> : vector<1x128xf32>
    %516 = tpu.matmul %514, %515, %cst_410 {dimension_numbers = #tpu.dot_dimension_numbers<[1], [0], [0], [1], [0, 0, 1, 1], [], []>} : vector<1x64xbf16>, vector<64x128xbf16>, vector<1x128xf32> -> vector<1x128xf32>
    %517 = arith.addf %512, %516 : vector<1x128xf32>
    %c57 = arith.constant 57 : index
    %c0_411 = arith.constant 0 : index
    %518 = vector.load %arg20[%c57, %c0_411] : memref<64x64xf32, #tpu.memory_space<vmem>>, vector<1x64xf32>
    %519 = arith.truncf %518 : vector<1x64xf32> to vector<1x64xbf16>
    %c3648 = arith.constant 3648 : index
    %c0_412 = arith.constant 0 : index
    %520 = vector.load %arg11[%c3648, %c0_412] : memref<4096x128xbf16, #tpu.memory_space<vmem>>, vector<64x128xbf16>
    %cst_413 = arith.constant dense<0.000000e+00> : vector<1x128xf32>
    %521 = tpu.matmul %519, %520, %cst_413 {dimension_numbers = #tpu.dot_dimension_numbers<[1], [0], [0], [1], [0, 0, 1, 1], [], []>} : vector<1x64xbf16>, vector<64x128xbf16>, vector<1x128xf32> -> vector<1x128xf32>
    %522 = arith.addf %517, %521 : vector<1x128xf32>
    %c58 = arith.constant 58 : index
    %c0_414 = arith.constant 0 : index
    %523 = vector.load %arg20[%c58, %c0_414] : memref<64x64xf32, #tpu.memory_space<vmem>>, vector<1x64xf32>
    %524 = arith.truncf %523 : vector<1x64xf32> to vector<1x64xbf16>
    %c3712 = arith.constant 3712 : index
    %c0_415 = arith.constant 0 : index
    %525 = vector.load %arg11[%c3712, %c0_415] : memref<4096x128xbf16, #tpu.memory_space<vmem>>, vector<64x128xbf16>
    %cst_416 = arith.constant dense<0.000000e+00> : vector<1x128xf32>
    %526 = tpu.matmul %524, %525, %cst_416 {dimension_numbers = #tpu.dot_dimension_numbers<[1], [0], [0], [1], [0, 0, 1, 1], [], []>} : vector<1x64xbf16>, vector<64x128xbf16>, vector<1x128xf32> -> vector<1x128xf32>
    %527 = arith.addf %522, %526 : vector<1x128xf32>
    %c59 = arith.constant 59 : index
    %c0_417 = arith.constant 0 : index
    %528 = vector.load %arg20[%c59, %c0_417] : memref<64x64xf32, #tpu.memory_space<vmem>>, vector<1x64xf32>
    %529 = arith.truncf %528 : vector<1x64xf32> to vector<1x64xbf16>
    %c3776 = arith.constant 3776 : index
    %c0_418 = arith.constant 0 : index
    %530 = vector.load %arg11[%c3776, %c0_418] : memref<4096x128xbf16, #tpu.memory_space<vmem>>, vector<64x128xbf16>
    %cst_419 = arith.constant dense<0.000000e+00> : vector<1x128xf32>
    %531 = tpu.matmul %529, %530, %cst_419 {dimension_numbers = #tpu.dot_dimension_numbers<[1], [0], [0], [1], [0, 0, 1, 1], [], []>} : vector<1x64xbf16>, vector<64x128xbf16>, vector<1x128xf32> -> vector<1x128xf32>
    %532 = arith.addf %527, %531 : vector<1x128xf32>
    %c60 = arith.constant 60 : index
    %c0_420 = arith.constant 0 : index
    %533 = vector.load %arg20[%c60, %c0_420] : memref<64x64xf32, #tpu.memory_space<vmem>>, vector<1x64xf32>
    %534 = arith.truncf %533 : vector<1x64xf32> to vector<1x64xbf16>
    %c3840 = arith.constant 3840 : index
    %c0_421 = arith.constant 0 : index
    %535 = vector.load %arg11[%c3840, %c0_421] : memref<4096x128xbf16, #tpu.memory_space<vmem>>, vector<64x128xbf16>
    %cst_422 = arith.constant dense<0.000000e+00> : vector<1x128xf32>
    %536 = tpu.matmul %534, %535, %cst_422 {dimension_numbers = #tpu.dot_dimension_numbers<[1], [0], [0], [1], [0, 0, 1, 1], [], []>} : vector<1x64xbf16>, vector<64x128xbf16>, vector<1x128xf32> -> vector<1x128xf32>
    %537 = arith.addf %532, %536 : vector<1x128xf32>
    %c61 = arith.constant 61 : index
    %c0_423 = arith.constant 0 : index
    %538 = vector.load %arg20[%c61, %c0_423] : memref<64x64xf32, #tpu.memory_space<vmem>>, vector<1x64xf32>
    %539 = arith.truncf %538 : vector<1x64xf32> to vector<1x64xbf16>
    %c3904 = arith.constant 3904 : index
    %c0_424 = arith.constant 0 : index
    %540 = vector.load %arg11[%c3904, %c0_424] : memref<4096x128xbf16, #tpu.memory_space<vmem>>, vector<64x128xbf16>
    %cst_425 = arith.constant dense<0.000000e+00> : vector<1x128xf32>
    %541 = tpu.matmul %539, %540, %cst_425 {dimension_numbers = #tpu.dot_dimension_numbers<[1], [0], [0], [1], [0, 0, 1, 1], [], []>} : vector<1x64xbf16>, vector<64x128xbf16>, vector<1x128xf32> -> vector<1x128xf32>
    %542 = arith.addf %537, %541 : vector<1x128xf32>
    %c62 = arith.constant 62 : index
    %c0_426 = arith.constant 0 : index
    %543 = vector.load %arg20[%c62, %c0_426] : memref<64x64xf32, #tpu.memory_space<vmem>>, vector<1x64xf32>
    %544 = arith.truncf %543 : vector<1x64xf32> to vector<1x64xbf16>
    %c3968 = arith.constant 3968 : index
    %c0_427 = arith.constant 0 : index
    %545 = vector.load %arg11[%c3968, %c0_427] : memref<4096x128xbf16, #tpu.memory_space<vmem>>, vector<64x128xbf16>
    %cst_428 = arith.constant dense<0.000000e+00> : vector<1x128xf32>
    %546 = tpu.matmul %544, %545, %cst_428 {dimension_numbers = #tpu.dot_dimension_numbers<[1], [0], [0], [1], [0, 0, 1, 1], [], []>} : vector<1x64xbf16>, vector<64x128xbf16>, vector<1x128xf32> -> vector<1x128xf32>
    %547 = arith.addf %542, %546 : vector<1x128xf32>
    %c63 = arith.constant 63 : index
    %c0_429 = arith.constant 0 : index
    %548 = vector.load %arg20[%c63, %c0_429] : memref<64x64xf32, #tpu.memory_space<vmem>>, vector<1x64xf32>
    %549 = arith.truncf %548 : vector<1x64xf32> to vector<1x64xbf16>
    %c4032 = arith.constant 4032 : index
    %c0_430 = arith.constant 0 : index
    %550 = vector.load %arg11[%c4032, %c0_430] : memref<4096x128xbf16, #tpu.memory_space<vmem>>, vector<64x128xbf16>
    %cst_431 = arith.constant dense<0.000000e+00> : vector<1x128xf32>
    %551 = tpu.matmul %549, %550, %cst_431 {dimension_numbers = #tpu.dot_dimension_numbers<[1], [0], [0], [1], [0, 0, 1, 1], [], []>} : vector<1x64xbf16>, vector<64x128xbf16>, vector<1x128xf32> -> vector<1x128xf32>
    %552 = arith.addf %547, %551 : vector<1x128xf32>
    %c0_432 = arith.constant 0 : index
    %c0_433 = arith.constant 0 : index
    %553 = vector.load %arg13[%c0_432, %c0_433] : memref<1x128xf32, #tpu.memory_space<vmem>>, vector<1x128xf32>
    %554 = arith.addf %552, %553 : vector<1x128xf32>
    %cst_434 = arith.constant 0.000000e+00 : f32
    %555 = vector.broadcast %cst_434 : f32 to vector<1x128xf32>
    %556 = arith.maximumf %554, %555 : vector<1x128xf32>
    %557 = arith.truncf %556 : vector<1x128xf32> to vector<1x128xbf16>
    %c0_435 = arith.constant 0 : index
    %c0_436 = arith.constant 0 : index
    %558 = vector.load %arg14[%c0_435, %c0_436] : memref<128x6xbf16, #tpu.memory_space<vmem>>, vector<128x6xbf16>
    %cst_437 = arith.constant dense<0.000000e+00> : vector<1x6xf32>
    %559 = tpu.matmul %557, %558, %cst_437 {dimension_numbers = #tpu.dot_dimension_numbers<[1], [0], [0], [1], [0, 0, 1, 1], [], []>} : vector<1x128xbf16>, vector<128x6xbf16>, vector<1x6xf32> -> vector<1x6xf32>
    %c0_438 = arith.constant 0 : index
    %c0_439 = arith.constant 0 : index
    %560 = vector.load %arg15[%c0_438, %c0_439] : memref<1x6xf32, #tpu.memory_space<vmem>>, vector<1x6xf32>
    %561 = arith.addf %559, %560 : vector<1x6xf32>
    %c0_440 = arith.constant 0 : index
    %c0_441 = arith.constant 0 : index
    %c0_442 = arith.constant 0 : index
    %562 = vector.load %arg16[%c0_440, %c0_441, %c0_442] : memref<1x1x6xf32, #tpu.memory_space<vmem>>, vector<1x1x6xf32>
    %563 = vector.shape_cast %562 : vector<1x1x6xf32> to vector<1x6xf32>
    %564 = vector.shape_cast %561 : vector<1x6xf32> to vector<1x1x6xf32>
    tpu.vector_store %arg16[%c0_440, %c0_441, %c0_442], %564 {strides = array<i32>} : memref<1x1x6xf32, #tpu.memory_space<vmem>>, vector<1x1x6xf32>,
    return
  }
  func.func @transform_0(%arg0: i32) -> (i32, i32, i32, i32) {
    %c0_i32 = arith.constant 0 : i32
    %c0_i32_0 = arith.constant 0 : i32
    %c0_i32_1 = arith.constant 0 : i32
    %c0_i32_2 = arith.constant 0 : i32
    return %arg0, %c0_i32, %c0_i32_0, %c0_i32_1 : i32, i32, i32, i32
  }
  func.func @transform_1(%arg0: i32) -> (i32, i32, i32) {
    %c0_i32 = arith.constant 0 : i32
    %c0_i32_0 = arith.constant 0 : i32
    %c0_i32_1 = arith.constant 0 : i32
    return %arg0, %c0_i32, %c0_i32_0 : i32, i32, i32
  }
  func.func @transform_2(%arg0: i32) -> (i32, i32, i32) {
    %c0_i32 = arith.constant 0 : i32
    %c0_i32_0 = arith.constant 0 : i32
    %c0_i32_1 = arith.constant 0 : i32
    %c0_i32_2 = arith.constant 0 : i32
    return %c0_i32, %c0_i32_0, %c0_i32_1 : i32, i32, i32
  }
  func.func @transform_3(%arg0: i32) -> (i32, i32) {
    %c0_i32 = arith.constant 0 : i32
    %c0_i32_0 = arith.constant 0 : i32
    %c0_i32_1 = arith.constant 0 : i32
    return %c0_i32, %c0_i32_0 : i32, i32
  }
  func.func @transform_4(%arg0: i32) -> (i32, i32, i32) {
    %c0_i32 = arith.constant 0 : i32
    %c0_i32_0 = arith.constant 0 : i32
    %c0_i32_1 = arith.constant 0 : i32
    %c0_i32_2 = arith.constant 0 : i32
    return %c0_i32, %c0_i32_0, %c0_i32_1 : i32, i32, i32
  }
  func.func @transform_5(%arg0: i32) -> (i32, i32) {
    %c0_i32 = arith.constant 0 : i32
    %c0_i32_0 = arith.constant 0 : i32
    %c0_i32_1 = arith.constant 0 : i32
    return %c0_i32, %c0_i32_0 : i32, i32
  }
  func.func @transform_6(%arg0: i32) -> (i32, i32, i32) {
    %c0_i32 = arith.constant 0 : i32
    %c0_i32_0 = arith.constant 0 : i32
    %c0_i32_1 = arith.constant 0 : i32
    %c0_i32_2 = arith.constant 0 : i32
    return %c0_i32, %c0_i32_0, %c0_i32_1 : i32, i32, i32
  }
  func.func @transform_7(%arg0: i32) -> (i32, i32) {
    %c0_i32 = arith.constant 0 : i32
    %c0_i32_0 = arith.constant 0 : i32
    %c0_i32_1 = arith.constant 0 : i32
    return %c0_i32, %c0_i32_0 : i32, i32
  }
  func.func @transform_8(%arg0: i32) -> (i32, i32) {
    %c0_i32 = arith.constant 0 : i32
    %c0_i32_0 = arith.constant 0 : i32
    %c0_i32_1 = arith.constant 0 : i32
    return %c0_i32, %c0_i32_0 : i32, i32
  }
  func.func @transform_9(%arg0: i32) -> (i32, i32) {
    %c0_i32 = arith.constant 0 : i32
    %c0_i32_0 = arith.constant 0 : i32
    %c0_i32_1 = arith.constant 0 : i32
    return %c0_i32, %c0_i32_0 : i32, i32
  }
  func.func @transform_10(%arg0: i32) -> (i32, i32) {
    %c0_i32 = arith.constant 0 : i32
    %c0_i32_0 = arith.constant 0 : i32
    %c0_i32_1 = arith.constant 0 : i32
    return %c0_i32, %c0_i32_0 : i32, i32
  }
  func.func @transform_11(%arg0: i32) -> (i32, i32) {
    %c0_i32 = arith.constant 0 : i32
    %c0_i32_0 = arith.constant 0 : i32
    %c0_i32_1 = arith.constant 0 : i32
    return %c0_i32, %c0_i32_0 : i32, i32
  }
  func.func @transform_12(%arg0: i32) -> (i32, i32) {
    %c0_i32 = arith.constant 0 : i32
    %c0_i32_0 = arith.constant 0 : i32
    %c0_i32_1 = arith.constant 0 : i32
    return %c0_i32, %c0_i32_0 : i32, i32
  }
  func.func @transform_13(%arg0: i32) -> (i32, i32) {
    %c0_i32 = arith.constant 0 : i32
    %c0_i32_0 = arith.constant 0 : i32
    %c0_i32_1 = arith.constant 0 : i32
    return %c0_i32, %c0_i32_0 : i32, i32
  }
  func.func @transform_14(%arg0: i32) -> (i32, i32) {
    %c0_i32 = arith.constant 0 : i32
    %c0_i32_0 = arith.constant 0 : i32
    %c0_i32_1 = arith.constant 0 : i32
    return %c0_i32, %c0_i32_0 : i32, i32
  }
  func.func @transform_15(%arg0: i32) -> (i32, i32, i32) {
    %c0_i32 = arith.constant 0 : i32
    %c0_i32_0 = arith.constant 0 : i32
    %c0_i32_1 = arith.constant 0 : i32
    return %arg0, %c0_i32, %c0_i32_0 : i32, i32, i32
  }
}

</mosaic_0001>

<llo_original>
// kernel: tpu_custom_call.1
$region0: #{tpu_custom_call.1}
  #allocation0 [shape = 'u32[]', space=smem, size = 0x4, offset = 0x4, fixed_abs, tag = 'smem constant byte address 0x4 - core index']
  #allocation1 [shape = 'u32[144,128]{1,0:T(1,128)}', space=vmem, size = 0x12000, scoped, tag = 'internal scratch']
  #allocation2 [shape = 'f32[10,10,4]{2,1,0:T(8,128)}', space=vmem, size = 0x14000, scoped, tag = 'scratch operand']
  #allocation3 [shape = 'f32[10,10,32]{2,1,0:T(8,128)}', space=vmem, size = 0x14000, scoped, tag = 'scratch operand']
  #allocation4 [shape = 'f32[10,10,64]{2,1,0:T(8,128)}', space=vmem, size = 0x14000, scoped, tag = 'scratch operand']
  #allocation5 [shape = 'f32[64,64]{1,0:T(8,128)}', space=vmem, size = 0x8000, scoped, tag = 'scratch operand']
  %s0 = inlined_call_operand.vmem [shape: f32[2,8,8,4], index: 0, kind: input, shape index: {}]
  %s1 = inlined_call_operand.vmem [shape: f32[2,1,8], index: 1, kind: input, shape index: {}]
  %s2 = inlined_call_operand.vmem [shape: bf16[9,4,32], index: 2, kind: input, shape index: {}]
  %s3 = inlined_call_operand.vmem [shape: f32[1,32], index: 3, kind: input, shape index: {}]
  %s4 = inlined_call_operand.vmem [shape: bf16[9,32,64], index: 4, kind: input, shape index: {}]
  %s5 = inlined_call_operand.vmem [shape: f32[1,64], index: 5, kind: input, shape index: {}]
  %s6 = inlined_call_operand.hbm [shape: bf16[9,64,64], index: 6, kind: input, shape index: {}]
  %s7 = inlined_call_operand.vmem [shape: f32[1,64], index: 7, kind: input, shape index: {}]
  %s8 = inlined_call_operand.vmem [shape: bf16[8,64], index: 8, kind: input, shape index: {}]
  %s9 = inlined_call_operand.vmem [shape: f32[1,64], index: 9, kind: input, shape index: {}]
  %s10 = inlined_call_operand.hbm [shape: bf16[4096,128], index: 10, kind: input, shape index: {}]
  %s11 = inlined_call_operand.vmem [shape: bf16[64,128], index: 11, kind: input, shape index: {}]
  %s12 = inlined_call_operand.vmem [shape: f32[1,128], index: 12, kind: input, shape index: {}]
  %s13 = inlined_call_operand.vmem [shape: bf16[128,6], index: 13, kind: input, shape index: {}]
  %s14 = inlined_call_operand.vmem [shape: f32[1,6], index: 14, kind: input, shape index: {}]
  %s15 = inlined_call_operand.hbm [shape: f32[2,1,6], index: 15, kind: output, shape index: {}]
  %s16 = sld [smem:[#allocation0]]
  $region101: #{tpu_custom_call.1} parent=0
    _
  %s18 = ssub.s32 1, %s16
  %s19 = scalar_select 0, %s18, %s16
  $region1: #{tpu_custom_call.1} parent=0
    #allocation6 [shape = 'u8[147456]{0}', space=vmem, size = 0x24000, scoped, tag = 'input window, operand 6, single buffered']
    #allocation7 [shape = 's32[2]{0}', space=sflag, size = 0x8, scoped, tag = 'scoped memory for tpu_custom_call.1']
    #allocation8 [shape = 's32[2]{0}', space=sflag, size = 0x8, scoped, tag = 'scoped memory for tpu_custom_call.1']
    #allocation9 [shape = 'u8[1048576]{0}', space=vmem, size = 0x100000, scoped, tag = 'input window, operand 10, single buffered']
    #allocation10 [shape = 's32[1]{0}', space=sflag, size = 0x4, scoped, tag = 'scoped memory for tpu_custom_call.1']
    #allocation11 [shape = 'u8[1024]{0}', space=vmem, size = 0x400, scoped, tag = 'output window, operand 0']
    %20 = vsyncpa [#allocation7], 0
    %21 = vsyncpa [#allocation10], 0
    %22 = vsyncpa [#allocation8], 0
    %s23 = scalar_lea.sflag [#allocation8], 1
    %24 = vsyncpa %s23, 0
    loop: start=0, step=1, limit=4
    $region2: #{tpu_custom_call.1} parent=1 // loop_pre_header
      _
    $region3: #{tpu_custom_call.1} parent=1 // loop_header
      %s26 = sphi 0, %s30
      %p27 = scmp.ge.s32.totalorder %s26, 4
      %s36 = sphi 0, %s38
      %s39 = sphi 0, %s36
      %s40 = sphi 0, %s39
      %s56 = sphi 0, %s40
      %s62 = sphi 0, %s64
      %s65 = sphi 0, %s62
      %s66 = sphi 0, %s65
      %s82 = sphi 0, %s66
      %s86 = sphi 0, %s86
      %s88 = sphi 0, %s86
      %s89 = sphi 0, %s88
      %s103 = sphi 0, %s89
      %s107 = sphi 0, %s107
      %s109 = sphi 0, %s107
      %s110 = sphi 0, %s109
      %s124 = sphi 0, %s110
      %s128 = sphi 0, %s128
      %s130 = sphi 0, %s128
      %s131 = sphi 0, %s130
      %s145 = sphi 0, %s131
      %s149 = sphi 0, %s149
      %s151 = sphi 0, %s149
      %s152 = sphi 0, %s151
      %s166 = sphi 0, %s152
      %s170 = sphi 0, %s170
      %s172 = sphi 0, %s170
      %s173 = sphi 0, %s172
      %s187 = sphi 0, %s173
      %s191 = sphi 0, %s191
      %s193 = sphi 0, %s191
      %s194 = sphi 0, %s193
      %s208 = sphi 0, %s194
      %s212 = sphi 0, %s212
      %s214 = sphi 0, %s212
      %s215 = sphi 0, %s214
      %s229 = sphi 0, %s215
      %s233 = sphi 0, %s233
      %s235 = sphi 0, %s233
      %s236 = sphi 0, %s235
      %s250 = sphi 0, %s236
      %s254 = sphi 0, %s254
      %s256 = sphi 0, %s254
      %s257 = sphi 0, %s256
      %s271 = sphi 0, %s257
      %s275 = sphi 0, %s275
      %s277 = sphi 0, %s275
      %s278 = sphi 0, %s277
      %s292 = sphi 0, %s278
      %s296 = sphi 0, %s296
      %s298 = sphi 0, %s296
      %s299 = sphi 0, %s298
      %s313 = sphi 0, %s299
      %s317 = sphi 0, %s317
      %s319 = sphi 0, %s317
      %s320 = sphi 0, %s319
      %s334 = sphi 0, %s320
      %s338 = sphi 0, %s338
      %s340 = sphi 0, %s338
      %s341 = sphi 0, %s340
      %s355 = sphi 0, %s341
      %s361 = sphi 0, %s363
      %s364 = sphi 0, %s361
      %s365 = sphi 0, %s364
      %s381 = sphi 0, %s365
    $region4: #{tpu_custom_call.1} parent=1 // loop_header_branch
      %29 = sbr.rel (%p27) target = $region8
    $region5: #{tpu_custom_call.1} parent=1 // loop_body
      %s31 = ssub.s32 %s26, 1
      %s32 = ssub.s32 %s26, 2
      %s33 = sadd.s32 %s26, 1
      %s34 = ssub.s32 %s26, %s33
      %p35 = scmp.eq.s32.totalorder %s34, 0
      %s37 = sadd.s32 %s36, 1
      %s38 = scalar_select %p35, %s36, %s37
      %p41 = pneg %p35
      %p42 = scmp.eq.s32.totalorder %s26, 1
      %p43 = por %p41, %p42
      %p44 = scmp.ne.s32.totalorder %s36, %s39
      %p45 = scmp.eq.s32.totalorder %s26, 0
      %p46 = por %p44, %p45
      %p47 = scmp.ne.s32.totalorder %s36, %s39
      %p48 = scmp.eq.s32.totalorder %s31, 1
      %p49 = por %p47, %p48
      %p50 = scmp.ne.s32.totalorder %s39, %s40
      %p51 = scmp.eq.s32.totalorder %s31, 0
      %p52 = por %p50, %p51
      %p53 = scmp.ne.s32.totalorder %s39, %s40
      %p54 = scmp.eq.s32.totalorder %s32, 1
      %p55 = por %p53, %p54
      %p57 = scmp.ne.s32.totalorder %s40, %s56
      %p58 = scmp.eq.s32.totalorder %s32, 0
      %p59 = por %p57, %p58
      %s60 = ssub.s32 %s26, %s33
      %p61 = scmp.eq.s32.totalorder %s60, 0
      %s63 = sadd.s32 %s62, 1
      %s64 = scalar_select %p61, %s62, %s63
      %p67 = pneg %p61
      %p68 = scmp.eq.s32.totalorder %s26, 1
      %p69 = por %p67, %p68
      %p70 = scmp.ne.s32.totalorder %s62, %s65
      %p71 = scmp.eq.s32.totalorder %s26, 0
      %p72 = por %p70, %p71
      %p73 = scmp.ne.s32.totalorder %s62, %s65
      %p74 = scmp.eq.s32.totalorder %s31, 1
      %p75 = por %p73, %p74
      %p76 = scmp.ne.s32.totalorder %s65, %s66
      %p77 = scmp.eq.s32.totalorder %s31, 0
      %p78 = por %p76, %p77
      %p79 = scmp.ne.s32.totalorder %s65, %s66
      %p80 = scmp.eq.s32.totalorder %s32, 1
      %p81 = por %p79, %p80
      %p83 = scmp.ne.s32.totalorder %s66, %s82
      %p84 = scmp.eq.s32.totalorder %s32, 0
      %p85 = por %p83, %p84
      %s87 = sadd.s32 %s86, 1
      %p90 = scmp.eq.s32.totalorder %s26, 1
      %p91 = scmp.ne.s32.totalorder %s86, %s88
      %p92 = scmp.eq.s32.totalorder %s26, 0
      %p93 = por %p91, %p92
      %p94 = scmp.ne.s32.totalorder %s86, %s88
      %p95 = scmp.eq.s32.totalorder %s31, 1
      %p96 = por %p94, %p95
      %p97 = scmp.ne.s32.totalorder %s88, %s89
      %p98 = scmp.eq.s32.totalorder %s31, 0
      %p99 = por %p97, %p98
      %p100 = scmp.ne.s32.totalorder %s88, %s89
      %p101 = scmp.eq.s32.totalorder %s32, 1
      %p102 = por %p100, %p101
      %p104 = scmp.ne.s32.totalorder %s89, %s103
      %p105 = scmp.eq.s32.totalorder %s32, 0
      %p106 = por %p104, %p105
      %s108 = sadd.s32 %s107, 1
      %p111 = scmp.eq.s32.totalorder %s26, 1
      %p112 = scmp.ne.s32.totalorder %s107, %s109
      %p113 = scmp.eq.s32.totalorder %s26, 0
      %p114 = por %p112, %p113
      %p115 = scmp.ne.s32.totalorder %s107, %s109
      %p116 = scmp.eq.s32.totalorder %s31, 1
      %p117 = por %p115, %p116
      %p118 = scmp.ne.s32.totalorder %s109, %s110
      %p119 = scmp.eq.s32.totalorder %s31, 0
      %p120 = por %p118, %p119
      %p121 = scmp.ne.s32.totalorder %s109, %s110
      %p122 = scmp.eq.s32.totalorder %s32, 1
      %p123 = por %p121, %p122
      %p125 = scmp.ne.s32.totalorder %s110, %s124
      %p126 = scmp.eq.s32.totalorder %s32, 0
      %p127 = por %p125, %p126
      %s129 = sadd.s32 %s128, 1
      %p132 = scmp.eq.s32.totalorder %s26, 1
      %p133 = scmp.ne.s32.totalorder %s128, %s130
      %p134 = scmp.eq.s32.totalorder %s26, 0
      %p135 = por %p133, %p134
      %p136 = scmp.ne.s32.totalorder %s128, %s130
      %p137 = scmp.eq.s32.totalorder %s31, 1
      %p138 = por %p136, %p137
      %p139 = scmp.ne.s32.totalorder %s130, %s131
      %p140 = scmp.eq.s32.totalorder %s31, 0
      %p141 = por %p139, %p140
      %p142 = scmp.ne.s32.totalorder %s130, %s131
      %p143 = scmp.eq.s32.totalorder %s32, 1
      %p144 = por %p142, %p143
      %p146 = scmp.ne.s32.totalorder %s131, %s145
      %p147 = scmp.eq.s32.totalorder %s32, 0
      %p148 = por %p146, %p147
      %s150 = sadd.s32 %s149, 1
      %p153 = scmp.eq.s32.totalorder %s26, 1
      %p154 = scmp.ne.s32.totalorder %s149, %s151
      %p155 = scmp.eq.s32.totalorder %s26, 0
      %p156 = por %p154, %p155
      %p157 = scmp.ne.s32.totalorder %s149, %s151
      %p158 = scmp.eq.s32.totalorder %s31, 1
      %p159 = por %p157, %p158
      %p160 = scmp.ne.s32.totalorder %s151, %s152
      %p161 = scmp.eq.s32.totalorder %s31, 0
      %p162 = por %p160, %p161
      %p163 = scmp.ne.s32.totalorder %s151, %s152
      %p164 = scmp.eq.s32.totalorder %s32, 1
      %p165 = por %p163, %p164
      %p167 = scmp.ne.s32.totalorder %s152, %s166
      %p168 = scmp.eq.s32.totalorder %s32, 0
      %p169 = por %p167, %p168
      %s171 = sadd.s32 %s170, 1
      %p174 = scmp.eq.s32.totalorder %s26, 1
      %p175 = scmp.ne.s32.totalorder %s170, %s172
      %p176 = scmp.eq.s32.totalorder %s26, 0
      %p177 = por %p175, %p176
      %p178 = scmp.ne.s32.totalorder %s170, %s172
      %p179 = scmp.eq.s32.totalorder %s31, 1
      %p180 = por %p178, %p179
      %p181 = scmp.ne.s32.totalorder %s172, %s173
      %p182 = scmp.eq.s32.totalorder %s31, 0
      %p183 = por %p181, %p182
      %p184 = scmp.ne.s32.totalorder %s172, %s173
      %p185 = scmp.eq.s32.totalorder %s32, 1
      %p186 = por %p184, %p185
      %p188 = scmp.ne.s32.totalorder %s173, %s187
      %p189 = scmp.eq.s32.totalorder %s32, 0
      %p190 = por %p188, %p189
      %s192 = sadd.s32 %s191, 1
      %p195 = scmp.eq.s32.totalorder %s26, 1
      %p196 = scmp.ne.s32.totalorder %s191, %s193
      %p197 = scmp.eq.s32.totalorder %s26, 0
      %p198 = por %p196, %p197
      %p199 = scmp.ne.s32.totalorder %s191, %s193
      %p200 = scmp.eq.s32.totalorder %s31, 1
      %p201 = por %p199, %p200
      %p202 = scmp.ne.s32.totalorder %s193, %s194
      %p203 = scmp.eq.s32.totalorder %s31, 0
      %p204 = por %p202, %p203
      %p205 = scmp.ne.s32.totalorder %s193, %s194
      %p206 = scmp.eq.s32.totalorder %s32, 1
      %p207 = por %p205, %p206
      %p209 = scmp.ne.s32.totalorder %s194, %s208
      %p210 = scmp.eq.s32.totalorder %s32, 0
      %p211 = por %p209, %p210
      %s213 = sadd.s32 %s212, 1
      %p216 = scmp.eq.s32.totalorder %s26, 1
      %p217 = scmp.ne.s32.totalorder %s212, %s214
      %p218 = scmp.eq.s32.totalorder %s26, 0
      %p219 = por %p217, %p218
      %p220 = scmp.ne.s32.totalorder %s212, %s214
      %p221 = scmp.eq.s32.totalorder %s31, 1
      %p222 = por %p220, %p221
      %p223 = scmp.ne.s32.totalorder %s214, %s215
      %p224 = scmp.eq.s32.totalorder %s31, 0
      %p225 = por %p223, %p224
      %p226 = scmp.ne.s32.totalorder %s214, %s215
      %p227 = scmp.eq.s32.totalorder %s32, 1
      %p228 = por %p226, %p227
      %p230 = scmp.ne.s32.totalorder %s215, %s229
      %p231 = scmp.eq.s32.totalorder %s32, 0
      %p232 = por %p230, %p231
      %s234 = sadd.s32 %s233, 1
      %p237 = scmp.eq.s32.totalorder %s26, 1
      %p238 = scmp.ne.s32.totalorder %s233, %s235
      %p239 = scmp.eq.s32.totalorder %s26, 0
      %p240 = por %p238, %p239
      %p241 = scmp.ne.s32.totalorder %s233, %s235
      %p242 = scmp.eq.s32.totalorder %s31, 1
      %p243 = por %p241, %p242
      %p244 = scmp.ne.s32.totalorder %s235, %s236
      %p245 = scmp.eq.s32.totalorder %s31, 0
      %p246 = por %p244, %p245
      %p247 = scmp.ne.s32.totalorder %s235, %s236
      %p248 = scmp.eq.s32.totalorder %s32, 1
      %p249 = por %p247, %p248
      %p251 = scmp.ne.s32.totalorder %s236, %s250
      %p252 = scmp.eq.s32.totalorder %s32, 0
      %p253 = por %p251, %p252
      %s255 = sadd.s32 %s254, 1
      %p258 = scmp.eq.s32.totalorder %s26, 1
      %p259 = scmp.ne.s32.totalorder %s254, %s256
      %p260 = scmp.eq.s32.totalorder %s26, 0
      %p261 = por %p259, %p260
      %p262 = scmp.ne.s32.totalorder %s254, %s256
      %p263 = scmp.eq.s32.totalorder %s31, 1
      %p264 = por %p262, %p263
      %p265 = scmp.ne.s32.totalorder %s256, %s257
      %p266 = scmp.eq.s32.totalorder %s31, 0
      %p267 = por %p265, %p266
      %p268 = scmp.ne.s32.totalorder %s256, %s257
      %p269 = scmp.eq.s32.totalorder %s32, 1
      %p270 = por %p268, %p269
      %p272 = scmp.ne.s32.totalorder %s257, %s271
      %p273 = scmp.eq.s32.totalorder %s32, 0
      %p274 = por %p272, %p273
      %s276 = sadd.s32 %s275, 1
      %p279 = scmp.eq.s32.totalorder %s26, 1
      %p280 = scmp.ne.s32.totalorder %s275, %s277
      %p281 = scmp.eq.s32.totalorder %s26, 0
      %p282 = por %p280, %p281
      %p283 = scmp.ne.s32.totalorder %s275, %s277
      %p284 = scmp.eq.s32.totalorder %s31, 1
      %p285 = por %p283, %p284
      %p286 = scmp.ne.s32.totalorder %s277, %s278
      %p287 = scmp.eq.s32.totalorder %s31, 0
      %p288 = por %p286, %p287
      %p289 = scmp.ne.s32.totalorder %s277, %s278
      %p290 = scmp.eq.s32.totalorder %s32, 1
      %p291 = por %p289, %p290
      %p293 = scmp.ne.s32.totalorder %s278, %s292
      %p294 = scmp.eq.s32.totalorder %s32, 0
      %p295 = por %p293, %p294
      %s297 = sadd.s32 %s296, 1
      %p300 = scmp.eq.s32.totalorder %s26, 1
      %p301 = scmp.ne.s32.totalorder %s296, %s298
      %p302 = scmp.eq.s32.totalorder %s26, 0
      %p303 = por %p301, %p302
      %p304 = scmp.ne.s32.totalorder %s296, %s298
      %p305 = scmp.eq.s32.totalorder %s31, 1
      %p306 = por %p304, %p305
      %p307 = scmp.ne.s32.totalorder %s298, %s299
      %p308 = scmp.eq.s32.totalorder %s31, 0
      %p309 = por %p307, %p308
      %p310 = scmp.ne.s32.totalorder %s298, %s299
      %p311 = scmp.eq.s32.totalorder %s32, 1
      %p312 = por %p310, %p311
      %p314 = scmp.ne.s32.totalorder %s299, %s313
      %p315 = scmp.eq.s32.totalorder %s32, 0
      %p316 = por %p314, %p315
      %s318 = sadd.s32 %s317, 1
      %p321 = scmp.eq.s32.totalorder %s26, 1
      %p322 = scmp.ne.s32.totalorder %s317, %s319
      %p323 = scmp.eq.s32.totalorder %s26, 0
      %p324 = por %p322, %p323
      %p325 = scmp.ne.s32.totalorder %s317, %s319
      %p326 = scmp.eq.s32.totalorder %s31, 1
      %p327 = por %p325, %p326
      %p328 = scmp.ne.s32.totalorder %s319, %s320
      %p329 = scmp.eq.s32.totalorder %s31, 0
      %p330 = por %p328, %p329
      %p331 = scmp.ne.s32.totalorder %s319, %s320
      %p332 = scmp.eq.s32.totalorder %s32, 1
      %p333 = por %p331, %p332
      %p335 = scmp.ne.s32.totalorder %s320, %s334
      %p336 = scmp.eq.s32.totalorder %s32, 0
      %p337 = por %p335, %p336
      %s339 = sadd.s32 %s338, 1
      %p342 = scmp.eq.s32.totalorder %s26, 1
      %p343 = scmp.ne.s32.totalorder %s338, %s340
      %p344 = scmp.eq.s32.totalorder %s26, 0
      %p345 = por %p343, %p344
      %p346 = scmp.ne.s32.totalorder %s338, %s340
      %p347 = scmp.eq.s32.totalorder %s31, 1
      %p348 = por %p346, %p347
      %p349 = scmp.ne.s32.totalorder %s340, %s341
      %p350 = scmp.eq.s32.totalorder %s31, 0
      %p351 = por %p349, %p350
      %p352 = scmp.ne.s32.totalorder %s340, %s341
      %p353 = scmp.eq.s32.totalorder %s32, 1
      %p354 = por %p352, %p353
      %p356 = scmp.ne.s32.totalorder %s341, %s355
      %p357 = scmp.eq.s32.totalorder %s32, 0
      %p358 = por %p356, %p357
      %s359 = ssub.s32 %s26, %s33
      %p360 = scmp.eq.s32.totalorder %s359, 0
      %s362 = sadd.s32 %s361, 1
      %s363 = scalar_select %p360, %s361, %s362
      %p366 = pneg %p360
      %p367 = scmp.eq.s32.totalorder %s26, 1
      %p368 = por %p366, %p367
      %p369 = scmp.ne.s32.totalorder %s361, %s364
      %p370 = scmp.eq.s32.totalorder %s26, 0
      %p371 = por %p369, %p370
      %p372 = scmp.ne.s32.totalorder %s361, %s364
      %p373 = scmp.eq.s32.totalorder %s31, 1
      %p374 = por %p372, %p373
      %p375 = scmp.ne.s32.totalorder %s364, %s365
      %p376 = scmp.eq.s32.totalorder %s31, 0
      %p377 = por %p375, %p376
      %p378 = scmp.ne.s32.totalorder %s364, %s365
      %p379 = scmp.eq.s32.totalorder %s32, 1
      %p380 = por %p378, %p379
      %p382 = scmp.ne.s32.totalorder %s365, %s381
      %p383 = scmp.eq.s32.totalorder %s32, 0
      %p384 = por %p382, %p383
      %p385 = scmp.le.s32.totalorder 1, %s26
      %p386 = scmp.lt.s32.totalorder %s26, 3
      %p387 = pnand %p385, %p386
      %p388 = pneg %p387
      // Predicated region
      $region9: #{tpu_custom_call.1} parent=5 // pred_check
        _
      $region10: #{tpu_custom_call.1} parent=5 // pred_check_branch
        %390 = sbr.rel (%p387) target = $region12
      $region11: #{tpu_custom_call.1} parent=5 // pred_region
        %s391 = ssub.s32 %s26, 1
        // Predicated region
        $region13: #{tpu_custom_call.1} parent=11 // pred_check
          %p392 = pneg %p99
        $region14: #{tpu_custom_call.1} parent=11 // pred_check_branch
          %394 = sbr.rel (%p392) target = $region16
        $region15: #{tpu_custom_call.1} parent=11 // pred_region
          _
        $region16: #{tpu_custom_call.1} parent=11 // pred_fallthru
          _
        // Predicated region
        $region17: #{tpu_custom_call.1} parent=11 // pred_check
          %p395 = pneg %p120
        $region18: #{tpu_custom_call.1} parent=11 // pred_check_branch
          %397 = sbr.rel (%p395) target = $region20
        $region19: #{tpu_custom_call.1} parent=11 // pred_region
          _
        $region20: #{tpu_custom_call.1} parent=11 // pred_fallthru
          _
        // Predicated region
        $region21: #{tpu_custom_call.1} parent=11 // pred_check
          %p398 = pneg %p141
        $region22: #{tpu_custom_call.1} parent=11 // pred_check_branch
          %400 = sbr.rel (%p398) target = $region24
        $region23: #{tpu_custom_call.1} parent=11 // pred_region
          _
        $region24: #{tpu_custom_call.1} parent=11 // pred_fallthru
          _
        // Predicated region
        $region25: #{tpu_custom_call.1} parent=11 // pred_check
          %p401 = pneg %p162
        $region26: #{tpu_custom_call.1} parent=11 // pred_check_branch
          %403 = sbr.rel (%p401) target = $region28
        $region27: #{tpu_custom_call.1} parent=11 // pred_region
          _
        $region28: #{tpu_custom_call.1} parent=11 // pred_fallthru
          _
        // Predicated region
        $region29: #{tpu_custom_call.1} parent=11 // pred_check
          %p404 = pneg %p183
        $region30: #{tpu_custom_call.1} parent=11 // pred_check_branch
          %406 = sbr.rel (%p404) target = $region32
        $region31: #{tpu_custom_call.1} parent=11 // pred_region
          %s408 = ssub.s32 4608, 4608
          %409 = vsyncadd [#allocation7], %s408
          %s410 = sshll.u32 [#allocation6], 4
          %s411 = int_to_ptr.vmem [resolvable:$true] %s410
          %416 = dma.hbm_to_vmem [thread:$0]  %s6, 4608, %s411, [#allocation7], 64, 64, 4
        $region32: #{tpu_custom_call.1} parent=11 // pred_fallthru
          _
        // Predicated region
        $region33: #{tpu_custom_call.1} parent=11 // pred_check
          %p417 = pneg %p204
        $region34: #{tpu_custom_call.1} parent=11 // pred_check_branch
          %419 = sbr.rel (%p417) target = $region36
        $region35: #{tpu_custom_call.1} parent=11 // pred_region
          _
        $region36: #{tpu_custom_call.1} parent=11 // pred_fallthru
          _
        // Predicated region
        $region37: #{tpu_custom_call.1} parent=11 // pred_check
          %p420 = pneg %p225
        $region38: #{tpu_custom_call.1} parent=11 // pred_check_branch
          %422 = sbr.rel (%p420) target = $region40
        $region39: #{tpu_custom_call.1} parent=11 // pred_region
          _
        $region40: #{tpu_custom_call.1} parent=11 // pred_fallthru
          _
        // Predicated region
        $region41: #{tpu_custom_call.1} parent=11 // pred_check
          %p423 = pneg %p246
        $region42: #{tpu_custom_call.1} parent=11 // pred_check_branch
          %425 = sbr.rel (%p423) target = $region44
        $region43: #{tpu_custom_call.1} parent=11 // pred_region
          _
        $region44: #{tpu_custom_call.1} parent=11 // pred_fallthru
          _
        // Predicated region
        $region45: #{tpu_custom_call.1} parent=11 // pred_check
          %p426 = pneg %p267
        $region46: #{tpu_custom_call.1} parent=11 // pred_check_branch
          %428 = sbr.rel (%p426) target = $region48
        $region47: #{tpu_custom_call.1} parent=11 // pred_region
          %s430 = ssub.s32 32768, 32768
          %431 = vsyncadd [#allocation10], %s430
          %s432 = sshll.u32 [#allocation9], 4
          %s433 = int_to_ptr.vmem [resolvable:$true] %s432
          %438 = dma.hbm_to_vmem [thread:$0]  %s10, 32768, %s433, [#allocation10], 64, 64, 4
        $region48: #{tpu_custom_call.1} parent=11 // pred_fallthru
          _
        // Predicated region
        $region49: #{tpu_custom_call.1} parent=11 // pred_check
          %p439 = pneg %p288
        $region50: #{tpu_custom_call.1} parent=11 // pred_check_branch
          %441 = sbr.rel (%p439) target = $region52
        $region51: #{tpu_custom_call.1} parent=11 // pred_region
          _
        $region52: #{tpu_custom_call.1} parent=11 // pred_fallthru
          _
        // Predicated region
        $region53: #{tpu_custom_call.1} parent=11 // pred_check
          %p442 = pneg %p309
        $region54: #{tpu_custom_call.1} parent=11 // pred_check_branch
          %444 = sbr.rel (%p442) target = $region56
        $region55: #{tpu_custom_call.1} parent=11 // pred_region
          _
        $region56: #{tpu_custom_call.1} parent=11 // pred_fallthru
          _
        // Predicated region
        $region57: #{tpu_custom_call.1} parent=11 // pred_check
          %p445 = pneg %p330
        $region58: #{tpu_custom_call.1} parent=11 // pred_check_branch
          %447 = sbr.rel (%p445) target = $region60
        $region59: #{tpu_custom_call.1} parent=11 // pred_region
          _
        $region60: #{tpu_custom_call.1} parent=11 // pred_fallthru
          _
        // Predicated region
        $region61: #{tpu_custom_call.1} parent=11 // pred_check
          %p448 = pneg %p351
        $region62: #{tpu_custom_call.1} parent=11 // pred_check_branch
          %450 = sbr.rel (%p448) target = $region64
        $region63: #{tpu_custom_call.1} parent=11 // pred_region
          _
        $region64: #{tpu_custom_call.1} parent=11 // pred_fallthru
          _
      $region12: #{tpu_custom_call.1} parent=5 // pred_fallthru
        _
      %p451 = scmp.lt.s32.totalorder %s26, 2
      // Predicated region
      $region65: #{tpu_custom_call.1} parent=5 // pred_check
        %p452 = pneg %p451
      $region66: #{tpu_custom_call.1} parent=5 // pred_check_branch
        %454 = sbr.rel (%p452) target = $region68
      $region67: #{tpu_custom_call.1} parent=5 // pred_region
        // Predicated region
        $region69: #{tpu_custom_call.1} parent=67 // pred_check
          %p455 = pneg %p46
        $region70: #{tpu_custom_call.1} parent=67 // pred_check_branch
          %457 = sbr.rel (%p455) target = $region72
        $region71: #{tpu_custom_call.1} parent=67 // pred_region
          %p458 = scmp.lt.s32.totalorder %s26, 1
          %s459 = scalar_select %p458, %s26, 1
          %s460 = smul.addr %s459, 8
          %s461 = smul.addr %s460, 8
          %s462 = scalar_lea.vmem %s0, %s461
        $region72: #{tpu_custom_call.1} parent=67 // pred_fallthru
          _
        // Predicated region
        $region73: #{tpu_custom_call.1} parent=67 // pred_check
          %p463 = pneg %p72
        $region74: #{tpu_custom_call.1} parent=67 // pred_check_branch
          %465 = sbr.rel (%p463) target = $region76
        $region75: #{tpu_custom_call.1} parent=67 // pred_region
          %p466 = scmp.lt.s32.totalorder %s26, 1
          %s467 = scalar_select %p466, %s26, 1
          %s468 = scalar_lea.vmem %s1, %s467
        $region76: #{tpu_custom_call.1} parent=67 // pred_fallthru
          _
      $region68: #{tpu_custom_call.1} parent=5 // pred_fallthru
        _
      %p469 = scmp.le.s32.totalorder 1, %s26
      %p470 = scmp.lt.s32.totalorder %s26, 3
      %p471 = pnand %p469, %p470
      %p472 = pneg %p471
      // Predicated region
      $region77: #{tpu_custom_call.1} parent=5 // pred_check
        _
      $region78: #{tpu_custom_call.1} parent=5 // pred_check_branch
        %474 = sbr.rel (%p471) target = $region80
      $region79: #{tpu_custom_call.1} parent=5 // pred_region
        %s475 = ssub.s32 %s26, 1
        // Predicated region
        $region81: #{tpu_custom_call.1} parent=79 // pred_check
          %p476 = pneg %p183
        $region82: #{tpu_custom_call.1} parent=79 // pred_check_branch
          %478 = sbr.rel (%p476) target = $region84
        $region83: #{tpu_custom_call.1} parent=79 // pred_region
          %479 = dma.done [#allocation7], 4608
        $region84: #{tpu_custom_call.1} parent=79 // pred_fallthru
          _
        // Predicated region
        $region85: #{tpu_custom_call.1} parent=79 // pred_check
          %p480 = pneg %p267
        $region86: #{tpu_custom_call.1} parent=79 // pred_check_branch
          %482 = sbr.rel (%p480) target = $region88
        $region87: #{tpu_custom_call.1} parent=79 // pred_region
          %483 = dma.done [#allocation10], 32768
        $region88: #{tpu_custom_call.1} parent=79 // pred_fallthru
          _
        %p484 = scmp.lt.s32.totalorder %s31, 1
        %s485 = scalar_select %p484, %s31, 1
        %s486 = smul.addr %s485, 8
        %s487 = smul.addr %s486, 8
        %s488 = scalar_lea.vmem %s0, %s487
        %p489 = pneg %p52
        %p490 = pneg %p49
        %p491 = scmp.lt.s32.totalorder %s31, 1
        %s492 = scalar_select %p491, %s31, 1
        %s493 = scalar_lea.vmem %s1, %s492
        %p494 = pneg %p78
        %p495 = pneg %p75
        %p496 = pneg %p99
        %p497 = pneg %p96
        %p498 = pneg %p120
        %p499 = pneg %p117
        %p500 = pneg %p141
        %p501 = pneg %p138
        %p502 = pneg %p162
        %p503 = pneg %p159
        %p504 = pneg %p183
        %p505 = pneg %p180
        %p506 = pneg %p204
        %p507 = pneg %p201
        %p508 = pneg %p225
        %p509 = pneg %p222
        %p510 = pneg %p246
        %p511 = pneg %p243
        %p512 = pneg %p267
        %p513 = pneg %p264
        %p514 = pneg %p288
        %p515 = pneg %p285
        %p516 = pneg %p309
        %p517 = pneg %p306
        %p518 = pneg %p330
        %p519 = pneg %p327
        %p520 = pneg %p351
        %p521 = pneg %p348
        %p522 = pneg %p377
        %p523 = pneg %p374
        %s524 = sand.u32 %s364, 1
        %s525 = scalar_lea.sflag [#allocation8], %s524
        %s526 = sand.u32 %s364, 1
        %s527 = scalar_lea.vmem [#allocation11], %s526
        %p528 = scmp.lt.s32.totalorder %s31, 1
        %s529 = scalar_select %p528, %s31, 1
        %s530 = smul.addr %s529, 8
        %s531 = smul.addr %s530, 8
        %s532 = scalar_lea.vmem %s0, %s531
        %p533 = scmp.lt.s32.totalorder %s31, 1
        %s534 = scalar_select %p533, %s31, 1
        %s535 = scalar_lea.vmem %s1, %s534
        %v537 = vld [vmem:[%s532] sm:$0xff]
        %v538 = vld [vmem:[%s532 + $0x8] sm:$0xff]
        %v539 = vld [vmem:[%s532 + $0x10] sm:$0xff]
        %v540 = vld [vmem:[%s532 + $0x18] sm:$0xff]
        %v541 = vld [vmem:[%s532 + $0x20] sm:$0xff]
        %v542 = vld [vmem:[%s532 + $0x28] sm:$0xff]
        %v543 = vld [vmem:[%s532 + $0x30] sm:$0xff]
        %v544 = vld [vmem:[%s532 + $0x38] sm:$0xff]
        %vm545 = vcmask 31744
        %546 = vst.msk [vmem:[#allocation2] sm:$0xff] %vm545, 0.0
        %vm547 = vcmask 25600
        %548 = vst.msk [vmem:[#allocation2 + $0x8] sm:$0x3] %vm547, 0.0
        %549 = vst.msk [vmem:[#allocation2 + $0x10] sm:$0xff] %vm545, 0.0
        %550 = vst.msk [vmem:[#allocation2 + $0x18] sm:$0x3] %vm547, 0.0
        %551 = vst.msk [vmem:[#allocation2 + $0x20] sm:$0xff] %vm545, 0.0
        %552 = vst.msk [vmem:[#allocation2 + $0x28] sm:$0x3] %vm547, 0.0
        %553 = vst.msk [vmem:[#allocation2 + $0x30] sm:$0xff] %vm545, 0.0
        %554 = vst.msk [vmem:[#allocation2 + $0x38] sm:$0x3] %vm547, 0.0
        %555 = vst.msk [vmem:[#allocation2 + $0x40] sm:$0xff] %vm545, 0.0
        %556 = vst.msk [vmem:[#allocation2 + $0x48] sm:$0x3] %vm547, 0.0
        %557 = vst.msk [vmem:[#allocation2 + $0x50] sm:$0xff] %vm545, 0.0
        %558 = vst.msk [vmem:[#allocation2 + $0x58] sm:$0x3] %vm547, 0.0
        %559 = vst.msk [vmem:[#allocation2 + $0x60] sm:$0xff] %vm545, 0.0
        %560 = vst.msk [vmem:[#allocation2 + $0x68] sm:$0x3] %vm547, 0.0
        %561 = vst.msk [vmem:[#allocation2 + $0x70] sm:$0xff] %vm545, 0.0
        %562 = vst.msk [vmem:[#allocation2 + $0x78] sm:$0x3] %vm547, 0.0
        %563 = vst.msk [vmem:[#allocation2 + $0x80] sm:$0xff] %vm545, 0.0
        %564 = vst.msk [vmem:[#allocation2 + $0x88] sm:$0x3] %vm547, 0.0
        %565 = vst.msk [vmem:[#allocation2 + $0x90] sm:$0xff] %vm545, 0.0
        %566 = vst.msk [vmem:[#allocation2 + $0x98] sm:$0x3] %vm547, 0.0
        %s567 = scalar_lea.vmem [#allocation2], 16
        %568 = vst.msk [vmem:[%s567 + $0x1] sm:$0xff] %vm545, %v537
        %569 = vst.msk [vmem:[%s567 + $0x11] sm:$0xff] %vm545, %v538
        %570 = vst.msk [vmem:[%s567 + $0x21] sm:$0xff] %vm545, %v539
        %571 = vst.msk [vmem:[%s567 + $0x31] sm:$0xff] %vm545, %v540
        %572 = vst.msk [vmem:[%s567 + $0x41] sm:$0xff] %vm545, %v541
        %573 = vst.msk [vmem:[%s567 + $0x51] sm:$0xff] %vm545, %v542
        %574 = vst.msk [vmem:[%s567 + $0x61] sm:$0xff] %vm545, %v543
        %575 = vst.msk [vmem:[%s567 + $0x71] sm:$0xff] %vm545, %v544
        %v576 = vld [vmem:[#allocation2] sm:$0xff]
        %v577 = vld [vmem:[#allocation2 + $0x10] sm:$0xff]
        %v578 = vld [vmem:[#allocation2 + $0x20] sm:$0xff]
        %v579 = vld [vmem:[#allocation2 + $0x30] sm:$0xff]
        %v580 = vld [vmem:[#allocation2 + $0x40] sm:$0xff]
        %v581 = vld [vmem:[#allocation2 + $0x50] sm:$0xff]
        %v582 = vld [vmem:[#allocation2 + $0x60] sm:$0xff]
        %v583 = vld [vmem:[#allocation2 + $0x70] sm:$0xff]
        %v584 = vpack.c.bf16 %v577, %v576
        %v585 = vpack.c.bf16 %v579, %v578
        %v586 = vpack.c.bf16 %v581, %v580
        %v587 = vpack.c.bf16 %v583, %v582
        %v588 = vld [vmem:[%s2] sm:$0x3]
        %v589 = vld [vmem:[#allocation2 + $0x1] sm:$0xff]
        %v590 = vld [vmem:[#allocation2 + $0x11] sm:$0xff]
        %v591 = vld [vmem:[#allocation2 + $0x21] sm:$0xff]
        %v592 = vld [vmem:[#allocation2 + $0x31] sm:$0xff]
        %v593 = vld [vmem:[#allocation2 + $0x41] sm:$0xff]
        %v594 = vld [vmem:[#allocation2 + $0x51] sm:$0xff]
        %v595 = vld [vmem:[#allocation2 + $0x61] sm:$0xff]
        %v596 = vld [vmem:[#allocation2 + $0x71] sm:$0xff]
        %v597 = vpack.c.bf16 %v590, %v589
        %v598 = vpack.c.bf16 %v592, %v591
        %v599 = vpack.c.bf16 %v594, %v593
        %v600 = vpack.c.bf16 %v596, %v595
        %s601 = scalar_lea.vmem %s2, 2
        %v602 = vld [vmem:[%s601] sm:$0x3]
        %v604 = vsel %vm545, %v597, 0
        %v607 = vsel %vm545, %v598, 0
        %v610 = vsel %vm545, %v599, 0
        %v613 = vsel %vm545, %v600, 0
        %vm615 = vcmask 1041408
        %v617 = vsel %vm615, %v602, 0
        %619 = vmatprep.subr.bf16.mxu0 0
        %620 = vmatpush1.bf16.msra.mxu0 %v617
        %621 = vmatprep.subr.bf16.mxu0 0
        %622 = vmatpush1.bf16.msra.mxu0 0
        %623 = vmatprep.subr.bf16.mxu0 0
        %624 = vmatpush1.bf16.msra.mxu0 0
        %625 = vmatprep.subr.bf16.mxu0 0
        %626 = vmatpush1.bf16.msra.mxu0 0
        %627 = vmatprep.subr.bf16.mxu0 0
        %628 = vmatpush1.bf16.msra.mxu0 0
        %629 = vmatprep.subr.bf16.mxu0 0
        %630 = vmatpush1.bf16.msra.mxu0 0
        %631 = vmatprep.subr.bf16.mxu0 0
        %632 = vmatpush1.bf16.msra.mxu0 0
        %633 = vmatprep.subr.bf16.mxu0 0
        %634 = vmatpush1.bf16.msra.mxu0 0
        %635 = vmatprep.subr.bf16.mxu0 0
        %636 = vmatpush1.bf16.msra.mxu0 0
        %637 = vmatprep.subr.bf16.mxu0 0
        %638 = vmatpush1.bf16.msra.mxu0 0
        %639 = vmatprep.subr.bf16.mxu0 0
        %640 = vmatpush1.bf16.msra.mxu0 0
        %641 = vmatprep.subr.bf16.mxu0 0
        %642 = vmatpush1.bf16.msra.mxu0 0
        %643 = vmatprep.subr.bf16.mxu0 0
        %644 = vmatpush1.bf16.msra.mxu0 0
        %645 = vmatprep.subr.bf16.mxu0 0
        %646 = vmatpush1.bf16.msra.mxu0 0
        %647 = vmatprep.subr.bf16.mxu0 0
        %648 = vmatpush1.bf16.msra.mxu0 0
        %649 = vmatprep.subr.bf16.mxu0 0
        %650 = vmatpush1.bf16.msra.mxu0 0
        %651 = vmatprep.mubr.bf16.mxu0 0
        %652 = vmatmul.mubr.bf16.gmra.mrb[0].mxu0 %v604
        %v653 = vpop.f32.mrb[0].mxu0
        %v654 = vadd.f32 0.0, %v653
        %v655 = vpop.f32.mrb[0].mxu0
        %v656 = vpop.f32.mrb[0].mxu0
        %v657 = vadd.f32 0.0, %v656
        %v658 = vpop.f32.mrb[0].mxu0
        %659 = vmatprep.mubr.bf16.mxu0 0
        %660 = vmatmul.mubr.bf16.gmra.mrb[0].mxu0 %v607
        %v661 = vpop.f32.mrb[0].mxu0
        %v662 = vadd.f32 0.0, %v661
        %v663 = vpop.f32.mrb[0].mxu0
        %v664 = vpop.f32.mrb[0].mxu0
        %v665 = vadd.f32 0.0, %v664
        %v666 = vpop.f32.mrb[0].mxu0
        %667 = vmatprep.mubr.bf16.mxu0 0
        %668 = vmatmul.mubr.bf16.gmra.mrb[0].mxu0 %v610
        %v669 = vpop.f32.mrb[0].mxu0
        %v670 = vadd.f32 0.0, %v669
        %v671 = vpop.f32.mrb[0].mxu0
        %v672 = vpop.f32.mrb[0].mxu0
        %v673 = vadd.f32 0.0, %v672
        %v674 = vpop.f32.mrb[0].mxu0
        %675 = vmatprep.mubr.bf16.mxu0 0
        %676 = vmatmul.mubr.bf16.gmra.mrb[0].mxu0 %v613
        %v677 = vpop.f32.mrb[0].mxu0
        %v678 = vadd.f32 0.0, %v677
        %v679 = vpop.f32.mrb[0].mxu0
        %v680 = vpop.f32.mrb[0].mxu0
        %v681 = vadd.f32 0.0, %v680
        %v682 = vpop.f32.mrb[0].mxu0
        %683 = vdwg.mxu0
        %v685 = vsel %vm545, %v584, 0
        %v688 = vsel %vm545, %v585, 0
        %v691 = vsel %vm545, %v586, 0
        %v694 = vsel %vm545, %v587, 0
        %v697 = vsel %vm615, %v588, 0
        %699 = vmatprep.subr.bf16.mxu0 0
        %700 = vmatpush1.bf16.msra.mxu0 %v697
        %701 = vmatprep.subr.bf16.mxu0 0
        %702 = vmatpush1.bf16.msra.mxu0 0
        %703 = vmatprep.subr.bf16.mxu0 0
        %704 = vmatpush1.bf16.msra.mxu0 0
        %705 = vmatprep.subr.bf16.mxu0 0
        %706 = vmatpush1.bf16.msra.mxu0 0
        %707 = vmatprep.subr.bf16.mxu0 0
        %708 = vmatpush1.bf16.msra.mxu0 0
        %709 = vmatprep.subr.bf16.mxu0 0
        %710 = vmatpush1.bf16.msra.mxu0 0
        %711 = vmatprep.subr.bf16.mxu0 0
        %712 = vmatpush1.bf16.msra.mxu0 0
        %713 = vmatprep.subr.bf16.mxu0 0
        %714 = vmatpush1.bf16.msra.mxu0 0
        %715 = vmatprep.subr.bf16.mxu0 0
        %716 = vmatpush1.bf16.msra.mxu0 0
        %717 = vmatprep.subr.bf16.mxu0 0
        %718 = vmatpush1.bf16.msra.mxu0 0
        %719 = vmatprep.subr.bf16.mxu0 0
        %720 = vmatpush1.bf16.msra.mxu0 0
        %721 = vmatprep.subr.bf16.mxu0 0
        %722 = vmatpush1.bf16.msra.mxu0 0
        %723 = vmatprep.subr.bf16.mxu0 0
        %724 = vmatpush1.bf16.msra.mxu0 0
        %725 = vmatprep.subr.bf16.mxu0 0
        %726 = vmatpush1.bf16.msra.mxu0 0
        %727 = vmatprep.subr.bf16.mxu0 0
        %728 = vmatpush1.bf16.msra.mxu0 0
        %729 = vmatprep.subr.bf16.mxu0 0
        %730 = vmatpush1.bf16.msra.mxu0 0
        %731 = vmatprep.mubr.bf16.mxu0 0
        %732 = vmatmul.mubr.bf16.gmra.mrb[0].mxu0 %v685
        %v733 = vpop.f32.mrb[0].mxu0
        %v734 = vadd.f32 %v654, %v733
        %v735 = vpop.f32.mrb[0].mxu0
        %v736 = vpop.f32.mrb[0].mxu0
        %v737 = vadd.f32 %v657, %v736
        %v738 = vpop.f32.mrb[0].mxu0
        %739 = vmatprep.mubr.bf16.mxu0 0
        %740 = vmatmul.mubr.bf16.gmra.mrb[0].mxu0 %v688
        %v741 = vpop.f32.mrb[0].mxu0
        %v742 = vadd.f32 %v662, %v741
        %v743 = vpop.f32.mrb[0].mxu0
        %v744 = vpop.f32.mrb[0].mxu0
        %v745 = vadd.f32 %v665, %v744
        %v746 = vpop.f32.mrb[0].mxu0
        %747 = vmatprep.mubr.bf16.mxu0 0
        %748 = vmatmul.mubr.bf16.gmra.mrb[0].mxu0 %v691
        %v749 = vpop.f32.mrb[0].mxu0
        %v750 = vadd.f32 %v670, %v749
        %v751 = vpop.f32.mrb[0].mxu0
        %v752 = vpop.f32.mrb[0].mxu0
        %v753 = vadd.f32 %v673, %v752
        %v754 = vpop.f32.mrb[0].mxu0
        %755 = vmatprep.mubr.bf16.mxu0 0
        %756 = vmatmul.mubr.bf16.gmra.mrb[0].mxu0 %v694
        %v757 = vpop.f32.mrb[0].mxu0
        %v758 = vadd.f32 %v678, %v757
        %v759 = vpop.f32.mrb[0].mxu0
        %v760 = vpop.f32.mrb[0].mxu0
        %v761 = vadd.f32 %v681, %v760
        %v762 = vpop.f32.mrb[0].mxu0
        %763 = vdwg.mxu0
        %v764 = vld [vmem:[#allocation2 + $0x2] sm:$0xff]
        %v765 = vld [vmem:[#allocation2 + $0x12] sm:$0xff]
        %v766 = vld [vmem:[#allocation2 + $0x22] sm:$0xff]
        %v767 = vld [vmem:[#allocation2 + $0x32] sm:$0xff]
        %v768 = vld [vmem:[#allocation2 + $0x42] sm:$0xff]
        %v769 = vld [vmem:[#allocation2 + $0x52] sm:$0xff]
        %v770 = vld [vmem:[#allocation2 + $0x62] sm:$0xff]
        %v771 = vld [vmem:[#allocation2 + $0x72] sm:$0xff]
        %v772 = vpack.c.bf16 %v765, %v764
        %v773 = vpack.c.bf16 %v767, %v766
        %v774 = vpack.c.bf16 %v769, %v768
        %v775 = vpack.c.bf16 %v771, %v770
        %s776 = scalar_lea.vmem %s2, 4
        %v777 = vld [vmem:[%s776] sm:$0x3]
        %v779 = vsel %vm545, %v772, 0
        %v782 = vsel %vm545, %v773, 0
        %v785 = vsel %vm545, %v774, 0
        %v788 = vsel %vm545, %v775, 0
        %v791 = vsel %vm615, %v777, 0
        %793 = vmatprep.subr.bf16.mxu0 0
        %794 = vmatpush1.bf16.msra.mxu0 %v791
        %795 = vmatprep.subr.bf16.mxu0 0
        %796 = vmatpush1.bf16.msra.mxu0 0
        %797 = vmatprep.subr.bf16.mxu0 0
        %798 = vmatpush1.bf16.msra.mxu0 0
        %799 = vmatprep.subr.bf16.mxu0 0
        %800 = vmatpush1.bf16.msra.mxu0 0
        %801 = vmatprep.subr.bf16.mxu0 0
        %802 = vmatpush1.bf16.msra.mxu0 0
        %803 = vmatprep.subr.bf16.mxu0 0
        %804 = vmatpush1.bf16.msra.mxu0 0
        %805 = vmatprep.subr.bf16.mxu0 0
        %806 = vmatpush1.bf16.msra.mxu0 0
        %807 = vmatprep.subr.bf16.mxu0 0
        %808 = vmatpush1.bf16.msra.mxu0 0
        %809 = vmatprep.subr.bf16.mxu0 0
        %810 = vmatpush1.bf16.msra.mxu0 0
        %811 = vmatprep.subr.bf16.mxu0 0
        %812 = vmatpush1.bf16.msra.mxu0 0
        %813 = vmatprep.subr.bf16.mxu0 0
        %814 = vmatpush1.bf16.msra.mxu0 0
        %815 = vmatprep.subr.bf16.mxu0 0
        %816 = vmatpush1.bf16.msra.mxu0 0
        %817 = vmatprep.subr.bf16.mxu0 0
        %818 = vmatpush1.bf16.msra.mxu0 0
        %819 = vmatprep.subr.bf16.mxu0 0
        %820 = vmatpush1.bf16.msra.mxu0 0
        %821 = vmatprep.subr.bf16.mxu0 0
        %822 = vmatpush1.bf16.msra.mxu0 0
        %823 = vmatprep.subr.bf16.mxu0 0
        %824 = vmatpush1.bf16.msra.mxu0 0
        %825 = vmatprep.mubr.bf16.mxu0 0
        %826 = vmatmul.mubr.bf16.gmra.mrb[0].mxu0 %v779
        %v827 = vpop.f32.mrb[0].mxu0
        %v828 = vadd.f32 0.0, %v827
        %v829 = vpop.f32.mrb[0].mxu0
        %v830 = vpop.f32.mrb[0].mxu0
        %v831 = vadd.f32 0.0, %v830
        %v832 = vpop.f32.mrb[0].mxu0
        %833 = vmatprep.mubr.bf16.mxu0 0
        %834 = vmatmul.mubr.bf16.gmra.mrb[0].mxu0 %v782
        %v835 = vpop.f32.mrb[0].mxu0
        %v836 = vadd.f32 0.0, %v835
        %v837 = vpop.f32.mrb[0].mxu0
        %v838 = vpop.f32.mrb[0].mxu0
        %v839 = vadd.f32 0.0, %v838
        %v840 = vpop.f32.mrb[0].mxu0
        %841 = vmatprep.mubr.bf16.mxu0 0
        %842 = vmatmul.mubr.bf16.gmra.mrb[0].mxu0 %v785
        %v843 = vpop.f32.mrb[0].mxu0
        %v844 = vadd.f32 0.0, %v843
        %v845 = vpop.f32.mrb[0].mxu0
        %v846 = vpop.f32.mrb[0].mxu0
        %v847 = vadd.f32 0.0, %v846
        %v848 = vpop.f32.mrb[0].mxu0
        %849 = vmatprep.mubr.bf16.mxu0 0
        %850 = vmatmul.mubr.bf16.gmra.mrb[0].mxu0 %v788
        %v851 = vpop.f32.mrb[0].mxu0
        %v852 = vadd.f32 0.0, %v851
        %v853 = vpop.f32.mrb[0].mxu0
        %v854 = vpop.f32.mrb[0].mxu0
        %v855 = vadd.f32 0.0, %v854
        %v856 = vpop.f32.mrb[0].mxu0
        %857 = vdwg.mxu0
        %v858 = vadd.f32 %v734, %v828
        %v859 = vadd.f32 %v737, %v831
        %v860 = vadd.f32 %v742, %v836
        %v861 = vadd.f32 %v745, %v839
        %v862 = vadd.f32 %v750, %v844
        %v863 = vadd.f32 %v753, %v847
        %v864 = vadd.f32 %v758, %v852
        %v865 = vadd.f32 %v761, %v855
        %v866 = vld [vmem:[%s567] sm:$0xff]
        %v867 = vld [vmem:[%s567 + $0x10] sm:$0xff]
        %v868 = vld [vmem:[%s567 + $0x20] sm:$0xff]
        %v869 = vld [vmem:[%s567 + $0x30] sm:$0xff]
        %v870 = vld [vmem:[%s567 + $0x40] sm:$0xff]
        %v871 = vld [vmem:[%s567 + $0x50] sm:$0xff]
        %v872 = vld [vmem:[%s567 + $0x60] sm:$0xff]
        %v873 = vld [vmem:[%s567 + $0x70] sm:$0xff]
        %v874 = vpack.c.bf16 %v867, %v866
        %v875 = vpack.c.bf16 %v869, %v868
        %v876 = vpack.c.bf16 %v871, %v870
        %v877 = vpack.c.bf16 %v873, %v872
        %s878 = scalar_lea.vmem %s2, 6
        %v879 = vld [vmem:[%s878] sm:$0x3]
        %v881 = vsel %vm545, %v874, 0
        %v884 = vsel %vm545, %v875, 0
        %v887 = vsel %vm545, %v876, 0
        %v890 = vsel %vm545, %v877, 0
        %v893 = vsel %vm615, %v879, 0
        %895 = vmatprep.subr.bf16.mxu0 0
        %896 = vmatpush1.bf16.msra.mxu0 %v893
        %897 = vmatprep.subr.bf16.mxu0 0
        %898 = vmatpush1.bf16.msra.mxu0 0
        %899 = vmatprep.subr.bf16.mxu0 0
        %900 = vmatpush1.bf16.msra.mxu0 0
        %901 = vmatprep.subr.bf16.mxu0 0
        %902 = vmatpush1.bf16.msra.mxu0 0
        %903 = vmatprep.subr.bf16.mxu0 0
        %904 = vmatpush1.bf16.msra.mxu0 0
        %905 = vmatprep.subr.bf16.mxu0 0
        %906 = vmatpush1.bf16.msra.mxu0 0
        %907 = vmatprep.subr.bf16.mxu0 0
        %908 = vmatpush1.bf16.msra.mxu0 0
        %909 = vmatprep.subr.bf16.mxu0 0
        %910 = vmatpush1.bf16.msra.mxu0 0
        %911 = vmatprep.subr.bf16.mxu0 0
        %912 = vmatpush1.bf16.msra.mxu0 0
        %913 = vmatprep.subr.bf16.mxu0 0
        %914 = vmatpush1.bf16.msra.mxu0 0
        %915 = vmatprep.subr.bf16.mxu0 0
        %916 = vmatpush1.bf16.msra.mxu0 0
        %917 = vmatprep.subr.bf16.mxu0 0
        %918 = vmatpush1.bf16.msra.mxu0 0
        %919 = vmatprep.subr.bf16.mxu0 0
        %920 = vmatpush1.bf16.msra.mxu0 0
        %921 = vmatprep.subr.bf16.mxu0 0
        %922 = vmatpush1.bf16.msra.mxu0 0
        %923 = vmatprep.subr.bf16.mxu0 0
        %924 = vmatpush1.bf16.msra.mxu0 0
        %925 = vmatprep.subr.bf16.mxu0 0
        %926 = vmatpush1.bf16.msra.mxu0 0
        %927 = vmatprep.mubr.bf16.mxu0 0
        %928 = vmatmul.mubr.bf16.gmra.mrb[0].mxu0 %v881
        %v929 = vpop.f32.mrb[0].mxu0
        %v930 = vadd.f32 0.0, %v929
        %v931 = vpop.f32.mrb[0].mxu0
        %v932 = vpop.f32.mrb[0].mxu0
        %v933 = vadd.f32 0.0, %v932
        %v934 = vpop.f32.mrb[0].mxu0
        %935 = vmatprep.mubr.bf16.mxu0 0
        %936 = vmatmul.mubr.bf16.gmra.mrb[0].mxu0 %v884
        %v937 = vpop.f32.mrb[0].mxu0
        %v938 = vadd.f32 0.0, %v937
        %v939 = vpop.f32.mrb[0].mxu0
        %v940 = vpop.f32.mrb[0].mxu0
        %v941 = vadd.f32 0.0, %v940
        %v942 = vpop.f32.mrb[0].mxu0
        %943 = vmatprep.mubr.bf16.mxu0 0
        %944 = vmatmul.mubr.bf16.gmra.mrb[0].mxu0 %v887
        %v945 = vpop.f32.mrb[0].mxu0
        %v946 = vadd.f32 0.0, %v945
        %v947 = vpop.f32.mrb[0].mxu0
        %v948 = vpop.f32.mrb[0].mxu0
        %v949 = vadd.f32 0.0, %v948
        %v950 = vpop.f32.mrb[0].mxu0
        %951 = vmatprep.mubr.bf16.mxu0 0
        %952 = vmatmul.mubr.bf16.gmra.mrb[0].mxu0 %v890
        %v953 = vpop.f32.mrb[0].mxu0
        %v954 = vadd.f32 0.0, %v953
        %v955 = vpop.f32.mrb[0].mxu0
        %v956 = vpop.f32.mrb[0].mxu0
        %v957 = vadd.f32 0.0, %v956
        %v958 = vpop.f32.mrb[0].mxu0
        %959 = vdwg.mxu0
        %v960 = vadd.f32 %v858, %v930
        %v961 = vadd.f32 %v859, %v933
        %v962 = vadd.f32 %v860, %v938
        %v963 = vadd.f32 %v861, %v941
        %v964 = vadd.f32 %v862, %v946
        %v965 = vadd.f32 %v863, %v949
        %v966 = vadd.f32 %v864, %v954
        %v967 = vadd.f32 %v865, %v957
        %v968 = vld [vmem:[%s567 + $0x1] sm:$0xff]
        %v969 = vld [vmem:[%s567 + $0x11] sm:$0xff]
        %v970 = vld [vmem:[%s567 + $0x21] sm:$0xff]
        %v971 = vld [vmem:[%s567 + $0x31] sm:$0xff]
        %v972 = vld [vmem:[%s567 + $0x41] sm:$0xff]
        %v973 = vld [vmem:[%s567 + $0x51] sm:$0xff]
        %v974 = vld [vmem:[%s567 + $0x61] sm:$0xff]
        %v975 = vld [vmem:[%s567 + $0x71] sm:$0xff]
        %v976 = vpack.c.bf16 %v969, %v968
        %v977 = vpack.c.bf16 %v971, %v970
        %v978 = vpack.c.bf16 %v973, %v972
        %v979 = vpack.c.bf16 %v975, %v974
        %s980 = scalar_lea.vmem %s2, 8
        %v981 = vld [vmem:[%s980] sm:$0x3]
        %v983 = vsel %vm545, %v976, 0
        %v986 = vsel %vm545, %v977, 0
        %v989 = vsel %vm545, %v978, 0
        %v992 = vsel %vm545, %v979, 0
        %v995 = vsel %vm615, %v981, 0
        %997 = vmatprep.subr.bf16.mxu0 0
        %998 = vmatpush1.bf16.msra.mxu0 %v995
        %999 = vmatprep.subr.bf16.mxu0 0
        %1000 = vmatpush1.bf16.msra.mxu0 0
        %1001 = vmatprep.subr.bf16.mxu0 0
        %1002 = vmatpush1.bf16.msra.mxu0 0
        %1003 = vmatprep.subr.bf16.mxu0 0
        %1004 = vmatpush1.bf16.msra.mxu0 0
        %1005 = vmatprep.subr.bf16.mxu0 0
        %1006 = vmatpush1.bf16.msra.mxu0 0
        %1007 = vmatprep.subr.bf16.mxu0 0
        %1008 = vmatpush1.bf16.msra.mxu0 0
        %1009 = vmatprep.subr.bf16.mxu0 0
        %1010 = vmatpush1.bf16.msra.mxu0 0
        %1011 = vmatprep.subr.bf16.mxu0 0
        %1012 = vmatpush1.bf16.msra.mxu0 0
        %1013 = vmatprep.subr.bf16.mxu0 0
        %1014 = vmatpush1.bf16.msra.mxu0 0
        %1015 = vmatprep.subr.bf16.mxu0 0
        %1016 = vmatpush1.bf16.msra.mxu0 0
        %1017 = vmatprep.subr.bf16.mxu0 0
        %1018 = vmatpush1.bf16.msra.mxu0 0
        %1019 = vmatprep.subr.bf16.mxu0 0
        %1020 = vmatpush1.bf16.msra.mxu0 0
        %1021 = vmatprep.subr.bf16.mxu0 0
        %1022 = vmatpush1.bf16.msra.mxu0 0
        %1023 = vmatprep.subr.bf16.mxu0 0
        %1024 = vmatpush1.bf16.msra.mxu0 0
        %1025 = vmatprep.subr.bf16.mxu0 0
        %1026 = vmatpush1.bf16.msra.mxu0 0
        %1027 = vmatprep.subr.bf16.mxu0 0
        %1028 = vmatpush1.bf16.msra.mxu0 0
        %1029 = vmatprep.mubr.bf16.mxu0 0
        %1030 = vmatmul.mubr.bf16.gmra.mrb[0].mxu0 %v983
        %v1031 = vpop.f32.mrb[0].mxu0
        %v1032 = vadd.f32 0.0, %v1031
        %v1033 = vpop.f32.mrb[0].mxu0
        %v1034 = vpop.f32.mrb[0].mxu0
        %v1035 = vadd.f32 0.0, %v1034
        %v1036 = vpop.f32.mrb[0].mxu0
        %1037 = vmatprep.mubr.bf16.mxu0 0
        %1038 = vmatmul.mubr.bf16.gmra.mrb[0].mxu0 %v986
        %v1039 = vpop.f32.mrb[0].mxu0
        %v1040 = vadd.f32 0.0, %v1039
        %v1041 = vpop.f32.mrb[0].mxu0
        %v1042 = vpop.f32.mrb[0].mxu0
        %v1043 = vadd.f32 0.0, %v1042
        %v1044 = vpop.f32.mrb[0].mxu0
        %1045 = vmatprep.mubr.bf16.mxu0 0
        %1046 = vmatmul.mubr.bf16.gmra.mrb[0].mxu0 %v989
        %v1047 = vpop.f32.mrb[0].mxu0
        %v1048 = vadd.f32 0.0, %v1047
        %v1049 = vpop.f32.mrb[0].mxu0
        %v1050 = vpop.f32.mrb[0].mxu0
        %v1051 = vadd.f32 0.0, %v1050
        %v1052 = vpop.f32.mrb[0].mxu0
        %1053 = vmatprep.mubr.bf16.mxu0 0
        %1054 = vmatmul.mubr.bf16.gmra.mrb[0].mxu0 %v992
        %v1055 = vpop.f32.mrb[0].mxu0
        %v1056 = vadd.f32 0.0, %v1055
        %v1057 = vpop.f32.mrb[0].mxu0
        %v1058 = vpop.f32.mrb[0].mxu0
        %v1059 = vadd.f32 0.0, %v1058
        %v1060 = vpop.f32.mrb[0].mxu0
        %1061 = vdwg.mxu0
        %v1062 = vadd.f32 %v960, %v1032
        %v1063 = vadd.f32 %v961, %v1035
        %v1064 = vadd.f32 %v962, %v1040
        %v1065 = vadd.f32 %v963, %v1043
        %v1066 = vadd.f32 %v964, %v1048
        %v1067 = vadd.f32 %v965, %v1051
        %v1068 = vadd.f32 %v966, %v1056
        %v1069 = vadd.f32 %v967, %v1059
        %v1070 = vld [vmem:[%s567 + $0x2] sm:$0xff]
        %v1071 = vld [vmem:[%s567 + $0x12] sm:$0xff]
        %v1072 = vld [vmem:[%s567 + $0x22] sm:$0xff]
        %v1073 = vld [vmem:[%s567 + $0x32] sm:$0xff]
        %v1074 = vld [vmem:[%s567 + $0x42] sm:$0xff]
        %v1075 = vld [vmem:[%s567 + $0x52] sm:$0xff]
        %v1076 = vld [vmem:[%s567 + $0x62] sm:$0xff]
        %v1077 = vld [vmem:[%s567 + $0x72] sm:$0xff]
        %v1078 = vpack.c.bf16 %v1071, %v1070
        %v1079 = vpack.c.bf16 %v1073, %v1072
        %v1080 = vpack.c.bf16 %v1075, %v1074
        %v1081 = vpack.c.bf16 %v1077, %v1076
        %s1082 = scalar_lea.vmem %s2, 10
        %v1083 = vld [vmem:[%s1082] sm:$0x3]
        %v1085 = vsel %vm545, %v1078, 0
        %v1088 = vsel %vm545, %v1079, 0
        %v1091 = vsel %vm545, %v1080, 0
        %v1094 = vsel %vm545, %v1081, 0
        %v1097 = vsel %vm615, %v1083, 0
        %1099 = vmatprep.subr.bf16.mxu0 0
        %1100 = vmatpush1.bf16.msra.mxu0 %v1097
        %1101 = vmatprep.subr.bf16.mxu0 0
        %1102 = vmatpush1.bf16.msra.mxu0 0
        %1103 = vmatprep.subr.bf16.mxu0 0
        %1104 = vmatpush1.bf16.msra.mxu0 0
        %1105 = vmatprep.subr.bf16.mxu0 0
        %1106 = vmatpush1.bf16.msra.mxu0 0
        %1107 = vmatprep.subr.bf16.mxu0 0
        %1108 = vmatpush1.bf16.msra.mxu0 0
        %1109 = vmatprep.subr.bf16.mxu0 0
        %1110 = vmatpush1.bf16.msra.mxu0 0
        %1111 = vmatprep.subr.bf16.mxu0 0
        %1112 = vmatpush1.bf16.msra.mxu0 0
        %1113 = vmatprep.subr.bf16.mxu0 0
        %1114 = vmatpush1.bf16.msra.mxu0 0
        %1115 = vmatprep.subr.bf16.mxu0 0
        %1116 = vmatpush1.bf16.msra.mxu0 0
        %1117 = vmatprep.subr.bf16.mxu0 0
        %1118 = vmatpush1.bf16.msra.mxu0 0
        %1119 = vmatprep.subr.bf16.mxu0 0
        %1120 = vmatpush1.bf16.msra.mxu0 0
        %1121 = vmatprep.subr.bf16.mxu0 0
        %1122 = vmatpush1.bf16.msra.mxu0 0
        %1123 = vmatprep.subr.bf16.mxu0 0
        %1124 = vmatpush1.bf16.msra.mxu0 0
        %1125 = vmatprep.subr.bf16.mxu0 0
        %1126 = vmatpush1.bf16.msra.mxu0 0
        %1127 = vmatprep.subr.bf16.mxu0 0
        %1128 = vmatpush1.bf16.msra.mxu0 0
        %1129 = vmatprep.subr.bf16.mxu0 0
        %1130 = vmatpush1.bf16.msra.mxu0 0
        %1131 = vmatprep.mubr.bf16.mxu0 0
        %1132 = vmatmul.mubr.bf16.gmra.mrb[0].mxu0 %v1085
        %v1133 = vpop.f32.mrb[0].mxu0
        %v1134 = vadd.f32 0.0, %v1133
        %v1135 = vpop.f32.mrb[0].mxu0
        %v1136 = vpop.f32.mrb[0].mxu0
        %v1137 = vadd.f32 0.0, %v1136
        %v1138 = vpop.f32.mrb[0].mxu0
        %1139 = vmatprep.mubr.bf16.mxu0 0
        %1140 = vmatmul.mubr.bf16.gmra.mrb[0].mxu0 %v1088
        %v1141 = vpop.f32.mrb[0].mxu0
        %v1142 = vadd.f32 0.0, %v1141
        %v1143 = vpop.f32.mrb[0].mxu0
        %v1144 = vpop.f32.mrb[0].mxu0
        %v1145 = vadd.f32 0.0, %v1144
        %v1146 = vpop.f32.mrb[0].mxu0
        %1147 = vmatprep.mubr.bf16.mxu0 0
        %1148 = vmatmul.mubr.bf16.gmra.mrb[0].mxu0 %v1091
        %v1149 = vpop.f32.mrb[0].mxu0
        %v1150 = vadd.f32 0.0, %v1149
        %v1151 = vpop.f32.mrb[0].mxu0
        %v1152 = vpop.f32.mrb[0].mxu0
        %v1153 = vadd.f32 0.0, %v1152
        %v1154 = vpop.f32.mrb[0].mxu0
        %1155 = vmatprep.mubr.bf16.mxu0 0
        %1156 = vmatmul.mubr.bf16.gmra.mrb[0].mxu0 %v1094
        %v1157 = vpop.f32.mrb[0].mxu0
        %v1158 = vadd.f32 0.0, %v1157
        %v1159 = vpop.f32.mrb[0].mxu0
        %v1160 = vpop.f32.mrb[0].mxu0
        %v1161 = vadd.f32 0.0, %v1160
        %v1162 = vpop.f32.mrb[0].mxu0
        %1163 = vdwg.mxu0
        %v1164 = vadd.f32 %v1062, %v1134
        %v1165 = vadd.f32 %v1063, %v1137
        %v1166 = vadd.f32 %v1064, %v1142
        %v1167 = vadd.f32 %v1065, %v1145
        %v1168 = vadd.f32 %v1066, %v1150
        %v1169 = vadd.f32 %v1067, %v1153
        %v1170 = vadd.f32 %v1068, %v1158
        %v1171 = vadd.f32 %v1069, %v1161
        %s1172 = scalar_lea.vmem [#allocation2], 32
        %v1173 = vld [vmem:[%s1172] sm:$0xff]
        %v1174 = vld [vmem:[%s1172 + $0x10] sm:$0xff]
        %v1175 = vld [vmem:[%s1172 + $0x20] sm:$0xff]
        %v1176 = vld [vmem:[%s1172 + $0x30] sm:$0xff]
        %v1177 = vld [vmem:[%s1172 + $0x40] sm:$0xff]
        %v1178 = vld [vmem:[%s1172 + $0x50] sm:$0xff]
        %v1179 = vld [vmem:[%s1172 + $0x60] sm:$0xff]
        %v1180 = vld [vmem:[%s1172 + $0x70] sm:$0xff]
        %v1181 = vpack.c.bf16 %v1174, %v1173
        %v1182 = vpack.c.bf16 %v1176, %v1175
        %v1183 = vpack.c.bf16 %v1178, %v1177
        %v1184 = vpack.c.bf16 %v1180, %v1179
        %s1185 = scalar_lea.vmem %s2, 12
        %v1186 = vld [vmem:[%s1185] sm:$0x3]
        %v1188 = vsel %vm545, %v1181, 0
        %v1191 = vsel %vm545, %v1182, 0
        %v1194 = vsel %vm545, %v1183, 0
        %v1197 = vsel %vm545, %v1184, 0
        %v1200 = vsel %vm615, %v1186, 0
        %1202 = vmatprep.subr.bf16.mxu0 0
        %1203 = vmatpush1.bf16.msra.mxu0 %v1200
        %1204 = vmatprep.subr.bf16.mxu0 0
        %1205 = vmatpush1.bf16.msra.mxu0 0
        %1206 = vmatprep.subr.bf16.mxu0 0
        %1207 = vmatpush1.bf16.msra.mxu0 0
        %1208 = vmatprep.subr.bf16.mxu0 0
        %1209 = vmatpush1.bf16.msra.mxu0 0
        %1210 = vmatprep.subr.bf16.mxu0 0
        %1211 = vmatpush1.bf16.msra.mxu0 0
        %1212 = vmatprep.subr.bf16.mxu0 0
        %1213 = vmatpush1.bf16.msra.mxu0 0
        %1214 = vmatprep.subr.bf16.mxu0 0
        %1215 = vmatpush1.bf16.msra.mxu0 0
        %1216 = vmatprep.subr.bf16.mxu0 0
        %1217 = vmatpush1.bf16.msra.mxu0 0
        %1218 = vmatprep.subr.bf16.mxu0 0
        %1219 = vmatpush1.bf16.msra.mxu0 0
        %1220 = vmatprep.subr.bf16.mxu0 0
        %1221 = vmatpush1.bf16.msra.mxu0 0
        %1222 = vmatprep.subr.bf16.mxu0 0
        %1223 = vmatpush1.bf16.msra.mxu0 0
        %1224 = vmatprep.subr.bf16.mxu0 0
        %1225 = vmatpush1.bf16.msra.mxu0 0
        %1226 = vmatprep.subr.bf16.mxu0 0
        %1227 = vmatpush1.bf16.msra.mxu0 0
        %1228 = vmatprep.subr.bf16.mxu0 0
        %1229 = vmatpush1.bf16.msra.mxu0 0
        %1230 = vmatprep.subr.bf16.mxu0 0
        %1231 = vmatpush1.bf16.msra.mxu0 0
        %1232 = vmatprep.subr.bf16.mxu0 0
        %1233 = vmatpush1.bf16.msra.mxu0 0
        %1234 = vmatprep.mubr.bf16.mxu0 0
        %1235 = vmatmul.mubr.bf16.gmra.mrb[0].mxu0 %v1188
        %v1236 = vpop.f32.mrb[0].mxu0
        %v1237 = vadd.f32 0.0, %v1236
        %v1238 = vpop.f32.mrb[0].mxu0
        %v1239 = vpop.f32.mrb[0].mxu0
        %v1240 = vadd.f32 0.0, %v1239
        %v1241 = vpop.f32.mrb[0].mxu0
        %1242 = vmatprep.mubr.bf16.mxu0 0
        %1243 = vmatmul.mubr.bf16.gmra.mrb[0].mxu0 %v1191
        %v1244 = vpop.f32.mrb[0].mxu0
        %v1245 = vadd.f32 0.0, %v1244
        %v1246 = vpop.f32.mrb[0].mxu0
        %v1247 = vpop.f32.mrb[0].mxu0
        %v1248 = vadd.f32 0.0, %v1247
        %v1249 = vpop.f32.mrb[0].mxu0
        %1250 = vmatprep.mubr.bf16.mxu0 0
        %1251 = vmatmul.mubr.bf16.gmra.mrb[0].mxu0 %v1194
        %v1252 = vpop.f32.mrb[0].mxu0
        %v1253 = vadd.f32 0.0, %v1252
        %v1254 = vpop.f32.mrb[0].mxu0
        %v1255 = vpop.f32.mrb[0].mxu0
        %v1256 = vadd.f32 0.0, %v1255
        %v1257 = vpop.f32.mrb[0].mxu0
        %1258 = vmatprep.mubr.bf16.mxu0 0
        %1259 = vmatmul.mubr.bf16.gmra.mrb[0].mxu0 %v1197
        %v1260 = vpop.f32.mrb[0].mxu0
        %v1261 = vadd.f32 0.0, %v1260
        %v1262 = vpop.f32.mrb[0].mxu0
        %v1263 = vpop.f32.mrb[0].mxu0
        %v1264 = vadd.f32 0.0, %v1263
        %v1265 = vpop.f32.mrb[0].mxu0
        %1266 = vdwg.mxu0
        %v1267 = vadd.f32 %v1164, %v1237
        %v1268 = vadd.f32 %v1165, %v1240
        %v1269 = vadd.f32 %v1166, %v1245
        %v1270 = vadd.f32 %v1167, %v1248
        %v1271 = vadd.f32 %v1168, %v1253
        %v1272 = vadd.f32 %v1169, %v1256
        %v1273 = vadd.f32 %v1170, %v1261
        %v1274 = vadd.f32 %v1171, %v1264
        %v1275 = vld [vmem:[%s1172 + $0x1] sm:$0xff]
        %v1276 = vld [vmem:[%s1172 + $0x11] sm:$0xff]
        %v1277 = vld [vmem:[%s1172 + $0x21] sm:$0xff]
        %v1278 = vld [vmem:[%s1172 + $0x31] sm:$0xff]
        %v1279 = vld [vmem:[%s1172 + $0x41] sm:$0xff]
        %v1280 = vld [vmem:[%s1172 + $0x51] sm:$0xff]
        %v1281 = vld [vmem:[%s1172 + $0x61] sm:$0xff]
        %v1282 = vld [vmem:[%s1172 + $0x71] sm:$0xff]
        %v1283 = vpack.c.bf16 %v1276, %v1275
        %v1284 = vpack.c.bf16 %v1278, %v1277
        %v1285 = vpack.c.bf16 %v1280, %v1279
        %v1286 = vpack.c.bf16 %v1282, %v1281
        %s1287 = scalar_lea.vmem %s2, 14
        %v1288 = vld [vmem:[%s1287] sm:$0x3]
        %v1290 = vsel %vm545, %v1283, 0
        %v1293 = vsel %vm545, %v1284, 0
        %v1296 = vsel %vm545, %v1285, 0
        %v1299 = vsel %vm545, %v1286, 0
        %v1302 = vsel %vm615, %v1288, 0
        %1304 = vmatprep.subr.bf16.mxu0 0
        %1305 = vmatpush1.bf16.msra.mxu0 %v1302
        %1306 = vmatprep.subr.bf16.mxu0 0
        %1307 = vmatpush1.bf16.msra.mxu0 0
        %1308 = vmatprep.subr.bf16.mxu0 0
        %1309 = vmatpush1.bf16.msra.mxu0 0
        %1310 = vmatprep.subr.bf16.mxu0 0
        %1311 = vmatpush1.bf16.msra.mxu0 0
        %1312 = vmatprep.subr.bf16.mxu0 0
        %1313 = vmatpush1.bf16.msra.mxu0 0
        %1314 = vmatprep.subr.bf16.mxu0 0
        %1315 = vmatpush1.bf16.msra.mxu0 0
        %1316 = vmatprep.subr.bf16.mxu0 0
        %1317 = vmatpush1.bf16.msra.mxu0 0
        %1318 = vmatprep.subr.bf16.mxu0 0
        %1319 = vmatpush1.bf16.msra.mxu0 0
        %1320 = vmatprep.subr.bf16.mxu0 0
        %1321 = vmatpush1.bf16.msra.mxu0 0
        %1322 = vmatprep.subr.bf16.mxu0 0
        %1323 = vmatpush1.bf16.msra.mxu0 0
        %1324 = vmatprep.subr.bf16.mxu0 0
        %1325 = vmatpush1.bf16.msra.mxu0 0
        %1326 = vmatprep.subr.bf16.mxu0 0
        %1327 = vmatpush1.bf16.msra.mxu0 0
        %1328 = vmatprep.subr.bf16.mxu0 0
        %1329 = vmatpush1.bf16.msra.mxu0 0
        %1330 = vmatprep.subr.bf16.mxu0 0
        %1331 = vmatpush1.bf16.msra.mxu0 0
        %1332 = vmatprep.subr.bf16.mxu0 0
        %1333 = vmatpush1.bf16.msra.mxu0 0
        %1334 = vmatprep.subr.bf16.mxu0 0
        %1335 = vmatpush1.bf16.msra.mxu0 0
        %1336 = vmatprep.mubr.bf16.mxu0 0
        %1337 = vmatmul.mubr.bf16.gmra.mrb[0].mxu0 %v1290
        %v1338 = vpop.f32.mrb[0].mxu0
        %v1339 = vadd.f32 0.0, %v1338
        %v1340 = vpop.f32.mrb[0].mxu0
        %v1341 = vpop.f32.mrb[0].mxu0
        %v1342 = vadd.f32 0.0, %v1341
        %v1343 = vpop.f32.mrb[0].mxu0
        %1344 = vmatprep.mubr.bf16.mxu0 0
        %1345 = vmatmul.mubr.bf16.gmra.mrb[0].mxu0 %v1293
        %v1346 = vpop.f32.mrb[0].mxu0
        %v1347 = vadd.f32 0.0, %v1346
        %v1348 = vpop.f32.mrb[0].mxu0
        %v1349 = vpop.f32.mrb[0].mxu0
        %v1350 = vadd.f32 0.0, %v1349
        %v1351 = vpop.f32.mrb[0].mxu0
        %1352 = vmatprep.mubr.bf16.mxu0 0
        %1353 = vmatmul.mubr.bf16.gmra.mrb[0].mxu0 %v1296
        %v1354 = vpop.f32.mrb[0].mxu0
        %v1355 = vadd.f32 0.0, %v1354
        %v1356 = vpop.f32.mrb[0].mxu0
        %v1357 = vpop.f32.mrb[0].mxu0
        %v1358 = vadd.f32 0.0, %v1357
        %v1359 = vpop.f32.mrb[0].mxu0
        %1360 = vmatprep.mubr.bf16.mxu0 0
        %1361 = vmatmul.mubr.bf16.gmra.mrb[0].mxu0 %v1299
        %v1362 = vpop.f32.mrb[0].mxu0
        %v1363 = vadd.f32 0.0, %v1362
        %v1364 = vpop.f32.mrb[0].mxu0
        %v1365 = vpop.f32.mrb[0].mxu0
        %v1366 = vadd.f32 0.0, %v1365
        %v1367 = vpop.f32.mrb[0].mxu0
        %1368 = vdwg.mxu0
        %v1369 = vadd.f32 %v1267, %v1339
        %v1370 = vadd.f32 %v1268, %v1342
        %v1371 = vadd.f32 %v1269, %v1347
        %v1372 = vadd.f32 %v1270, %v1350
        %v1373 = vadd.f32 %v1271, %v1355
        %v1374 = vadd.f32 %v1272, %v1358
        %v1375 = vadd.f32 %v1273, %v1363
        %v1376 = vadd.f32 %v1274, %v1366
        %v1377 = vld [vmem:[%s1172 + $0x2] sm:$0xff]
        %v1378 = vld [vmem:[%s1172 + $0x12] sm:$0xff]
        %v1379 = vld [vmem:[%s1172 + $0x22] sm:$0xff]
        %v1380 = vld [vmem:[%s1172 + $0x32] sm:$0xff]
        %v1381 = vld [vmem:[%s1172 + $0x42] sm:$0xff]
        %v1382 = vld [vmem:[%s1172 + $0x52] sm:$0xff]
        %v1383 = vld [vmem:[%s1172 + $0x62] sm:$0xff]
        %v1384 = vld [vmem:[%s1172 + $0x72] sm:$0xff]
        %v1385 = vpack.c.bf16 %v1378, %v1377
        %v1386 = vpack.c.bf16 %v1380, %v1379
        %v1387 = vpack.c.bf16 %v1382, %v1381
        %v1388 = vpack.c.bf16 %v1384, %v1383
        %s1389 = scalar_lea.vmem %s2, 16
        %v1390 = vld [vmem:[%s1389] sm:$0x3]
        %v1392 = vsel %vm545, %v1385, 0
        %v1395 = vsel %vm545, %v1386, 0
        %v1398 = vsel %vm545, %v1387, 0
        %v1401 = vsel %vm545, %v1388, 0
        %v1404 = vsel %vm615, %v1390, 0
        %1406 = vmatprep.subr.bf16.mxu0 0
        %1407 = vmatpush1.bf16.msra.mxu0 %v1404
        %1408 = vmatprep.subr.bf16.mxu0 0
        %1409 = vmatpush1.bf16.msra.mxu0 0
        %1410 = vmatprep.subr.bf16.mxu0 0
        %1411 = vmatpush1.bf16.msra.mxu0 0
        %1412 = vmatprep.subr.bf16.mxu0 0
        %1413 = vmatpush1.bf16.msra.mxu0 0
        %1414 = vmatprep.subr.bf16.mxu0 0
        %1415 = vmatpush1.bf16.msra.mxu0 0
        %1416 = vmatprep.subr.bf16.mxu0 0
        %1417 = vmatpush1.bf16.msra.mxu0 0
        %1418 = vmatprep.subr.bf16.mxu0 0
        %1419 = vmatpush1.bf16.msra.mxu0 0
        %1420 = vmatprep.subr.bf16.mxu0 0
        %1421 = vmatpush1.bf16.msra.mxu0 0
        %1422 = vmatprep.subr.bf16.mxu0 0
        %1423 = vmatpush1.bf16.msra.mxu0 0
        %1424 = vmatprep.subr.bf16.mxu0 0
        %1425 = vmatpush1.bf16.msra.mxu0 0
        %1426 = vmatprep.subr.bf16.mxu0 0
        %1427 = vmatpush1.bf16.msra.mxu0 0
        %1428 = vmatprep.subr.bf16.mxu0 0
        %1429 = vmatpush1.bf16.msra.mxu0 0
        %1430 = vmatprep.subr.bf16.mxu0 0
        %1431 = vmatpush1.bf16.msra.mxu0 0
        %1432 = vmatprep.subr.bf16.mxu0 0
        %1433 = vmatpush1.bf16.msra.mxu0 0
        %1434 = vmatprep.subr.bf16.mxu0 0
        %1435 = vmatpush1.bf16.msra.mxu0 0
        %1436 = vmatprep.subr.bf16.mxu0 0
        %1437 = vmatpush1.bf16.msra.mxu0 0
        %1438 = vmatprep.mubr.bf16.mxu0 0
        %1439 = vmatmul.mubr.bf16.gmra.mrb[0].mxu0 %v1392
        %v1440 = vpop.f32.mrb[0].mxu0
        %v1441 = vadd.f32 0.0, %v1440
        %v1442 = vpop.f32.mrb[0].mxu0
        %v1443 = vpop.f32.mrb[0].mxu0
        %v1444 = vadd.f32 0.0, %v1443
        %v1445 = vpop.f32.mrb[0].mxu0
        %1446 = vmatprep.mubr.bf16.mxu0 0
        %1447 = vmatmul.mubr.bf16.gmra.mrb[0].mxu0 %v1395
        %v1448 = vpop.f32.mrb[0].mxu0
        %v1449 = vadd.f32 0.0, %v1448
        %v1450 = vpop.f32.mrb[0].mxu0
        %v1451 = vpop.f32.mrb[0].mxu0
        %v1452 = vadd.f32 0.0, %v1451
        %v1453 = vpop.f32.mrb[0].mxu0
        %1454 = vmatprep.mubr.bf16.mxu0 0
        %1455 = vmatmul.mubr.bf16.gmra.mrb[0].mxu0 %v1398
        %v1456 = vpop.f32.mrb[0].mxu0
        %v1457 = vadd.f32 0.0, %v1456
        %v1458 = vpop.f32.mrb[0].mxu0
        %v1459 = vpop.f32.mrb[0].mxu0
        %v1460 = vadd.f32 0.0, %v1459
        %v1461 = vpop.f32.mrb[0].mxu0
        %1462 = vmatprep.mubr.bf16.mxu0 0
        %1463 = vmatmul.mubr.bf16.gmra.mrb[0].mxu0 %v1401
        %v1464 = vpop.f32.mrb[0].mxu0
        %v1465 = vadd.f32 0.0, %v1464
        %v1466 = vpop.f32.mrb[0].mxu0
        %v1467 = vpop.f32.mrb[0].mxu0
        %v1468 = vadd.f32 0.0, %v1467
        %v1469 = vpop.f32.mrb[0].mxu0
        %1470 = vdwg.mxu0
        %v1471 = vadd.f32 %v1369, %v1441
        %v1472 = vadd.f32 %v1370, %v1444
        %v1473 = vadd.f32 %v1371, %v1449
        %v1474 = vadd.f32 %v1372, %v1452
        %v1475 = vadd.f32 %v1373, %v1457
        %v1476 = vadd.f32 %v1374, %v1460
        %v1477 = vadd.f32 %v1375, %v1465
        %v1478 = vadd.f32 %v1376, %v1468
        %v1479 = vld [vmem:[%s3] sm:$0x1]
        %v1481 = vlaneseq
        %v1482 = vshrl.u32 %v1481, 7
        %v1483 = vsub.s32 0, %v1482
        %v1484 = vrot.slane %v1479, %v1483
        %v1486 = vadd.f32 %v1471, %v1484
        %v1487 = vadd.f32 %v1472, %v1484
        %v1488 = vadd.f32 %v1473, %v1484
        %v1489 = vadd.f32 %v1474, %v1484
        %v1490 = vadd.f32 %v1475, %v1484
        %v1491 = vadd.f32 %v1476, %v1484
        %v1492 = vadd.f32 %v1477, %v1484
        %v1493 = vadd.f32 %v1478, %v1484
        %v1494 = vmax.f32 %v1486, 0.0
        %v1495 = vmax.f32 %v1487, 0.0
        %v1496 = vmax.f32 %v1488, 0.0
        %v1497 = vmax.f32 %v1489, 0.0
        %v1498 = vmax.f32 %v1490, 0.0
        %v1499 = vmax.f32 %v1491, 0.0
        %v1500 = vmax.f32 %v1492, 0.0
        %v1501 = vmax.f32 %v1493, 0.0
        %vm1502 = vcmask 261120
        %1503 = vst.msk [vmem:[#allocation3] sm:$0xff] %vm1502, 0.0
        %vm1504 = vcmask 254976
        %1505 = vst.msk [vmem:[#allocation3 + $0x8] sm:$0x3] %vm1504, 0.0
        %1506 = vst.msk [vmem:[#allocation3 + $0x10] sm:$0xff] %vm1502, 0.0
        %1507 = vst.msk [vmem:[#allocation3 + $0x18] sm:$0x3] %vm1504, 0.0
        %1508 = vst.msk [vmem:[#allocation3 + $0x20] sm:$0xff] %vm1502, 0.0
        %1509 = vst.msk [vmem:[#allocation3 + $0x28] sm:$0x3] %vm1504, 0.0
        %1510 = vst.msk [vmem:[#allocation3 + $0x30] sm:$0xff] %vm1502, 0.0
        %1511 = vst.msk [vmem:[#allocation3 + $0x38] sm:$0x3] %vm1504, 0.0
        %1512 = vst.msk [vmem:[#allocation3 + $0x40] sm:$0xff] %vm1502, 0.0
        %1513 = vst.msk [vmem:[#allocation3 + $0x48] sm:$0x3] %vm1504, 0.0
        %1514 = vst.msk [vmem:[#allocation3 + $0x50] sm:$0xff] %vm1502, 0.0
        %1515 = vst.msk [vmem:[#allocation3 + $0x58] sm:$0x3] %vm1504, 0.0
        %1516 = vst.msk [vmem:[#allocation3 + $0x60] sm:$0xff] %vm1502, 0.0
        %1517 = vst.msk [vmem:[#allocation3 + $0x68] sm:$0x3] %vm1504, 0.0
        %1518 = vst.msk [vmem:[#allocation3 + $0x70] sm:$0xff] %vm1502, 0.0
        %1519 = vst.msk [vmem:[#allocation3 + $0x78] sm:$0x3] %vm1504, 0.0
        %1520 = vst.msk [vmem:[#allocation3 + $0x80] sm:$0xff] %vm1502, 0.0
        %1521 = vst.msk [vmem:[#allocation3 + $0x88] sm:$0x3] %vm1504, 0.0
        %1522 = vst.msk [vmem:[#allocation3 + $0x90] sm:$0xff] %vm1502, 0.0
        %1523 = vst.msk [vmem:[#allocation3 + $0x98] sm:$0x3] %vm1504, 0.0
        %s1524 = scalar_lea.vmem [#allocation3], 16
        %1525 = vst.msk [vmem:[%s1524 + $0x1] sm:$0xff] %vm1502, %v1494
        %1526 = vst.msk [vmem:[%s1524 + $0x11] sm:$0xff] %vm1502, %v1495
        %1527 = vst.msk [vmem:[%s1524 + $0x21] sm:$0xff] %vm1502, %v1496
        %1528 = vst.msk [vmem:[%s1524 + $0x31] sm:$0xff] %vm1502, %v1497
        %1529 = vst.msk [vmem:[%s1524 + $0x41] sm:$0xff] %vm1502, %v1498
        %1530 = vst.msk [vmem:[%s1524 + $0x51] sm:$0xff] %vm1502, %v1499
        %1531 = vst.msk [vmem:[%s1524 + $0x61] sm:$0xff] %vm1502, %v1500
        %1532 = vst.msk [vmem:[%s1524 + $0x71] sm:$0xff] %vm1502, %v1501
        %v1533 = vld [vmem:[#allocation3] sm:$0xff]
        %v1534 = vld [vmem:[#allocation3 + $0x10] sm:$0xff]
        %v1535 = vld [vmem:[#allocation3 + $0x20] sm:$0xff]
        %v1536 = vld [vmem:[#allocation3 + $0x30] sm:$0xff]
        %v1537 = vld [vmem:[#allocation3 + $0x40] sm:$0xff]
        %v1538 = vld [vmem:[#allocation3 + $0x50] sm:$0xff]
        %v1539 = vld [vmem:[#allocation3 + $0x60] sm:$0xff]
        %v1540 = vld [vmem:[#allocation3 + $0x70] sm:$0xff]
        %v1541 = vpack.c.bf16 %v1534, %v1533
        %v1542 = vpack.c.bf16 %v1536, %v1535
        %v1543 = vpack.c.bf16 %v1538, %v1537
        %v1544 = vpack.c.bf16 %v1540, %v1539
        %v1545 = vld [vmem:[%s4] sm:$0xf]
        %v1546 = vld [vmem:[%s4 + $0x4] sm:$0xf]
        %v1547 = vld [vmem:[%s4 + $0x8] sm:$0xf]
        %v1548 = vld [vmem:[%s4 + $0xc] sm:$0xf]
        %v1549 = vld [vmem:[#allocation3 + $0x1] sm:$0xff]
        %v1550 = vld [vmem:[#allocation3 + $0x11] sm:$0xff]
        %v1551 = vld [vmem:[#allocation3 + $0x21] sm:$0xff]
        %v1552 = vld [vmem:[#allocation3 + $0x31] sm:$0xff]
        %v1553 = vld [vmem:[#allocation3 + $0x41] sm:$0xff]
        %v1554 = vld [vmem:[#allocation3 + $0x51] sm:$0xff]
        %v1555 = vld [vmem:[#allocation3 + $0x61] sm:$0xff]
        %v1556 = vld [vmem:[#allocation3 + $0x71] sm:$0xff]
        %v1557 = vpack.c.bf16 %v1550, %v1549
        %v1558 = vpack.c.bf16 %v1552, %v1551
        %v1559 = vpack.c.bf16 %v1554, %v1553
        %v1560 = vpack.c.bf16 %v1556, %v1555
        %s1561 = scalar_lea.vmem %s4, 16
        %v1562 = vld [vmem:[%s1561] sm:$0xf]
        %v1563 = vld [vmem:[%s1561 + $0x4] sm:$0xf]
        %v1564 = vld [vmem:[%s1561 + $0x8] sm:$0xf]
        %v1565 = vld [vmem:[%s1561 + $0xc] sm:$0xf]
        %v1570 = vunpack.c.l.b16 %v1562
        %v1571 = vunpack.c.l.b16 %v1563
        %v1572 = vunpack.c.l.b16 %v1564
        %v1573 = vunpack.c.l.b16 %v1565
        %v1574 = vpack.c.b16 %v1571, %v1570
        %v1575 = vpack.c.b16 %v1573, %v1572
        %v1579 = vsel %vm1502, %v1557, 0
        %v1582 = vsel %vm1502, %v1558, 0
        %v1585 = vsel %vm1502, %v1559, 0
        %v1588 = vsel %vm1502, %v1560, 0
        %1590 = vmatprep.subr.bf16.mxu0 0
        %1591 = vmatpush1.bf16.msra.mxu0 %v1574
        %1592 = vmatprep.subr.bf16.mxu0 0
        %1593 = vmatpush1.bf16.msra.mxu0 %v1575
        %1594 = vmatprep.subr.bf16.mxu0 0
        %1595 = vmatpush1.bf16.msra.mxu0 0
        %1596 = vmatprep.subr.bf16.mxu0 0
        %1597 = vmatpush1.bf16.msra.mxu0 0
        %1598 = vmatprep.subr.bf16.mxu0 0
        %1599 = vmatpush1.bf16.msra.mxu0 0
        %1600 = vmatprep.subr.bf16.mxu0 0
        %1601 = vmatpush1.bf16.msra.mxu0 0
        %1602 = vmatprep.subr.bf16.mxu0 0
        %1603 = vmatpush1.bf16.msra.mxu0 0
        %1604 = vmatprep.subr.bf16.mxu0 0
        %1605 = vmatpush1.bf16.msra.mxu0 0
        %1606 = vmatprep.subr.bf16.mxu0 0
        %1607 = vmatpush1.bf16.msra.mxu0 0
        %1608 = vmatprep.subr.bf16.mxu0 0
        %1609 = vmatpush1.bf16.msra.mxu0 0
        %1610 = vmatprep.subr.bf16.mxu0 0
        %1611 = vmatpush1.bf16.msra.mxu0 0
        %1612 = vmatprep.subr.bf16.mxu0 0
        %1613 = vmatpush1.bf16.msra.mxu0 0
        %1614 = vmatprep.subr.bf16.mxu0 0
        %1615 = vmatpush1.bf16.msra.mxu0 0
        %1616 = vmatprep.subr.bf16.mxu0 0
        %1617 = vmatpush1.bf16.msra.mxu0 0
        %1618 = vmatprep.subr.bf16.mxu0 0
        %1619 = vmatpush1.bf16.msra.mxu0 0
        %1620 = vmatprep.subr.bf16.mxu0 0
        %1621 = vmatpush1.bf16.msra.mxu0 0
        %1622 = vmatprep.mubr.bf16.mxu0 0
        %1623 = vmatmul.mubr.bf16.gmra.mrb[0].mxu0 %v1579
        %v1624 = vpop.f32.mrb[0].mxu0
        %v1625 = vadd.f32 0.0, %v1624
        %v1626 = vpop.f32.mrb[0].mxu0
        %v1627 = vpop.f32.mrb[0].mxu0
        %v1628 = vadd.f32 0.0, %v1627
        %v1629 = vpop.f32.mrb[0].mxu0
        %1630 = vmatprep.mubr.bf16.mxu0 0
        %1631 = vmatmul.mubr.bf16.gmra.mrb[0].mxu0 %v1582
        %v1632 = vpop.f32.mrb[0].mxu0
        %v1633 = vadd.f32 0.0, %v1632
        %v1634 = vpop.f32.mrb[0].mxu0
        %v1635 = vpop.f32.mrb[0].mxu0
        %v1636 = vadd.f32 0.0, %v1635
        %v1637 = vpop.f32.mrb[0].mxu0
        %1638 = vmatprep.mubr.bf16.mxu0 0
        %1639 = vmatmul.mubr.bf16.gmra.mrb[0].mxu0 %v1585
        %v1640 = vpop.f32.mrb[0].mxu0
        %v1641 = vadd.f32 0.0, %v1640
        %v1642 = vpop.f32.mrb[0].mxu0
        %v1643 = vpop.f32.mrb[0].mxu0
        %v1644 = vadd.f32 0.0, %v1643
        %v1645 = vpop.f32.mrb[0].mxu0
        %1646 = vmatprep.mubr.bf16.mxu0 0
        %1647 = vmatmul.mubr.bf16.gmra.mrb[0].mxu0 %v1588
        %v1648 = vpop.f32.mrb[0].mxu0
        %v1649 = vadd.f32 0.0, %v1648
        %v1650 = vpop.f32.mrb[0].mxu0
        %v1651 = vpop.f32.mrb[0].mxu0
        %v1652 = vadd.f32 0.0, %v1651
        %v1653 = vpop.f32.mrb[0].mxu0
        %1654 = vdwg.mxu0
        %v1659 = vunpack.c.l.b16 %v1545
        %v1660 = vunpack.c.l.b16 %v1546
        %v1661 = vunpack.c.l.b16 %v1547
        %v1662 = vunpack.c.l.b16 %v1548
        %v1663 = vpack.c.b16 %v1660, %v1659
        %v1664 = vpack.c.b16 %v1662, %v1661
        %v1668 = vsel %vm1502, %v1541, 0
        %v1671 = vsel %vm1502, %v1542, 0
        %v1674 = vsel %vm1502, %v1543, 0
        %v1677 = vsel %vm1502, %v1544, 0
        %1679 = vmatprep.subr.bf16.mxu0 0
        %1680 = vmatpush1.bf16.msra.mxu0 %v1663
        %1681 = vmatprep.subr.bf16.mxu0 0
        %1682 = vmatpush1.bf16.msra.mxu0 %v1664
        %1683 = vmatprep.subr.bf16.mxu0 0
        %1684 = vmatpush1.bf16.msra.mxu0 0
        %1685 = vmatprep.subr.bf16.mxu0 0
        %1686 = vmatpush1.bf16.msra.mxu0 0
        %1687 = vmatprep.subr.bf16.mxu0 0
        %1688 = vmatpush1.bf16.msra.mxu0 0
        %1689 = vmatprep.subr.bf16.mxu0 0
        %1690 = vmatpush1.bf16.msra.mxu0 0
        %1691 = vmatprep.subr.bf16.mxu0 0
        %1692 = vmatpush1.bf16.msra.mxu0 0
        %1693 = vmatprep.subr.bf16.mxu0 0
        %1694 = vmatpush1.bf16.msra.mxu0 0
        %1695 = vmatprep.subr.bf16.mxu0 0
        %1696 = vmatpush1.bf16.msra.mxu0 0
        %1697 = vmatprep.subr.bf16.mxu0 0
        %1698 = vmatpush1.bf16.msra.mxu0 0
        %1699 = vmatprep.subr.bf16.mxu0 0
        %1700 = vmatpush1.bf16.msra.mxu0 0
        %1701 = vmatprep.subr.bf16.mxu0 0
        %1702 = vmatpush1.bf16.msra.mxu0 0
        %1703 = vmatprep.subr.bf16.mxu0 0
        %1704 = vmatpush1.bf16.msra.mxu0 0
        %1705 = vmatprep.subr.bf16.mxu0 0
        %1706 = vmatpush1.bf16.msra.mxu0 0
        %1707 = vmatprep.subr.bf16.mxu0 0
        %1708 = vmatpush1.bf16.msra.mxu0 0
        %1709 = vmatprep.subr.bf16.mxu0 0
        %1710 = vmatpush1.bf16.msra.mxu0 0
        %1711 = vmatprep.mubr.bf16.mxu0 0
        %1712 = vmatmul.mubr.bf16.gmra.mrb[0].mxu0 %v1668
        %v1713 = vpop.f32.mrb[0].mxu0
        %v1714 = vadd.f32 %v1625, %v1713
        %v1715 = vpop.f32.mrb[0].mxu0
        %v1716 = vpop.f32.mrb[0].mxu0
        %v1717 = vadd.f32 %v1628, %v1716
        %v1718 = vpop.f32.mrb[0].mxu0
        %1719 = vmatprep.mubr.bf16.mxu0 0
        %1720 = vmatmul.mubr.bf16.gmra.mrb[0].mxu0 %v1671
        %v1721 = vpop.f32.mrb[0].mxu0
        %v1722 = vadd.f32 %v1633, %v1721
        %v1723 = vpop.f32.mrb[0].mxu0
        %v1724 = vpop.f32.mrb[0].mxu0
        %v1725 = vadd.f32 %v1636, %v1724
        %v1726 = vpop.f32.mrb[0].mxu0
        %1727 = vmatprep.mubr.bf16.mxu0 0
        %1728 = vmatmul.mubr.bf16.gmra.mrb[0].mxu0 %v1674
        %v1729 = vpop.f32.mrb[0].mxu0
        %v1730 = vadd.f32 %v1641, %v1729
        %v1731 = vpop.f32.mrb[0].mxu0
        %v1732 = vpop.f32.mrb[0].mxu0
        %v1733 = vadd.f32 %v1644, %v1732
        %v1734 = vpop.f32.mrb[0].mxu0
        %1735 = vmatprep.mubr.bf16.mxu0 0
        %1736 = vmatmul.mubr.bf16.gmra.mrb[0].mxu0 %v1677
        %v1737 = vpop.f32.mrb[0].mxu0
        %v1738 = vadd.f32 %v1649, %v1737
        %v1739 = vpop.f32.mrb[0].mxu0
        %v1740 = vpop.f32.mrb[0].mxu0
        %v1741 = vadd.f32 %v1652, %v1740
        %v1742 = vpop.f32.mrb[0].mxu0
        %1743 = vdwg.mxu0
        %v1744 = vld [vmem:[#allocation3 + $0x2] sm:$0xff]
        %v1745 = vld [vmem:[#allocation3 + $0x12] sm:$0xff]
        %v1746 = vld [vmem:[#allocation3 + $0x22] sm:$0xff]
        %v1747 = vld [vmem:[#allocation3 + $0x32] sm:$0xff]
        %v1748 = vld [vmem:[#allocation3 + $0x42] sm:$0xff]
        %v1749 = vld [vmem:[#allocation3 + $0x52] sm:$0xff]
        %v1750 = vld [vmem:[#allocation3 + $0x62] sm:$0xff]
        %v1751 = vld [vmem:[#allocation3 + $0x72] sm:$0xff]
        %v1752 = vpack.c.bf16 %v1745, %v1744
        %v1753 = vpack.c.bf16 %v1747, %v1746
        %v1754 = vpack.c.bf16 %v1749, %v1748
        %v1755 = vpack.c.bf16 %v1751, %v1750
        %s1756 = scalar_lea.vmem %s4, 32
        %v1757 = vld [vmem:[%s1756] sm:$0xf]
        %v1758 = vld [vmem:[%s1756 + $0x4] sm:$0xf]
        %v1759 = vld [vmem:[%s1756 + $0x8] sm:$0xf]
        %v1760 = vld [vmem:[%s1756 + $0xc] sm:$0xf]
        %v1765 = vunpack.c.l.b16 %v1757
        %v1766 = vunpack.c.l.b16 %v1758
        %v1767 = vunpack.c.l.b16 %v1759
        %v1768 = vunpack.c.l.b16 %v1760
        %v1769 = vpack.c.b16 %v1766, %v1765
        %v1770 = vpack.c.b16 %v1768, %v1767
        %v1774 = vsel %vm1502, %v1752, 0
        %v1777 = vsel %vm1502, %v1753, 0
        %v1780 = vsel %vm1502, %v1754, 0
        %v1783 = vsel %vm1502, %v1755, 0
        %1785 = vmatprep.subr.bf16.mxu0 0
        %1786 = vmatpush1.bf16.msra.mxu0 %v1769
        %1787 = vmatprep.subr.bf16.mxu0 0
        %1788 = vmatpush1.bf16.msra.mxu0 %v1770
        %1789 = vmatprep.subr.bf16.mxu0 0
        %1790 = vmatpush1.bf16.msra.mxu0 0
        %1791 = vmatprep.subr.bf16.mxu0 0
        %1792 = vmatpush1.bf16.msra.mxu0 0
        %1793 = vmatprep.subr.bf16.mxu0 0
        %1794 = vmatpush1.bf16.msra.mxu0 0
        %1795 = vmatprep.subr.bf16.mxu0 0
        %1796 = vmatpush1.bf16.msra.mxu0 0
        %1797 = vmatprep.subr.bf16.mxu0 0
        %1798 = vmatpush1.bf16.msra.mxu0 0
        %1799 = vmatprep.subr.bf16.mxu0 0
        %1800 = vmatpush1.bf16.msra.mxu0 0
        %1801 = vmatprep.subr.bf16.mxu0 0
        %1802 = vmatpush1.bf16.msra.mxu0 0
        %1803 = vmatprep.subr.bf16.mxu0 0
        %1804 = vmatpush1.bf16.msra.mxu0 0
        %1805 = vmatprep.subr.bf16.mxu0 0
        %1806 = vmatpush1.bf16.msra.mxu0 0
        %1807 = vmatprep.subr.bf16.mxu0 0
        %1808 = vmatpush1.bf16.msra.mxu0 0
        %1809 = vmatprep.subr.bf16.mxu0 0
        %1810 = vmatpush1.bf16.msra.mxu0 0
        %1811 = vmatprep.subr.bf16.mxu0 0
        %1812 = vmatpush1.bf16.msra.mxu0 0
        %1813 = vmatprep.subr.bf16.mxu0 0
        %1814 = vmatpush1.bf16.msra.mxu0 0
        %1815 = vmatprep.subr.bf16.mxu0 0
        %1816 = vmatpush1.bf16.msra.mxu0 0
        %1817 = vmatprep.mubr.bf16.mxu0 0
        %1818 = vmatmul.mubr.bf16.gmra.mrb[0].mxu0 %v1774
        %v1819 = vpop.f32.mrb[0].mxu0
        %v1820 = vadd.f32 0.0, %v1819
        %v1821 = vpop.f32.mrb[0].mxu0
        %v1822 = vpop.f32.mrb[0].mxu0
        %v1823 = vadd.f32 0.0, %v1822
        %v1824 = vpop.f32.mrb[0].mxu0
        %1825 = vmatprep.mubr.bf16.mxu0 0
        %1826 = vmatmul.mubr.bf16.gmra.mrb[0].mxu0 %v1777
        %v1827 = vpop.f32.mrb[0].mxu0
        %v1828 = vadd.f32 0.0, %v1827
        %v1829 = vpop.f32.mrb[0].mxu0
        %v1830 = vpop.f32.mrb[0].mxu0
        %v1831 = vadd.f32 0.0, %v1830
        %v1832 = vpop.f32.mrb[0].mxu0
        %1833 = vmatprep.mubr.bf16.mxu0 0
        %1834 = vmatmul.mubr.bf16.gmra.mrb[0].mxu0 %v1780
        %v1835 = vpop.f32.mrb[0].mxu0
        %v1836 = vadd.f32 0.0, %v1835
        %v1837 = vpop.f32.mrb[0].mxu0
        %v1838 = vpop.f32.mrb[0].mxu0
        %v1839 = vadd.f32 0.0, %v1838
        %v1840 = vpop.f32.mrb[0].mxu0
        %1841 = vmatprep.mubr.bf16.mxu0 0
        %1842 = vmatmul.mubr.bf16.gmra.mrb[0].mxu0 %v1783
        %v1843 = vpop.f32.mrb[0].mxu0
        %v1844 = vadd.f32 0.0, %v1843
        %v1845 = vpop.f32.mrb[0].mxu0
        %v1846 = vpop.f32.mrb[0].mxu0
        %v1847 = vadd.f32 0.0, %v1846
        %v1848 = vpop.f32.mrb[0].mxu0
        %1849 = vdwg.mxu0
        %v1850 = vadd.f32 %v1714, %v1820
        %v1851 = vadd.f32 %v1717, %v1823
        %v1852 = vadd.f32 %v1722, %v1828
        %v1853 = vadd.f32 %v1725, %v1831
        %v1854 = vadd.f32 %v1730, %v1836
        %v1855 = vadd.f32 %v1733, %v1839
        %v1856 = vadd.f32 %v1738, %v1844
        %v1857 = vadd.f32 %v1741, %v1847
        %v1858 = vld [vmem:[%s1524] sm:$0xff]
        %v1859 = vld [vmem:[%s1524 + $0x10] sm:$0xff]
        %v1860 = vld [vmem:[%s1524 + $0x20] sm:$0xff]
        %v1861 = vld [vmem:[%s1524 + $0x30] sm:$0xff]
        %v1862 = vld [vmem:[%s1524 + $0x40] sm:$0xff]
        %v1863 = vld [vmem:[%s1524 + $0x50] sm:$0xff]
        %v1864 = vld [vmem:[%s1524 + $0x60] sm:$0xff]
        %v1865 = vld [vmem:[%s1524 + $0x70] sm:$0xff]
        %v1866 = vpack.c.bf16 %v1859, %v1858
        %v1867 = vpack.c.bf16 %v1861, %v1860
        %v1868 = vpack.c.bf16 %v1863, %v1862
        %v1869 = vpack.c.bf16 %v1865, %v1864
        %s1870 = scalar_lea.vmem %s4, 48
        %v1871 = vld [vmem:[%s1870] sm:$0xf]
        %v1872 = vld [vmem:[%s1870 + $0x4] sm:$0xf]
        %v1873 = vld [vmem:[%s1870 + $0x8] sm:$0xf]
        %v1874 = vld [vmem:[%s1870 + $0xc] sm:$0xf]
        %v1879 = vunpack.c.l.b16 %v1871
        %v1880 = vunpack.c.l.b16 %v1872
        %v1881 = vunpack.c.l.b16 %v1873
        %v1882 = vunpack.c.l.b16 %v1874
        %v1883 = vpack.c.b16 %v1880, %v1879
        %v1884 = vpack.c.b16 %v1882, %v1881
        %v1888 = vsel %vm1502, %v1866, 0
        %v1891 = vsel %vm1502, %v1867, 0
        %v1894 = vsel %vm1502, %v1868, 0
        %v1897 = vsel %vm1502, %v1869, 0
        %1899 = vmatprep.subr.bf16.mxu0 0
        %1900 = vmatpush1.bf16.msra.mxu0 %v1883
        %1901 = vmatprep.subr.bf16.mxu0 0
        %1902 = vmatpush1.bf16.msra.mxu0 %v1884
        %1903 = vmatprep.subr.bf16.mxu0 0
        %1904 = vmatpush1.bf16.msra.mxu0 0
        %1905 = vmatprep.subr.bf16.mxu0 0
        %1906 = vmatpush1.bf16.msra.mxu0 0
        %1907 = vmatprep.subr.bf16.mxu0 0
        %1908 = vmatpush1.bf16.msra.mxu0 0
        %1909 = vmatprep.subr.bf16.mxu0 0
        %1910 = vmatpush1.bf16.msra.mxu0 0
        %1911 = vmatprep.subr.bf16.mxu0 0
        %1912 = vmatpush1.bf16.msra.mxu0 0
        %1913 = vmatprep.subr.bf16.mxu0 0
        %1914 = vmatpush1.bf16.msra.mxu0 0
        %1915 = vmatprep.subr.bf16.mxu0 0
        %1916 = vmatpush1.bf16.msra.mxu0 0
        %1917 = vmatprep.subr.bf16.mxu0 0
        %1918 = vmatpush1.bf16.msra.mxu0 0
        %1919 = vmatprep.subr.bf16.mxu0 0
        %1920 = vmatpush1.bf16.msra.mxu0 0
        %1921 = vmatprep.subr.bf16.mxu0 0
        %1922 = vmatpush1.bf16.msra.mxu0 0
        %1923 = vmatprep.subr.bf16.mxu0 0
        %1924 = vmatpush1.bf16.msra.mxu0 0
        %1925 = vmatprep.subr.bf16.mxu0 0
        %1926 = vmatpush1.bf16.msra.mxu0 0
        %1927 = vmatprep.subr.bf16.mxu0 0
        %1928 = vmatpush1.bf16.msra.mxu0 0
        %1929 = vmatprep.subr.bf16.mxu0 0
        %1930 = vmatpush1.bf16.msra.mxu0 0
        %1931 = vmatprep.mubr.bf16.mxu0 0
        %1932 = vmatmul.mubr.bf16.gmra.mrb[0].mxu0 %v1888
        %v1933 = vpop.f32.mrb[0].mxu0
        %v1934 = vadd.f32 0.0, %v1933
        %v1935 = vpop.f32.mrb[0].mxu0
        %v1936 = vpop.f32.mrb[0].mxu0
        %v1937 = vadd.f32 0.0, %v1936
        %v1938 = vpop.f32.mrb[0].mxu0
        %1939 = vmatprep.mubr.bf16.mxu0 0
        %1940 = vmatmul.mubr.bf16.gmra.mrb[0].mxu0 %v1891
        %v1941 = vpop.f32.mrb[0].mxu0
        %v1942 = vadd.f32 0.0, %v1941
        %v1943 = vpop.f32.mrb[0].mxu0
        %v1944 = vpop.f32.mrb[0].mxu0
        %v1945 = vadd.f32 0.0, %v1944
        %v1946 = vpop.f32.mrb[0].mxu0
        %1947 = vmatprep.mubr.bf16.mxu0 0
        %1948 = vmatmul.mubr.bf16.gmra.mrb[0].mxu0 %v1894
        %v1949 = vpop.f32.mrb[0].mxu0
        %v1950 = vadd.f32 0.0, %v1949
        %v1951 = vpop.f32.mrb[0].mxu0
        %v1952 = vpop.f32.mrb[0].mxu0
        %v1953 = vadd.f32 0.0, %v1952
        %v1954 = vpop.f32.mrb[0].mxu0
        %1955 = vmatprep.mubr.bf16.mxu0 0
        %1956 = vmatmul.mubr.bf16.gmra.mrb[0].mxu0 %v1897
        %v1957 = vpop.f32.mrb[0].mxu0
        %v1958 = vadd.f32 0.0, %v1957
        %v1959 = vpop.f32.mrb[0].mxu0
        %v1960 = vpop.f32.mrb[0].mxu0
        %v1961 = vadd.f32 0.0, %v1960
        %v1962 = vpop.f32.mrb[0].mxu0
        %1963 = vdwg.mxu0
        %v1964 = vadd.f32 %v1850, %v1934
        %v1965 = vadd.f32 %v1851, %v1937
        %v1966 = vadd.f32 %v1852, %v1942
        %v1967 = vadd.f32 %v1853, %v1945
        %v1968 = vadd.f32 %v1854, %v1950
        %v1969 = vadd.f32 %v1855, %v1953
        %v1970 = vadd.f32 %v1856, %v1958
        %v1971 = vadd.f32 %v1857, %v1961
        %v1972 = vld [vmem:[%s1524 + $0x1] sm:$0xff]
        %v1973 = vld [vmem:[%s1524 + $0x11] sm:$0xff]
        %v1974 = vld [vmem:[%s1524 + $0x21] sm:$0xff]
        %v1975 = vld [vmem:[%s1524 + $0x31] sm:$0xff]
        %v1976 = vld [vmem:[%s1524 + $0x41] sm:$0xff]
        %v1977 = vld [vmem:[%s1524 + $0x51] sm:$0xff]
        %v1978 = vld [vmem:[%s1524 + $0x61] sm:$0xff]
        %v1979 = vld [vmem:[%s1524 + $0x71] sm:$0xff]
        %v1980 = vpack.c.bf16 %v1973, %v1972
        %v1981 = vpack.c.bf16 %v1975, %v1974
        %v1982 = vpack.c.bf16 %v1977, %v1976
        %v1983 = vpack.c.bf16 %v1979, %v1978
        %s1984 = scalar_lea.vmem %s4, 64
        %v1985 = vld [vmem:[%s1984] sm:$0xf]
        %v1986 = vld [vmem:[%s1984 + $0x4] sm:$0xf]
        %v1987 = vld [vmem:[%s1984 + $0x8] sm:$0xf]
        %v1988 = vld [vmem:[%s1984 + $0xc] sm:$0xf]
        %v1993 = vunpack.c.l.b16 %v1985
        %v1994 = vunpack.c.l.b16 %v1986
        %v1995 = vunpack.c.l.b16 %v1987
        %v1996 = vunpack.c.l.b16 %v1988
        %v1997 = vpack.c.b16 %v1994, %v1993
        %v1998 = vpack.c.b16 %v1996, %v1995
        %v2002 = vsel %vm1502, %v1980, 0
        %v2005 = vsel %vm1502, %v1981, 0
        %v2008 = vsel %vm1502, %v1982, 0
        %v2011 = vsel %vm1502, %v1983, 0
        %2013 = vmatprep.subr.bf16.mxu0 0
        %2014 = vmatpush1.bf16.msra.mxu0 %v1997
        %2015 = vmatprep.subr.bf16.mxu0 0
        %2016 = vmatpush1.bf16.msra.mxu0 %v1998
        %2017 = vmatprep.subr.bf16.mxu0 0
        %2018 = vmatpush1.bf16.msra.mxu0 0
        %2019 = vmatprep.subr.bf16.mxu0 0
        %2020 = vmatpush1.bf16.msra.mxu0 0
        %2021 = vmatprep.subr.bf16.mxu0 0
        %2022 = vmatpush1.bf16.msra.mxu0 0
        %2023 = vmatprep.subr.bf16.mxu0 0
        %2024 = vmatpush1.bf16.msra.mxu0 0
        %2025 = vmatprep.subr.bf16.mxu0 0
        %2026 = vmatpush1.bf16.msra.mxu0 0
        %2027 = vmatprep.subr.bf16.mxu0 0
        %2028 = vmatpush1.bf16.msra.mxu0 0
        %2029 = vmatprep.subr.bf16.mxu0 0
        %2030 = vmatpush1.bf16.msra.mxu0 0
        %2031 = vmatprep.subr.bf16.mxu0 0
        %2032 = vmatpush1.bf16.msra.mxu0 0
        %2033 = vmatprep.subr.bf16.mxu0 0
        %2034 = vmatpush1.bf16.msra.mxu0 0
        %2035 = vmatprep.subr.bf16.mxu0 0
        %2036 = vmatpush1.bf16.msra.mxu0 0
        %2037 = vmatprep.subr.bf16.mxu0 0
        %2038 = vmatpush1.bf16.msra.mxu0 0
        %2039 = vmatprep.subr.bf16.mxu0 0
        %2040 = vmatpush1.bf16.msra.mxu0 0
        %2041 = vmatprep.subr.bf16.mxu0 0
        %2042 = vmatpush1.bf16.msra.mxu0 0
        %2043 = vmatprep.subr.bf16.mxu0 0
        %2044 = vmatpush1.bf16.msra.mxu0 0
        %2045 = vmatprep.mubr.bf16.mxu0 0
        %2046 = vmatmul.mubr.bf16.gmra.mrb[0].mxu0 %v2002
        %v2047 = vpop.f32.mrb[0].mxu0
        %v2048 = vadd.f32 0.0, %v2047
        %v2049 = vpop.f32.mrb[0].mxu0
        %v2050 = vpop.f32.mrb[0].mxu0
        %v2051 = vadd.f32 0.0, %v2050
        %v2052 = vpop.f32.mrb[0].mxu0
        %2053 = vmatprep.mubr.bf16.mxu0 0
        %2054 = vmatmul.mubr.bf16.gmra.mrb[0].mxu0 %v2005
        %v2055 = vpop.f32.mrb[0].mxu0
        %v2056 = vadd.f32 0.0, %v2055
        %v2057 = vpop.f32.mrb[0].mxu0
        %v2058 = vpop.f32.mrb[0].mxu0
        %v2059 = vadd.f32 0.0, %v2058
        %v2060 = vpop.f32.mrb[0].mxu0
        %2061 = vmatprep.mubr.bf16.mxu0 0
        %2062 = vmatmul.mubr.bf16.gmra.mrb[0].mxu0 %v2008
        %v2063 = vpop.f32.mrb[0].mxu0
        %v2064 = vadd.f32 0.0, %v2063
        %v2065 = vpop.f32.mrb[0].mxu0
        %v2066 = vpop.f32.mrb[0].mxu0
        %v2067 = vadd.f32 0.0, %v2066
        %v2068 = vpop.f32.mrb[0].mxu0
        %2069 = vmatprep.mubr.bf16.mxu0 0
        %2070 = vmatmul.mubr.bf16.gmra.mrb[0].mxu0 %v2011
        %v2071 = vpop.f32.mrb[0].mxu0
        %v2072 = vadd.f32 0.0, %v2071
        %v2073 = vpop.f32.mrb[0].mxu0
        %v2074 = vpop.f32.mrb[0].mxu0
        %v2075 = vadd.f32 0.0, %v2074
        %v2076 = vpop.f32.mrb[0].mxu0
        %2077 = vdwg.mxu0
        %v2078 = vadd.f32 %v1964, %v2048
        %v2079 = vadd.f32 %v1965, %v2051
        %v2080 = vadd.f32 %v1966, %v2056
        %v2081 = vadd.f32 %v1967, %v2059
        %v2082 = vadd.f32 %v1968, %v2064
        %v2083 = vadd.f32 %v1969, %v2067
        %v2084 = vadd.f32 %v1970, %v2072
        %v2085 = vadd.f32 %v1971, %v2075
        %v2086 = vld [vmem:[%s1524 + $0x2] sm:$0xff]
        %v2087 = vld [vmem:[%s1524 + $0x12] sm:$0xff]
        %v2088 = vld [vmem:[%s1524 + $0x22] sm:$0xff]
        %v2089 = vld [vmem:[%s1524 + $0x32] sm:$0xff]
        %v2090 = vld [vmem:[%s1524 + $0x42] sm:$0xff]
        %v2091 = vld [vmem:[%s1524 + $0x52] sm:$0xff]
        %v2092 = vld [vmem:[%s1524 + $0x62] sm:$0xff]
        %v2093 = vld [vmem:[%s1524 + $0x72] sm:$0xff]
        %v2094 = vpack.c.bf16 %v2087, %v2086
        %v2095 = vpack.c.bf16 %v2089, %v2088
        %v2096 = vpack.c.bf16 %v2091, %v2090
        %v2097 = vpack.c.bf16 %v2093, %v2092
        %s2098 = scalar_lea.vmem %s4, 80
        %v2099 = vld [vmem:[%s2098] sm:$0xf]
        %v2100 = vld [vmem:[%s2098 + $0x4] sm:$0xf]
        %v2101 = vld [vmem:[%s2098 + $0x8] sm:$0xf]
        %v2102 = vld [vmem:[%s2098 + $0xc] sm:$0xf]
        %v2107 = vunpack.c.l.b16 %v2099
        %v2108 = vunpack.c.l.b16 %v2100
        %v2109 = vunpack.c.l.b16 %v2101
        %v2110 = vunpack.c.l.b16 %v2102
        %v2111 = vpack.c.b16 %v2108, %v2107
        %v2112 = vpack.c.b16 %v2110, %v2109
        %v2116 = vsel %vm1502, %v2094, 0
        %v2119 = vsel %vm1502, %v2095, 0
        %v2122 = vsel %vm1502, %v2096, 0
        %v2125 = vsel %vm1502, %v2097, 0
        %2127 = vmatprep.subr.bf16.mxu0 0
        %2128 = vmatpush1.bf16.msra.mxu0 %v2111
        %2129 = vmatprep.subr.bf16.mxu0 0
        %2130 = vmatpush1.bf16.msra.mxu0 %v2112
        %2131 = vmatprep.subr.bf16.mxu0 0
        %2132 = vmatpush1.bf16.msra.mxu0 0
        %2133 = vmatprep.subr.bf16.mxu0 0
        %2134 = vmatpush1.bf16.msra.mxu0 0
        %2135 = vmatprep.subr.bf16.mxu0 0
        %2136 = vmatpush1.bf16.msra.mxu0 0
        %2137 = vmatprep.subr.bf16.mxu0 0
        %2138 = vmatpush1.bf16.msra.mxu0 0
        %2139 = vmatprep.subr.bf16.mxu0 0
        %2140 = vmatpush1.bf16.msra.mxu0 0
        %2141 = vmatprep.subr.bf16.mxu0 0
        %2142 = vmatpush1.bf16.msra.mxu0 0
        %2143 = vmatprep.subr.bf16.mxu0 0
        %2144 = vmatpush1.bf16.msra.mxu0 0
        %2145 = vmatprep.subr.bf16.mxu0 0
        %2146 = vmatpush1.bf16.msra.mxu0 0
        %2147 = vmatprep.subr.bf16.mxu0 0
        %2148 = vmatpush1.bf16.msra.mxu0 0
        %2149 = vmatprep.subr.bf16.mxu0 0
        %2150 = vmatpush1.bf16.msra.mxu0 0
        %2151 = vmatprep.subr.bf16.mxu0 0
        %2152 = vmatpush1.bf16.msra.mxu0 0
        %2153 = vmatprep.subr.bf16.mxu0 0
        %2154 = vmatpush1.bf16.msra.mxu0 0
        %2155 = vmatprep.subr.bf16.mxu0 0
        %2156 = vmatpush1.bf16.msra.mxu0 0
        %2157 = vmatprep.subr.bf16.mxu0 0
        %2158 = vmatpush1.bf16.msra.mxu0 0
        %2159 = vmatprep.mubr.bf16.mxu0 0
        %2160 = vmatmul.mubr.bf16.gmra.mrb[0].mxu0 %v2116
        %v2161 = vpop.f32.mrb[0].mxu0
        %v2162 = vadd.f32 0.0, %v2161
        %v2163 = vpop.f32.mrb[0].mxu0
        %v2164 = vpop.f32.mrb[0].mxu0
        %v2165 = vadd.f32 0.0, %v2164
        %v2166 = vpop.f32.mrb[0].mxu0
        %2167 = vmatprep.mubr.bf16.mxu0 0
        %2168 = vmatmul.mubr.bf16.gmra.mrb[0].mxu0 %v2119
        %v2169 = vpop.f32.mrb[0].mxu0
        %v2170 = vadd.f32 0.0, %v2169
        %v2171 = vpop.f32.mrb[0].mxu0
        %v2172 = vpop.f32.mrb[0].mxu0
        %v2173 = vadd.f32 0.0, %v2172
        %v2174 = vpop.f32.mrb[0].mxu0
        %2175 = vmatprep.mubr.bf16.mxu0 0
        %2176 = vmatmul.mubr.bf16.gmra.mrb[0].mxu0 %v2122
        %v2177 = vpop.f32.mrb[0].mxu0
        %v2178 = vadd.f32 0.0, %v2177
        %v2179 = vpop.f32.mrb[0].mxu0
        %v2180 = vpop.f32.mrb[0].mxu0
        %v2181 = vadd.f32 0.0, %v2180
        %v2182 = vpop.f32.mrb[0].mxu0
        %2183 = vmatprep.mubr.bf16.mxu0 0
        %2184 = vmatmul.mubr.bf16.gmra.mrb[0].mxu0 %v2125
        %v2185 = vpop.f32.mrb[0].mxu0
        %v2186 = vadd.f32 0.0, %v2185
        %v2187 = vpop.f32.mrb[0].mxu0
        %v2188 = vpop.f32.mrb[0].mxu0
        %v2189 = vadd.f32 0.0, %v2188
        %v2190 = vpop.f32.mrb[0].mxu0
        %2191 = vdwg.mxu0
        %v2192 = vadd.f32 %v2078, %v2162
        %v2193 = vadd.f32 %v2079, %v2165
        %v2194 = vadd.f32 %v2080, %v2170
        %v2195 = vadd.f32 %v2081, %v2173
        %v2196 = vadd.f32 %v2082, %v2178
        %v2197 = vadd.f32 %v2083, %v2181
        %v2198 = vadd.f32 %v2084, %v2186
        %v2199 = vadd.f32 %v2085, %v2189
        %s2200 = scalar_lea.vmem [#allocation3], 32
        %v2201 = vld [vmem:[%s2200] sm:$0xff]
        %v2202 = vld [vmem:[%s2200 + $0x10] sm:$0xff]
        %v2203 = vld [vmem:[%s2200 + $0x20] sm:$0xff]
        %v2204 = vld [vmem:[%s2200 + $0x30] sm:$0xff]
        %v2205 = vld [vmem:[%s2200 + $0x40] sm:$0xff]
        %v2206 = vld [vmem:[%s2200 + $0x50] sm:$0xff]
        %v2207 = vld [vmem:[%s2200 + $0x60] sm:$0xff]
        %v2208 = vld [vmem:[%s2200 + $0x70] sm:$0xff]
        %v2209 = vpack.c.bf16 %v2202, %v2201
        %v2210 = vpack.c.bf16 %v2204, %v2203
        %v2211 = vpack.c.bf16 %v2206, %v2205
        %v2212 = vpack.c.bf16 %v2208, %v2207
        %s2213 = scalar_lea.vmem %s4, 96
        %v2214 = vld [vmem:[%s2213] sm:$0xf]
        %v2215 = vld [vmem:[%s2213 + $0x4] sm:$0xf]
        %v2216 = vld [vmem:[%s2213 + $0x8] sm:$0xf]
        %v2217 = vld [vmem:[%s2213 + $0xc] sm:$0xf]
        %v2222 = vunpack.c.l.b16 %v2214
        %v2223 = vunpack.c.l.b16 %v2215
        %v2224 = vunpack.c.l.b16 %v2216
        %v2225 = vunpack.c.l.b16 %v2217
        %v2226 = vpack.c.b16 %v2223, %v2222
        %v2227 = vpack.c.b16 %v2225, %v2224
        %v2231 = vsel %vm1502, %v2209, 0
        %v2234 = vsel %vm1502, %v2210, 0
        %v2237 = vsel %vm1502, %v2211, 0
        %v2240 = vsel %vm1502, %v2212, 0
        %2242 = vmatprep.subr.bf16.mxu0 0
        %2243 = vmatpush1.bf16.msra.mxu0 %v2226
        %2244 = vmatprep.subr.bf16.mxu0 0
        %2245 = vmatpush1.bf16.msra.mxu0 %v2227
        %2246 = vmatprep.subr.bf16.mxu0 0
        %2247 = vmatpush1.bf16.msra.mxu0 0
        %2248 = vmatprep.subr.bf16.mxu0 0
        %2249 = vmatpush1.bf16.msra.mxu0 0
        %2250 = vmatprep.subr.bf16.mxu0 0
        %2251 = vmatpush1.bf16.msra.mxu0 0
        %2252 = vmatprep.subr.bf16.mxu0 0
        %2253 = vmatpush1.bf16.msra.mxu0 0
        %2254 = vmatprep.subr.bf16.mxu0 0
        %2255 = vmatpush1.bf16.msra.mxu0 0
        %2256 = vmatprep.subr.bf16.mxu0 0
        %2257 = vmatpush1.bf16.msra.mxu0 0
        %2258 = vmatprep.subr.bf16.mxu0 0
        %2259 = vmatpush1.bf16.msra.mxu0 0
        %2260 = vmatprep.subr.bf16.mxu0 0
        %2261 = vmatpush1.bf16.msra.mxu0 0
        %2262 = vmatprep.subr.bf16.mxu0 0
        %2263 = vmatpush1.bf16.msra.mxu0 0
        %2264 = vmatprep.subr.bf16.mxu0 0
        %2265 = vmatpush1.bf16.msra.mxu0 0
        %2266 = vmatprep.subr.bf16.mxu0 0
        %2267 = vmatpush1.bf16.msra.mxu0 0
        %2268 = vmatprep.subr.bf16.mxu0 0
        %2269 = vmatpush1.bf16.msra.mxu0 0
        %2270 = vmatprep.subr.bf16.mxu0 0
        %2271 = vmatpush1.bf16.msra.mxu0 0
        %2272 = vmatprep.subr.bf16.mxu0 0
        %2273 = vmatpush1.bf16.msra.mxu0 0
        %2274 = vmatprep.mubr.bf16.mxu0 0
        %2275 = vmatmul.mubr.bf16.gmra.mrb[0].mxu0 %v2231
        %v2276 = vpop.f32.mrb[0].mxu0
        %v2277 = vadd.f32 0.0, %v2276
        %v2278 = vpop.f32.mrb[0].mxu0
        %v2279 = vpop.f32.mrb[0].mxu0
        %v2280 = vadd.f32 0.0, %v2279
        %v2281 = vpop.f32.mrb[0].mxu0
        %2282 = vmatprep.mubr.bf16.mxu0 0
        %2283 = vmatmul.mubr.bf16.gmra.mrb[0].mxu0 %v2234
        %v2284 = vpop.f32.mrb[0].mxu0
        %v2285 = vadd.f32 0.0, %v2284
        %v2286 = vpop.f32.mrb[0].mxu0
        %v2287 = vpop.f32.mrb[0].mxu0
        %v2288 = vadd.f32 0.0, %v2287
        %v2289 = vpop.f32.mrb[0].mxu0
        %2290 = vmatprep.mubr.bf16.mxu0 0
        %2291 = vmatmul.mubr.bf16.gmra.mrb[0].mxu0 %v2237
        %v2292 = vpop.f32.mrb[0].mxu0
        %v2293 = vadd.f32 0.0, %v2292
        %v2294 = vpop.f32.mrb[0].mxu0
        %v2295 = vpop.f32.mrb[0].mxu0
        %v2296 = vadd.f32 0.0, %v2295
        %v2297 = vpop.f32.mrb[0].mxu0
        %2298 = vmatprep.mubr.bf16.mxu0 0
        %2299 = vmatmul.mubr.bf16.gmra.mrb[0].mxu0 %v2240
        %v2300 = vpop.f32.mrb[0].mxu0
        %v2301 = vadd.f32 0.0, %v2300
        %v2302 = vpop.f32.mrb[0].mxu0
        %v2303 = vpop.f32.mrb[0].mxu0
        %v2304 = vadd.f32 0.0, %v2303
        %v2305 = vpop.f32.mrb[0].mxu0
        %2306 = vdwg.mxu0
        %v2307 = vadd.f32 %v2192, %v2277
        %v2308 = vadd.f32 %v2193, %v2280
        %v2309 = vadd.f32 %v2194, %v2285
        %v2310 = vadd.f32 %v2195, %v2288
        %v2311 = vadd.f32 %v2196, %v2293
        %v2312 = vadd.f32 %v2197, %v2296
        %v2313 = vadd.f32 %v2198, %v2301
        %v2314 = vadd.f32 %v2199, %v2304
        %v2315 = vld [vmem:[%s2200 + $0x1] sm:$0xff]
        %v2316 = vld [vmem:[%s2200 + $0x11] sm:$0xff]
        %v2317 = vld [vmem:[%s2200 + $0x21] sm:$0xff]
        %v2318 = vld [vmem:[%s2200 + $0x31] sm:$0xff]
        %v2319 = vld [vmem:[%s2200 + $0x41] sm:$0xff]
        %v2320 = vld [vmem:[%s2200 + $0x51] sm:$0xff]
        %v2321 = vld [vmem:[%s2200 + $0x61] sm:$0xff]
        %v2322 = vld [vmem:[%s2200 + $0x71] sm:$0xff]
        %v2323 = vpack.c.bf16 %v2316, %v2315
        %v2324 = vpack.c.bf16 %v2318, %v2317
        %v2325 = vpack.c.bf16 %v2320, %v2319
        %v2326 = vpack.c.bf16 %v2322, %v2321
        %s2327 = scalar_lea.vmem %s4, 112
        %v2328 = vld [vmem:[%s2327] sm:$0xf]
        %v2329 = vld [vmem:[%s2327 + $0x4] sm:$0xf]
        %v2330 = vld [vmem:[%s2327 + $0x8] sm:$0xf]
        %v2331 = vld [vmem:[%s2327 + $0xc] sm:$0xf]
        %v2336 = vunpack.c.l.b16 %v2328
        %v2337 = vunpack.c.l.b16 %v2329
        %v2338 = vunpack.c.l.b16 %v2330
        %v2339 = vunpack.c.l.b16 %v2331
        %v2340 = vpack.c.b16 %v2337, %v2336
        %v2341 = vpack.c.b16 %v2339, %v2338
        %v2345 = vsel %vm1502, %v2323, 0
        %v2348 = vsel %vm1502, %v2324, 0
        %v2351 = vsel %vm1502, %v2325, 0
        %v2354 = vsel %vm1502, %v2326, 0
        %2356 = vmatprep.subr.bf16.mxu0 0
        %2357 = vmatpush1.bf16.msra.mxu0 %v2340
        %2358 = vmatprep.subr.bf16.mxu0 0
        %2359 = vmatpush1.bf16.msra.mxu0 %v2341
        %2360 = vmatprep.subr.bf16.mxu0 0
        %2361 = vmatpush1.bf16.msra.mxu0 0
        %2362 = vmatprep.subr.bf16.mxu0 0
        %2363 = vmatpush1.bf16.msra.mxu0 0
        %2364 = vmatprep.subr.bf16.mxu0 0
        %2365 = vmatpush1.bf16.msra.mxu0 0
        %2366 = vmatprep.subr.bf16.mxu0 0
        %2367 = vmatpush1.bf16.msra.mxu0 0
        %2368 = vmatprep.subr.bf16.mxu0 0
        %2369 = vmatpush1.bf16.msra.mxu0 0
        %2370 = vmatprep.subr.bf16.mxu0 0
        %2371 = vmatpush1.bf16.msra.mxu0 0
        %2372 = vmatprep.subr.bf16.mxu0 0
        %2373 = vmatpush1.bf16.msra.mxu0 0
        %2374 = vmatprep.subr.bf16.mxu0 0
        %2375 = vmatpush1.bf16.msra.mxu0 0
        %2376 = vmatprep.subr.bf16.mxu0 0
        %2377 = vmatpush1.bf16.msra.mxu0 0
        %2378 = vmatprep.subr.bf16.mxu0 0
        %2379 = vmatpush1.bf16.msra.mxu0 0
        %2380 = vmatprep.subr.bf16.mxu0 0
        %2381 = vmatpush1.bf16.msra.mxu0 0
        %2382 = vmatprep.subr.bf16.mxu0 0
        %2383 = vmatpush1.bf16.msra.mxu0 0
        %2384 = vmatprep.subr.bf16.mxu0 0
        %2385 = vmatpush1.bf16.msra.mxu0 0
        %2386 = vmatprep.subr.bf16.mxu0 0
        %2387 = vmatpush1.bf16.msra.mxu0 0
        %2388 = vmatprep.mubr.bf16.mxu0 0
        %2389 = vmatmul.mubr.bf16.gmra.mrb[0].mxu0 %v2345
        %v2390 = vpop.f32.mrb[0].mxu0
        %v2391 = vadd.f32 0.0, %v2390
        %v2392 = vpop.f32.mrb[0].mxu0
        %v2393 = vpop.f32.mrb[0].mxu0
        %v2394 = vadd.f32 0.0, %v2393
        %v2395 = vpop.f32.mrb[0].mxu0
        %2396 = vmatprep.mubr.bf16.mxu0 0
        %2397 = vmatmul.mubr.bf16.gmra.mrb[0].mxu0 %v2348
        %v2398 = vpop.f32.mrb[0].mxu0
        %v2399 = vadd.f32 0.0, %v2398
        %v2400 = vpop.f32.mrb[0].mxu0
        %v2401 = vpop.f32.mrb[0].mxu0
        %v2402 = vadd.f32 0.0, %v2401
        %v2403 = vpop.f32.mrb[0].mxu0
        %2404 = vmatprep.mubr.bf16.mxu0 0
        %2405 = vmatmul.mubr.bf16.gmra.mrb[0].mxu0 %v2351
        %v2406 = vpop.f32.mrb[0].mxu0
        %v2407 = vadd.f32 0.0, %v2406
        %v2408 = vpop.f32.mrb[0].mxu0
        %v2409 = vpop.f32.mrb[0].mxu0
        %v2410 = vadd.f32 0.0, %v2409
        %v2411 = vpop.f32.mrb[0].mxu0
        %2412 = vmatprep.mubr.bf16.mxu0 0
        %2413 = vmatmul.mubr.bf16.gmra.mrb[0].mxu0 %v2354
        %v2414 = vpop.f32.mrb[0].mxu0
        %v2415 = vadd.f32 0.0, %v2414
        %v2416 = vpop.f32.mrb[0].mxu0
        %v2417 = vpop.f32.mrb[0].mxu0
        %v2418 = vadd.f32 0.0, %v2417
        %v2419 = vpop.f32.mrb[0].mxu0
        %2420 = vdwg.mxu0
        %v2421 = vadd.f32 %v2307, %v2391
        %v2422 = vadd.f32 %v2308, %v2394
        %v2423 = vadd.f32 %v2309, %v2399
        %v2424 = vadd.f32 %v2310, %v2402
        %v2425 = vadd.f32 %v2311, %v2407
        %v2426 = vadd.f32 %v2312, %v2410
        %v2427 = vadd.f32 %v2313, %v2415
        %v2428 = vadd.f32 %v2314, %v2418
        %v2429 = vld [vmem:[%s2200 + $0x2] sm:$0xff]
        %v2430 = vld [vmem:[%s2200 + $0x12] sm:$0xff]
        %v2431 = vld [vmem:[%s2200 + $0x22] sm:$0xff]
        %v2432 = vld [vmem:[%s2200 + $0x32] sm:$0xff]
        %v2433 = vld [vmem:[%s2200 + $0x42] sm:$0xff]
        %v2434 = vld [vmem:[%s2200 + $0x52] sm:$0xff]
        %v2435 = vld [vmem:[%s2200 + $0x62] sm:$0xff]
        %v2436 = vld [vmem:[%s2200 + $0x72] sm:$0xff]
        %v2437 = vpack.c.bf16 %v2430, %v2429
        %v2438 = vpack.c.bf16 %v2432, %v2431
        %v2439 = vpack.c.bf16 %v2434, %v2433
        %v2440 = vpack.c.bf16 %v2436, %v2435
        %s2441 = scalar_lea.vmem %s4, 128
        %v2442 = vld [vmem:[%s2441] sm:$0xf]
        %v2443 = vld [vmem:[%s2441 + $0x4] sm:$0xf]
        %v2444 = vld [vmem:[%s2441 + $0x8] sm:$0xf]
        %v2445 = vld [vmem:[%s2441 + $0xc] sm:$0xf]
        %v2450 = vunpack.c.l.b16 %v2442
        %v2451 = vunpack.c.l.b16 %v2443
        %v2452 = vunpack.c.l.b16 %v2444
        %v2453 = vunpack.c.l.b16 %v2445
        %v2454 = vpack.c.b16 %v2451, %v2450
        %v2455 = vpack.c.b16 %v2453, %v2452
        %v2459 = vsel %vm1502, %v2437, 0
        %v2462 = vsel %vm1502, %v2438, 0
        %v2465 = vsel %vm1502, %v2439, 0
        %v2468 = vsel %vm1502, %v2440, 0
        %2470 = vmatprep.subr.bf16.mxu0 0
        %2471 = vmatpush1.bf16.msra.mxu0 %v2454
        %2472 = vmatprep.subr.bf16.mxu0 0
        %2473 = vmatpush1.bf16.msra.mxu0 %v2455
        %2474 = vmatprep.subr.bf16.mxu0 0
        %2475 = vmatpush1.bf16.msra.mxu0 0
        %2476 = vmatprep.subr.bf16.mxu0 0
        %2477 = vmatpush1.bf16.msra.mxu0 0
        %2478 = vmatprep.subr.bf16.mxu0 0
        %2479 = vmatpush1.bf16.msra.mxu0 0
        %2480 = vmatprep.subr.bf16.mxu0 0
        %2481 = vmatpush1.bf16.msra.mxu0 0
        %2482 = vmatprep.subr.bf16.mxu0 0
        %2483 = vmatpush1.bf16.msra.mxu0 0
        %2484 = vmatprep.subr.bf16.mxu0 0
        %2485 = vmatpush1.bf16.msra.mxu0 0
        %2486 = vmatprep.subr.bf16.mxu0 0
        %2487 = vmatpush1.bf16.msra.mxu0 0
        %2488 = vmatprep.subr.bf16.mxu0 0
        %2489 = vmatpush1.bf16.msra.mxu0 0
        %2490 = vmatprep.subr.bf16.mxu0 0
        %2491 = vmatpush1.bf16.msra.mxu0 0
        %2492 = vmatprep.subr.bf16.mxu0 0
        %2493 = vmatpush1.bf16.msra.mxu0 0
        %2494 = vmatprep.subr.bf16.mxu0 0
        %2495 = vmatpush1.bf16.msra.mxu0 0
        %2496 = vmatprep.subr.bf16.mxu0 0
        %2497 = vmatpush1.bf16.msra.mxu0 0
        %2498 = vmatprep.subr.bf16.mxu0 0
        %2499 = vmatpush1.bf16.msra.mxu0 0
        %2500 = vmatprep.subr.bf16.mxu0 0
        %2501 = vmatpush1.bf16.msra.mxu0 0
        %2502 = vmatprep.mubr.bf16.mxu0 0
        %2503 = vmatmul.mubr.bf16.gmra.mrb[0].mxu0 %v2459
        %v2504 = vpop.f32.mrb[0].mxu0
        %v2505 = vadd.f32 0.0, %v2504
        %v2506 = vpop.f32.mrb[0].mxu0
        %v2507 = vpop.f32.mrb[0].mxu0
        %v2508 = vadd.f32 0.0, %v2507
        %v2509 = vpop.f32.mrb[0].mxu0
        %2510 = vmatprep.mubr.bf16.mxu0 0
        %2511 = vmatmul.mubr.bf16.gmra.mrb[0].mxu0 %v2462
        %v2512 = vpop.f32.mrb[0].mxu0
        %v2513 = vadd.f32 0.0, %v2512
        %v2514 = vpop.f32.mrb[0].mxu0
        %v2515 = vpop.f32.mrb[0].mxu0
        %v2516 = vadd.f32 0.0, %v2515
        %v2517 = vpop.f32.mrb[0].mxu0
        %2518 = vmatprep.mubr.bf16.mxu0 0
        %2519 = vmatmul.mubr.bf16.gmra.mrb[0].mxu0 %v2465
        %v2520 = vpop.f32.mrb[0].mxu0
        %v2521 = vadd.f32 0.0, %v2520
        %v2522 = vpop.f32.mrb[0].mxu0
        %v2523 = vpop.f32.mrb[0].mxu0
        %v2524 = vadd.f32 0.0, %v2523
        %v2525 = vpop.f32.mrb[0].mxu0
        %2526 = vmatprep.mubr.bf16.mxu0 0
        %2527 = vmatmul.mubr.bf16.gmra.mrb[0].mxu0 %v2468
        %v2528 = vpop.f32.mrb[0].mxu0
        %v2529 = vadd.f32 0.0, %v2528
        %v2530 = vpop.f32.mrb[0].mxu0
        %v2531 = vpop.f32.mrb[0].mxu0
        %v2532 = vadd.f32 0.0, %v2531
        %v2533 = vpop.f32.mrb[0].mxu0
        %2534 = vdwg.mxu0
        %v2535 = vadd.f32 %v2421, %v2505
        %v2536 = vadd.f32 %v2422, %v2508
        %v2537 = vadd.f32 %v2423, %v2513
        %v2538 = vadd.f32 %v2424, %v2516
        %v2539 = vadd.f32 %v2425, %v2521
        %v2540 = vadd.f32 %v2426, %v2524
        %v2541 = vadd.f32 %v2427, %v2529
        %v2542 = vadd.f32 %v2428, %v2532
        %v2543 = vld [vmem:[%s5] sm:$0x1]
        %v2545 = vlaneseq
        %v2546 = vshrl.u32 %v2545, 7
        %v2547 = vsub.s32 0, %v2546
        %v2548 = vrot.slane %v2543, %v2547
        %v2550 = vadd.f32 %v2535, %v2548
        %v2551 = vadd.f32 %v2536, %v2548
        %v2552 = vadd.f32 %v2537, %v2548
        %v2553 = vadd.f32 %v2538, %v2548
        %v2554 = vadd.f32 %v2539, %v2548
        %v2555 = vadd.f32 %v2540, %v2548
        %v2556 = vadd.f32 %v2541, %v2548
        %v2557 = vadd.f32 %v2542, %v2548
        %v2558 = vmax.f32 %v2550, 0.0
        %v2559 = vmax.f32 %v2551, 0.0
        %v2560 = vmax.f32 %v2552, 0.0
        %v2561 = vmax.f32 %v2553, 0.0
        %v2562 = vmax.f32 %v2554, 0.0
        %v2563 = vmax.f32 %v2555, 0.0
        %v2564 = vmax.f32 %v2556, 0.0
        %v2565 = vmax.f32 %v2557, 0.0
        %vm2566 = vcmask 523264
        %2567 = vst.msk [vmem:[#allocation4] sm:$0xff] %vm2566, 0.0
        %vm2568 = vcmask 517120
        %2569 = vst.msk [vmem:[#allocation4 + $0x8] sm:$0x3] %vm2568, 0.0
        %2570 = vst.msk [vmem:[#allocation4 + $0x10] sm:$0xff] %vm2566, 0.0
        %2571 = vst.msk [vmem:[#allocation4 + $0x18] sm:$0x3] %vm2568, 0.0
        %2572 = vst.msk [vmem:[#allocation4 + $0x20] sm:$0xff] %vm2566, 0.0
        %2573 = vst.msk [vmem:[#allocation4 + $0x28] sm:$0x3] %vm2568, 0.0
        %2574 = vst.msk [vmem:[#allocation4 + $0x30] sm:$0xff] %vm2566, 0.0
        %2575 = vst.msk [vmem:[#allocation4 + $0x38] sm:$0x3] %vm2568, 0.0
        %2576 = vst.msk [vmem:[#allocation4 + $0x40] sm:$0xff] %vm2566, 0.0
        %2577 = vst.msk [vmem:[#allocation4 + $0x48] sm:$0x3] %vm2568, 0.0
        %2578 = vst.msk [vmem:[#allocation4 + $0x50] sm:$0xff] %vm2566, 0.0
        %2579 = vst.msk [vmem:[#allocation4 + $0x58] sm:$0x3] %vm2568, 0.0
        %2580 = vst.msk [vmem:[#allocation4 + $0x60] sm:$0xff] %vm2566, 0.0
        %2581 = vst.msk [vmem:[#allocation4 + $0x68] sm:$0x3] %vm2568, 0.0
        %2582 = vst.msk [vmem:[#allocation4 + $0x70] sm:$0xff] %vm2566, 0.0
        %2583 = vst.msk [vmem:[#allocation4 + $0x78] sm:$0x3] %vm2568, 0.0
        %2584 = vst.msk [vmem:[#allocation4 + $0x80] sm:$0xff] %vm2566, 0.0
        %2585 = vst.msk [vmem:[#allocation4 + $0x88] sm:$0x3] %vm2568, 0.0
        %2586 = vst.msk [vmem:[#allocation4 + $0x90] sm:$0xff] %vm2566, 0.0
        %2587 = vst.msk [vmem:[#allocation4 + $0x98] sm:$0x3] %vm2568, 0.0
        %s2588 = scalar_lea.vmem [#allocation4], 16
        %2589 = vst.msk [vmem:[%s2588 + $0x1] sm:$0xff] %vm2566, %v2558
        %2590 = vst.msk [vmem:[%s2588 + $0x11] sm:$0xff] %vm2566, %v2559
        %2591 = vst.msk [vmem:[%s2588 + $0x21] sm:$0xff] %vm2566, %v2560
        %2592 = vst.msk [vmem:[%s2588 + $0x31] sm:$0xff] %vm2566, %v2561
        %2593 = vst.msk [vmem:[%s2588 + $0x41] sm:$0xff] %vm2566, %v2562
        %2594 = vst.msk [vmem:[%s2588 + $0x51] sm:$0xff] %vm2566, %v2563
        %2595 = vst.msk [vmem:[%s2588 + $0x61] sm:$0xff] %vm2566, %v2564
        %2596 = vst.msk [vmem:[%s2588 + $0x71] sm:$0xff] %vm2566, %v2565
        %v2597 = vld [vmem:[#allocation4] sm:$0xff]
        %v2598 = vld [vmem:[#allocation4 + $0x10] sm:$0xff]
        %v2599 = vld [vmem:[#allocation4 + $0x20] sm:$0xff]
        %v2600 = vld [vmem:[#allocation4 + $0x30] sm:$0xff]
        %v2601 = vld [vmem:[#allocation4 + $0x40] sm:$0xff]
        %v2602 = vld [vmem:[#allocation4 + $0x50] sm:$0xff]
        %v2603 = vld [vmem:[#allocation4 + $0x60] sm:$0xff]
        %v2604 = vld [vmem:[#allocation4 + $0x70] sm:$0xff]
        %v2605 = vpack.c.bf16 %v2598, %v2597
        %v2606 = vpack.c.bf16 %v2600, %v2599
        %v2607 = vpack.c.bf16 %v2602, %v2601
        %v2608 = vpack.c.bf16 %v2604, %v2603
        %v2609 = vld [vmem:[#allocation6] sm:$0xf]
        %v2610 = vld [vmem:[#allocation6 + $0x4] sm:$0xf]
        %v2611 = vld [vmem:[#allocation6 + $0x8] sm:$0xf]
        %v2612 = vld [vmem:[#allocation6 + $0xc] sm:$0xf]
        %v2613 = vld [vmem:[#allocation6 + $0x10] sm:$0xf]
        %v2614 = vld [vmem:[#allocation6 + $0x14] sm:$0xf]
        %v2615 = vld [vmem:[#allocation6 + $0x18] sm:$0xf]
        %v2616 = vld [vmem:[#allocation6 + $0x1c] sm:$0xf]
        %v2617 = vld [vmem:[#allocation4 + $0x1] sm:$0xff]
        %v2618 = vld [vmem:[#allocation4 + $0x11] sm:$0xff]
        %v2619 = vld [vmem:[#allocation4 + $0x21] sm:$0xff]
        %v2620 = vld [vmem:[#allocation4 + $0x31] sm:$0xff]
        %v2621 = vld [vmem:[#allocation4 + $0x41] sm:$0xff]
        %v2622 = vld [vmem:[#allocation4 + $0x51] sm:$0xff]
        %v2623 = vld [vmem:[#allocation4 + $0x61] sm:$0xff]
        %v2624 = vld [vmem:[#allocation4 + $0x71] sm:$0xff]
        %v2625 = vpack.c.bf16 %v2618, %v2617
        %v2626 = vpack.c.bf16 %v2620, %v2619
        %v2627 = vpack.c.bf16 %v2622, %v2621
        %v2628 = vpack.c.bf16 %v2624, %v2623
        %s2629 = scalar_lea.vmem [#allocation6], 32
        %v2630 = vld [vmem:[%s2629] sm:$0xf]
        %v2631 = vld [vmem:[%s2629 + $0x4] sm:$0xf]
        %v2632 = vld [vmem:[%s2629 + $0x8] sm:$0xf]
        %v2633 = vld [vmem:[%s2629 + $0xc] sm:$0xf]
        %v2634 = vld [vmem:[%s2629 + $0x10] sm:$0xf]
        %v2635 = vld [vmem:[%s2629 + $0x14] sm:$0xf]
        %v2636 = vld [vmem:[%s2629 + $0x18] sm:$0xf]
        %v2637 = vld [vmem:[%s2629 + $0x1c] sm:$0xf]
        %v2646 = vunpack.c.l.b16 %v2630
        %v2647 = vunpack.c.l.b16 %v2631
        %v2648 = vunpack.c.l.b16 %v2632
        %v2649 = vunpack.c.l.b16 %v2633
        %v2650 = vunpack.c.l.b16 %v2634
        %v2651 = vunpack.c.l.b16 %v2635
        %v2652 = vunpack.c.l.b16 %v2636
        %v2653 = vunpack.c.l.b16 %v2637
        %v2654 = vpack.c.b16 %v2647, %v2646
        %v2655 = vpack.c.b16 %v2649, %v2648
        %v2656 = vpack.c.b16 %v2651, %v2650
        %v2657 = vpack.c.b16 %v2653, %v2652
        %v2663 = vsel %vm2566, %v2625, 0
        %v2666 = vsel %vm2566, %v2626, 0
        %v2669 = vsel %vm2566, %v2627, 0
        %v2672 = vsel %vm2566, %v2628, 0
        %2674 = vmatprep.subr.bf16.mxu0 0
        %2675 = vmatpush1.bf16.msra.mxu0 %v2654
        %2676 = vmatprep.subr.bf16.mxu0 0
        %2677 = vmatpush1.bf16.msra.mxu0 %v2655
        %2678 = vmatprep.subr.bf16.mxu0 0
        %2679 = vmatpush1.bf16.msra.mxu0 %v2656
        %2680 = vmatprep.subr.bf16.mxu0 0
        %2681 = vmatpush1.bf16.msra.mxu0 %v2657
        %2682 = vmatprep.subr.bf16.mxu0 0
        %2683 = vmatpush1.bf16.msra.mxu0 0
        %2684 = vmatprep.subr.bf16.mxu0 0
        %2685 = vmatpush1.bf16.msra.mxu0 0
        %2686 = vmatprep.subr.bf16.mxu0 0
        %2687 = vmatpush1.bf16.msra.mxu0 0
        %2688 = vmatprep.subr.bf16.mxu0 0
        %2689 = vmatpush1.bf16.msra.mxu0 0
        %2690 = vmatprep.subr.bf16.mxu0 0
        %2691 = vmatpush1.bf16.msra.mxu0 0
        %2692 = vmatprep.subr.bf16.mxu0 0
        %2693 = vmatpush1.bf16.msra.mxu0 0
        %2694 = vmatprep.subr.bf16.mxu0 0
        %2695 = vmatpush1.bf16.msra.mxu0 0
        %2696 = vmatprep.subr.bf16.mxu0 0
        %2697 = vmatpush1.bf16.msra.mxu0 0
        %2698 = vmatprep.subr.bf16.mxu0 0
        %2699 = vmatpush1.bf16.msra.mxu0 0
        %2700 = vmatprep.subr.bf16.mxu0 0
        %2701 = vmatpush1.bf16.msra.mxu0 0
        %2702 = vmatprep.subr.bf16.mxu0 0
        %2703 = vmatpush1.bf16.msra.mxu0 0
        %2704 = vmatprep.subr.bf16.mxu0 0
        %2705 = vmatpush1.bf16.msra.mxu0 0
        %2706 = vmatprep.mubr.bf16.mxu0 0
        %2707 = vmatmul.mubr.bf16.gmra.mrb[0].mxu0 %v2663
        %v2708 = vpop.f32.mrb[0].mxu0
        %v2709 = vadd.f32 0.0, %v2708
        %v2710 = vpop.f32.mrb[0].mxu0
        %v2711 = vpop.f32.mrb[0].mxu0
        %v2712 = vadd.f32 0.0, %v2711
        %v2713 = vpop.f32.mrb[0].mxu0
        %2714 = vmatprep.mubr.bf16.mxu0 0
        %2715 = vmatmul.mubr.bf16.gmra.mrb[0].mxu0 %v2666
        %v2716 = vpop.f32.mrb[0].mxu0
        %v2717 = vadd.f32 0.0, %v2716
        %v2718 = vpop.f32.mrb[0].mxu0
        %v2719 = vpop.f32.mrb[0].mxu0
        %v2720 = vadd.f32 0.0, %v2719
        %v2721 = vpop.f32.mrb[0].mxu0
        %2722 = vmatprep.mubr.bf16.mxu0 0
        %2723 = vmatmul.mubr.bf16.gmra.mrb[0].mxu0 %v2669
        %v2724 = vpop.f32.mrb[0].mxu0
        %v2725 = vadd.f32 0.0, %v2724
        %v2726 = vpop.f32.mrb[0].mxu0
        %v2727 = vpop.f32.mrb[0].mxu0
        %v2728 = vadd.f32 0.0, %v2727
        %v2729 = vpop.f32.mrb[0].mxu0
        %2730 = vmatprep.mubr.bf16.mxu0 0
        %2731 = vmatmul.mubr.bf16.gmra.mrb[0].mxu0 %v2672
        %v2732 = vpop.f32.mrb[0].mxu0
        %v2733 = vadd.f32 0.0, %v2732
        %v2734 = vpop.f32.mrb[0].mxu0
        %v2735 = vpop.f32.mrb[0].mxu0
        %v2736 = vadd.f32 0.0, %v2735
        %v2737 = vpop.f32.mrb[0].mxu0
        %2738 = vdwg.mxu0
        %v2747 = vunpack.c.l.b16 %v2609
        %v2748 = vunpack.c.l.b16 %v2610
        %v2749 = vunpack.c.l.b16 %v2611
        %v2750 = vunpack.c.l.b16 %v2612
        %v2751 = vunpack.c.l.b16 %v2613
        %v2752 = vunpack.c.l.b16 %v2614
        %v2753 = vunpack.c.l.b16 %v2615
        %v2754 = vunpack.c.l.b16 %v2616
        %v2755 = vpack.c.b16 %v2748, %v2747
        %v2756 = vpack.c.b16 %v2750, %v2749
        %v2757 = vpack.c.b16 %v2752, %v2751
        %v2758 = vpack.c.b16 %v2754, %v2753
        %v2764 = vsel %vm2566, %v2605, 0
        %v2767 = vsel %vm2566, %v2606, 0
        %v2770 = vsel %vm2566, %v2607, 0
        %v2773 = vsel %vm2566, %v2608, 0
        %2775 = vmatprep.subr.bf16.mxu0 0
        %2776 = vmatpush1.bf16.msra.mxu0 %v2755
        %2777 = vmatprep.subr.bf16.mxu0 0
        %2778 = vmatpush1.bf16.msra.mxu0 %v2756
        %2779 = vmatprep.subr.bf16.mxu0 0
        %2780 = vmatpush1.bf16.msra.mxu0 %v2757
        %2781 = vmatprep.subr.bf16.mxu0 0
        %2782 = vmatpush1.bf16.msra.mxu0 %v2758
        %2783 = vmatprep.subr.bf16.mxu0 0
        %2784 = vmatpush1.bf16.msra.mxu0 0
        %2785 = vmatprep.subr.bf16.mxu0 0
        %2786 = vmatpush1.bf16.msra.mxu0 0
        %2787 = vmatprep.subr.bf16.mxu0 0
        %2788 = vmatpush1.bf16.msra.mxu0 0
        %2789 = vmatprep.subr.bf16.mxu0 0
        %2790 = vmatpush1.bf16.msra.mxu0 0
        %2791 = vmatprep.subr.bf16.mxu0 0
        %2792 = vmatpush1.bf16.msra.mxu0 0
        %2793 = vmatprep.subr.bf16.mxu0 0
        %2794 = vmatpush1.bf16.msra.mxu0 0
        %2795 = vmatprep.subr.bf16.mxu0 0
        %2796 = vmatpush1.bf16.msra.mxu0 0
        %2797 = vmatprep.subr.bf16.mxu0 0
        %2798 = vmatpush1.bf16.msra.mxu0 0
        %2799 = vmatprep.subr.bf16.mxu0 0
        %2800 = vmatpush1.bf16.msra.mxu0 0
        %2801 = vmatprep.subr.bf16.mxu0 0
        %2802 = vmatpush1.bf16.msra.mxu0 0
        %2803 = vmatprep.subr.bf16.mxu0 0
        %2804 = vmatpush1.bf16.msra.mxu0 0
        %2805 = vmatprep.subr.bf16.mxu0 0
        %2806 = vmatpush1.bf16.msra.mxu0 0
        %2807 = vmatprep.mubr.bf16.mxu0 0
        %2808 = vmatmul.mubr.bf16.gmra.mrb[0].mxu0 %v2764
        %v2809 = vpop.f32.mrb[0].mxu0
        %v2810 = vadd.f32 %v2709, %v2809
        %v2811 = vpop.f32.mrb[0].mxu0
        %v2812 = vpop.f32.mrb[0].mxu0
        %v2813 = vadd.f32 %v2712, %v2812
        %v2814 = vpop.f32.mrb[0].mxu0
        %2815 = vmatprep.mubr.bf16.mxu0 0
        %2816 = vmatmul.mubr.bf16.gmra.mrb[0].mxu0 %v2767
        %v2817 = vpop.f32.mrb[0].mxu0
        %v2818 = vadd.f32 %v2717, %v2817
        %v2819 = vpop.f32.mrb[0].mxu0
        %v2820 = vpop.f32.mrb[0].mxu0
        %v2821 = vadd.f32 %v2720, %v2820
        %v2822 = vpop.f32.mrb[0].mxu0
        %2823 = vmatprep.mubr.bf16.mxu0 0
        %2824 = vmatmul.mubr.bf16.gmra.mrb[0].mxu0 %v2770
        %v2825 = vpop.f32.mrb[0].mxu0
        %v2826 = vadd.f32 %v2725, %v2825
        %v2827 = vpop.f32.mrb[0].mxu0
        %v2828 = vpop.f32.mrb[0].mxu0
        %v2829 = vadd.f32 %v2728, %v2828
        %v2830 = vpop.f32.mrb[0].mxu0
        %2831 = vmatprep.mubr.bf16.mxu0 0
        %2832 = vmatmul.mubr.bf16.gmra.mrb[0].mxu0 %v2773
        %v2833 = vpop.f32.mrb[0].mxu0
        %v2834 = vadd.f32 %v2733, %v2833
        %v2835 = vpop.f32.mrb[0].mxu0
        %v2836 = vpop.f32.mrb[0].mxu0
        %v2837 = vadd.f32 %v2736, %v2836
        %v2838 = vpop.f32.mrb[0].mxu0
        %2839 = vdwg.mxu0
        %v2840 = vld [vmem:[#allocation4 + $0x2] sm:$0xff]
        %v2841 = vld [vmem:[#allocation4 + $0x12] sm:$0xff]
        %v2842 = vld [vmem:[#allocation4 + $0x22] sm:$0xff]
        %v2843 = vld [vmem:[#allocation4 + $0x32] sm:$0xff]
        %v2844 = vld [vmem:[#allocation4 + $0x42] sm:$0xff]
        %v2845 = vld [vmem:[#allocation4 + $0x52] sm:$0xff]
        %v2846 = vld [vmem:[#allocation4 + $0x62] sm:$0xff]
        %v2847 = vld [vmem:[#allocation4 + $0x72] sm:$0xff]
        %v2848 = vpack.c.bf16 %v2841, %v2840
        %v2849 = vpack.c.bf16 %v2843, %v2842
        %v2850 = vpack.c.bf16 %v2845, %v2844
        %v2851 = vpack.c.bf16 %v2847, %v2846
        %s2852 = scalar_lea.vmem [#allocation6], 64
        %v2853 = vld [vmem:[%s2852] sm:$0xf]
        %v2854 = vld [vmem:[%s2852 + $0x4] sm:$0xf]
        %v2855 = vld [vmem:[%s2852 + $0x8] sm:$0xf]
        %v2856 = vld [vmem:[%s2852 + $0xc] sm:$0xf]
        %v2857 = vld [vmem:[%s2852 + $0x10] sm:$0xf]
        %v2858 = vld [vmem:[%s2852 + $0x14] sm:$0xf]
        %v2859 = vld [vmem:[%s2852 + $0x18] sm:$0xf]
        %v2860 = vld [vmem:[%s2852 + $0x1c] sm:$0xf]
        %v2869 = vunpack.c.l.b16 %v2853
        %v2870 = vunpack.c.l.b16 %v2854
        %v2871 = vunpack.c.l.b16 %v2855
        %v2872 = vunpack.c.l.b16 %v2856
        %v2873 = vunpack.c.l.b16 %v2857
        %v2874 = vunpack.c.l.b16 %v2858
        %v2875 = vunpack.c.l.b16 %v2859
        %v2876 = vunpack.c.l.b16 %v2860
        %v2877 = vpack.c.b16 %v2870, %v2869
        %v2878 = vpack.c.b16 %v2872, %v2871
        %v2879 = vpack.c.b16 %v2874, %v2873
        %v2880 = vpack.c.b16 %v2876, %v2875
        %v2886 = vsel %vm2566, %v2848, 0
        %v2889 = vsel %vm2566, %v2849, 0
        %v2892 = vsel %vm2566, %v2850, 0
        %v2895 = vsel %vm2566, %v2851, 0
        %2897 = vmatprep.subr.bf16.mxu0 0
        %2898 = vmatpush1.bf16.msra.mxu0 %v2877
        %2899 = vmatprep.subr.bf16.mxu0 0
        %2900 = vmatpush1.bf16.msra.mxu0 %v2878
        %2901 = vmatprep.subr.bf16.mxu0 0
        %2902 = vmatpush1.bf16.msra.mxu0 %v2879
        %2903 = vmatprep.subr.bf16.mxu0 0
        %2904 = vmatpush1.bf16.msra.mxu0 %v2880
        %2905 = vmatprep.subr.bf16.mxu0 0
        %2906 = vmatpush1.bf16.msra.mxu0 0
        %2907 = vmatprep.subr.bf16.mxu0 0
        %2908 = vmatpush1.bf16.msra.mxu0 0
        %2909 = vmatprep.subr.bf16.mxu0 0
        %2910 = vmatpush1.bf16.msra.mxu0 0
        %2911 = vmatprep.subr.bf16.mxu0 0
        %2912 = vmatpush1.bf16.msra.mxu0 0
        %2913 = vmatprep.subr.bf16.mxu0 0
        %2914 = vmatpush1.bf16.msra.mxu0 0
        %2915 = vmatprep.subr.bf16.mxu0 0
        %2916 = vmatpush1.bf16.msra.mxu0 0
        %2917 = vmatprep.subr.bf16.mxu0 0
        %2918 = vmatpush1.bf16.msra.mxu0 0
        %2919 = vmatprep.subr.bf16.mxu0 0
        %2920 = vmatpush1.bf16.msra.mxu0 0
        %2921 = vmatprep.subr.bf16.mxu0 0
        %2922 = vmatpush1.bf16.msra.mxu0 0
        %2923 = vmatprep.subr.bf16.mxu0 0
        %2924 = vmatpush1.bf16.msra.mxu0 0
        %2925 = vmatprep.subr.bf16.mxu0 0
        %2926 = vmatpush1.bf16.msra.mxu0 0
        %2927 = vmatprep.subr.bf16.mxu0 0
        %2928 = vmatpush1.bf16.msra.mxu0 0
        %2929 = vmatprep.mubr.bf16.mxu0 0
        %2930 = vmatmul.mubr.bf16.gmra.mrb[0].mxu0 %v2886
        %v2931 = vpop.f32.mrb[0].mxu0
        %v2932 = vadd.f32 0.0, %v2931
        %v2933 = vpop.f32.mrb[0].mxu0
        %v2934 = vpop.f32.mrb[0].mxu0
        %v2935 = vadd.f32 0.0, %v2934
        %v2936 = vpop.f32.mrb[0].mxu0
        %2937 = vmatprep.mubr.bf16.mxu0 0
        %2938 = vmatmul.mubr.bf16.gmra.mrb[0].mxu0 %v2889
        %v2939 = vpop.f32.mrb[0].mxu0
        %v2940 = vadd.f32 0.0, %v2939
        %v2941 = vpop.f32.mrb[0].mxu0
        %v2942 = vpop.f32.mrb[0].mxu0
        %v2943 = vadd.f32 0.0, %v2942
        %v2944 = vpop.f32.mrb[0].mxu0
        %2945 = vmatprep.mubr.bf16.mxu0 0
        %2946 = vmatmul.mubr.bf16.gmra.mrb[0].mxu0 %v2892
        %v2947 = vpop.f32.mrb[0].mxu0
        %v2948 = vadd.f32 0.0, %v2947
        %v2949 = vpop.f32.mrb[0].mxu0
        %v2950 = vpop.f32.mrb[0].mxu0
        %v2951 = vadd.f32 0.0, %v2950
        %v2952 = vpop.f32.mrb[0].mxu0
        %2953 = vmatprep.mubr.bf16.mxu0 0
        %2954 = vmatmul.mubr.bf16.gmra.mrb[0].mxu0 %v2895
        %v2955 = vpop.f32.mrb[0].mxu0
        %v2956 = vadd.f32 0.0, %v2955
        %v2957 = vpop.f32.mrb[0].mxu0
        %v2958 = vpop.f32.mrb[0].mxu0
        %v2959 = vadd.f32 0.0, %v2958
        %v2960 = vpop.f32.mrb[0].mxu0
        %2961 = vdwg.mxu0
        %v2962 = vadd.f32 %v2810, %v2932
        %v2963 = vadd.f32 %v2813, %v2935
        %v2964 = vadd.f32 %v2818, %v2940
        %v2965 = vadd.f32 %v2821, %v2943
        %v2966 = vadd.f32 %v2826, %v2948
        %v2967 = vadd.f32 %v2829, %v2951
        %v2968 = vadd.f32 %v2834, %v2956
        %v2969 = vadd.f32 %v2837, %v2959
        %v2970 = vld [vmem:[%s2588] sm:$0xff]
        %v2971 = vld [vmem:[%s2588 + $0x10] sm:$0xff]
        %v2972 = vld [vmem:[%s2588 + $0x20] sm:$0xff]
        %v2973 = vld [vmem:[%s2588 + $0x30] sm:$0xff]
        %v2974 = vld [vmem:[%s2588 + $0x40] sm:$0xff]
        %v2975 = vld [vmem:[%s2588 + $0x50] sm:$0xff]
        %v2976 = vld [vmem:[%s2588 + $0x60] sm:$0xff]
        %v2977 = vld [vmem:[%s2588 + $0x70] sm:$0xff]
        %v2978 = vpack.c.bf16 %v2971, %v2970
        %v2979 = vpack.c.bf16 %v2973, %v2972
        %v2980 = vpack.c.bf16 %v2975, %v2974
        %v2981 = vpack.c.bf16 %v2977, %v2976
        %s2982 = scalar_lea.vmem [#allocation6], 96
        %v2983 = vld [vmem:[%s2982] sm:$0xf]
        %v2984 = vld [vmem:[%s2982 + $0x4] sm:$0xf]
        %v2985 = vld [vmem:[%s2982 + $0x8] sm:$0xf]
        %v2986 = vld [vmem:[%s2982 + $0xc] sm:$0xf]
        %v2987 = vld [vmem:[%s2982 + $0x10] sm:$0xf]
        %v2988 = vld [vmem:[%s2982 + $0x14] sm:$0xf]
        %v2989 = vld [vmem:[%s2982 + $0x18] sm:$0xf]
        %v2990 = vld [vmem:[%s2982 + $0x1c] sm:$0xf]
        %v2999 = vunpack.c.l.b16 %v2983
        %v3000 = vunpack.c.l.b16 %v2984
        %v3001 = vunpack.c.l.b16 %v2985
        %v3002 = vunpack.c.l.b16 %v2986
        %v3003 = vunpack.c.l.b16 %v2987
        %v3004 = vunpack.c.l.b16 %v2988
        %v3005 = vunpack.c.l.b16 %v2989
        %v3006 = vunpack.c.l.b16 %v2990
        %v3007 = vpack.c.b16 %v3000, %v2999
        %v3008 = vpack.c.b16 %v3002, %v3001
        %v3009 = vpack.c.b16 %v3004, %v3003
        %v3010 = vpack.c.b16 %v3006, %v3005
        %v3016 = vsel %vm2566, %v2978, 0
        %v3019 = vsel %vm2566, %v2979, 0
        %v3022 = vsel %vm2566, %v2980, 0
        %v3025 = vsel %vm2566, %v2981, 0
        %3027 = vmatprep.subr.bf16.mxu0 0
        %3028 = vmatpush1.bf16.msra.mxu0 %v3007
        %3029 = vmatprep.subr.bf16.mxu0 0
        %3030 = vmatpush1.bf16.msra.mxu0 %v3008
        %3031 = vmatprep.subr.bf16.mxu0 0
        %3032 = vmatpush1.bf16.msra.mxu0 %v3009
        %3033 = vmatprep.subr.bf16.mxu0 0
        %3034 = vmatpush1.bf16.msra.mxu0 %v3010
        %3035 = vmatprep.subr.bf16.mxu0 0
        %3036 = vmatpush1.bf16.msra.mxu0 0
        %3037 = vmatprep.subr.bf16.mxu0 0
        %3038 = vmatpush1.bf16.msra.mxu0 0
        %3039 = vmatprep.subr.bf16.mxu0 0
        %3040 = vmatpush1.bf16.msra.mxu0 0
        %3041 = vmatprep.subr.bf16.mxu0 0
        %3042 = vmatpush1.bf16.msra.mxu0 0
        %3043 = vmatprep.subr.bf16.mxu0 0
        %3044 = vmatpush1.bf16.msra.mxu0 0
        %3045 = vmatprep.subr.bf16.mxu0 0
        %3046 = vmatpush1.bf16.msra.mxu0 0
        %3047 = vmatprep.subr.bf16.mxu0 0
        %3048 = vmatpush1.bf16.msra.mxu0 0
        %3049 = vmatprep.subr.bf16.mxu0 0
        %3050 = vmatpush1.bf16.msra.mxu0 0
        %3051 = vmatprep.subr.bf16.mxu0 0
        %3052 = vmatpush1.bf16.msra.mxu0 0
        %3053 = vmatprep.subr.bf16.mxu0 0
        %3054 = vmatpush1.bf16.msra.mxu0 0
        %3055 = vmatprep.subr.bf16.mxu0 0
        %3056 = vmatpush1.bf16.msra.mxu0 0
        %3057 = vmatprep.subr.bf16.mxu0 0
        %3058 = vmatpush1.bf16.msra.mxu0 0
        %3059 = vmatprep.mubr.bf16.mxu0 0
        %3060 = vmatmul.mubr.bf16.gmra.mrb[0].mxu0 %v3016
        %v3061 = vpop.f32.mrb[0].mxu0
        %v3062 = vadd.f32 0.0, %v3061
        %v3063 = vpop.f32.mrb[0].mxu0
        %v3064 = vpop.f32.mrb[0].mxu0
        %v3065 = vadd.f32 0.0, %v3064
        %v3066 = vpop.f32.mrb[0].mxu0
        %3067 = vmatprep.mubr.bf16.mxu0 0
        %3068 = vmatmul.mubr.bf16.gmra.mrb[0].mxu0 %v3019
        %v3069 = vpop.f32.mrb[0].mxu0
        %v3070 = vadd.f32 0.0, %v3069
        %v3071 = vpop.f32.mrb[0].mxu0
        %v3072 = vpop.f32.mrb[0].mxu0
        %v3073 = vadd.f32 0.0, %v3072
        %v3074 = vpop.f32.mrb[0].mxu0
        %3075 = vmatprep.mubr.bf16.mxu0 0
        %3076 = vmatmul.mubr.bf16.gmra.mrb[0].mxu0 %v3022
        %v3077 = vpop.f32.mrb[0].mxu0
        %v3078 = vadd.f32 0.0, %v3077
        %v3079 = vpop.f32.mrb[0].mxu0
        %v3080 = vpop.f32.mrb[0].mxu0
        %v3081 = vadd.f32 0.0, %v3080
        %v3082 = vpop.f32.mrb[0].mxu0
        %3083 = vmatprep.mubr.bf16.mxu0 0
        %3084 = vmatmul.mubr.bf16.gmra.mrb[0].mxu0 %v3025
        %v3085 = vpop.f32.mrb[0].mxu0
        %v3086 = vadd.f32 0.0, %v3085
        %v3087 = vpop.f32.mrb[0].mxu0
        %v3088 = vpop.f32.mrb[0].mxu0
        %v3089 = vadd.f32 0.0, %v3088
        %v3090 = vpop.f32.mrb[0].mxu0
        %3091 = vdwg.mxu0
        %v3092 = vadd.f32 %v2962, %v3062
        %v3093 = vadd.f32 %v2963, %v3065
        %v3094 = vadd.f32 %v2964, %v3070
        %v3095 = vadd.f32 %v2965, %v3073
        %v3096 = vadd.f32 %v2966, %v3078
        %v3097 = vadd.f32 %v2967, %v3081
        %v3098 = vadd.f32 %v2968, %v3086
        %v3099 = vadd.f32 %v2969, %v3089
        %v3100 = vld [vmem:[%s2588 + $0x1] sm:$0xff]
        %v3101 = vld [vmem:[%s2588 + $0x11] sm:$0xff]
        %v3102 = vld [vmem:[%s2588 + $0x21] sm:$0xff]
        %v3103 = vld [vmem:[%s2588 + $0x31] sm:$0xff]
        %v3104 = vld [vmem:[%s2588 + $0x41] sm:$0xff]
        %v3105 = vld [vmem:[%s2588 + $0x51] sm:$0xff]
        %v3106 = vld [vmem:[%s2588 + $0x61] sm:$0xff]
        %v3107 = vld [vmem:[%s2588 + $0x71] sm:$0xff]
        %v3108 = vpack.c.bf16 %v3101, %v3100
        %v3109 = vpack.c.bf16 %v3103, %v3102
        %v3110 = vpack.c.bf16 %v3105, %v3104
        %v3111 = vpack.c.bf16 %v3107, %v3106
        %s3112 = scalar_lea.vmem [#allocation6], 128
        %v3113 = vld [vmem:[%s3112] sm:$0xf]
        %v3114 = vld [vmem:[%s3112 + $0x4] sm:$0xf]
        %v3115 = vld [vmem:[%s3112 + $0x8] sm:$0xf]
        %v3116 = vld [vmem:[%s3112 + $0xc] sm:$0xf]
        %v3117 = vld [vmem:[%s3112 + $0x10] sm:$0xf]
        %v3118 = vld [vmem:[%s3112 + $0x14] sm:$0xf]
        %v3119 = vld [vmem:[%s3112 + $0x18] sm:$0xf]
        %v3120 = vld [vmem:[%s3112 + $0x1c] sm:$0xf]
        %v3129 = vunpack.c.l.b16 %v3113
        %v3130 = vunpack.c.l.b16 %v3114
        %v3131 = vunpack.c.l.b16 %v3115
        %v3132 = vunpack.c.l.b16 %v3116
        %v3133 = vunpack.c.l.b16 %v3117
        %v3134 = vunpack.c.l.b16 %v3118
        %v3135 = vunpack.c.l.b16 %v3119
        %v3136 = vunpack.c.l.b16 %v3120
        %v3137 = vpack.c.b16 %v3130, %v3129
        %v3138 = vpack.c.b16 %v3132, %v3131
        %v3139 = vpack.c.b16 %v3134, %v3133
        %v3140 = vpack.c.b16 %v3136, %v3135
        %v3146 = vsel %vm2566, %v3108, 0
        %v3149 = vsel %vm2566, %v3109, 0
        %v3152 = vsel %vm2566, %v3110, 0
        %v3155 = vsel %vm2566, %v3111, 0
        %3157 = vmatprep.subr.bf16.mxu0 0
        %3158 = vmatpush1.bf16.msra.mxu0 %v3137
        %3159 = vmatprep.subr.bf16.mxu0 0
        %3160 = vmatpush1.bf16.msra.mxu0 %v3138
        %3161 = vmatprep.subr.bf16.mxu0 0
        %3162 = vmatpush1.bf16.msra.mxu0 %v3139
        %3163 = vmatprep.subr.bf16.mxu0 0
        %3164 = vmatpush1.bf16.msra.mxu0 %v3140
        %3165 = vmatprep.subr.bf16.mxu0 0
        %3166 = vmatpush1.bf16.msra.mxu0 0
        %3167 = vmatprep.subr.bf16.mxu0 0
        %3168 = vmatpush1.bf16.msra.mxu0 0
        %3169 = vmatprep.subr.bf16.mxu0 0
        %3170 = vmatpush1.bf16.msra.mxu0 0
        %3171 = vmatprep.subr.bf16.mxu0 0
        %3172 = vmatpush1.bf16.msra.mxu0 0
        %3173 = vmatprep.subr.bf16.mxu0 0
        %3174 = vmatpush1.bf16.msra.mxu0 0
        %3175 = vmatprep.subr.bf16.mxu0 0
        %3176 = vmatpush1.bf16.msra.mxu0 0
        %3177 = vmatprep.subr.bf16.mxu0 0
        %3178 = vmatpush1.bf16.msra.mxu0 0
        %3179 = vmatprep.subr.bf16.mxu0 0
        %3180 = vmatpush1.bf16.msra.mxu0 0
        %3181 = vmatprep.subr.bf16.mxu0 0
        %3182 = vmatpush1.bf16.msra.mxu0 0
        %3183 = vmatprep.subr.bf16.mxu0 0
        %3184 = vmatpush1.bf16.msra.mxu0 0
        %3185 = vmatprep.subr.bf16.mxu0 0
        %3186 = vmatpush1.bf16.msra.mxu0 0
        %3187 = vmatprep.subr.bf16.mxu0 0
        %3188 = vmatpush1.bf16.msra.mxu0 0
        %3189 = vmatprep.mubr.bf16.mxu0 0
        %3190 = vmatmul.mubr.bf16.gmra.mrb[0].mxu0 %v3146
        %v3191 = vpop.f32.mrb[0].mxu0
        %v3192 = vadd.f32 0.0, %v3191
        %v3193 = vpop.f32.mrb[0].mxu0
        %v3194 = vpop.f32.mrb[0].mxu0
        %v3195 = vadd.f32 0.0, %v3194
        %v3196 = vpop.f32.mrb[0].mxu0
        %3197 = vmatprep.mubr.bf16.mxu0 0
        %3198 = vmatmul.mubr.bf16.gmra.mrb[0].mxu0 %v3149
        %v3199 = vpop.f32.mrb[0].mxu0
        %v3200 = vadd.f32 0.0, %v3199
        %v3201 = vpop.f32.mrb[0].mxu0
        %v3202 = vpop.f32.mrb[0].mxu0
        %v3203 = vadd.f32 0.0, %v3202
        %v3204 = vpop.f32.mrb[0].mxu0
        %3205 = vmatprep.mubr.bf16.mxu0 0
        %3206 = vmatmul.mubr.bf16.gmra.mrb[0].mxu0 %v3152
        %v3207 = vpop.f32.mrb[0].mxu0
        %v3208 = vadd.f32 0.0, %v3207
        %v3209 = vpop.f32.mrb[0].mxu0
        %v3210 = vpop.f32.mrb[0].mxu0
        %v3211 = vadd.f32 0.0, %v3210
        %v3212 = vpop.f32.mrb[0].mxu0
        %3213 = vmatprep.mubr.bf16.mxu0 0
        %3214 = vmatmul.mubr.bf16.gmra.mrb[0].mxu0 %v3155
        %v3215 = vpop.f32.mrb[0].mxu0
        %v3216 = vadd.f32 0.0, %v3215
        %v3217 = vpop.f32.mrb[0].mxu0
        %v3218 = vpop.f32.mrb[0].mxu0
        %v3219 = vadd.f32 0.0, %v3218
        %v3220 = vpop.f32.mrb[0].mxu0
        %3221 = vdwg.mxu0
        %v3222 = vadd.f32 %v3092, %v3192
        %v3223 = vadd.f32 %v3093, %v3195
        %v3224 = vadd.f32 %v3094, %v3200
        %v3225 = vadd.f32 %v3095, %v3203
        %v3226 = vadd.f32 %v3096, %v3208
        %v3227 = vadd.f32 %v3097, %v3211
        %v3228 = vadd.f32 %v3098, %v3216
        %v3229 = vadd.f32 %v3099, %v3219
        %v3230 = vld [vmem:[%s2588 + $0x2] sm:$0xff]
        %v3231 = vld [vmem:[%s2588 + $0x12] sm:$0xff]
        %v3232 = vld [vmem:[%s2588 + $0x22] sm:$0xff]
        %v3233 = vld [vmem:[%s2588 + $0x32] sm:$0xff]
        %v3234 = vld [vmem:[%s2588 + $0x42] sm:$0xff]
        %v3235 = vld [vmem:[%s2588 + $0x52] sm:$0xff]
        %v3236 = vld [vmem:[%s2588 + $0x62] sm:$0xff]
        %v3237 = vld [vmem:[%s2588 + $0x72] sm:$0xff]
        %v3238 = vpack.c.bf16 %v3231, %v3230
        %v3239 = vpack.c.bf16 %v3233, %v3232
        %v3240 = vpack.c.bf16 %v3235, %v3234
        %v3241 = vpack.c.bf16 %v3237, %v3236
        %s3242 = scalar_lea.vmem [#allocation6], 160
        %v3243 = vld [vmem:[%s3242] sm:$0xf]
        %v3244 = vld [vmem:[%s3242 + $0x4] sm:$0xf]
        %v3245 = vld [vmem:[%s3242 + $0x8] sm:$0xf]
        %v3246 = vld [vmem:[%s3242 + $0xc] sm:$0xf]
        %v3247 = vld [vmem:[%s3242 + $0x10] sm:$0xf]
        %v3248 = vld [vmem:[%s3242 + $0x14] sm:$0xf]
        %v3249 = vld [vmem:[%s3242 + $0x18] sm:$0xf]
        %v3250 = vld [vmem:[%s3242 + $0x1c] sm:$0xf]
        %v3259 = vunpack.c.l.b16 %v3243
        %v3260 = vunpack.c.l.b16 %v3244
        %v3261 = vunpack.c.l.b16 %v3245
        %v3262 = vunpack.c.l.b16 %v3246
        %v3263 = vunpack.c.l.b16 %v3247
        %v3264 = vunpack.c.l.b16 %v3248
        %v3265 = vunpack.c.l.b16 %v3249
        %v3266 = vunpack.c.l.b16 %v3250
        %v3267 = vpack.c.b16 %v3260, %v3259
        %v3268 = vpack.c.b16 %v3262, %v3261
        %v3269 = vpack.c.b16 %v3264, %v3263
        %v3270 = vpack.c.b16 %v3266, %v3265
        %v3276 = vsel %vm2566, %v3238, 0
        %v3279 = vsel %vm2566, %v3239, 0
        %v3282 = vsel %vm2566, %v3240, 0
        %v3285 = vsel %vm2566, %v3241, 0
        %3287 = vmatprep.subr.bf16.mxu0 0
        %3288 = vmatpush1.bf16.msra.mxu0 %v3267
        %3289 = vmatprep.subr.bf16.mxu0 0
        %3290 = vmatpush1.bf16.msra.mxu0 %v3268
        %3291 = vmatprep.subr.bf16.mxu0 0
        %3292 = vmatpush1.bf16.msra.mxu0 %v3269
        %3293 = vmatprep.subr.bf16.mxu0 0
        %3294 = vmatpush1.bf16.msra.mxu0 %v3270
        %3295 = vmatprep.subr.bf16.mxu0 0
        %3296 = vmatpush1.bf16.msra.mxu0 0
        %3297 = vmatprep.subr.bf16.mxu0 0
        %3298 = vmatpush1.bf16.msra.mxu0 0
        %3299 = vmatprep.subr.bf16.mxu0 0
        %3300 = vmatpush1.bf16.msra.mxu0 0
        %3301 = vmatprep.subr.bf16.mxu0 0
        %3302 = vmatpush1.bf16.msra.mxu0 0
        %3303 = vmatprep.subr.bf16.mxu0 0
        %3304 = vmatpush1.bf16.msra.mxu0 0
        %3305 = vmatprep.subr.bf16.mxu0 0
        %3306 = vmatpush1.bf16.msra.mxu0 0
        %3307 = vmatprep.subr.bf16.mxu0 0
        %3308 = vmatpush1.bf16.msra.mxu0 0
        %3309 = vmatprep.subr.bf16.mxu0 0
        %3310 = vmatpush1.bf16.msra.mxu0 0
        %3311 = vmatprep.subr.bf16.mxu0 0
        %3312 = vmatpush1.bf16.msra.mxu0 0
        %3313 = vmatprep.subr.bf16.mxu0 0
        %3314 = vmatpush1.bf16.msra.mxu0 0
        %3315 = vmatprep.subr.bf16.mxu0 0
        %3316 = vmatpush1.bf16.msra.mxu0 0
        %3317 = vmatprep.subr.bf16.mxu0 0
        %3318 = vmatpush1.bf16.msra.mxu0 0
        %3319 = vmatprep.mubr.bf16.mxu0 0
        %3320 = vmatmul.mubr.bf16.gmra.mrb[0].mxu0 %v3276
        %v3321 = vpop.f32.mrb[0].mxu0
        %v3322 = vadd.f32 0.0, %v3321
        %v3323 = vpop.f32.mrb[0].mxu0
        %v3324 = vpop.f32.mrb[0].mxu0
        %v3325 = vadd.f32 0.0, %v3324
        %v3326 = vpop.f32.mrb[0].mxu0
        %3327 = vmatprep.mubr.bf16.mxu0 0
        %3328 = vmatmul.mubr.bf16.gmra.mrb[0].mxu0 %v3279
        %v3329 = vpop.f32.mrb[0].mxu0
        %v3330 = vadd.f32 0.0, %v3329
        %v3331 = vpop.f32.mrb[0].mxu0
        %v3332 = vpop.f32.mrb[0].mxu0
        %v3333 = vadd.f32 0.0, %v3332
        %v3334 = vpop.f32.mrb[0].mxu0
        %3335 = vmatprep.mubr.bf16.mxu0 0
        %3336 = vmatmul.mubr.bf16.gmra.mrb[0].mxu0 %v3282
        %v3337 = vpop.f32.mrb[0].mxu0
        %v3338 = vadd.f32 0.0, %v3337
        %v3339 = vpop.f32.mrb[0].mxu0
        %v3340 = vpop.f32.mrb[0].mxu0
        %v3341 = vadd.f32 0.0, %v3340
        %v3342 = vpop.f32.mrb[0].mxu0
        %3343 = vmatprep.mubr.bf16.mxu0 0
        %3344 = vmatmul.mubr.bf16.gmra.mrb[0].mxu0 %v3285
        %v3345 = vpop.f32.mrb[0].mxu0
        %v3346 = vadd.f32 0.0, %v3345
        %v3347 = vpop.f32.mrb[0].mxu0
        %v3348 = vpop.f32.mrb[0].mxu0
        %v3349 = vadd.f32 0.0, %v3348
        %v3350 = vpop.f32.mrb[0].mxu0
        %3351 = vdwg.mxu0
        %v3352 = vadd.f32 %v3222, %v3322
        %v3353 = vadd.f32 %v3223, %v3325
        %v3354 = vadd.f32 %v3224, %v3330
        %v3355 = vadd.f32 %v3225, %v3333
        %v3356 = vadd.f32 %v3226, %v3338
        %v3357 = vadd.f32 %v3227, %v3341
        %v3358 = vadd.f32 %v3228, %v3346
        %v3359 = vadd.f32 %v3229, %v3349
        %s3360 = scalar_lea.vmem [#allocation4], 32
        %v3361 = vld [vmem:[%s3360] sm:$0xff]
        %v3362 = vld [vmem:[%s3360 + $0x10] sm:$0xff]
        %v3363 = vld [vmem:[%s3360 + $0x20] sm:$0xff]
        %v3364 = vld [vmem:[%s3360 + $0x30] sm:$0xff]
        %v3365 = vld [vmem:[%s3360 + $0x40] sm:$0xff]
        %v3366 = vld [vmem:[%s3360 + $0x50] sm:$0xff]
        %v3367 = vld [vmem:[%s3360 + $0x60] sm:$0xff]
        %v3368 = vld [vmem:[%s3360 + $0x70] sm:$0xff]
        %v3369 = vpack.c.bf16 %v3362, %v3361
        %v3370 = vpack.c.bf16 %v3364, %v3363
        %v3371 = vpack.c.bf16 %v3366, %v3365
        %v3372 = vpack.c.bf16 %v3368, %v3367
        %s3373 = scalar_lea.vmem [#allocation6], 192
        %v3374 = vld [vmem:[%s3373] sm:$0xf]
        %v3375 = vld [vmem:[%s3373 + $0x4] sm:$0xf]
        %v3376 = vld [vmem:[%s3373 + $0x8] sm:$0xf]
        %v3377 = vld [vmem:[%s3373 + $0xc] sm:$0xf]
        %v3378 = vld [vmem:[%s3373 + $0x10] sm:$0xf]
        %v3379 = vld [vmem:[%s3373 + $0x14] sm:$0xf]
        %v3380 = vld [vmem:[%s3373 + $0x18] sm:$0xf]
        %v3381 = vld [vmem:[%s3373 + $0x1c] sm:$0xf]
        %v3390 = vunpack.c.l.b16 %v3374
        %v3391 = vunpack.c.l.b16 %v3375
        %v3392 = vunpack.c.l.b16 %v3376
        %v3393 = vunpack.c.l.b16 %v3377
        %v3394 = vunpack.c.l.b16 %v3378
        %v3395 = vunpack.c.l.b16 %v3379
        %v3396 = vunpack.c.l.b16 %v3380
        %v3397 = vunpack.c.l.b16 %v3381
        %v3398 = vpack.c.b16 %v3391, %v3390
        %v3399 = vpack.c.b16 %v3393, %v3392
        %v3400 = vpack.c.b16 %v3395, %v3394
        %v3401 = vpack.c.b16 %v3397, %v3396
        %v3407 = vsel %vm2566, %v3369, 0
        %v3410 = vsel %vm2566, %v3370, 0
        %v3413 = vsel %vm2566, %v3371, 0
        %v3416 = vsel %vm2566, %v3372, 0
        %3418 = vmatprep.subr.bf16.mxu0 0
        %3419 = vmatpush1.bf16.msra.mxu0 %v3398
        %3420 = vmatprep.subr.bf16.mxu0 0
        %3421 = vmatpush1.bf16.msra.mxu0 %v3399
        %3422 = vmatprep.subr.bf16.mxu0 0
        %3423 = vmatpush1.bf16.msra.mxu0 %v3400
        %3424 = vmatprep.subr.bf16.mxu0 0
        %3425 = vmatpush1.bf16.msra.mxu0 %v3401
        %3426 = vmatprep.subr.bf16.mxu0 0
        %3427 = vmatpush1.bf16.msra.mxu0 0
        %3428 = vmatprep.subr.bf16.mxu0 0
        %3429 = vmatpush1.bf16.msra.mxu0 0
        %3430 = vmatprep.subr.bf16.mxu0 0
        %3431 = vmatpush1.bf16.msra.mxu0 0
        %3432 = vmatprep.subr.bf16.mxu0 0
        %3433 = vmatpush1.bf16.msra.mxu0 0
        %3434 = vmatprep.subr.bf16.mxu0 0
        %3435 = vmatpush1.bf16.msra.mxu0 0
        %3436 = vmatprep.subr.bf16.mxu0 0
        %3437 = vmatpush1.bf16.msra.mxu0 0
        %3438 = vmatprep.subr.bf16.mxu0 0
        %3439 = vmatpush1.bf16.msra.mxu0 0
        %3440 = vmatprep.subr.bf16.mxu0 0
        %3441 = vmatpush1.bf16.msra.mxu0 0
        %3442 = vmatprep.subr.bf16.mxu0 0
        %3443 = vmatpush1.bf16.msra.mxu0 0
        %3444 = vmatprep.subr.bf16.mxu0 0
        %3445 = vmatpush1.bf16.msra.mxu0 0
        %3446 = vmatprep.subr.bf16.mxu0 0
        %3447 = vmatpush1.bf16.msra.mxu0 0
        %3448 = vmatprep.subr.bf16.mxu0 0
        %3449 = vmatpush1.bf16.msra.mxu0 0
        %3450 = vmatprep.mubr.bf16.mxu0 0
        %3451 = vmatmul.mubr.bf16.gmra.mrb[0].mxu0 %v3407
        %v3452 = vpop.f32.mrb[0].mxu0
        %v3453 = vadd.f32 0.0, %v3452
        %v3454 = vpop.f32.mrb[0].mxu0
        %v3455 = vpop.f32.mrb[0].mxu0
        %v3456 = vadd.f32 0.0, %v3455
        %v3457 = vpop.f32.mrb[0].mxu0
        %3458 = vmatprep.mubr.bf16.mxu0 0
        %3459 = vmatmul.mubr.bf16.gmra.mrb[0].mxu0 %v3410
        %v3460 = vpop.f32.mrb[0].mxu0
        %v3461 = vadd.f32 0.0, %v3460
        %v3462 = vpop.f32.mrb[0].mxu0
        %v3463 = vpop.f32.mrb[0].mxu0
        %v3464 = vadd.f32 0.0, %v3463
        %v3465 = vpop.f32.mrb[0].mxu0
        %3466 = vmatprep.mubr.bf16.mxu0 0
        %3467 = vmatmul.mubr.bf16.gmra.mrb[0].mxu0 %v3413
        %v3468 = vpop.f32.mrb[0].mxu0
        %v3469 = vadd.f32 0.0, %v3468
        %v3470 = vpop.f32.mrb[0].mxu0
        %v3471 = vpop.f32.mrb[0].mxu0
        %v3472 = vadd.f32 0.0, %v3471
        %v3473 = vpop.f32.mrb[0].mxu0
        %3474 = vmatprep.mubr.bf16.mxu0 0
        %3475 = vmatmul.mubr.bf16.gmra.mrb[0].mxu0 %v3416
        %v3476 = vpop.f32.mrb[0].mxu0
        %v3477 = vadd.f32 0.0, %v3476
        %v3478 = vpop.f32.mrb[0].mxu0
        %v3479 = vpop.f32.mrb[0].mxu0
        %v3480 = vadd.f32 0.0, %v3479
        %v3481 = vpop.f32.mrb[0].mxu0
        %3482 = vdwg.mxu0
        %v3483 = vadd.f32 %v3352, %v3453
        %v3484 = vadd.f32 %v3353, %v3456
        %v3485 = vadd.f32 %v3354, %v3461
        %v3486 = vadd.f32 %v3355, %v3464
        %v3487 = vadd.f32 %v3356, %v3469
        %v3488 = vadd.f32 %v3357, %v3472
        %v3489 = vadd.f32 %v3358, %v3477
        %v3490 = vadd.f32 %v3359, %v3480
        %v3491 = vld [vmem:[%s3360 + $0x1] sm:$0xff]
        %v3492 = vld [vmem:[%s3360 + $0x11] sm:$0xff]
        %v3493 = vld [vmem:[%s3360 + $0x21] sm:$0xff]
        %v3494 = vld [vmem:[%s3360 + $0x31] sm:$0xff]
        %v3495 = vld [vmem:[%s3360 + $0x41] sm:$0xff]
        %v3496 = vld [vmem:[%s3360 + $0x51] sm:$0xff]
        %v3497 = vld [vmem:[%s3360 + $0x61] sm:$0xff]
        %v3498 = vld [vmem:[%s3360 + $0x71] sm:$0xff]
        %v3499 = vpack.c.bf16 %v3492, %v3491
        %v3500 = vpack.c.bf16 %v3494, %v3493
        %v3501 = vpack.c.bf16 %v3496, %v3495
        %v3502 = vpack.c.bf16 %v3498, %v3497
        %s3503 = scalar_lea.vmem [#allocation6], 224
        %v3504 = vld [vmem:[%s3503] sm:$0xf]
        %v3505 = vld [vmem:[%s3503 + $0x4] sm:$0xf]
        %v3506 = vld [vmem:[%s3503 + $0x8] sm:$0xf]
        %v3507 = vld [vmem:[%s3503 + $0xc] sm:$0xf]
        %v3508 = vld [vmem:[%s3503 + $0x10] sm:$0xf]
        %v3509 = vld [vmem:[%s3503 + $0x14] sm:$0xf]
        %v3510 = vld [vmem:[%s3503 + $0x18] sm:$0xf]
        %v3511 = vld [vmem:[%s3503 + $0x1c] sm:$0xf]
        %v3520 = vunpack.c.l.b16 %v3504
        %v3521 = vunpack.c.l.b16 %v3505
        %v3522 = vunpack.c.l.b16 %v3506
        %v3523 = vunpack.c.l.b16 %v3507
        %v3524 = vunpack.c.l.b16 %v3508
        %v3525 = vunpack.c.l.b16 %v3509
        %v3526 = vunpack.c.l.b16 %v3510
        %v3527 = vunpack.c.l.b16 %v3511
        %v3528 = vpack.c.b16 %v3521, %v3520
        %v3529 = vpack.c.b16 %v3523, %v3522
        %v3530 = vpack.c.b16 %v3525, %v3524
        %v3531 = vpack.c.b16 %v3527, %v3526
        %v3537 = vsel %vm2566, %v3499, 0
        %v3540 = vsel %vm2566, %v3500, 0
        %v3543 = vsel %vm2566, %v3501, 0
        %v3546 = vsel %vm2566, %v3502, 0
        %3548 = vmatprep.subr.bf16.mxu0 0
        %3549 = vmatpush1.bf16.msra.mxu0 %v3528
        %3550 = vmatprep.subr.bf16.mxu0 0
        %3551 = vmatpush1.bf16.msra.mxu0 %v3529
        %3552 = vmatprep.subr.bf16.mxu0 0
        %3553 = vmatpush1.bf16.msra.mxu0 %v3530
        %3554 = vmatprep.subr.bf16.mxu0 0
        %3555 = vmatpush1.bf16.msra.mxu0 %v3531
        %3556 = vmatprep.subr.bf16.mxu0 0
        %3557 = vmatpush1.bf16.msra.mxu0 0
        %3558 = vmatprep.subr.bf16.mxu0 0
        %3559 = vmatpush1.bf16.msra.mxu0 0
        %3560 = vmatprep.subr.bf16.mxu0 0
        %3561 = vmatpush1.bf16.msra.mxu0 0
        %3562 = vmatprep.subr.bf16.mxu0 0
        %3563 = vmatpush1.bf16.msra.mxu0 0
        %3564 = vmatprep.subr.bf16.mxu0 0
        %3565 = vmatpush1.bf16.msra.mxu0 0
        %3566 = vmatprep.subr.bf16.mxu0 0
        %3567 = vmatpush1.bf16.msra.mxu0 0
        %3568 = vmatprep.subr.bf16.mxu0 0
        %3569 = vmatpush1.bf16.msra.mxu0 0
        %3570 = vmatprep.subr.bf16.mxu0 0
        %3571 = vmatpush1.bf16.msra.mxu0 0
        %3572 = vmatprep.subr.bf16.mxu0 0
        %3573 = vmatpush1.bf16.msra.mxu0 0
        %3574 = vmatprep.subr.bf16.mxu0 0
        %3575 = vmatpush1.bf16.msra.mxu0 0
        %3576 = vmatprep.subr.bf16.mxu0 0
        %3577 = vmatpush1.bf16.msra.mxu0 0
        %3578 = vmatprep.subr.bf16.mxu0 0
        %3579 = vmatpush1.bf16.msra.mxu0 0
        %3580 = vmatprep.mubr.bf16.mxu0 0
        %3581 = vmatmul.mubr.bf16.gmra.mrb[0].mxu0 %v3537
        %v3582 = vpop.f32.mrb[0].mxu0
        %v3583 = vadd.f32 0.0, %v3582
        %v3584 = vpop.f32.mrb[0].mxu0
        %v3585 = vpop.f32.mrb[0].mxu0
        %v3586 = vadd.f32 0.0, %v3585
        %v3587 = vpop.f32.mrb[0].mxu0
        %3588 = vmatprep.mubr.bf16.mxu0 0
        %3589 = vmatmul.mubr.bf16.gmra.mrb[0].mxu0 %v3540
        %v3590 = vpop.f32.mrb[0].mxu0
        %v3591 = vadd.f32 0.0, %v3590
        %v3592 = vpop.f32.mrb[0].mxu0
        %v3593 = vpop.f32.mrb[0].mxu0
        %v3594 = vadd.f32 0.0, %v3593
        %v3595 = vpop.f32.mrb[0].mxu0
        %3596 = vmatprep.mubr.bf16.mxu0 0
        %3597 = vmatmul.mubr.bf16.gmra.mrb[0].mxu0 %v3543
        %v3598 = vpop.f32.mrb[0].mxu0
        %v3599 = vadd.f32 0.0, %v3598
        %v3600 = vpop.f32.mrb[0].mxu0
        %v3601 = vpop.f32.mrb[0].mxu0
        %v3602 = vadd.f32 0.0, %v3601
        %v3603 = vpop.f32.mrb[0].mxu0
        %3604 = vmatprep.mubr.bf16.mxu0 0
        %3605 = vmatmul.mubr.bf16.gmra.mrb[0].mxu0 %v3546
        %v3606 = vpop.f32.mrb[0].mxu0
        %v3607 = vadd.f32 0.0, %v3606
        %v3608 = vpop.f32.mrb[0].mxu0
        %v3609 = vpop.f32.mrb[0].mxu0
        %v3610 = vadd.f32 0.0, %v3609
        %v3611 = vpop.f32.mrb[0].mxu0
        %3612 = vdwg.mxu0
        %v3613 = vadd.f32 %v3483, %v3583
        %v3614 = vadd.f32 %v3484, %v3586
        %v3615 = vadd.f32 %v3485, %v3591
        %v3616 = vadd.f32 %v3486, %v3594
        %v3617 = vadd.f32 %v3487, %v3599
        %v3618 = vadd.f32 %v3488, %v3602
        %v3619 = vadd.f32 %v3489, %v3607
        %v3620 = vadd.f32 %v3490, %v3610
        %v3621 = vld [vmem:[%s3360 + $0x2] sm:$0xff]
        %v3622 = vld [vmem:[%s3360 + $0x12] sm:$0xff]
        %v3623 = vld [vmem:[%s3360 + $0x22] sm:$0xff]
        %v3624 = vld [vmem:[%s3360 + $0x32] sm:$0xff]
        %v3625 = vld [vmem:[%s3360 + $0x42] sm:$0xff]
        %v3626 = vld [vmem:[%s3360 + $0x52] sm:$0xff]
        %v3627 = vld [vmem:[%s3360 + $0x62] sm:$0xff]
        %v3628 = vld [vmem:[%s3360 + $0x72] sm:$0xff]
        %v3629 = vpack.c.bf16 %v3622, %v3621
        %v3630 = vpack.c.bf16 %v3624, %v3623
        %v3631 = vpack.c.bf16 %v3626, %v3625
        %v3632 = vpack.c.bf16 %v3628, %v3627
        %s3633 = scalar_lea.vmem [#allocation6], 256
        %v3634 = vld [vmem:[%s3633] sm:$0xf]
        %v3635 = vld [vmem:[%s3633 + $0x4] sm:$0xf]
        %v3636 = vld [vmem:[%s3633 + $0x8] sm:$0xf]
        %v3637 = vld [vmem:[%s3633 + $0xc] sm:$0xf]
        %v3638 = vld [vmem:[%s3633 + $0x10] sm:$0xf]
        %v3639 = vld [vmem:[%s3633 + $0x14] sm:$0xf]
        %v3640 = vld [vmem:[%s3633 + $0x18] sm:$0xf]
        %v3641 = vld [vmem:[%s3633 + $0x1c] sm:$0xf]
        %v3650 = vunpack.c.l.b16 %v3634
        %v3651 = vunpack.c.l.b16 %v3635
        %v3652 = vunpack.c.l.b16 %v3636
        %v3653 = vunpack.c.l.b16 %v3637
        %v3654 = vunpack.c.l.b16 %v3638
        %v3655 = vunpack.c.l.b16 %v3639
        %v3656 = vunpack.c.l.b16 %v3640
        %v3657 = vunpack.c.l.b16 %v3641
        %v3658 = vpack.c.b16 %v3651, %v3650
        %v3659 = vpack.c.b16 %v3653, %v3652
        %v3660 = vpack.c.b16 %v3655, %v3654
        %v3661 = vpack.c.b16 %v3657, %v3656
        %v3667 = vsel %vm2566, %v3629, 0
        %v3670 = vsel %vm2566, %v3630, 0
        %v3673 = vsel %vm2566, %v3631, 0
        %v3676 = vsel %vm2566, %v3632, 0
        %3678 = vmatprep.subr.bf16.mxu0 0
        %3679 = vmatpush1.bf16.msra.mxu0 %v3658
        %3680 = vmatprep.subr.bf16.mxu0 0
        %3681 = vmatpush1.bf16.msra.mxu0 %v3659
        %3682 = vmatprep.subr.bf16.mxu0 0
        %3683 = vmatpush1.bf16.msra.mxu0 %v3660
        %3684 = vmatprep.subr.bf16.mxu0 0
        %3685 = vmatpush1.bf16.msra.mxu0 %v3661
        %3686 = vmatprep.subr.bf16.mxu0 0
        %3687 = vmatpush1.bf16.msra.mxu0 0
        %3688 = vmatprep.subr.bf16.mxu0 0
        %3689 = vmatpush1.bf16.msra.mxu0 0
        %3690 = vmatprep.subr.bf16.mxu0 0
        %3691 = vmatpush1.bf16.msra.mxu0 0
        %3692 = vmatprep.subr.bf16.mxu0 0
        %3693 = vmatpush1.bf16.msra.mxu0 0
        %3694 = vmatprep.subr.bf16.mxu0 0
        %3695 = vmatpush1.bf16.msra.mxu0 0
        %3696 = vmatprep.subr.bf16.mxu0 0
        %3697 = vmatpush1.bf16.msra.mxu0 0
        %3698 = vmatprep.subr.bf16.mxu0 0
        %3699 = vmatpush1.bf16.msra.mxu0 0
        %3700 = vmatprep.subr.bf16.mxu0 0
        %3701 = vmatpush1.bf16.msra.mxu0 0
        %3702 = vmatprep.subr.bf16.mxu0 0
        %3703 = vmatpush1.bf16.msra.mxu0 0
        %3704 = vmatprep.subr.bf16.mxu0 0
        %3705 = vmatpush1.bf16.msra.mxu0 0
        %3706 = vmatprep.subr.bf16.mxu0 0
        %3707 = vmatpush1.bf16.msra.mxu0 0
        %3708 = vmatprep.subr.bf16.mxu0 0
        %3709 = vmatpush1.bf16.msra.mxu0 0
        %3710 = vmatprep.mubr.bf16.mxu0 0
        %3711 = vmatmul.mubr.bf16.gmra.mrb[0].mxu0 %v3667
        %v3712 = vpop.f32.mrb[0].mxu0
        %v3713 = vadd.f32 0.0, %v3712
        %v3714 = vpop.f32.mrb[0].mxu0
        %v3715 = vpop.f32.mrb[0].mxu0
        %v3716 = vadd.f32 0.0, %v3715
        %v3717 = vpop.f32.mrb[0].mxu0
        %3718 = vmatprep.mubr.bf16.mxu0 0
        %3719 = vmatmul.mubr.bf16.gmra.mrb[0].mxu0 %v3670
        %v3720 = vpop.f32.mrb[0].mxu0
        %v3721 = vadd.f32 0.0, %v3720
        %v3722 = vpop.f32.mrb[0].mxu0
        %v3723 = vpop.f32.mrb[0].mxu0
        %v3724 = vadd.f32 0.0, %v3723
        %v3725 = vpop.f32.mrb[0].mxu0
        %3726 = vmatprep.mubr.bf16.mxu0 0
        %3727 = vmatmul.mubr.bf16.gmra.mrb[0].mxu0 %v3673
        %v3728 = vpop.f32.mrb[0].mxu0
        %v3729 = vadd.f32 0.0, %v3728
        %v3730 = vpop.f32.mrb[0].mxu0
        %v3731 = vpop.f32.mrb[0].mxu0
        %v3732 = vadd.f32 0.0, %v3731
        %v3733 = vpop.f32.mrb[0].mxu0
        %3734 = vmatprep.mubr.bf16.mxu0 0
        %3735 = vmatmul.mubr.bf16.gmra.mrb[0].mxu0 %v3676
        %v3736 = vpop.f32.mrb[0].mxu0
        %v3737 = vadd.f32 0.0, %v3736
        %v3738 = vpop.f32.mrb[0].mxu0
        %v3739 = vpop.f32.mrb[0].mxu0
        %v3740 = vadd.f32 0.0, %v3739
        %v3741 = vpop.f32.mrb[0].mxu0
        %3742 = vdwg.mxu0
        %v3743 = vadd.f32 %v3613, %v3713
        %v3744 = vadd.f32 %v3614, %v3716
        %v3745 = vadd.f32 %v3615, %v3721
        %v3746 = vadd.f32 %v3616, %v3724
        %v3747 = vadd.f32 %v3617, %v3729
        %v3748 = vadd.f32 %v3618, %v3732
        %v3749 = vadd.f32 %v3619, %v3737
        %v3750 = vadd.f32 %v3620, %v3740
        %v3751 = vld [vmem:[%s7] sm:$0x1]
        %v3753 = vlaneseq
        %v3754 = vshrl.u32 %v3753, 7
        %v3755 = vsub.s32 0, %v3754
        %v3756 = vrot.slane %v3751, %v3755
        %v3758 = vadd.f32 %v3743, %v3756
        %v3759 = vadd.f32 %v3744, %v3756
        %v3760 = vadd.f32 %v3745, %v3756
        %v3761 = vadd.f32 %v3746, %v3756
        %v3762 = vadd.f32 %v3747, %v3756
        %v3763 = vadd.f32 %v3748, %v3756
        %v3764 = vadd.f32 %v3749, %v3756
        %v3765 = vadd.f32 %v3750, %v3756
        %v3766 = vmax.f32 %v3758, 0.0
        %v3767 = vmax.f32 %v3759, 0.0
        %v3768 = vmax.f32 %v3760, 0.0
        %v3769 = vmax.f32 %v3761, 0.0
        %v3770 = vmax.f32 %v3762, 0.0
        %v3771 = vmax.f32 %v3763, 0.0
        %v3772 = vmax.f32 %v3764, 0.0
        %v3773 = vmax.f32 %v3765, 0.0
        %3774 = vst.msk [vmem:[#allocation5] sm:$0xff] %vm2566, %v3766
        %3775 = vst.msk [vmem:[#allocation5 + $0x8] sm:$0xff] %vm2566, %v3767
        %3776 = vst.msk [vmem:[#allocation5 + $0x10] sm:$0xff] %vm2566, %v3768
        %3777 = vst.msk [vmem:[#allocation5 + $0x18] sm:$0xff] %vm2566, %v3769
        %3778 = vst.msk [vmem:[#allocation5 + $0x20] sm:$0xff] %vm2566, %v3770
        %3779 = vst.msk [vmem:[#allocation5 + $0x28] sm:$0xff] %vm2566, %v3771
        %3780 = vst.msk [vmem:[#allocation5 + $0x30] sm:$0xff] %vm2566, %v3772
        %3781 = vst.msk [vmem:[#allocation5 + $0x38] sm:$0xff] %vm2566, %v3773
        %v3782 = vld [vmem:[%s535] sm:$0x1]
        %v3783 = vpack.c.bf16 %v3782, %v3782
        %v3784 = vld [vmem:[%s8] sm:$0xf]
        %v3785 = vld [vmem:[%s9] sm:$0x1]
        %vm3786 = vcmask 64512
        %v3788 = vsel %vm3786, %v3783, 0
        %vm3790 = vcmask 1043456
        %v3792 = vsel %vm3790, %v3784, 0
        %3794 = vmatprep.subr.bf16.mxu0 0
        %3795 = vmatpush1.bf16.msra.mxu0 %v3792
        %3796 = vmatprep.subr.bf16.mxu0 0
        %3797 = vmatpush1.bf16.msra.mxu0 0
        %3798 = vmatprep.subr.bf16.mxu0 0
        %3799 = vmatpush1.bf16.msra.mxu0 0
        %3800 = vmatprep.subr.bf16.mxu0 0
        %3801 = vmatpush1.bf16.msra.mxu0 0
        %3802 = vmatprep.subr.bf16.mxu0 0
        %3803 = vmatpush1.bf16.msra.mxu0 0
        %3804 = vmatprep.subr.bf16.mxu0 0
        %3805 = vmatpush1.bf16.msra.mxu0 0
        %3806 = vmatprep.subr.bf16.mxu0 0
        %3807 = vmatpush1.bf16.msra.mxu0 0
        %3808 = vmatprep.subr.bf16.mxu0 0
        %3809 = vmatpush1.bf16.msra.mxu0 0
        %3810 = vmatprep.subr.bf16.mxu0 0
        %3811 = vmatpush1.bf16.msra.mxu0 0
        %3812 = vmatprep.subr.bf16.mxu0 0
        %3813 = vmatpush1.bf16.msra.mxu0 0
        %3814 = vmatprep.subr.bf16.mxu0 0
        %3815 = vmatpush1.bf16.msra.mxu0 0
        %3816 = vmatprep.subr.bf16.mxu0 0
        %3817 = vmatpush1.bf16.msra.mxu0 0
        %3818 = vmatprep.subr.bf16.mxu0 0
        %3819 = vmatpush1.bf16.msra.mxu0 0
        %3820 = vmatprep.subr.bf16.mxu0 0
        %3821 = vmatpush1.bf16.msra.mxu0 0
        %3822 = vmatprep.subr.bf16.mxu0 0
        %3823 = vmatpush1.bf16.msra.mxu0 0
        %3824 = vmatprep.subr.bf16.mxu0 0
        %3825 = vmatpush1.bf16.msra.mxu0 0
        %3826 = vmatprep.mubr.bf16.mxu0 0
        %3827 = vmatmul.mubr.bf16.gmra.mrb[0].mxu0 %v3788
        %v3828 = vpop.f32.mrb[0].mxu0
        %v3829 = vadd.f32 %v3785, %v3828
        %v3830 = vpop.f32.mrb[0].mxu0
        %v3831 = vpop.f32.mrb[0].mxu0
        %v3832 = vpop.f32.mrb[0].mxu0
        %3833 = vdwg.mxu0
        %v3834 = vmax.f32 %v3829, 0.0
        %v3835 = vpack.c.bf16 %v3834, %v3834
        %v3836 = vld [vmem:[%s11] sm:$0xf]
        %v3837 = vld [vmem:[%s11 + $0x4] sm:$0xf]
        %v3838 = vld [vmem:[%s11 + $0x8] sm:$0xf]
        %v3839 = vld [vmem:[%s11 + $0xc] sm:$0xf]
        %v3840 = vld [vmem:[%s11 + $0x10] sm:$0xf]
        %v3841 = vld [vmem:[%s11 + $0x14] sm:$0xf]
        %v3842 = vld [vmem:[%s11 + $0x18] sm:$0xf]
        %v3843 = vld [vmem:[%s11 + $0x1c] sm:$0xf]
        %v3844 = vld [vmem:[#allocation5] sm:$0x1]
        %v3845 = vpack.c.bf16 %v3844, %v3844
        %v3846 = vld [vmem:[#allocation9] sm:$0xf]
        %v3847 = vld [vmem:[#allocation9 + $0x4] sm:$0xf]
        %v3848 = vld [vmem:[#allocation9 + $0x8] sm:$0xf]
        %v3849 = vld [vmem:[#allocation9 + $0xc] sm:$0xf]
        %v3850 = vld [vmem:[#allocation9 + $0x10] sm:$0xf]
        %v3851 = vld [vmem:[#allocation9 + $0x14] sm:$0xf]
        %v3852 = vld [vmem:[#allocation9 + $0x18] sm:$0xf]
        %v3853 = vld [vmem:[#allocation9 + $0x1c] sm:$0xf]
        %v3862 = vunpack.c.l.b16 %v3846
        %v3863 = vunpack.c.l.b16 %v3847
        %v3864 = vunpack.c.l.b16 %v3848
        %v3865 = vunpack.c.l.b16 %v3849
        %v3866 = vunpack.c.l.b16 %v3850
        %v3867 = vunpack.c.l.b16 %v3851
        %v3868 = vunpack.c.l.b16 %v3852
        %v3869 = vunpack.c.l.b16 %v3853
        %v3870 = vpack.c.b16 %v3863, %v3862
        %v3871 = vpack.c.b16 %v3865, %v3864
        %v3872 = vpack.c.b16 %v3867, %v3866
        %v3873 = vpack.c.b16 %v3869, %v3868
        %v3879 = vsel %vm2566, %v3845, 0
        %3881 = vmatprep.subr.bf16.mxu0 0
        %3882 = vmatpush1.bf16.msra.mxu0 %v3870
        %3883 = vmatprep.subr.bf16.mxu0 0
        %3884 = vmatpush1.bf16.msra.mxu0 %v3871
        %3885 = vmatprep.subr.bf16.mxu0 0
        %3886 = vmatpush1.bf16.msra.mxu0 %v3872
        %3887 = vmatprep.subr.bf16.mxu0 0
        %3888 = vmatpush1.bf16.msra.mxu0 %v3873
        %3889 = vmatprep.subr.bf16.mxu0 0
        %3890 = vmatpush1.bf16.msra.mxu0 0
        %3891 = vmatprep.subr.bf16.mxu0 0
        %3892 = vmatpush1.bf16.msra.mxu0 0
        %3893 = vmatprep.subr.bf16.mxu0 0
        %3894 = vmatpush1.bf16.msra.mxu0 0
        %3895 = vmatprep.subr.bf16.mxu0 0
        %3896 = vmatpush1.bf16.msra.mxu0 0
        %3897 = vmatprep.subr.bf16.mxu0 0
        %3898 = vmatpush1.bf16.msra.mxu0 0
        %3899 = vmatprep.subr.bf16.mxu0 0
        %3900 = vmatpush1.bf16.msra.mxu0 0
        %3901 = vmatprep.subr.bf16.mxu0 0
        %3902 = vmatpush1.bf16.msra.mxu0 0
        %3903 = vmatprep.subr.bf16.mxu0 0
        %3904 = vmatpush1.bf16.msra.mxu0 0
        %3905 = vmatprep.subr.bf16.mxu0 0
        %3906 = vmatpush1.bf16.msra.mxu0 0
        %3907 = vmatprep.subr.bf16.mxu0 0
        %3908 = vmatpush1.bf16.msra.mxu0 0
        %3909 = vmatprep.subr.bf16.mxu0 0
        %3910 = vmatpush1.bf16.msra.mxu0 0
        %3911 = vmatprep.subr.bf16.mxu0 0
        %3912 = vmatpush1.bf16.msra.mxu0 0
        %3913 = vmatprep.mubr.bf16.mxu0 0
        %3914 = vmatmul.mubr.bf16.gmra.mrb[0].mxu0 %v3879
        %v3915 = vpop.f32.mrb[0].mxu0
        %v3916 = vadd.f32 0.0, %v3915
        %v3917 = vpop.f32.mrb[0].mxu0
        %v3918 = vpop.f32.mrb[0].mxu0
        %v3919 = vpop.f32.mrb[0].mxu0
        %3920 = vdwg.mxu0
        %v3929 = vunpack.c.l.b16 %v3836
        %v3930 = vunpack.c.l.b16 %v3837
        %v3931 = vunpack.c.l.b16 %v3838
        %v3932 = vunpack.c.l.b16 %v3839
        %v3933 = vunpack.c.l.b16 %v3840
        %v3934 = vunpack.c.l.b16 %v3841
        %v3935 = vunpack.c.l.b16 %v3842
        %v3936 = vunpack.c.l.b16 %v3843
        %v3937 = vpack.c.b16 %v3930, %v3929
        %v3938 = vpack.c.b16 %v3932, %v3931
        %v3939 = vpack.c.b16 %v3934, %v3933
        %v3940 = vpack.c.b16 %v3936, %v3935
        %v3946 = vsel %vm2566, %v3835, 0
        %3948 = vmatprep.subr.bf16.mxu0 0
        %3949 = vmatpush1.bf16.msra.mxu0 %v3937
        %3950 = vmatprep.subr.bf16.mxu0 0
        %3951 = vmatpush1.bf16.msra.mxu0 %v3938
        %3952 = vmatprep.subr.bf16.mxu0 0
        %3953 = vmatpush1.bf16.msra.mxu0 %v3939
        %3954 = vmatprep.subr.bf16.mxu0 0
        %3955 = vmatpush1.bf16.msra.mxu0 %v3940
        %3956 = vmatprep.subr.bf16.mxu0 0
        %3957 = vmatpush1.bf16.msra.mxu0 0
        %3958 = vmatprep.subr.bf16.mxu0 0
        %3959 = vmatpush1.bf16.msra.mxu0 0
        %3960 = vmatprep.subr.bf16.mxu0 0
        %3961 = vmatpush1.bf16.msra.mxu0 0
        %3962 = vmatprep.subr.bf16.mxu0 0
        %3963 = vmatpush1.bf16.msra.mxu0 0
        %3964 = vmatprep.subr.bf16.mxu0 0
        %3965 = vmatpush1.bf16.msra.mxu0 0
        %3966 = vmatprep.subr.bf16.mxu0 0
        %3967 = vmatpush1.bf16.msra.mxu0 0
        %3968 = vmatprep.subr.bf16.mxu0 0
        %3969 = vmatpush1.bf16.msra.mxu0 0
        %3970 = vmatprep.subr.bf16.mxu0 0
        %3971 = vmatpush1.bf16.msra.mxu0 0
        %3972 = vmatprep.subr.bf16.mxu0 0
        %3973 = vmatpush1.bf16.msra.mxu0 0
        %3974 = vmatprep.subr.bf16.mxu0 0
        %3975 = vmatpush1.bf16.msra.mxu0 0
        %3976 = vmatprep.subr.bf16.mxu0 0
        %3977 = vmatpush1.bf16.msra.mxu0 0
        %3978 = vmatprep.subr.bf16.mxu0 0
        %3979 = vmatpush1.bf16.msra.mxu0 0
        %3980 = vmatprep.mubr.bf16.mxu0 0
        %3981 = vmatmul.mubr.bf16.gmra.mrb[0].mxu0 %v3946
        %v3982 = vpop.f32.mrb[0].mxu0
        %v3983 = vadd.f32 %v3916, %v3982
        %v3984 = vpop.f32.mrb[0].mxu0
        %v3985 = vpop.f32.mrb[0].mxu0
        %v3986 = vpop.f32.mrb[0].mxu0
        %3987 = vdwg.mxu0
        %v3988 = vld [vmem:[#allocation5 + $0x1] sm:$0x1]
        %v3989 = vpack.c.bf16 %v3988, %v3988
        %v3990 = vld [vmem:[#allocation9 + $0x20] sm:$0xf]
        %v3991 = vld [vmem:[#allocation9 + $0x24] sm:$0xf]
        %v3992 = vld [vmem:[#allocation9 + $0x28] sm:$0xf]
        %v3993 = vld [vmem:[#allocation9 + $0x2c] sm:$0xf]
        %v3994 = vld [vmem:[#allocation9 + $0x30] sm:$0xf]
        %v3995 = vld [vmem:[#allocation9 + $0x34] sm:$0xf]
        %v3996 = vld [vmem:[#allocation9 + $0x38] sm:$0xf]
        %v3997 = vld [vmem:[#allocation9 + $0x3c] sm:$0xf]
        %v4006 = vunpack.c.l.b16 %v3990
        %v4007 = vunpack.c.l.b16 %v3991
        %v4008 = vunpack.c.l.b16 %v3992
        %v4009 = vunpack.c.l.b16 %v3993
        %v4010 = vunpack.c.l.b16 %v3994
        %v4011 = vunpack.c.l.b16 %v3995
        %v4012 = vunpack.c.l.b16 %v3996
        %v4013 = vunpack.c.l.b16 %v3997
        %v4014 = vpack.c.b16 %v4007, %v4006
        %v4015 = vpack.c.b16 %v4009, %v4008
        %v4016 = vpack.c.b16 %v4011, %v4010
        %v4017 = vpack.c.b16 %v4013, %v4012
        %v4023 = vsel %vm2566, %v3989, 0
        %4025 = vmatprep.subr.bf16.mxu0 0
        %4026 = vmatpush1.bf16.msra.mxu0 %v4014
        %4027 = vmatprep.subr.bf16.mxu0 0
        %4028 = vmatpush1.bf16.msra.mxu0 %v4015
        %4029 = vmatprep.subr.bf16.mxu0 0
        %4030 = vmatpush1.bf16.msra.mxu0 %v4016
        %4031 = vmatprep.subr.bf16.mxu0 0
        %4032 = vmatpush1.bf16.msra.mxu0 %v4017
        %4033 = vmatprep.subr.bf16.mxu0 0
        %4034 = vmatpush1.bf16.msra.mxu0 0
        %4035 = vmatprep.subr.bf16.mxu0 0
        %4036 = vmatpush1.bf16.msra.mxu0 0
        %4037 = vmatprep.subr.bf16.mxu0 0
        %4038 = vmatpush1.bf16.msra.mxu0 0
        %4039 = vmatprep.subr.bf16.mxu0 0
        %4040 = vmatpush1.bf16.msra.mxu0 0
        %4041 = vmatprep.subr.bf16.mxu0 0
        %4042 = vmatpush1.bf16.msra.mxu0 0
        %4043 = vmatprep.subr.bf16.mxu0 0
        %4044 = vmatpush1.bf16.msra.mxu0 0
        %4045 = vmatprep.subr.bf16.mxu0 0
        %4046 = vmatpush1.bf16.msra.mxu0 0
        %4047 = vmatprep.subr.bf16.mxu0 0
        %4048 = vmatpush1.bf16.msra.mxu0 0
        %4049 = vmatprep.subr.bf16.mxu0 0
        %4050 = vmatpush1.bf16.msra.mxu0 0
        %4051 = vmatprep.subr.bf16.mxu0 0
        %4052 = vmatpush1.bf16.msra.mxu0 0
        %4053 = vmatprep.subr.bf16.mxu0 0
        %4054 = vmatpush1.bf16.msra.mxu0 0
        %4055 = vmatprep.subr.bf16.mxu0 0
        %4056 = vmatpush1.bf16.msra.mxu0 0
        %4057 = vmatprep.mubr.bf16.mxu0 0
        %4058 = vmatmul.mubr.bf16.gmra.mrb[0].mxu0 %v4023
        %v4059 = vpop.f32.mrb[0].mxu0
        %v4060 = vadd.f32 0.0, %v4059
        %v4061 = vpop.f32.mrb[0].mxu0
        %v4062 = vpop.f32.mrb[0].mxu0
        %v4063 = vpop.f32.mrb[0].mxu0
        %4064 = vdwg.mxu0
        %v4065 = vadd.f32 %v3983, %v4060
        %v4066 = vld [vmem:[#allocation5 + $0x2] sm:$0x1]
        %v4067 = vpack.c.bf16 %v4066, %v4066
        %v4068 = vld [vmem:[#allocation9 + $0x40] sm:$0xf]
        %v4069 = vld [vmem:[#allocation9 + $0x44] sm:$0xf]
        %v4070 = vld [vmem:[#allocation9 + $0x48] sm:$0xf]
        %v4071 = vld [vmem:[#allocation9 + $0x4c] sm:$0xf]
        %v4072 = vld [vmem:[#allocation9 + $0x50] sm:$0xf]
        %v4073 = vld [vmem:[#allocation9 + $0x54] sm:$0xf]
        %v4074 = vld [vmem:[#allocation9 + $0x58] sm:$0xf]
        %v4075 = vld [vmem:[#allocation9 + $0x5c] sm:$0xf]
        %v4084 = vunpack.c.l.b16 %v4068
        %v4085 = vunpack.c.l.b16 %v4069
        %v4086 = vunpack.c.l.b16 %v4070
        %v4087 = vunpack.c.l.b16 %v4071
        %v4088 = vunpack.c.l.b16 %v4072
        %v4089 = vunpack.c.l.b16 %v4073
        %v4090 = vunpack.c.l.b16 %v4074
        %v4091 = vunpack.c.l.b16 %v4075
        %v4092 = vpack.c.b16 %v4085, %v4084
        %v4093 = vpack.c.b16 %v4087, %v4086
        %v4094 = vpack.c.b16 %v4089, %v4088
        %v4095 = vpack.c.b16 %v4091, %v4090
        %v4101 = vsel %vm2566, %v4067, 0
        %4103 = vmatprep.subr.bf16.mxu0 0
        %4104 = vmatpush1.bf16.msra.mxu0 %v4092
        %4105 = vmatprep.subr.bf16.mxu0 0
        %4106 = vmatpush1.bf16.msra.mxu0 %v4093
        %4107 = vmatprep.subr.bf16.mxu0 0
        %4108 = vmatpush1.bf16.msra.mxu0 %v4094
        %4109 = vmatprep.subr.bf16.mxu0 0
        %4110 = vmatpush1.bf16.msra.mxu0 %v4095
        %4111 = vmatprep.subr.bf16.mxu0 0
        %4112 = vmatpush1.bf16.msra.mxu0 0
        %4113 = vmatprep.subr.bf16.mxu0 0
        %4114 = vmatpush1.bf16.msra.mxu0 0
        %4115 = vmatprep.subr.bf16.mxu0 0
        %4116 = vmatpush1.bf16.msra.mxu0 0
        %4117 = vmatprep.subr.bf16.mxu0 0
        %4118 = vmatpush1.bf16.msra.mxu0 0
        %4119 = vmatprep.subr.bf16.mxu0 0
        %4120 = vmatpush1.bf16.msra.mxu0 0
        %4121 = vmatprep.subr.bf16.mxu0 0
        %4122 = vmatpush1.bf16.msra.mxu0 0
        %4123 = vmatprep.subr.bf16.mxu0 0
        %4124 = vmatpush1.bf16.msra.mxu0 0
        %4125 = vmatprep.subr.bf16.mxu0 0
        %4126 = vmatpush1.bf16.msra.mxu0 0
        %4127 = vmatprep.subr.bf16.mxu0 0
        %4128 = vmatpush1.bf16.msra.mxu0 0
        %4129 = vmatprep.subr.bf16.mxu0 0
        %4130 = vmatpush1.bf16.msra.mxu0 0
        %4131 = vmatprep.subr.bf16.mxu0 0
        %4132 = vmatpush1.bf16.msra.mxu0 0
        %4133 = vmatprep.subr.bf16.mxu0 0
        %4134 = vmatpush1.bf16.msra.mxu0 0
        %4135 = vmatprep.mubr.bf16.mxu0 0
        %4136 = vmatmul.mubr.bf16.gmra.mrb[0].mxu0 %v4101
        %v4137 = vpop.f32.mrb[0].mxu0
        %v4138 = vadd.f32 0.0, %v4137
        %v4139 = vpop.f32.mrb[0].mxu0
        %v4140 = vpop.f32.mrb[0].mxu0
        %v4141 = vpop.f32.mrb[0].mxu0
        %4142 = vdwg.mxu0
        %v4143 = vadd.f32 %v4065, %v4138
        %v4144 = vld [vmem:[#allocation5 + $0x3] sm:$0x1]
        %v4145 = vpack.c.bf16 %v4144, %v4144
        %v4146 = vld [vmem:[#allocation9 + $0x60] sm:$0xf]
        %v4147 = vld [vmem:[#allocation9 + $0x64] sm:$0xf]
        %v4148 = vld [vmem:[#allocation9 + $0x68] sm:$0xf]
        %v4149 = vld [vmem:[#allocation9 + $0x6c] sm:$0xf]
        %v4150 = vld [vmem:[#allocation9 + $0x70] sm:$0xf]
        %v4151 = vld [vmem:[#allocation9 + $0x74] sm:$0xf]
        %v4152 = vld [vmem:[#allocation9 + $0x78] sm:$0xf]
        %v4153 = vld [vmem:[#allocation9 + $0x7c] sm:$0xf]
        %v4162 = vunpack.c.l.b16 %v4146
        %v4163 = vunpack.c.l.b16 %v4147
        %v4164 = vunpack.c.l.b16 %v4148
        %v4165 = vunpack.c.l.b16 %v4149
        %v4166 = vunpack.c.l.b16 %v4150
        %v4167 = vunpack.c.l.b16 %v4151
        %v4168 = vunpack.c.l.b16 %v4152
        %v4169 = vunpack.c.l.b16 %v4153
        %v4170 = vpack.c.b16 %v4163, %v4162
        %v4171 = vpack.c.b16 %v4165, %v4164
        %v4172 = vpack.c.b16 %v4167, %v4166
        %v4173 = vpack.c.b16 %v4169, %v4168
        %v4179 = vsel %vm2566, %v4145, 0
        %4181 = vmatprep.subr.bf16.mxu0 0
        %4182 = vmatpush1.bf16.msra.mxu0 %v4170
        %4183 = vmatprep.subr.bf16.mxu0 0
        %4184 = vmatpush1.bf16.msra.mxu0 %v4171
        %4185 = vmatprep.subr.bf16.mxu0 0
        %4186 = vmatpush1.bf16.msra.mxu0 %v4172
        %4187 = vmatprep.subr.bf16.mxu0 0
        %4188 = vmatpush1.bf16.msra.mxu0 %v4173
        %4189 = vmatprep.subr.bf16.mxu0 0
        %4190 = vmatpush1.bf16.msra.mxu0 0
        %4191 = vmatprep.subr.bf16.mxu0 0
        %4192 = vmatpush1.bf16.msra.mxu0 0
        %4193 = vmatprep.subr.bf16.mxu0 0
        %4194 = vmatpush1.bf16.msra.mxu0 0
        %4195 = vmatprep.subr.bf16.mxu0 0
        %4196 = vmatpush1.bf16.msra.mxu0 0
        %4197 = vmatprep.subr.bf16.mxu0 0
        %4198 = vmatpush1.bf16.msra.mxu0 0
        %4199 = vmatprep.subr.bf16.mxu0 0
        %4200 = vmatpush1.bf16.msra.mxu0 0
        %4201 = vmatprep.subr.bf16.mxu0 0
        %4202 = vmatpush1.bf16.msra.mxu0 0
        %4203 = vmatprep.subr.bf16.mxu0 0
        %4204 = vmatpush1.bf16.msra.mxu0 0
        %4205 = vmatprep.subr.bf16.mxu0 0
        %4206 = vmatpush1.bf16.msra.mxu0 0
        %4207 = vmatprep.subr.bf16.mxu0 0
        %4208 = vmatpush1.bf16.msra.mxu0 0
        %4209 = vmatprep.subr.bf16.mxu0 0
        %4210 = vmatpush1.bf16.msra.mxu0 0
        %4211 = vmatprep.subr.bf16.mxu0 0
        %4212 = vmatpush1.bf16.msra.mxu0 0
        %4213 = vmatprep.mubr.bf16.mxu0 0
        %4214 = vmatmul.mubr.bf16.gmra.mrb[0].mxu0 %v4179
        %v4215 = vpop.f32.mrb[0].mxu0
        %v4216 = vadd.f32 0.0, %v4215
        %v4217 = vpop.f32.mrb[0].mxu0
        %v4218 = vpop.f32.mrb[0].mxu0
        %v4219 = vpop.f32.mrb[0].mxu0
        %4220 = vdwg.mxu0
        %v4221 = vadd.f32 %v4143, %v4216
        %v4222 = vld [vmem:[#allocation5 + $0x4] sm:$0x1]
        %v4223 = vpack.c.bf16 %v4222, %v4222
        %v4224 = vld [vmem:[#allocation9 + $0x80] sm:$0xf]
        %v4225 = vld [vmem:[#allocation9 + $0x84] sm:$0xf]
        %v4226 = vld [vmem:[#allocation9 + $0x88] sm:$0xf]
        %v4227 = vld [vmem:[#allocation9 + $0x8c] sm:$0xf]
        %v4228 = vld [vmem:[#allocation9 + $0x90] sm:$0xf]
        %v4229 = vld [vmem:[#allocation9 + $0x94] sm:$0xf]
        %v4230 = vld [vmem:[#allocation9 + $0x98] sm:$0xf]
        %v4231 = vld [vmem:[#allocation9 + $0x9c] sm:$0xf]
        %v4240 = vunpack.c.l.b16 %v4224
        %v4241 = vunpack.c.l.b16 %v4225
        %v4242 = vunpack.c.l.b16 %v4226
        %v4243 = vunpack.c.l.b16 %v4227
        %v4244 = vunpack.c.l.b16 %v4228
        %v4245 = vunpack.c.l.b16 %v4229
        %v4246 = vunpack.c.l.b16 %v4230
        %v4247 = vunpack.c.l.b16 %v4231
        %v4248 = vpack.c.b16 %v4241, %v4240
        %v4249 = vpack.c.b16 %v4243, %v4242
        %v4250 = vpack.c.b16 %v4245, %v4244
        %v4251 = vpack.c.b16 %v4247, %v4246
        %v4257 = vsel %vm2566, %v4223, 0
        %4259 = vmatprep.subr.bf16.mxu0 0
        %4260 = vmatpush1.bf16.msra.mxu0 %v4248
        %4261 = vmatprep.subr.bf16.mxu0 0
        %4262 = vmatpush1.bf16.msra.mxu0 %v4249
        %4263 = vmatprep.subr.bf16.mxu0 0
        %4264 = vmatpush1.bf16.msra.mxu0 %v4250
        %4265 = vmatprep.subr.bf16.mxu0 0
        %4266 = vmatpush1.bf16.msra.mxu0 %v4251
        %4267 = vmatprep.subr.bf16.mxu0 0
        %4268 = vmatpush1.bf16.msra.mxu0 0
        %4269 = vmatprep.subr.bf16.mxu0 0
        %4270 = vmatpush1.bf16.msra.mxu0 0
        %4271 = vmatprep.subr.bf16.mxu0 0
        %4272 = vmatpush1.bf16.msra.mxu0 0
        %4273 = vmatprep.subr.bf16.mxu0 0
        %4274 = vmatpush1.bf16.msra.mxu0 0
        %4275 = vmatprep.subr.bf16.mxu0 0
        %4276 = vmatpush1.bf16.msra.mxu0 0
        %4277 = vmatprep.subr.bf16.mxu0 0
        %4278 = vmatpush1.bf16.msra.mxu0 0
        %4279 = vmatprep.subr.bf16.mxu0 0
        %4280 = vmatpush1.bf16.msra.mxu0 0
        %4281 = vmatprep.subr.bf16.mxu0 0
        %4282 = vmatpush1.bf16.msra.mxu0 0
        %4283 = vmatprep.subr.bf16.mxu0 0
        %4284 = vmatpush1.bf16.msra.mxu0 0
        %4285 = vmatprep.subr.bf16.mxu0 0
        %4286 = vmatpush1.bf16.msra.mxu0 0
        %4287 = vmatprep.subr.bf16.mxu0 0
        %4288 = vmatpush1.bf16.msra.mxu0 0
        %4289 = vmatprep.subr.bf16.mxu0 0
        %4290 = vmatpush1.bf16.msra.mxu0 0
        %4291 = vmatprep.mubr.bf16.mxu0 0
        %4292 = vmatmul.mubr.bf16.gmra.mrb[0].mxu0 %v4257
        %v4293 = vpop.f32.mrb[0].mxu0
        %v4294 = vadd.f32 0.0, %v4293
        %v4295 = vpop.f32.mrb[0].mxu0
        %v4296 = vpop.f32.mrb[0].mxu0
        %v4297 = vpop.f32.mrb[0].mxu0
        %4298 = vdwg.mxu0
        %v4299 = vadd.f32 %v4221, %v4294
        %v4300 = vld [vmem:[#allocation5 + $0x5] sm:$0x1]
        %v4301 = vpack.c.bf16 %v4300, %v4300
        %v4302 = vld [vmem:[#allocation9 + $0xa0] sm:$0xf]
        %v4303 = vld [vmem:[#allocation9 + $0xa4] sm:$0xf]
        %v4304 = vld [vmem:[#allocation9 + $0xa8] sm:$0xf]
        %v4305 = vld [vmem:[#allocation9 + $0xac] sm:$0xf]
        %v4306 = vld [vmem:[#allocation9 + $0xb0] sm:$0xf]
        %v4307 = vld [vmem:[#allocation9 + $0xb4] sm:$0xf]
        %v4308 = vld [vmem:[#allocation9 + $0xb8] sm:$0xf]
        %v4309 = vld [vmem:[#allocation9 + $0xbc] sm:$0xf]
        %v4318 = vunpack.c.l.b16 %v4302
        %v4319 = vunpack.c.l.b16 %v4303
        %v4320 = vunpack.c.l.b16 %v4304
        %v4321 = vunpack.c.l.b16 %v4305
        %v4322 = vunpack.c.l.b16 %v4306
        %v4323 = vunpack.c.l.b16 %v4307
        %v4324 = vunpack.c.l.b16 %v4308
        %v4325 = vunpack.c.l.b16 %v4309
        %v4326 = vpack.c.b16 %v4319, %v4318
        %v4327 = vpack.c.b16 %v4321, %v4320
        %v4328 = vpack.c.b16 %v4323, %v4322
        %v4329 = vpack.c.b16 %v4325, %v4324
        %v4335 = vsel %vm2566, %v4301, 0
        %4337 = vmatprep.subr.bf16.mxu0 0
        %4338 = vmatpush1.bf16.msra.mxu0 %v4326
        %4339 = vmatprep.subr.bf16.mxu0 0
        %4340 = vmatpush1.bf16.msra.mxu0 %v4327
        %4341 = vmatprep.subr.bf16.mxu0 0
        %4342 = vmatpush1.bf16.msra.mxu0 %v4328
        %4343 = vmatprep.subr.bf16.mxu0 0
        %4344 = vmatpush1.bf16.msra.mxu0 %v4329
        %4345 = vmatprep.subr.bf16.mxu0 0
        %4346 = vmatpush1.bf16.msra.mxu0 0
        %4347 = vmatprep.subr.bf16.mxu0 0
        %4348 = vmatpush1.bf16.msra.mxu0 0
        %4349 = vmatprep.subr.bf16.mxu0 0
        %4350 = vmatpush1.bf16.msra.mxu0 0
        %4351 = vmatprep.subr.bf16.mxu0 0
        %4352 = vmatpush1.bf16.msra.mxu0 0
        %4353 = vmatprep.subr.bf16.mxu0 0
        %4354 = vmatpush1.bf16.msra.mxu0 0
        %4355 = vmatprep.subr.bf16.mxu0 0
        %4356 = vmatpush1.bf16.msra.mxu0 0
        %4357 = vmatprep.subr.bf16.mxu0 0
        %4358 = vmatpush1.bf16.msra.mxu0 0
        %4359 = vmatprep.subr.bf16.mxu0 0
        %4360 = vmatpush1.bf16.msra.mxu0 0
        %4361 = vmatprep.subr.bf16.mxu0 0
        %4362 = vmatpush1.bf16.msra.mxu0 0
        %4363 = vmatprep.subr.bf16.mxu0 0
        %4364 = vmatpush1.bf16.msra.mxu0 0
        %4365 = vmatprep.subr.bf16.mxu0 0
        %4366 = vmatpush1.bf16.msra.mxu0 0
        %4367 = vmatprep.subr.bf16.mxu0 0
        %4368 = vmatpush1.bf16.msra.mxu0 0
        %4369 = vmatprep.mubr.bf16.mxu0 0
        %4370 = vmatmul.mubr.bf16.gmra.mrb[0].mxu0 %v4335
        %v4371 = vpop.f32.mrb[0].mxu0
        %v4372 = vadd.f32 0.0, %v4371
        %v4373 = vpop.f32.mrb[0].mxu0
        %v4374 = vpop.f32.mrb[0].mxu0
        %v4375 = vpop.f32.mrb[0].mxu0
        %4376 = vdwg.mxu0
        %v4377 = vadd.f32 %v4299, %v4372
        %v4378 = vld [vmem:[#allocation5 + $0x6] sm:$0x1]
        %v4379 = vpack.c.bf16 %v4378, %v4378
        %v4380 = vld [vmem:[#allocation9 + $0xc0] sm:$0xf]
        %v4381 = vld [vmem:[#allocation9 + $0xc4] sm:$0xf]
        %v4382 = vld [vmem:[#allocation9 + $0xc8] sm:$0xf]
        %v4383 = vld [vmem:[#allocation9 + $0xcc] sm:$0xf]
        %v4384 = vld [vmem:[#allocation9 + $0xd0] sm:$0xf]
        %v4385 = vld [vmem:[#allocation9 + $0xd4] sm:$0xf]
        %v4386 = vld [vmem:[#allocation9 + $0xd8] sm:$0xf]
        %v4387 = vld [vmem:[#allocation9 + $0xdc] sm:$0xf]
        %v4396 = vunpack.c.l.b16 %v4380
        %v4397 = vunpack.c.l.b16 %v4381
        %v4398 = vunpack.c.l.b16 %v4382
        %v4399 = vunpack.c.l.b16 %v4383
        %v4400 = vunpack.c.l.b16 %v4384
        %v4401 = vunpack.c.l.b16 %v4385
        %v4402 = vunpack.c.l.b16 %v4386
        %v4403 = vunpack.c.l.b16 %v4387
        %v4404 = vpack.c.b16 %v4397, %v4396
        %v4405 = vpack.c.b16 %v4399, %v4398
        %v4406 = vpack.c.b16 %v4401, %v4400
        %v4407 = vpack.c.b16 %v4403, %v4402
        %v4413 = vsel %vm2566, %v4379, 0
        %4415 = vmatprep.subr.bf16.mxu0 0
        %4416 = vmatpush1.bf16.msra.mxu0 %v4404
        %4417 = vmatprep.subr.bf16.mxu0 0
        %4418 = vmatpush1.bf16.msra.mxu0 %v4405
        %4419 = vmatprep.subr.bf16.mxu0 0
        %4420 = vmatpush1.bf16.msra.mxu0 %v4406
        %4421 = vmatprep.subr.bf16.mxu0 0
        %4422 = vmatpush1.bf16.msra.mxu0 %v4407
        %4423 = vmatprep.subr.bf16.mxu0 0
        %4424 = vmatpush1.bf16.msra.mxu0 0
        %4425 = vmatprep.subr.bf16.mxu0 0
        %4426 = vmatpush1.bf16.msra.mxu0 0
        %4427 = vmatprep.subr.bf16.mxu0 0
        %4428 = vmatpush1.bf16.msra.mxu0 0
        %4429 = vmatprep.subr.bf16.mxu0 0
        %4430 = vmatpush1.bf16.msra.mxu0 0
        %4431 = vmatprep.subr.bf16.mxu0 0
        %4432 = vmatpush1.bf16.msra.mxu0 0
        %4433 = vmatprep.subr.bf16.mxu0 0
        %4434 = vmatpush1.bf16.msra.mxu0 0
        %4435 = vmatprep.subr.bf16.mxu0 0
        %4436 = vmatpush1.bf16.msra.mxu0 0
        %4437 = vmatprep.subr.bf16.mxu0 0
        %4438 = vmatpush1.bf16.msra.mxu0 0
        %4439 = vmatprep.subr.bf16.mxu0 0
        %4440 = vmatpush1.bf16.msra.mxu0 0
        %4441 = vmatprep.subr.bf16.mxu0 0
        %4442 = vmatpush1.bf16.msra.mxu0 0
        %4443 = vmatprep.subr.bf16.mxu0 0
        %4444 = vmatpush1.bf16.msra.mxu0 0
        %4445 = vmatprep.subr.bf16.mxu0 0
        %4446 = vmatpush1.bf16.msra.mxu0 0
        %4447 = vmatprep.mubr.bf16.mxu0 0
        %4448 = vmatmul.mubr.bf16.gmra.mrb[0].mxu0 %v4413
        %v4449 = vpop.f32.mrb[0].mxu0
        %v4450 = vadd.f32 0.0, %v4449
        %v4451 = vpop.f32.mrb[0].mxu0
        %v4452 = vpop.f32.mrb[0].mxu0
        %v4453 = vpop.f32.mrb[0].mxu0
        %4454 = vdwg.mxu0
        %v4455 = vadd.f32 %v4377, %v4450
        %v4456 = vld [vmem:[#allocation5 + $0x7] sm:$0x1]
        %v4457 = vpack.c.bf16 %v4456, %v4456
        %v4458 = vld [vmem:[#allocation9 + $0xe0] sm:$0xf]
        %v4459 = vld [vmem:[#allocation9 + $0xe4] sm:$0xf]
        %v4460 = vld [vmem:[#allocation9 + $0xe8] sm:$0xf]
        %v4461 = vld [vmem:[#allocation9 + $0xec] sm:$0xf]
        %v4462 = vld [vmem:[#allocation9 + $0xf0] sm:$0xf]
        %v4463 = vld [vmem:[#allocation9 + $0xf4] sm:$0xf]
        %v4464 = vld [vmem:[#allocation9 + $0xf8] sm:$0xf]
        %v4465 = vld [vmem:[#allocation9 + $0xfc] sm:$0xf]
        %v4474 = vunpack.c.l.b16 %v4458
        %v4475 = vunpack.c.l.b16 %v4459
        %v4476 = vunpack.c.l.b16 %v4460
        %v4477 = vunpack.c.l.b16 %v4461
        %v4478 = vunpack.c.l.b16 %v4462
        %v4479 = vunpack.c.l.b16 %v4463
        %v4480 = vunpack.c.l.b16 %v4464
        %v4481 = vunpack.c.l.b16 %v4465
        %v4482 = vpack.c.b16 %v4475, %v4474
        %v4483 = vpack.c.b16 %v4477, %v4476
        %v4484 = vpack.c.b16 %v4479, %v4478
        %v4485 = vpack.c.b16 %v4481, %v4480
        %v4491 = vsel %vm2566, %v4457, 0
        %4493 = vmatprep.subr.bf16.mxu0 0
        %4494 = vmatpush1.bf16.msra.mxu0 %v4482
        %4495 = vmatprep.subr.bf16.mxu0 0
        %4496 = vmatpush1.bf16.msra.mxu0 %v4483
        %4497 = vmatprep.subr.bf16.mxu0 0
        %4498 = vmatpush1.bf16.msra.mxu0 %v4484
        %4499 = vmatprep.subr.bf16.mxu0 0
        %4500 = vmatpush1.bf16.msra.mxu0 %v4485
        %4501 = vmatprep.subr.bf16.mxu0 0
        %4502 = vmatpush1.bf16.msra.mxu0 0
        %4503 = vmatprep.subr.bf16.mxu0 0
        %4504 = vmatpush1.bf16.msra.mxu0 0
        %4505 = vmatprep.subr.bf16.mxu0 0
        %4506 = vmatpush1.bf16.msra.mxu0 0
        %4507 = vmatprep.subr.bf16.mxu0 0
        %4508 = vmatpush1.bf16.msra.mxu0 0
        %4509 = vmatprep.subr.bf16.mxu0 0
        %4510 = vmatpush1.bf16.msra.mxu0 0
        %4511 = vmatprep.subr.bf16.mxu0 0
        %4512 = vmatpush1.bf16.msra.mxu0 0
        %4513 = vmatprep.subr.bf16.mxu0 0
        %4514 = vmatpush1.bf16.msra.mxu0 0
        %4515 = vmatprep.subr.bf16.mxu0 0
        %4516 = vmatpush1.bf16.msra.mxu0 0
        %4517 = vmatprep.subr.bf16.mxu0 0
        %4518 = vmatpush1.bf16.msra.mxu0 0
        %4519 = vmatprep.subr.bf16.mxu0 0
        %4520 = vmatpush1.bf16.msra.mxu0 0
        %4521 = vmatprep.subr.bf16.mxu0 0
        %4522 = vmatpush1.bf16.msra.mxu0 0
        %4523 = vmatprep.subr.bf16.mxu0 0
        %4524 = vmatpush1.bf16.msra.mxu0 0
        %4525 = vmatprep.mubr.bf16.mxu0 0
        %4526 = vmatmul.mubr.bf16.gmra.mrb[0].mxu0 %v4491
        %v4527 = vpop.f32.mrb[0].mxu0
        %v4528 = vadd.f32 0.0, %v4527
        %v4529 = vpop.f32.mrb[0].mxu0
        %v4530 = vpop.f32.mrb[0].mxu0
        %v4531 = vpop.f32.mrb[0].mxu0
        %4532 = vdwg.mxu0
        %v4533 = vadd.f32 %v4455, %v4528
        %v4534 = vld [vmem:[#allocation5 + $0x8] sm:$0x1]
        %v4535 = vpack.c.bf16 %v4534, %v4534
        %v4536 = vld [vmem:[#allocation9 + $0x100] sm:$0xf]
        %v4537 = vld [vmem:[#allocation9 + $0x104] sm:$0xf]
        %v4538 = vld [vmem:[#allocation9 + $0x108] sm:$0xf]
        %v4539 = vld [vmem:[#allocation9 + $0x10c] sm:$0xf]
        %v4540 = vld [vmem:[#allocation9 + $0x110] sm:$0xf]
        %v4541 = vld [vmem:[#allocation9 + $0x114] sm:$0xf]
        %v4542 = vld [vmem:[#allocation9 + $0x118] sm:$0xf]
        %v4543 = vld [vmem:[#allocation9 + $0x11c] sm:$0xf]
        %v4552 = vunpack.c.l.b16 %v4536
        %v4553 = vunpack.c.l.b16 %v4537
        %v4554 = vunpack.c.l.b16 %v4538
        %v4555 = vunpack.c.l.b16 %v4539
        %v4556 = vunpack.c.l.b16 %v4540
        %v4557 = vunpack.c.l.b16 %v4541
        %v4558 = vunpack.c.l.b16 %v4542
        %v4559 = vunpack.c.l.b16 %v4543
        %v4560 = vpack.c.b16 %v4553, %v4552
        %v4561 = vpack.c.b16 %v4555, %v4554
        %v4562 = vpack.c.b16 %v4557, %v4556
        %v4563 = vpack.c.b16 %v4559, %v4558
        %v4569 = vsel %vm2566, %v4535, 0
        %4571 = vmatprep.subr.bf16.mxu0 0
        %4572 = vmatpush1.bf16.msra.mxu0 %v4560
        %4573 = vmatprep.subr.bf16.mxu0 0
        %4574 = vmatpush1.bf16.msra.mxu0 %v4561
        %4575 = vmatprep.subr.bf16.mxu0 0
        %4576 = vmatpush1.bf16.msra.mxu0 %v4562
        %4577 = vmatprep.subr.bf16.mxu0 0
        %4578 = vmatpush1.bf16.msra.mxu0 %v4563
        %4579 = vmatprep.subr.bf16.mxu0 0
        %4580 = vmatpush1.bf16.msra.mxu0 0
        %4581 = vmatprep.subr.bf16.mxu0 0
        %4582 = vmatpush1.bf16.msra.mxu0 0
        %4583 = vmatprep.subr.bf16.mxu0 0
        %4584 = vmatpush1.bf16.msra.mxu0 0
        %4585 = vmatprep.subr.bf16.mxu0 0
        %4586 = vmatpush1.bf16.msra.mxu0 0
        %4587 = vmatprep.subr.bf16.mxu0 0
        %4588 = vmatpush1.bf16.msra.mxu0 0
        %4589 = vmatprep.subr.bf16.mxu0 0
        %4590 = vmatpush1.bf16.msra.mxu0 0
        %4591 = vmatprep.subr.bf16.mxu0 0
        %4592 = vmatpush1.bf16.msra.mxu0 0
        %4593 = vmatprep.subr.bf16.mxu0 0
        %4594 = vmatpush1.bf16.msra.mxu0 0
        %4595 = vmatprep.subr.bf16.mxu0 0
        %4596 = vmatpush1.bf16.msra.mxu0 0
        %4597 = vmatprep.subr.bf16.mxu0 0
        %4598 = vmatpush1.bf16.msra.mxu0 0
        %4599 = vmatprep.subr.bf16.mxu0 0
        %4600 = vmatpush1.bf16.msra.mxu0 0
        %4601 = vmatprep.subr.bf16.mxu0 0
        %4602 = vmatpush1.bf16.msra.mxu0 0
        %4603 = vmatprep.mubr.bf16.mxu0 0
        %4604 = vmatmul.mubr.bf16.gmra.mrb[0].mxu0 %v4569
        %v4605 = vpop.f32.mrb[0].mxu0
        %v4606 = vadd.f32 0.0, %v4605
        %v4607 = vpop.f32.mrb[0].mxu0
        %v4608 = vpop.f32.mrb[0].mxu0
        %v4609 = vpop.f32.mrb[0].mxu0
        %4610 = vdwg.mxu0
        %v4611 = vadd.f32 %v4533, %v4606
        %v4612 = vld [vmem:[#allocation5 + $0x9] sm:$0x1]
        %v4613 = vpack.c.bf16 %v4612, %v4612
        %v4614 = vld [vmem:[#allocation9 + $0x120] sm:$0xf]
        %v4615 = vld [vmem:[#allocation9 + $0x124] sm:$0xf]
        %v4616 = vld [vmem:[#allocation9 + $0x128] sm:$0xf]
        %v4617 = vld [vmem:[#allocation9 + $0x12c] sm:$0xf]
        %v4618 = vld [vmem:[#allocation9 + $0x130] sm:$0xf]
        %v4619 = vld [vmem:[#allocation9 + $0x134] sm:$0xf]
        %v4620 = vld [vmem:[#allocation9 + $0x138] sm:$0xf]
        %v4621 = vld [vmem:[#allocation9 + $0x13c] sm:$0xf]
        %v4630 = vunpack.c.l.b16 %v4614
        %v4631 = vunpack.c.l.b16 %v4615
        %v4632 = vunpack.c.l.b16 %v4616
        %v4633 = vunpack.c.l.b16 %v4617
        %v4634 = vunpack.c.l.b16 %v4618
        %v4635 = vunpack.c.l.b16 %v4619
        %v4636 = vunpack.c.l.b16 %v4620
        %v4637 = vunpack.c.l.b16 %v4621
        %v4638 = vpack.c.b16 %v4631, %v4630
        %v4639 = vpack.c.b16 %v4633, %v4632
        %v4640 = vpack.c.b16 %v4635, %v4634
        %v4641 = vpack.c.b16 %v4637, %v4636
        %v4647 = vsel %vm2566, %v4613, 0
        %4649 = vmatprep.subr.bf16.mxu0 0
        %4650 = vmatpush1.bf16.msra.mxu0 %v4638
        %4651 = vmatprep.subr.bf16.mxu0 0
        %4652 = vmatpush1.bf16.msra.mxu0 %v4639
        %4653 = vmatprep.subr.bf16.mxu0 0
        %4654 = vmatpush1.bf16.msra.mxu0 %v4640
        %4655 = vmatprep.subr.bf16.mxu0 0
        %4656 = vmatpush1.bf16.msra.mxu0 %v4641
        %4657 = vmatprep.subr.bf16.mxu0 0
        %4658 = vmatpush1.bf16.msra.mxu0 0
        %4659 = vmatprep.subr.bf16.mxu0 0
        %4660 = vmatpush1.bf16.msra.mxu0 0
        %4661 = vmatprep.subr.bf16.mxu0 0
        %4662 = vmatpush1.bf16.msra.mxu0 0
        %4663 = vmatprep.subr.bf16.mxu0 0
        %4664 = vmatpush1.bf16.msra.mxu0 0
        %4665 = vmatprep.subr.bf16.mxu0 0
        %4666 = vmatpush1.bf16.msra.mxu0 0
        %4667 = vmatprep.subr.bf16.mxu0 0
        %4668 = vmatpush1.bf16.msra.mxu0 0
        %4669 = vmatprep.subr.bf16.mxu0 0
        %4670 = vmatpush1.bf16.msra.mxu0 0
        %4671 = vmatprep.subr.bf16.mxu0 0
        %4672 = vmatpush1.bf16.msra.mxu0 0
        %4673 = vmatprep.subr.bf16.mxu0 0
        %4674 = vmatpush1.bf16.msra.mxu0 0
        %4675 = vmatprep.subr.bf16.mxu0 0
        %4676 = vmatpush1.bf16.msra.mxu0 0
        %4677 = vmatprep.subr.bf16.mxu0 0
        %4678 = vmatpush1.bf16.msra.mxu0 0
        %4679 = vmatprep.subr.bf16.mxu0 0
        %4680 = vmatpush1.bf16.msra.mxu0 0
        %4681 = vmatprep.mubr.bf16.mxu0 0
        %4682 = vmatmul.mubr.bf16.gmra.mrb[0].mxu0 %v4647
        %v4683 = vpop.f32.mrb[0].mxu0
        %v4684 = vadd.f32 0.0, %v4683
        %v4685 = vpop.f32.mrb[0].mxu0
        %v4686 = vpop.f32.mrb[0].mxu0
        %v4687 = vpop.f32.mrb[0].mxu0
        %4688 = vdwg.mxu0
        %v4689 = vadd.f32 %v4611, %v4684
        %v4690 = vld [vmem:[#allocation5 + $0xa] sm:$0x1]
        %v4691 = vpack.c.bf16 %v4690, %v4690
        %v4692 = vld [vmem:[#allocation9 + $0x140] sm:$0xf]
        %v4693 = vld [vmem:[#allocation9 + $0x144] sm:$0xf]
        %v4694 = vld [vmem:[#allocation9 + $0x148] sm:$0xf]
        %v4695 = vld [vmem:[#allocation9 + $0x14c] sm:$0xf]
        %v4696 = vld [vmem:[#allocation9 + $0x150] sm:$0xf]
        %v4697 = vld [vmem:[#allocation9 + $0x154] sm:$0xf]
        %v4698 = vld [vmem:[#allocation9 + $0x158] sm:$0xf]
        %v4699 = vld [vmem:[#allocation9 + $0x15c] sm:$0xf]
        %v4708 = vunpack.c.l.b16 %v4692
        %v4709 = vunpack.c.l.b16 %v4693
        %v4710 = vunpack.c.l.b16 %v4694
        %v4711 = vunpack.c.l.b16 %v4695
        %v4712 = vunpack.c.l.b16 %v4696
        %v4713 = vunpack.c.l.b16 %v4697
        %v4714 = vunpack.c.l.b16 %v4698
        %v4715 = vunpack.c.l.b16 %v4699
        %v4716 = vpack.c.b16 %v4709, %v4708
        %v4717 = vpack.c.b16 %v4711, %v4710
        %v4718 = vpack.c.b16 %v4713, %v4712
        %v4719 = vpack.c.b16 %v4715, %v4714
        %v4725 = vsel %vm2566, %v4691, 0
        %4727 = vmatprep.subr.bf16.mxu0 0
        %4728 = vmatpush1.bf16.msra.mxu0 %v4716
        %4729 = vmatprep.subr.bf16.mxu0 0
        %4730 = vmatpush1.bf16.msra.mxu0 %v4717
        %4731 = vmatprep.subr.bf16.mxu0 0
        %4732 = vmatpush1.bf16.msra.mxu0 %v4718
        %4733 = vmatprep.subr.bf16.mxu0 0
        %4734 = vmatpush1.bf16.msra.mxu0 %v4719
        %4735 = vmatprep.subr.bf16.mxu0 0
        %4736 = vmatpush1.bf16.msra.mxu0 0
        %4737 = vmatprep.subr.bf16.mxu0 0
        %4738 = vmatpush1.bf16.msra.mxu0 0
        %4739 = vmatprep.subr.bf16.mxu0 0
        %4740 = vmatpush1.bf16.msra.mxu0 0
        %4741 = vmatprep.subr.bf16.mxu0 0
        %4742 = vmatpush1.bf16.msra.mxu0 0
        %4743 = vmatprep.subr.bf16.mxu0 0
        %4744 = vmatpush1.bf16.msra.mxu0 0
        %4745 = vmatprep.subr.bf16.mxu0 0
        %4746 = vmatpush1.bf16.msra.mxu0 0
        %4747 = vmatprep.subr.bf16.mxu0 0
        %4748 = vmatpush1.bf16.msra.mxu0 0
        %4749 = vmatprep.subr.bf16.mxu0 0
        %4750 = vmatpush1.bf16.msra.mxu0 0
        %4751 = vmatprep.subr.bf16.mxu0 0
        %4752 = vmatpush1.bf16.msra.mxu0 0
        %4753 = vmatprep.subr.bf16.mxu0 0
        %4754 = vmatpush1.bf16.msra.mxu0 0
        %4755 = vmatprep.subr.bf16.mxu0 0
        %4756 = vmatpush1.bf16.msra.mxu0 0
        %4757 = vmatprep.subr.bf16.mxu0 0
        %4758 = vmatpush1.bf16.msra.mxu0 0
        %4759 = vmatprep.mubr.bf16.mxu0 0
        %4760 = vmatmul.mubr.bf16.gmra.mrb[0].mxu0 %v4725
        %v4761 = vpop.f32.mrb[0].mxu0
        %v4762 = vadd.f32 0.0, %v4761
        %v4763 = vpop.f32.mrb[0].mxu0
        %v4764 = vpop.f32.mrb[0].mxu0
        %v4765 = vpop.f32.mrb[0].mxu0
        %4766 = vdwg.mxu0
        %v4767 = vadd.f32 %v4689, %v4762
        %v4768 = vld [vmem:[#allocation5 + $0xb] sm:$0x1]
        %v4769 = vpack.c.bf16 %v4768, %v4768
        %v4770 = vld [vmem:[#allocation9 + $0x160] sm:$0xf]
        %v4771 = vld [vmem:[#allocation9 + $0x164] sm:$0xf]
        %v4772 = vld [vmem:[#allocation9 + $0x168] sm:$0xf]
        %v4773 = vld [vmem:[#allocation9 + $0x16c] sm:$0xf]
        %v4774 = vld [vmem:[#allocation9 + $0x170] sm:$0xf]
        %v4775 = vld [vmem:[#allocation9 + $0x174] sm:$0xf]
        %v4776 = vld [vmem:[#allocation9 + $0x178] sm:$0xf]
        %v4777 = vld [vmem:[#allocation9 + $0x17c] sm:$0xf]
        %v4786 = vunpack.c.l.b16 %v4770
        %v4787 = vunpack.c.l.b16 %v4771
        %v4788 = vunpack.c.l.b16 %v4772
        %v4789 = vunpack.c.l.b16 %v4773
        %v4790 = vunpack.c.l.b16 %v4774
        %v4791 = vunpack.c.l.b16 %v4775
        %v4792 = vunpack.c.l.b16 %v4776
        %v4793 = vunpack.c.l.b16 %v4777
        %v4794 = vpack.c.b16 %v4787, %v4786
        %v4795 = vpack.c.b16 %v4789, %v4788
        %v4796 = vpack.c.b16 %v4791, %v4790
        %v4797 = vpack.c.b16 %v4793, %v4792
        %v4803 = vsel %vm2566, %v4769, 0
        %4805 = vmatprep.subr.bf16.mxu0 0
        %4806 = vmatpush1.bf16.msra.mxu0 %v4794
        %4807 = vmatprep.subr.bf16.mxu0 0
        %4808 = vmatpush1.bf16.msra.mxu0 %v4795
        %4809 = vmatprep.subr.bf16.mxu0 0
        %4810 = vmatpush1.bf16.msra.mxu0 %v4796
        %4811 = vmatprep.subr.bf16.mxu0 0
        %4812 = vmatpush1.bf16.msra.mxu0 %v4797
        %4813 = vmatprep.subr.bf16.mxu0 0
        %4814 = vmatpush1.bf16.msra.mxu0 0
        %4815 = vmatprep.subr.bf16.mxu0 0
        %4816 = vmatpush1.bf16.msra.mxu0 0
        %4817 = vmatprep.subr.bf16.mxu0 0
        %4818 = vmatpush1.bf16.msra.mxu0 0
        %4819 = vmatprep.subr.bf16.mxu0 0
        %4820 = vmatpush1.bf16.msra.mxu0 0
        %4821 = vmatprep.subr.bf16.mxu0 0
        %4822 = vmatpush1.bf16.msra.mxu0 0
        %4823 = vmatprep.subr.bf16.mxu0 0
        %4824 = vmatpush1.bf16.msra.mxu0 0
        %4825 = vmatprep.subr.bf16.mxu0 0
        %4826 = vmatpush1.bf16.msra.mxu0 0
        %4827 = vmatprep.subr.bf16.mxu0 0
        %4828 = vmatpush1.bf16.msra.mxu0 0
        %4829 = vmatprep.subr.bf16.mxu0 0
        %4830 = vmatpush1.bf16.msra.mxu0 0
        %4831 = vmatprep.subr.bf16.mxu0 0
        %4832 = vmatpush1.bf16.msra.mxu0 0
        %4833 = vmatprep.subr.bf16.mxu0 0
        %4834 = vmatpush1.bf16.msra.mxu0 0
        %4835 = vmatprep.subr.bf16.mxu0 0
        %4836 = vmatpush1.bf16.msra.mxu0 0
        %4837 = vmatprep.mubr.bf16.mxu0 0
        %4838 = vmatmul.mubr.bf16.gmra.mrb[0].mxu0 %v4803
        %v4839 = vpop.f32.mrb[0].mxu0
        %v4840 = vadd.f32 0.0, %v4839
        %v4841 = vpop.f32.mrb[0].mxu0
        %v4842 = vpop.f32.mrb[0].mxu0
        %v4843 = vpop.f32.mrb[0].mxu0
        %4844 = vdwg.mxu0
        %v4845 = vadd.f32 %v4767, %v4840
        %v4846 = vld [vmem:[#allocation5 + $0xc] sm:$0x1]
        %v4847 = vpack.c.bf16 %v4846, %v4846
        %v4848 = vld [vmem:[#allocation9 + $0x180] sm:$0xf]
        %v4849 = vld [vmem:[#allocation9 + $0x184] sm:$0xf]
        %v4850 = vld [vmem:[#allocation9 + $0x188] sm:$0xf]
        %v4851 = vld [vmem:[#allocation9 + $0x18c] sm:$0xf]
        %v4852 = vld [vmem:[#allocation9 + $0x190] sm:$0xf]
        %v4853 = vld [vmem:[#allocation9 + $0x194] sm:$0xf]
        %v4854 = vld [vmem:[#allocation9 + $0x198] sm:$0xf]
        %v4855 = vld [vmem:[#allocation9 + $0x19c] sm:$0xf]
        %v4864 = vunpack.c.l.b16 %v4848
        %v4865 = vunpack.c.l.b16 %v4849
        %v4866 = vunpack.c.l.b16 %v4850
        %v4867 = vunpack.c.l.b16 %v4851
        %v4868 = vunpack.c.l.b16 %v4852
        %v4869 = vunpack.c.l.b16 %v4853
        %v4870 = vunpack.c.l.b16 %v4854
        %v4871 = vunpack.c.l.b16 %v4855
        %v4872 = vpack.c.b16 %v4865, %v4864
        %v4873 = vpack.c.b16 %v4867, %v4866
        %v4874 = vpack.c.b16 %v4869, %v4868
        %v4875 = vpack.c.b16 %v4871, %v4870
        %v4881 = vsel %vm2566, %v4847, 0
        %4883 = vmatprep.subr.bf16.mxu0 0
        %4884 = vmatpush1.bf16.msra.mxu0 %v4872
        %4885 = vmatprep.subr.bf16.mxu0 0
        %4886 = vmatpush1.bf16.msra.mxu0 %v4873
        %4887 = vmatprep.subr.bf16.mxu0 0
        %4888 = vmatpush1.bf16.msra.mxu0 %v4874
        %4889 = vmatprep.subr.bf16.mxu0 0
        %4890 = vmatpush1.bf16.msra.mxu0 %v4875
        %4891 = vmatprep.subr.bf16.mxu0 0
        %4892 = vmatpush1.bf16.msra.mxu0 0
        %4893 = vmatprep.subr.bf16.mxu0 0
        %4894 = vmatpush1.bf16.msra.mxu0 0
        %4895 = vmatprep.subr.bf16.mxu0 0
        %4896 = vmatpush1.bf16.msra.mxu0 0
        %4897 = vmatprep.subr.bf16.mxu0 0
        %4898 = vmatpush1.bf16.msra.mxu0 0
        %4899 = vmatprep.subr.bf16.mxu0 0
        %4900 = vmatpush1.bf16.msra.mxu0 0
        %4901 = vmatprep.subr.bf16.mxu0 0
        %4902 = vmatpush1.bf16.msra.mxu0 0
        %4903 = vmatprep.subr.bf16.mxu0 0
        %4904 = vmatpush1.bf16.msra.mxu0 0
        %4905 = vmatprep.subr.bf16.mxu0 0
        %4906 = vmatpush1.bf16.msra.mxu0 0
        %4907 = vmatprep.subr.bf16.mxu0 0
        %4908 = vmatpush1.bf16.msra.mxu0 0
        %4909 = vmatprep.subr.bf16.mxu0 0
        %4910 = vmatpush1.bf16.msra.mxu0 0
        %4911 = vmatprep.subr.bf16.mxu0 0
        %4912 = vmatpush1.bf16.msra.mxu0 0
        %4913 = vmatprep.subr.bf16.mxu0 0
        %4914 = vmatpush1.bf16.msra.mxu0 0
        %4915 = vmatprep.mubr.bf16.mxu0 0
        %4916 = vmatmul.mubr.bf16.gmra.mrb[0].mxu0 %v4881
        %v4917 = vpop.f32.mrb[0].mxu0
        %v4918 = vadd.f32 0.0, %v4917
        %v4919 = vpop.f32.mrb[0].mxu0
        %v4920 = vpop.f32.mrb[0].mxu0
        %v4921 = vpop.f32.mrb[0].mxu0
        %4922 = vdwg.mxu0
        %v4923 = vadd.f32 %v4845, %v4918
        %v4924 = vld [vmem:[#allocation5 + $0xd] sm:$0x1]
        %v4925 = vpack.c.bf16 %v4924, %v4924
        %v4926 = vld [vmem:[#allocation9 + $0x1a0] sm:$0xf]
        %v4927 = vld [vmem:[#allocation9 + $0x1a4] sm:$0xf]
        %v4928 = vld [vmem:[#allocation9 + $0x1a8] sm:$0xf]
        %v4929 = vld [vmem:[#allocation9 + $0x1ac] sm:$0xf]
        %v4930 = vld [vmem:[#allocation9 + $0x1b0] sm:$0xf]
        %v4931 = vld [vmem:[#allocation9 + $0x1b4] sm:$0xf]
        %v4932 = vld [vmem:[#allocation9 + $0x1b8] sm:$0xf]
        %v4933 = vld [vmem:[#allocation9 + $0x1bc] sm:$0xf]
        %v4942 = vunpack.c.l.b16 %v4926
        %v4943 = vunpack.c.l.b16 %v4927
        %v4944 = vunpack.c.l.b16 %v4928
        %v4945 = vunpack.c.l.b16 %v4929
        %v4946 = vunpack.c.l.b16 %v4930
        %v4947 = vunpack.c.l.b16 %v4931
        %v4948 = vunpack.c.l.b16 %v4932
        %v4949 = vunpack.c.l.b16 %v4933
        %v4950 = vpack.c.b16 %v4943, %v4942
        %v4951 = vpack.c.b16 %v4945, %v4944
        %v4952 = vpack.c.b16 %v4947, %v4946
        %v4953 = vpack.c.b16 %v4949, %v4948
        %v4959 = vsel %vm2566, %v4925, 0
        %4961 = vmatprep.subr.bf16.mxu0 0
        %4962 = vmatpush1.bf16.msra.mxu0 %v4950
        %4963 = vmatprep.subr.bf16.mxu0 0
        %4964 = vmatpush1.bf16.msra.mxu0 %v4951
        %4965 = vmatprep.subr.bf16.mxu0 0
        %4966 = vmatpush1.bf16.msra.mxu0 %v4952
        %4967 = vmatprep.subr.bf16.mxu0 0
        %4968 = vmatpush1.bf16.msra.mxu0 %v4953
        %4969 = vmatprep.subr.bf16.mxu0 0
        %4970 = vmatpush1.bf16.msra.mxu0 0
        %4971 = vmatprep.subr.bf16.mxu0 0
        %4972 = vmatpush1.bf16.msra.mxu0 0
        %4973 = vmatprep.subr.bf16.mxu0 0
        %4974 = vmatpush1.bf16.msra.mxu0 0
        %4975 = vmatprep.subr.bf16.mxu0 0
        %4976 = vmatpush1.bf16.msra.mxu0 0
        %4977 = vmatprep.subr.bf16.mxu0 0
        %4978 = vmatpush1.bf16.msra.mxu0 0
        %4979 = vmatprep.subr.bf16.mxu0 0
        %4980 = vmatpush1.bf16.msra.mxu0 0
        %4981 = vmatprep.subr.bf16.mxu0 0
        %4982 = vmatpush1.bf16.msra.mxu0 0
        %4983 = vmatprep.subr.bf16.mxu0 0
        %4984 = vmatpush1.bf16.msra.mxu0 0
        %4985 = vmatprep.subr.bf16.mxu0 0
        %4986 = vmatpush1.bf16.msra.mxu0 0
        %4987 = vmatprep.subr.bf16.mxu0 0
        %4988 = vmatpush1.bf16.msra.mxu0 0
        %4989 = vmatprep.subr.bf16.mxu0 0
        %4990 = vmatpush1.bf16.msra.mxu0 0
        %4991 = vmatprep.subr.bf16.mxu0 0
        %4992 = vmatpush1.bf16.msra.mxu0 0
        %4993 = vmatprep.mubr.bf16.mxu0 0
        %4994 = vmatmul.mubr.bf16.gmra.mrb[0].mxu0 %v4959
        %v4995 = vpop.f32.mrb[0].mxu0
        %v4996 = vadd.f32 0.0, %v4995
        %v4997 = vpop.f32.mrb[0].mxu0
        %v4998 = vpop.f32.mrb[0].mxu0
        %v4999 = vpop.f32.mrb[0].mxu0
        %5000 = vdwg.mxu0
        %v5001 = vadd.f32 %v4923, %v4996
        %v5002 = vld [vmem:[#allocation5 + $0xe] sm:$0x1]
        %v5003 = vpack.c.bf16 %v5002, %v5002
        %v5004 = vld [vmem:[#allocation9 + $0x1c0] sm:$0xf]
        %v5005 = vld [vmem:[#allocation9 + $0x1c4] sm:$0xf]
        %v5006 = vld [vmem:[#allocation9 + $0x1c8] sm:$0xf]
        %v5007 = vld [vmem:[#allocation9 + $0x1cc] sm:$0xf]
        %v5008 = vld [vmem:[#allocation9 + $0x1d0] sm:$0xf]
        %v5009 = vld [vmem:[#allocation9 + $0x1d4] sm:$0xf]
        %v5010 = vld [vmem:[#allocation9 + $0x1d8] sm:$0xf]
        %v5011 = vld [vmem:[#allocation9 + $0x1dc] sm:$0xf]
        %v5020 = vunpack.c.l.b16 %v5004
        %v5021 = vunpack.c.l.b16 %v5005
        %v5022 = vunpack.c.l.b16 %v5006
        %v5023 = vunpack.c.l.b16 %v5007
        %v5024 = vunpack.c.l.b16 %v5008
        %v5025 = vunpack.c.l.b16 %v5009
        %v5026 = vunpack.c.l.b16 %v5010
        %v5027 = vunpack.c.l.b16 %v5011
        %v5028 = vpack.c.b16 %v5021, %v5020
        %v5029 = vpack.c.b16 %v5023, %v5022
        %v5030 = vpack.c.b16 %v5025, %v5024
        %v5031 = vpack.c.b16 %v5027, %v5026
        %v5037 = vsel %vm2566, %v5003, 0
        %5039 = vmatprep.subr.bf16.mxu0 0
        %5040 = vmatpush1.bf16.msra.mxu0 %v5028
        %5041 = vmatprep.subr.bf16.mxu0 0
        %5042 = vmatpush1.bf16.msra.mxu0 %v5029
        %5043 = vmatprep.subr.bf16.mxu0 0
        %5044 = vmatpush1.bf16.msra.mxu0 %v5030
        %5045 = vmatprep.subr.bf16.mxu0 0
        %5046 = vmatpush1.bf16.msra.mxu0 %v5031
        %5047 = vmatprep.subr.bf16.mxu0 0
        %5048 = vmatpush1.bf16.msra.mxu0 0
        %5049 = vmatprep.subr.bf16.mxu0 0
        %5050 = vmatpush1.bf16.msra.mxu0 0
        %5051 = vmatprep.subr.bf16.mxu0 0
        %5052 = vmatpush1.bf16.msra.mxu0 0
        %5053 = vmatprep.subr.bf16.mxu0 0
        %5054 = vmatpush1.bf16.msra.mxu0 0
        %5055 = vmatprep.subr.bf16.mxu0 0
        %5056 = vmatpush1.bf16.msra.mxu0 0
        %5057 = vmatprep.subr.bf16.mxu0 0
        %5058 = vmatpush1.bf16.msra.mxu0 0
        %5059 = vmatprep.subr.bf16.mxu0 0
        %5060 = vmatpush1.bf16.msra.mxu0 0
        %5061 = vmatprep.subr.bf16.mxu0 0
        %5062 = vmatpush1.bf16.msra.mxu0 0
        %5063 = vmatprep.subr.bf16.mxu0 0
        %5064 = vmatpush1.bf16.msra.mxu0 0
        %5065 = vmatprep.subr.bf16.mxu0 0
        %5066 = vmatpush1.bf16.msra.mxu0 0
        %5067 = vmatprep.subr.bf16.mxu0 0
        %5068 = vmatpush1.bf16.msra.mxu0 0
        %5069 = vmatprep.subr.bf16.mxu0 0
        %5070 = vmatpush1.bf16.msra.mxu0 0
        %5071 = vmatprep.mubr.bf16.mxu0 0
        %5072 = vmatmul.mubr.bf16.gmra.mrb[0].mxu0 %v5037
        %v5073 = vpop.f32.mrb[0].mxu0
        %v5074 = vadd.f32 0.0, %v5073
        %v5075 = vpop.f32.mrb[0].mxu0
        %v5076 = vpop.f32.mrb[0].mxu0
        %v5077 = vpop.f32.mrb[0].mxu0
        %5078 = vdwg.mxu0
        %v5079 = vadd.f32 %v5001, %v5074
        %v5080 = vld [vmem:[#allocation5 + $0xf] sm:$0x1]
        %v5081 = vpack.c.bf16 %v5080, %v5080
        %v5082 = vld [vmem:[#allocation9 + $0x1e0] sm:$0xf]
        %v5083 = vld [vmem:[#allocation9 + $0x1e4] sm:$0xf]
        %v5084 = vld [vmem:[#allocation9 + $0x1e8] sm:$0xf]
        %v5085 = vld [vmem:[#allocation9 + $0x1ec] sm:$0xf]
        %v5086 = vld [vmem:[#allocation9 + $0x1f0] sm:$0xf]
        %v5087 = vld [vmem:[#allocation9 + $0x1f4] sm:$0xf]
        %v5088 = vld [vmem:[#allocation9 + $0x1f8] sm:$0xf]
        %v5089 = vld [vmem:[#allocation9 + $0x1fc] sm:$0xf]
        %v5098 = vunpack.c.l.b16 %v5082
        %v5099 = vunpack.c.l.b16 %v5083
        %v5100 = vunpack.c.l.b16 %v5084
        %v5101 = vunpack.c.l.b16 %v5085
        %v5102 = vunpack.c.l.b16 %v5086
        %v5103 = vunpack.c.l.b16 %v5087
        %v5104 = vunpack.c.l.b16 %v5088
        %v5105 = vunpack.c.l.b16 %v5089
        %v5106 = vpack.c.b16 %v5099, %v5098
        %v5107 = vpack.c.b16 %v5101, %v5100
        %v5108 = vpack.c.b16 %v5103, %v5102
        %v5109 = vpack.c.b16 %v5105, %v5104
        %v5115 = vsel %vm2566, %v5081, 0
        %5117 = vmatprep.subr.bf16.mxu0 0
        %5118 = vmatpush1.bf16.msra.mxu0 %v5106
        %5119 = vmatprep.subr.bf16.mxu0 0
        %5120 = vmatpush1.bf16.msra.mxu0 %v5107
        %5121 = vmatprep.subr.bf16.mxu0 0
        %5122 = vmatpush1.bf16.msra.mxu0 %v5108
        %5123 = vmatprep.subr.bf16.mxu0 0
        %5124 = vmatpush1.bf16.msra.mxu0 %v5109
        %5125 = vmatprep.subr.bf16.mxu0 0
        %5126 = vmatpush1.bf16.msra.mxu0 0
        %5127 = vmatprep.subr.bf16.mxu0 0
        %5128 = vmatpush1.bf16.msra.mxu0 0
        %5129 = vmatprep.subr.bf16.mxu0 0
        %5130 = vmatpush1.bf16.msra.mxu0 0
        %5131 = vmatprep.subr.bf16.mxu0 0
        %5132 = vmatpush1.bf16.msra.mxu0 0
        %5133 = vmatprep.subr.bf16.mxu0 0
        %5134 = vmatpush1.bf16.msra.mxu0 0
        %5135 = vmatprep.subr.bf16.mxu0 0
        %5136 = vmatpush1.bf16.msra.mxu0 0
        %5137 = vmatprep.subr.bf16.mxu0 0
        %5138 = vmatpush1.bf16.msra.mxu0 0
        %5139 = vmatprep.subr.bf16.mxu0 0
        %5140 = vmatpush1.bf16.msra.mxu0 0
        %5141 = vmatprep.subr.bf16.mxu0 0
        %5142 = vmatpush1.bf16.msra.mxu0 0
        %5143 = vmatprep.subr.bf16.mxu0 0
        %5144 = vmatpush1.bf16.msra.mxu0 0
        %5145 = vmatprep.subr.bf16.mxu0 0
        %5146 = vmatpush1.bf16.msra.mxu0 0
        %5147 = vmatprep.subr.bf16.mxu0 0
        %5148 = vmatpush1.bf16.msra.mxu0 0
        %5149 = vmatprep.mubr.bf16.mxu0 0
        %5150 = vmatmul.mubr.bf16.gmra.mrb[0].mxu0 %v5115
        %v5151 = vpop.f32.mrb[0].mxu0
        %v5152 = vadd.f32 0.0, %v5151
        %v5153 = vpop.f32.mrb[0].mxu0
        %v5154 = vpop.f32.mrb[0].mxu0
        %v5155 = vpop.f32.mrb[0].mxu0
        %5156 = vdwg.mxu0
        %v5157 = vadd.f32 %v5079, %v5152
        %v5158 = vld [vmem:[#allocation5 + $0x10] sm:$0x1]
        %v5159 = vpack.c.bf16 %v5158, %v5158
        %v5160 = vld [vmem:[#allocation9 + $0x200] sm:$0xf]
        %v5161 = vld [vmem:[#allocation9 + $0x204] sm:$0xf]
        %v5162 = vld [vmem:[#allocation9 + $0x208] sm:$0xf]
        %v5163 = vld [vmem:[#allocation9 + $0x20c] sm:$0xf]
        %v5164 = vld [vmem:[#allocation9 + $0x210] sm:$0xf]
        %v5165 = vld [vmem:[#allocation9 + $0x214] sm:$0xf]
        %v5166 = vld [vmem:[#allocation9 + $0x218] sm:$0xf]
        %v5167 = vld [vmem:[#allocation9 + $0x21c] sm:$0xf]
        %v5176 = vunpack.c.l.b16 %v5160
        %v5177 = vunpack.c.l.b16 %v5161
        %v5178 = vunpack.c.l.b16 %v5162
        %v5179 = vunpack.c.l.b16 %v5163
        %v5180 = vunpack.c.l.b16 %v5164
        %v5181 = vunpack.c.l.b16 %v5165
        %v5182 = vunpack.c.l.b16 %v5166
        %v5183 = vunpack.c.l.b16 %v5167
        %v5184 = vpack.c.b16 %v5177, %v5176
        %v5185 = vpack.c.b16 %v5179, %v5178
        %v5186 = vpack.c.b16 %v5181, %v5180
        %v5187 = vpack.c.b16 %v5183, %v5182
        %v5193 = vsel %vm2566, %v5159, 0
        %5195 = vmatprep.subr.bf16.mxu0 0
        %5196 = vmatpush1.bf16.msra.mxu0 %v5184
        %5197 = vmatprep.subr.bf16.mxu0 0
        %5198 = vmatpush1.bf16.msra.mxu0 %v5185
        %5199 = vmatprep.subr.bf16.mxu0 0
        %5200 = vmatpush1.bf16.msra.mxu0 %v5186
        %5201 = vmatprep.subr.bf16.mxu0 0
        %5202 = vmatpush1.bf16.msra.mxu0 %v5187
        %5203 = vmatprep.subr.bf16.mxu0 0
        %5204 = vmatpush1.bf16.msra.mxu0 0
        %5205 = vmatprep.subr.bf16.mxu0 0
        %5206 = vmatpush1.bf16.msra.mxu0 0
        %5207 = vmatprep.subr.bf16.mxu0 0
        %5208 = vmatpush1.bf16.msra.mxu0 0
        %5209 = vmatprep.subr.bf16.mxu0 0
        %5210 = vmatpush1.bf16.msra.mxu0 0
        %5211 = vmatprep.subr.bf16.mxu0 0
        %5212 = vmatpush1.bf16.msra.mxu0 0
        %5213 = vmatprep.subr.bf16.mxu0 0
        %5214 = vmatpush1.bf16.msra.mxu0 0
        %5215 = vmatprep.subr.bf16.mxu0 0
        %5216 = vmatpush1.bf16.msra.mxu0 0
        %5217 = vmatprep.subr.bf16.mxu0 0
        %5218 = vmatpush1.bf16.msra.mxu0 0
        %5219 = vmatprep.subr.bf16.mxu0 0
        %5220 = vmatpush1.bf16.msra.mxu0 0
        %5221 = vmatprep.subr.bf16.mxu0 0
        %5222 = vmatpush1.bf16.msra.mxu0 0
        %5223 = vmatprep.subr.bf16.mxu0 0
        %5224 = vmatpush1.bf16.msra.mxu0 0
        %5225 = vmatprep.subr.bf16.mxu0 0
        %5226 = vmatpush1.bf16.msra.mxu0 0
        %5227 = vmatprep.mubr.bf16.mxu0 0
        %5228 = vmatmul.mubr.bf16.gmra.mrb[0].mxu0 %v5193
        %v5229 = vpop.f32.mrb[0].mxu0
        %v5230 = vadd.f32 0.0, %v5229
        %v5231 = vpop.f32.mrb[0].mxu0
        %v5232 = vpop.f32.mrb[0].mxu0
        %v5233 = vpop.f32.mrb[0].mxu0
        %5234 = vdwg.mxu0
        %v5235 = vadd.f32 %v5157, %v5230
        %v5236 = vld [vmem:[#allocation5 + $0x11] sm:$0x1]
        %v5237 = vpack.c.bf16 %v5236, %v5236
        %v5238 = vld [vmem:[#allocation9 + $0x220] sm:$0xf]
        %v5239 = vld [vmem:[#allocation9 + $0x224] sm:$0xf]
        %v5240 = vld [vmem:[#allocation9 + $0x228] sm:$0xf]
        %v5241 = vld [vmem:[#allocation9 + $0x22c] sm:$0xf]
        %v5242 = vld [vmem:[#allocation9 + $0x230] sm:$0xf]
        %v5243 = vld [vmem:[#allocation9 + $0x234] sm:$0xf]
        %v5244 = vld [vmem:[#allocation9 + $0x238] sm:$0xf]
        %v5245 = vld [vmem:[#allocation9 + $0x23c] sm:$0xf]
        %v5254 = vunpack.c.l.b16 %v5238
        %v5255 = vunpack.c.l.b16 %v5239
        %v5256 = vunpack.c.l.b16 %v5240
        %v5257 = vunpack.c.l.b16 %v5241
        %v5258 = vunpack.c.l.b16 %v5242
        %v5259 = vunpack.c.l.b16 %v5243
        %v5260 = vunpack.c.l.b16 %v5244
        %v5261 = vunpack.c.l.b16 %v5245
        %v5262 = vpack.c.b16 %v5255, %v5254
        %v5263 = vpack.c.b16 %v5257, %v5256
        %v5264 = vpack.c.b16 %v5259, %v5258
        %v5265 = vpack.c.b16 %v5261, %v5260
        %v5271 = vsel %vm2566, %v5237, 0
        %5273 = vmatprep.subr.bf16.mxu0 0
        %5274 = vmatpush1.bf16.msra.mxu0 %v5262
        %5275 = vmatprep.subr.bf16.mxu0 0
        %5276 = vmatpush1.bf16.msra.mxu0 %v5263
        %5277 = vmatprep.subr.bf16.mxu0 0
        %5278 = vmatpush1.bf16.msra.mxu0 %v5264
        %5279 = vmatprep.subr.bf16.mxu0 0
        %5280 = vmatpush1.bf16.msra.mxu0 %v5265
        %5281 = vmatprep.subr.bf16.mxu0 0
        %5282 = vmatpush1.bf16.msra.mxu0 0
        %5283 = vmatprep.subr.bf16.mxu0 0
        %5284 = vmatpush1.bf16.msra.mxu0 0
        %5285 = vmatprep.subr.bf16.mxu0 0
        %5286 = vmatpush1.bf16.msra.mxu0 0
        %5287 = vmatprep.subr.bf16.mxu0 0
        %5288 = vmatpush1.bf16.msra.mxu0 0
        %5289 = vmatprep.subr.bf16.mxu0 0
        %5290 = vmatpush1.bf16.msra.mxu0 0
        %5291 = vmatprep.subr.bf16.mxu0 0
        %5292 = vmatpush1.bf16.msra.mxu0 0
        %5293 = vmatprep.subr.bf16.mxu0 0
        %5294 = vmatpush1.bf16.msra.mxu0 0
        %5295 = vmatprep.subr.bf16.mxu0 0
        %5296 = vmatpush1.bf16.msra.mxu0 0
        %5297 = vmatprep.subr.bf16.mxu0 0
        %5298 = vmatpush1.bf16.msra.mxu0 0
        %5299 = vmatprep.subr.bf16.mxu0 0
        %5300 = vmatpush1.bf16.msra.mxu0 0
        %5301 = vmatprep.subr.bf16.mxu0 0
        %5302 = vmatpush1.bf16.msra.mxu0 0
        %5303 = vmatprep.subr.bf16.mxu0 0
        %5304 = vmatpush1.bf16.msra.mxu0 0
        %5305 = vmatprep.mubr.bf16.mxu0 0
        %5306 = vmatmul.mubr.bf16.gmra.mrb[0].mxu0 %v5271
        %v5307 = vpop.f32.mrb[0].mxu0
        %v5308 = vadd.f32 0.0, %v5307
        %v5309 = vpop.f32.mrb[0].mxu0
        %v5310 = vpop.f32.mrb[0].mxu0
        %v5311 = vpop.f32.mrb[0].mxu0
        %5312 = vdwg.mxu0
        %v5313 = vadd.f32 %v5235, %v5308
        %v5314 = vld [vmem:[#allocation5 + $0x12] sm:$0x1]
        %v5315 = vpack.c.bf16 %v5314, %v5314
        %v5316 = vld [vmem:[#allocation9 + $0x240] sm:$0xf]
        %v5317 = vld [vmem:[#allocation9 + $0x244] sm:$0xf]
        %v5318 = vld [vmem:[#allocation9 + $0x248] sm:$0xf]
        %v5319 = vld [vmem:[#allocation9 + $0x24c] sm:$0xf]
        %v5320 = vld [vmem:[#allocation9 + $0x250] sm:$0xf]
        %v5321 = vld [vmem:[#allocation9 + $0x254] sm:$0xf]
        %v5322 = vld [vmem:[#allocation9 + $0x258] sm:$0xf]
        %v5323 = vld [vmem:[#allocation9 + $0x25c] sm:$0xf]
        %v5332 = vunpack.c.l.b16 %v5316
        %v5333 = vunpack.c.l.b16 %v5317
        %v5334 = vunpack.c.l.b16 %v5318
        %v5335 = vunpack.c.l.b16 %v5319
        %v5336 = vunpack.c.l.b16 %v5320
        %v5337 = vunpack.c.l.b16 %v5321
        %v5338 = vunpack.c.l.b16 %v5322
        %v5339 = vunpack.c.l.b16 %v5323
        %v5340 = vpack.c.b16 %v5333, %v5332
        %v5341 = vpack.c.b16 %v5335, %v5334
        %v5342 = vpack.c.b16 %v5337, %v5336
        %v5343 = vpack.c.b16 %v5339, %v5338
        %v5349 = vsel %vm2566, %v5315, 0
        %5351 = vmatprep.subr.bf16.mxu0 0
        %5352 = vmatpush1.bf16.msra.mxu0 %v5340
        %5353 = vmatprep.subr.bf16.mxu0 0
        %5354 = vmatpush1.bf16.msra.mxu0 %v5341
        %5355 = vmatprep.subr.bf16.mxu0 0
        %5356 = vmatpush1.bf16.msra.mxu0 %v5342
        %5357 = vmatprep.subr.bf16.mxu0 0
        %5358 = vmatpush1.bf16.msra.mxu0 %v5343
        %5359 = vmatprep.subr.bf16.mxu0 0
        %5360 = vmatpush1.bf16.msra.mxu0 0
        %5361 = vmatprep.subr.bf16.mxu0 0
        %5362 = vmatpush1.bf16.msra.mxu0 0
        %5363 = vmatprep.subr.bf16.mxu0 0
        %5364 = vmatpush1.bf16.msra.mxu0 0
        %5365 = vmatprep.subr.bf16.mxu0 0
        %5366 = vmatpush1.bf16.msra.mxu0 0
        %5367 = vmatprep.subr.bf16.mxu0 0
        %5368 = vmatpush1.bf16.msra.mxu0 0
        %5369 = vmatprep.subr.bf16.mxu0 0
        %5370 = vmatpush1.bf16.msra.mxu0 0
        %5371 = vmatprep.subr.bf16.mxu0 0
        %5372 = vmatpush1.bf16.msra.mxu0 0
        %5373 = vmatprep.subr.bf16.mxu0 0
        %5374 = vmatpush1.bf16.msra.mxu0 0
        %5375 = vmatprep.subr.bf16.mxu0 0
        %5376 = vmatpush1.bf16.msra.mxu0 0
        %5377 = vmatprep.subr.bf16.mxu0 0
        %5378 = vmatpush1.bf16.msra.mxu0 0
        %5379 = vmatprep.subr.bf16.mxu0 0
        %5380 = vmatpush1.bf16.msra.mxu0 0
        %5381 = vmatprep.subr.bf16.mxu0 0
        %5382 = vmatpush1.bf16.msra.mxu0 0
        %5383 = vmatprep.mubr.bf16.mxu0 0
        %5384 = vmatmul.mubr.bf16.gmra.mrb[0].mxu0 %v5349
        %v5385 = vpop.f32.mrb[0].mxu0
        %v5386 = vadd.f32 0.0, %v5385
        %v5387 = vpop.f32.mrb[0].mxu0
        %v5388 = vpop.f32.mrb[0].mxu0
        %v5389 = vpop.f32.mrb[0].mxu0
        %5390 = vdwg.mxu0
        %v5391 = vadd.f32 %v5313, %v5386
        %v5392 = vld [vmem:[#allocation5 + $0x13] sm:$0x1]
        %v5393 = vpack.c.bf16 %v5392, %v5392
        %v5394 = vld [vmem:[#allocation9 + $0x260] sm:$0xf]
        %v5395 = vld [vmem:[#allocation9 + $0x264] sm:$0xf]
        %v5396 = vld [vmem:[#allocation9 + $0x268] sm:$0xf]
        %v5397 = vld [vmem:[#allocation9 + $0x26c] sm:$0xf]
        %v5398 = vld [vmem:[#allocation9 + $0x270] sm:$0xf]
        %v5399 = vld [vmem:[#allocation9 + $0x274] sm:$0xf]
        %v5400 = vld [vmem:[#allocation9 + $0x278] sm:$0xf]
        %v5401 = vld [vmem:[#allocation9 + $0x27c] sm:$0xf]
        %v5410 = vunpack.c.l.b16 %v5394
        %v5411 = vunpack.c.l.b16 %v5395
        %v5412 = vunpack.c.l.b16 %v5396
        %v5413 = vunpack.c.l.b16 %v5397
        %v5414 = vunpack.c.l.b16 %v5398
        %v5415 = vunpack.c.l.b16 %v5399
        %v5416 = vunpack.c.l.b16 %v5400
        %v5417 = vunpack.c.l.b16 %v5401
        %v5418 = vpack.c.b16 %v5411, %v5410
        %v5419 = vpack.c.b16 %v5413, %v5412
        %v5420 = vpack.c.b16 %v5415, %v5414
        %v5421 = vpack.c.b16 %v5417, %v5416
        %v5427 = vsel %vm2566, %v5393, 0
        %5429 = vmatprep.subr.bf16.mxu0 0
        %5430 = vmatpush1.bf16.msra.mxu0 %v5418
        %5431 = vmatprep.subr.bf16.mxu0 0
        %5432 = vmatpush1.bf16.msra.mxu0 %v5419
        %5433 = vmatprep.subr.bf16.mxu0 0
        %5434 = vmatpush1.bf16.msra.mxu0 %v5420
        %5435 = vmatprep.subr.bf16.mxu0 0
        %5436 = vmatpush1.bf16.msra.mxu0 %v5421
        %5437 = vmatprep.subr.bf16.mxu0 0
        %5438 = vmatpush1.bf16.msra.mxu0 0
        %5439 = vmatprep.subr.bf16.mxu0 0
        %5440 = vmatpush1.bf16.msra.mxu0 0
        %5441 = vmatprep.subr.bf16.mxu0 0
        %5442 = vmatpush1.bf16.msra.mxu0 0
        %5443 = vmatprep.subr.bf16.mxu0 0
        %5444 = vmatpush1.bf16.msra.mxu0 0
        %5445 = vmatprep.subr.bf16.mxu0 0
        %5446 = vmatpush1.bf16.msra.mxu0 0
        %5447 = vmatprep.subr.bf16.mxu0 0
        %5448 = vmatpush1.bf16.msra.mxu0 0
        %5449 = vmatprep.subr.bf16.mxu0 0
        %5450 = vmatpush1.bf16.msra.mxu0 0
        %5451 = vmatprep.subr.bf16.mxu0 0
        %5452 = vmatpush1.bf16.msra.mxu0 0
        %5453 = vmatprep.subr.bf16.mxu0 0
        %5454 = vmatpush1.bf16.msra.mxu0 0
        %5455 = vmatprep.subr.bf16.mxu0 0
        %5456 = vmatpush1.bf16.msra.mxu0 0
        %5457 = vmatprep.subr.bf16.mxu0 0
        %5458 = vmatpush1.bf16.msra.mxu0 0
        %5459 = vmatprep.subr.bf16.mxu0 0
        %5460 = vmatpush1.bf16.msra.mxu0 0
        %5461 = vmatprep.mubr.bf16.mxu0 0
        %5462 = vmatmul.mubr.bf16.gmra.mrb[0].mxu0 %v5427
        %v5463 = vpop.f32.mrb[0].mxu0
        %v5464 = vadd.f32 0.0, %v5463
        %v5465 = vpop.f32.mrb[0].mxu0
        %v5466 = vpop.f32.mrb[0].mxu0
        %v5467 = vpop.f32.mrb[0].mxu0
        %5468 = vdwg.mxu0
        %v5469 = vadd.f32 %v5391, %v5464
        %v5470 = vld [vmem:[#allocation5 + $0x14] sm:$0x1]
        %v5471 = vpack.c.bf16 %v5470, %v5470
        %v5472 = vld [vmem:[#allocation9 + $0x280] sm:$0xf]
        %v5473 = vld [vmem:[#allocation9 + $0x284] sm:$0xf]
        %v5474 = vld [vmem:[#allocation9 + $0x288] sm:$0xf]
        %v5475 = vld [vmem:[#allocation9 + $0x28c] sm:$0xf]
        %v5476 = vld [vmem:[#allocation9 + $0x290] sm:$0xf]
        %v5477 = vld [vmem:[#allocation9 + $0x294] sm:$0xf]
        %v5478 = vld [vmem:[#allocation9 + $0x298] sm:$0xf]
        %v5479 = vld [vmem:[#allocation9 + $0x29c] sm:$0xf]
        %v5488 = vunpack.c.l.b16 %v5472
        %v5489 = vunpack.c.l.b16 %v5473
        %v5490 = vunpack.c.l.b16 %v5474
        %v5491 = vunpack.c.l.b16 %v5475
        %v5492 = vunpack.c.l.b16 %v5476
        %v5493 = vunpack.c.l.b16 %v5477
        %v5494 = vunpack.c.l.b16 %v5478
        %v5495 = vunpack.c.l.b16 %v5479
        %v5496 = vpack.c.b16 %v5489, %v5488
        %v5497 = vpack.c.b16 %v5491, %v5490
        %v5498 = vpack.c.b16 %v5493, %v5492
        %v5499 = vpack.c.b16 %v5495, %v5494
        %v5505 = vsel %vm2566, %v5471, 0
        %5507 = vmatprep.subr.bf16.mxu0 0
        %5508 = vmatpush1.bf16.msra.mxu0 %v5496
        %5509 = vmatprep.subr.bf16.mxu0 0
        %5510 = vmatpush1.bf16.msra.mxu0 %v5497
        %5511 = vmatprep.subr.bf16.mxu0 0
        %5512 = vmatpush1.bf16.msra.mxu0 %v5498
        %5513 = vmatprep.subr.bf16.mxu0 0
        %5514 = vmatpush1.bf16.msra.mxu0 %v5499
        %5515 = vmatprep.subr.bf16.mxu0 0
        %5516 = vmatpush1.bf16.msra.mxu0 0
        %5517 = vmatprep.subr.bf16.mxu0 0
        %5518 = vmatpush1.bf16.msra.mxu0 0
        %5519 = vmatprep.subr.bf16.mxu0 0
        %5520 = vmatpush1.bf16.msra.mxu0 0
        %5521 = vmatprep.subr.bf16.mxu0 0
        %5522 = vmatpush1.bf16.msra.mxu0 0
        %5523 = vmatprep.subr.bf16.mxu0 0
        %5524 = vmatpush1.bf16.msra.mxu0 0
        %5525 = vmatprep.subr.bf16.mxu0 0
        %5526 = vmatpush1.bf16.msra.mxu0 0
        %5527 = vmatprep.subr.bf16.mxu0 0
        %5528 = vmatpush1.bf16.msra.mxu0 0
        %5529 = vmatprep.subr.bf16.mxu0 0
        %5530 = vmatpush1.bf16.msra.mxu0 0
        %5531 = vmatprep.subr.bf16.mxu0 0
        %5532 = vmatpush1.bf16.msra.mxu0 0
        %5533 = vmatprep.subr.bf16.mxu0 0
        %5534 = vmatpush1.bf16.msra.mxu0 0
        %5535 = vmatprep.subr.bf16.mxu0 0
        %5536 = vmatpush1.bf16.msra.mxu0 0
        %5537 = vmatprep.subr.bf16.mxu0 0
        %5538 = vmatpush1.bf16.msra.mxu0 0
        %5539 = vmatprep.mubr.bf16.mxu0 0
        %5540 = vmatmul.mubr.bf16.gmra.mrb[0].mxu0 %v5505
        %v5541 = vpop.f32.mrb[0].mxu0
        %v5542 = vadd.f32 0.0, %v5541
        %v5543 = vpop.f32.mrb[0].mxu0
        %v5544 = vpop.f32.mrb[0].mxu0
        %v5545 = vpop.f32.mrb[0].mxu0
        %5546 = vdwg.mxu0
        %v5547 = vadd.f32 %v5469, %v5542
        %v5548 = vld [vmem:[#allocation5 + $0x15] sm:$0x1]
        %v5549 = vpack.c.bf16 %v5548, %v5548
        %v5550 = vld [vmem:[#allocation9 + $0x2a0] sm:$0xf]
        %v5551 = vld [vmem:[#allocation9 + $0x2a4] sm:$0xf]
        %v5552 = vld [vmem:[#allocation9 + $0x2a8] sm:$0xf]
        %v5553 = vld [vmem:[#allocation9 + $0x2ac] sm:$0xf]
        %v5554 = vld [vmem:[#allocation9 + $0x2b0] sm:$0xf]
        %v5555 = vld [vmem:[#allocation9 + $0x2b4] sm:$0xf]
        %v5556 = vld [vmem:[#allocation9 + $0x2b8] sm:$0xf]
        %v5557 = vld [vmem:[#allocation9 + $0x2bc] sm:$0xf]
        %v5566 = vunpack.c.l.b16 %v5550
        %v5567 = vunpack.c.l.b16 %v5551
        %v5568 = vunpack.c.l.b16 %v5552
        %v5569 = vunpack.c.l.b16 %v5553
        %v5570 = vunpack.c.l.b16 %v5554
        %v5571 = vunpack.c.l.b16 %v5555
        %v5572 = vunpack.c.l.b16 %v5556
        %v5573 = vunpack.c.l.b16 %v5557
        %v5574 = vpack.c.b16 %v5567, %v5566
        %v5575 = vpack.c.b16 %v5569, %v5568
        %v5576 = vpack.c.b16 %v5571, %v5570
        %v5577 = vpack.c.b16 %v5573, %v5572
        %v5583 = vsel %vm2566, %v5549, 0
        %5585 = vmatprep.subr.bf16.mxu0 0
        %5586 = vmatpush1.bf16.msra.mxu0 %v5574
        %5587 = vmatprep.subr.bf16.mxu0 0
        %5588 = vmatpush1.bf16.msra.mxu0 %v5575
        %5589 = vmatprep.subr.bf16.mxu0 0
        %5590 = vmatpush1.bf16.msra.mxu0 %v5576
        %5591 = vmatprep.subr.bf16.mxu0 0
        %5592 = vmatpush1.bf16.msra.mxu0 %v5577
        %5593 = vmatprep.subr.bf16.mxu0 0
        %5594 = vmatpush1.bf16.msra.mxu0 0
        %5595 = vmatprep.subr.bf16.mxu0 0
        %5596 = vmatpush1.bf16.msra.mxu0 0
        %5597 = vmatprep.subr.bf16.mxu0 0
        %5598 = vmatpush1.bf16.msra.mxu0 0
        %5599 = vmatprep.subr.bf16.mxu0 0
        %5600 = vmatpush1.bf16.msra.mxu0 0
        %5601 = vmatprep.subr.bf16.mxu0 0
        %5602 = vmatpush1.bf16.msra.mxu0 0
        %5603 = vmatprep.subr.bf16.mxu0 0
        %5604 = vmatpush1.bf16.msra.mxu0 0
        %5605 = vmatprep.subr.bf16.mxu0 0
        %5606 = vmatpush1.bf16.msra.mxu0 0
        %5607 = vmatprep.subr.bf16.mxu0 0
        %5608 = vmatpush1.bf16.msra.mxu0 0
        %5609 = vmatprep.subr.bf16.mxu0 0
        %5610 = vmatpush1.bf16.msra.mxu0 0
        %5611 = vmatprep.subr.bf16.mxu0 0
        %5612 = vmatpush1.bf16.msra.mxu0 0
        %5613 = vmatprep.subr.bf16.mxu0 0
        %5614 = vmatpush1.bf16.msra.mxu0 0
        %5615 = vmatprep.subr.bf16.mxu0 0
        %5616 = vmatpush1.bf16.msra.mxu0 0
        %5617 = vmatprep.mubr.bf16.mxu0 0
        %5618 = vmatmul.mubr.bf16.gmra.mrb[0].mxu0 %v5583
        %v5619 = vpop.f32.mrb[0].mxu0
        %v5620 = vadd.f32 0.0, %v5619
        %v5621 = vpop.f32.mrb[0].mxu0
        %v5622 = vpop.f32.mrb[0].mxu0
        %v5623 = vpop.f32.mrb[0].mxu0
        %5624 = vdwg.mxu0
        %v5625 = vadd.f32 %v5547, %v5620
        %v5626 = vld [vmem:[#allocation5 + $0x16] sm:$0x1]
        %v5627 = vpack.c.bf16 %v5626, %v5626
        %v5628 = vld [vmem:[#allocation9 + $0x2c0] sm:$0xf]
        %v5629 = vld [vmem:[#allocation9 + $0x2c4] sm:$0xf]
        %v5630 = vld [vmem:[#allocation9 + $0x2c8] sm:$0xf]
        %v5631 = vld [vmem:[#allocation9 + $0x2cc] sm:$0xf]
        %v5632 = vld [vmem:[#allocation9 + $0x2d0] sm:$0xf]
        %v5633 = vld [vmem:[#allocation9 + $0x2d4] sm:$0xf]
        %v5634 = vld [vmem:[#allocation9 + $0x2d8] sm:$0xf]
        %v5635 = vld [vmem:[#allocation9 + $0x2dc] sm:$0xf]
        %v5644 = vunpack.c.l.b16 %v5628
        %v5645 = vunpack.c.l.b16 %v5629
        %v5646 = vunpack.c.l.b16 %v5630
        %v5647 = vunpack.c.l.b16 %v5631
        %v5648 = vunpack.c.l.b16 %v5632
        %v5649 = vunpack.c.l.b16 %v5633
        %v5650 = vunpack.c.l.b16 %v5634
        %v5651 = vunpack.c.l.b16 %v5635
        %v5652 = vpack.c.b16 %v5645, %v5644
        %v5653 = vpack.c.b16 %v5647, %v5646
        %v5654 = vpack.c.b16 %v5649, %v5648
        %v5655 = vpack.c.b16 %v5651, %v5650
        %v5661 = vsel %vm2566, %v5627, 0
        %5663 = vmatprep.subr.bf16.mxu0 0
        %5664 = vmatpush1.bf16.msra.mxu0 %v5652
        %5665 = vmatprep.subr.bf16.mxu0 0
        %5666 = vmatpush1.bf16.msra.mxu0 %v5653
        %5667 = vmatprep.subr.bf16.mxu0 0
        %5668 = vmatpush1.bf16.msra.mxu0 %v5654
        %5669 = vmatprep.subr.bf16.mxu0 0
        %5670 = vmatpush1.bf16.msra.mxu0 %v5655
        %5671 = vmatprep.subr.bf16.mxu0 0
        %5672 = vmatpush1.bf16.msra.mxu0 0
        %5673 = vmatprep.subr.bf16.mxu0 0
        %5674 = vmatpush1.bf16.msra.mxu0 0
        %5675 = vmatprep.subr.bf16.mxu0 0
        %5676 = vmatpush1.bf16.msra.mxu0 0
        %5677 = vmatprep.subr.bf16.mxu0 0
        %5678 = vmatpush1.bf16.msra.mxu0 0
        %5679 = vmatprep.subr.bf16.mxu0 0
        %5680 = vmatpush1.bf16.msra.mxu0 0
        %5681 = vmatprep.subr.bf16.mxu0 0
        %5682 = vmatpush1.bf16.msra.mxu0 0
        %5683 = vmatprep.subr.bf16.mxu0 0
        %5684 = vmatpush1.bf16.msra.mxu0 0
        %5685 = vmatprep.subr.bf16.mxu0 0
        %5686 = vmatpush1.bf16.msra.mxu0 0
        %5687 = vmatprep.subr.bf16.mxu0 0
        %5688 = vmatpush1.bf16.msra.mxu0 0
        %5689 = vmatprep.subr.bf16.mxu0 0
        %5690 = vmatpush1.bf16.msra.mxu0 0
        %5691 = vmatprep.subr.bf16.mxu0 0
        %5692 = vmatpush1.bf16.msra.mxu0 0
        %5693 = vmatprep.subr.bf16.mxu0 0
        %5694 = vmatpush1.bf16.msra.mxu0 0
        %5695 = vmatprep.mubr.bf16.mxu0 0
        %5696 = vmatmul.mubr.bf16.gmra.mrb[0].mxu0 %v5661
        %v5697 = vpop.f32.mrb[0].mxu0
        %v5698 = vadd.f32 0.0, %v5697
        %v5699 = vpop.f32.mrb[0].mxu0
        %v5700 = vpop.f32.mrb[0].mxu0
        %v5701 = vpop.f32.mrb[0].mxu0
        %5702 = vdwg.mxu0
        %v5703 = vadd.f32 %v5625, %v5698
        %v5704 = vld [vmem:[#allocation5 + $0x17] sm:$0x1]
        %v5705 = vpack.c.bf16 %v5704, %v5704
        %v5706 = vld [vmem:[#allocation9 + $0x2e0] sm:$0xf]
        %v5707 = vld [vmem:[#allocation9 + $0x2e4] sm:$0xf]
        %v5708 = vld [vmem:[#allocation9 + $0x2e8] sm:$0xf]
        %v5709 = vld [vmem:[#allocation9 + $0x2ec] sm:$0xf]
        %v5710 = vld [vmem:[#allocation9 + $0x2f0] sm:$0xf]
        %v5711 = vld [vmem:[#allocation9 + $0x2f4] sm:$0xf]
        %v5712 = vld [vmem:[#allocation9 + $0x2f8] sm:$0xf]
        %v5713 = vld [vmem:[#allocation9 + $0x2fc] sm:$0xf]
        %v5722 = vunpack.c.l.b16 %v5706
        %v5723 = vunpack.c.l.b16 %v5707
        %v5724 = vunpack.c.l.b16 %v5708
        %v5725 = vunpack.c.l.b16 %v5709
        %v5726 = vunpack.c.l.b16 %v5710
        %v5727 = vunpack.c.l.b16 %v5711
        %v5728 = vunpack.c.l.b16 %v5712
        %v5729 = vunpack.c.l.b16 %v5713
        %v5730 = vpack.c.b16 %v5723, %v5722
        %v5731 = vpack.c.b16 %v5725, %v5724
        %v5732 = vpack.c.b16 %v5727, %v5726
        %v5733 = vpack.c.b16 %v5729, %v5728
        %v5739 = vsel %vm2566, %v5705, 0
        %5741 = vmatprep.subr.bf16.mxu0 0
        %5742 = vmatpush1.bf16.msra.mxu0 %v5730
        %5743 = vmatprep.subr.bf16.mxu0 0
        %5744 = vmatpush1.bf16.msra.mxu0 %v5731
        %5745 = vmatprep.subr.bf16.mxu0 0
        %5746 = vmatpush1.bf16.msra.mxu0 %v5732
        %5747 = vmatprep.subr.bf16.mxu0 0
        %5748 = vmatpush1.bf16.msra.mxu0 %v5733
        %5749 = vmatprep.subr.bf16.mxu0 0
        %5750 = vmatpush1.bf16.msra.mxu0 0
        %5751 = vmatprep.subr.bf16.mxu0 0
        %5752 = vmatpush1.bf16.msra.mxu0 0
        %5753 = vmatprep.subr.bf16.mxu0 0
        %5754 = vmatpush1.bf16.msra.mxu0 0
        %5755 = vmatprep.subr.bf16.mxu0 0
        %5756 = vmatpush1.bf16.msra.mxu0 0
        %5757 = vmatprep.subr.bf16.mxu0 0
        %5758 = vmatpush1.bf16.msra.mxu0 0
        %5759 = vmatprep.subr.bf16.mxu0 0
        %5760 = vmatpush1.bf16.msra.mxu0 0
        %5761 = vmatprep.subr.bf16.mxu0 0
        %5762 = vmatpush1.bf16.msra.mxu0 0
        %5763 = vmatprep.subr.bf16.mxu0 0
        %5764 = vmatpush1.bf16.msra.mxu0 0
        %5765 = vmatprep.subr.bf16.mxu0 0
        %5766 = vmatpush1.bf16.msra.mxu0 0
        %5767 = vmatprep.subr.bf16.mxu0 0
        %5768 = vmatpush1.bf16.msra.mxu0 0
        %5769 = vmatprep.subr.bf16.mxu0 0
        %5770 = vmatpush1.bf16.msra.mxu0 0
        %5771 = vmatprep.subr.bf16.mxu0 0
        %5772 = vmatpush1.bf16.msra.mxu0 0
        %5773 = vmatprep.mubr.bf16.mxu0 0
        %5774 = vmatmul.mubr.bf16.gmra.mrb[0].mxu0 %v5739
        %v5775 = vpop.f32.mrb[0].mxu0
        %v5776 = vadd.f32 0.0, %v5775
        %v5777 = vpop.f32.mrb[0].mxu0
        %v5778 = vpop.f32.mrb[0].mxu0
        %v5779 = vpop.f32.mrb[0].mxu0
        %5780 = vdwg.mxu0
        %v5781 = vadd.f32 %v5703, %v5776
        %v5782 = vld [vmem:[#allocation5 + $0x18] sm:$0x1]
        %v5783 = vpack.c.bf16 %v5782, %v5782
        %v5784 = vld [vmem:[#allocation9 + $0x300] sm:$0xf]
        %v5785 = vld [vmem:[#allocation9 + $0x304] sm:$0xf]
        %v5786 = vld [vmem:[#allocation9 + $0x308] sm:$0xf]
        %v5787 = vld [vmem:[#allocation9 + $0x30c] sm:$0xf]
        %v5788 = vld [vmem:[#allocation9 + $0x310] sm:$0xf]
        %v5789 = vld [vmem:[#allocation9 + $0x314] sm:$0xf]
        %v5790 = vld [vmem:[#allocation9 + $0x318] sm:$0xf]
        %v5791 = vld [vmem:[#allocation9 + $0x31c] sm:$0xf]
        %v5800 = vunpack.c.l.b16 %v5784
        %v5801 = vunpack.c.l.b16 %v5785
        %v5802 = vunpack.c.l.b16 %v5786
        %v5803 = vunpack.c.l.b16 %v5787
        %v5804 = vunpack.c.l.b16 %v5788
        %v5805 = vunpack.c.l.b16 %v5789
        %v5806 = vunpack.c.l.b16 %v5790
        %v5807 = vunpack.c.l.b16 %v5791
        %v5808 = vpack.c.b16 %v5801, %v5800
        %v5809 = vpack.c.b16 %v5803, %v5802
        %v5810 = vpack.c.b16 %v5805, %v5804
        %v5811 = vpack.c.b16 %v5807, %v5806
        %v5817 = vsel %vm2566, %v5783, 0
        %5819 = vmatprep.subr.bf16.mxu0 0
        %5820 = vmatpush1.bf16.msra.mxu0 %v5808
        %5821 = vmatprep.subr.bf16.mxu0 0
        %5822 = vmatpush1.bf16.msra.mxu0 %v5809
        %5823 = vmatprep.subr.bf16.mxu0 0
        %5824 = vmatpush1.bf16.msra.mxu0 %v5810
        %5825 = vmatprep.subr.bf16.mxu0 0
        %5826 = vmatpush1.bf16.msra.mxu0 %v5811
        %5827 = vmatprep.subr.bf16.mxu0 0
        %5828 = vmatpush1.bf16.msra.mxu0 0
        %5829 = vmatprep.subr.bf16.mxu0 0
        %5830 = vmatpush1.bf16.msra.mxu0 0
        %5831 = vmatprep.subr.bf16.mxu0 0
        %5832 = vmatpush1.bf16.msra.mxu0 0
        %5833 = vmatprep.subr.bf16.mxu0 0
        %5834 = vmatpush1.bf16.msra.mxu0 0
        %5835 = vmatprep.subr.bf16.mxu0 0
        %5836 = vmatpush1.bf16.msra.mxu0 0
        %5837 = vmatprep.subr.bf16.mxu0 0
        %5838 = vmatpush1.bf16.msra.mxu0 0
        %5839 = vmatprep.subr.bf16.mxu0 0
        %5840 = vmatpush1.bf16.msra.mxu0 0
        %5841 = vmatprep.subr.bf16.mxu0 0
        %5842 = vmatpush1.bf16.msra.mxu0 0
        %5843 = vmatprep.subr.bf16.mxu0 0
        %5844 = vmatpush1.bf16.msra.mxu0 0
        %5845 = vmatprep.subr.bf16.mxu0 0
        %5846 = vmatpush1.bf16.msra.mxu0 0
        %5847 = vmatprep.subr.bf16.mxu0 0
        %5848 = vmatpush1.bf16.msra.mxu0 0
        %5849 = vmatprep.subr.bf16.mxu0 0
        %5850 = vmatpush1.bf16.msra.mxu0 0
        %5851 = vmatprep.mubr.bf16.mxu0 0
        %5852 = vmatmul.mubr.bf16.gmra.mrb[0].mxu0 %v5817
        %v5853 = vpop.f32.mrb[0].mxu0
        %v5854 = vadd.f32 0.0, %v5853
        %v5855 = vpop.f32.mrb[0].mxu0
        %v5856 = vpop.f32.mrb[0].mxu0
        %v5857 = vpop.f32.mrb[0].mxu0
        %5858 = vdwg.mxu0
        %v5859 = vadd.f32 %v5781, %v5854
        %v5860 = vld [vmem:[#allocation5 + $0x19] sm:$0x1]
        %v5861 = vpack.c.bf16 %v5860, %v5860
        %v5862 = vld [vmem:[#allocation9 + $0x320] sm:$0xf]
        %v5863 = vld [vmem:[#allocation9 + $0x324] sm:$0xf]
        %v5864 = vld [vmem:[#allocation9 + $0x328] sm:$0xf]
        %v5865 = vld [vmem:[#allocation9 + $0x32c] sm:$0xf]
        %v5866 = vld [vmem:[#allocation9 + $0x330] sm:$0xf]
        %v5867 = vld [vmem:[#allocation9 + $0x334] sm:$0xf]
        %v5868 = vld [vmem:[#allocation9 + $0x338] sm:$0xf]
        %v5869 = vld [vmem:[#allocation9 + $0x33c] sm:$0xf]
        %v5878 = vunpack.c.l.b16 %v5862
        %v5879 = vunpack.c.l.b16 %v5863
        %v5880 = vunpack.c.l.b16 %v5864
        %v5881 = vunpack.c.l.b16 %v5865
        %v5882 = vunpack.c.l.b16 %v5866
        %v5883 = vunpack.c.l.b16 %v5867
        %v5884 = vunpack.c.l.b16 %v5868
        %v5885 = vunpack.c.l.b16 %v5869
        %v5886 = vpack.c.b16 %v5879, %v5878
        %v5887 = vpack.c.b16 %v5881, %v5880
        %v5888 = vpack.c.b16 %v5883, %v5882
        %v5889 = vpack.c.b16 %v5885, %v5884
        %v5895 = vsel %vm2566, %v5861, 0
        %5897 = vmatprep.subr.bf16.mxu0 0
        %5898 = vmatpush1.bf16.msra.mxu0 %v5886
        %5899 = vmatprep.subr.bf16.mxu0 0
        %5900 = vmatpush1.bf16.msra.mxu0 %v5887
        %5901 = vmatprep.subr.bf16.mxu0 0
        %5902 = vmatpush1.bf16.msra.mxu0 %v5888
        %5903 = vmatprep.subr.bf16.mxu0 0
        %5904 = vmatpush1.bf16.msra.mxu0 %v5889
        %5905 = vmatprep.subr.bf16.mxu0 0
        %5906 = vmatpush1.bf16.msra.mxu0 0
        %5907 = vmatprep.subr.bf16.mxu0 0
        %5908 = vmatpush1.bf16.msra.mxu0 0
        %5909 = vmatprep.subr.bf16.mxu0 0
        %5910 = vmatpush1.bf16.msra.mxu0 0
        %5911 = vmatprep.subr.bf16.mxu0 0
        %5912 = vmatpush1.bf16.msra.mxu0 0
        %5913 = vmatprep.subr.bf16.mxu0 0
        %5914 = vmatpush1.bf16.msra.mxu0 0
        %5915 = vmatprep.subr.bf16.mxu0 0
        %5916 = vmatpush1.bf16.msra.mxu0 0
        %5917 = vmatprep.subr.bf16.mxu0 0
        %5918 = vmatpush1.bf16.msra.mxu0 0
        %5919 = vmatprep.subr.bf16.mxu0 0
        %5920 = vmatpush1.bf16.msra.mxu0 0
        %5921 = vmatprep.subr.bf16.mxu0 0
        %5922 = vmatpush1.bf16.msra.mxu0 0
        %5923 = vmatprep.subr.bf16.mxu0 0
        %5924 = vmatpush1.bf16.msra.mxu0 0
        %5925 = vmatprep.subr.bf16.mxu0 0
        %5926 = vmatpush1.bf16.msra.mxu0 0
        %5927 = vmatprep.subr.bf16.mxu0 0
        %5928 = vmatpush1.bf16.msra.mxu0 0
        %5929 = vmatprep.mubr.bf16.mxu0 0
        %5930 = vmatmul.mubr.bf16.gmra.mrb[0].mxu0 %v5895
        %v5931 = vpop.f32.mrb[0].mxu0
        %v5932 = vadd.f32 0.0, %v5931
        %v5933 = vpop.f32.mrb[0].mxu0
        %v5934 = vpop.f32.mrb[0].mxu0
        %v5935 = vpop.f32.mrb[0].mxu0
        %5936 = vdwg.mxu0
        %v5937 = vadd.f32 %v5859, %v5932
        %v5938 = vld [vmem:[#allocation5 + $0x1a] sm:$0x1]
        %v5939 = vpack.c.bf16 %v5938, %v5938
        %v5940 = vld [vmem:[#allocation9 + $0x340] sm:$0xf]
        %v5941 = vld [vmem:[#allocation9 + $0x344] sm:$0xf]
        %v5942 = vld [vmem:[#allocation9 + $0x348] sm:$0xf]
        %v5943 = vld [vmem:[#allocation9 + $0x34c] sm:$0xf]
        %v5944 = vld [vmem:[#allocation9 + $0x350] sm:$0xf]
        %v5945 = vld [vmem:[#allocation9 + $0x354] sm:$0xf]
        %v5946 = vld [vmem:[#allocation9 + $0x358] sm:$0xf]
        %v5947 = vld [vmem:[#allocation9 + $0x35c] sm:$0xf]
        %v5956 = vunpack.c.l.b16 %v5940
        %v5957 = vunpack.c.l.b16 %v5941
        %v5958 = vunpack.c.l.b16 %v5942
        %v5959 = vunpack.c.l.b16 %v5943
        %v5960 = vunpack.c.l.b16 %v5944
        %v5961 = vunpack.c.l.b16 %v5945
        %v5962 = vunpack.c.l.b16 %v5946
        %v5963 = vunpack.c.l.b16 %v5947
        %v5964 = vpack.c.b16 %v5957, %v5956
        %v5965 = vpack.c.b16 %v5959, %v5958
        %v5966 = vpack.c.b16 %v5961, %v5960
        %v5967 = vpack.c.b16 %v5963, %v5962
        %v5973 = vsel %vm2566, %v5939, 0
        %5975 = vmatprep.subr.bf16.mxu0 0
        %5976 = vmatpush1.bf16.msra.mxu0 %v5964
        %5977 = vmatprep.subr.bf16.mxu0 0
        %5978 = vmatpush1.bf16.msra.mxu0 %v5965
        %5979 = vmatprep.subr.bf16.mxu0 0
        %5980 = vmatpush1.bf16.msra.mxu0 %v5966
        %5981 = vmatprep.subr.bf16.mxu0 0
        %5982 = vmatpush1.bf16.msra.mxu0 %v5967
        %5983 = vmatprep.subr.bf16.mxu0 0
        %5984 = vmatpush1.bf16.msra.mxu0 0
        %5985 = vmatprep.subr.bf16.mxu0 0
        %5986 = vmatpush1.bf16.msra.mxu0 0
        %5987 = vmatprep.subr.bf16.mxu0 0
        %5988 = vmatpush1.bf16.msra.mxu0 0
        %5989 = vmatprep.subr.bf16.mxu0 0
        %5990 = vmatpush1.bf16.msra.mxu0 0
        %5991 = vmatprep.subr.bf16.mxu0 0
        %5992 = vmatpush1.bf16.msra.mxu0 0
        %5993 = vmatprep.subr.bf16.mxu0 0
        %5994 = vmatpush1.bf16.msra.mxu0 0
        %5995 = vmatprep.subr.bf16.mxu0 0
        %5996 = vmatpush1.bf16.msra.mxu0 0
        %5997 = vmatprep.subr.bf16.mxu0 0
        %5998 = vmatpush1.bf16.msra.mxu0 0
        %5999 = vmatprep.subr.bf16.mxu0 0
        %6000 = vmatpush1.bf16.msra.mxu0 0
        %6001 = vmatprep.subr.bf16.mxu0 0
        %6002 = vmatpush1.bf16.msra.mxu0 0
        %6003 = vmatprep.subr.bf16.mxu0 0
        %6004 = vmatpush1.bf16.msra.mxu0 0
        %6005 = vmatprep.subr.bf16.mxu0 0
        %6006 = vmatpush1.bf16.msra.mxu0 0
        %6007 = vmatprep.mubr.bf16.mxu0 0
        %6008 = vmatmul.mubr.bf16.gmra.mrb[0].mxu0 %v5973
        %v6009 = vpop.f32.mrb[0].mxu0
        %v6010 = vadd.f32 0.0, %v6009
        %v6011 = vpop.f32.mrb[0].mxu0
        %v6012 = vpop.f32.mrb[0].mxu0
        %v6013 = vpop.f32.mrb[0].mxu0
        %6014 = vdwg.mxu0
        %v6015 = vadd.f32 %v5937, %v6010
        %v6016 = vld [vmem:[#allocation5 + $0x1b] sm:$0x1]
        %v6017 = vpack.c.bf16 %v6016, %v6016
        %v6018 = vld [vmem:[#allocation9 + $0x360] sm:$0xf]
        %v6019 = vld [vmem:[#allocation9 + $0x364] sm:$0xf]
        %v6020 = vld [vmem:[#allocation9 + $0x368] sm:$0xf]
        %v6021 = vld [vmem:[#allocation9 + $0x36c] sm:$0xf]
        %v6022 = vld [vmem:[#allocation9 + $0x370] sm:$0xf]
        %v6023 = vld [vmem:[#allocation9 + $0x374] sm:$0xf]
        %v6024 = vld [vmem:[#allocation9 + $0x378] sm:$0xf]
        %v6025 = vld [vmem:[#allocation9 + $0x37c] sm:$0xf]
        %v6034 = vunpack.c.l.b16 %v6018
        %v6035 = vunpack.c.l.b16 %v6019
        %v6036 = vunpack.c.l.b16 %v6020
        %v6037 = vunpack.c.l.b16 %v6021
        %v6038 = vunpack.c.l.b16 %v6022
        %v6039 = vunpack.c.l.b16 %v6023
        %v6040 = vunpack.c.l.b16 %v6024
        %v6041 = vunpack.c.l.b16 %v6025
        %v6042 = vpack.c.b16 %v6035, %v6034
        %v6043 = vpack.c.b16 %v6037, %v6036
        %v6044 = vpack.c.b16 %v6039, %v6038
        %v6045 = vpack.c.b16 %v6041, %v6040
        %v6051 = vsel %vm2566, %v6017, 0
        %6053 = vmatprep.subr.bf16.mxu0 0
        %6054 = vmatpush1.bf16.msra.mxu0 %v6042
        %6055 = vmatprep.subr.bf16.mxu0 0
        %6056 = vmatpush1.bf16.msra.mxu0 %v6043
        %6057 = vmatprep.subr.bf16.mxu0 0
        %6058 = vmatpush1.bf16.msra.mxu0 %v6044
        %6059 = vmatprep.subr.bf16.mxu0 0
        %6060 = vmatpush1.bf16.msra.mxu0 %v6045
        %6061 = vmatprep.subr.bf16.mxu0 0
        %6062 = vmatpush1.bf16.msra.mxu0 0
        %6063 = vmatprep.subr.bf16.mxu0 0
        %6064 = vmatpush1.bf16.msra.mxu0 0
        %6065 = vmatprep.subr.bf16.mxu0 0
        %6066 = vmatpush1.bf16.msra.mxu0 0
        %6067 = vmatprep.subr.bf16.mxu0 0
        %6068 = vmatpush1.bf16.msra.mxu0 0
        %6069 = vmatprep.subr.bf16.mxu0 0
        %6070 = vmatpush1.bf16.msra.mxu0 0
        %6071 = vmatprep.subr.bf16.mxu0 0
        %6072 = vmatpush1.bf16.msra.mxu0 0
        %6073 = vmatprep.subr.bf16.mxu0 0
        %6074 = vmatpush1.bf16.msra.mxu0 0
        %6075 = vmatprep.subr.bf16.mxu0 0
        %6076 = vmatpush1.bf16.msra.mxu0 0
        %6077 = vmatprep.subr.bf16.mxu0 0
        %6078 = vmatpush1.bf16.msra.mxu0 0
        %6079 = vmatprep.subr.bf16.mxu0 0
        %6080 = vmatpush1.bf16.msra.mxu0 0
        %6081 = vmatprep.subr.bf16.mxu0 0
        %6082 = vmatpush1.bf16.msra.mxu0 0
        %6083 = vmatprep.subr.bf16.mxu0 0
        %6084 = vmatpush1.bf16.msra.mxu0 0
        %6085 = vmatprep.mubr.bf16.mxu0 0
        %6086 = vmatmul.mubr.bf16.gmra.mrb[0].mxu0 %v6051
        %v6087 = vpop.f32.mrb[0].mxu0
        %v6088 = vadd.f32 0.0, %v6087
        %v6089 = vpop.f32.mrb[0].mxu0
        %v6090 = vpop.f32.mrb[0].mxu0
        %v6091 = vpop.f32.mrb[0].mxu0
        %6092 = vdwg.mxu0
        %v6093 = vadd.f32 %v6015, %v6088
        %v6094 = vld [vmem:[#allocation5 + $0x1c] sm:$0x1]
        %v6095 = vpack.c.bf16 %v6094, %v6094
        %v6096 = vld [vmem:[#allocation9 + $0x380] sm:$0xf]
        %v6097 = vld [vmem:[#allocation9 + $0x384] sm:$0xf]
        %v6098 = vld [vmem:[#allocation9 + $0x388] sm:$0xf]
        %v6099 = vld [vmem:[#allocation9 + $0x38c] sm:$0xf]
        %v6100 = vld [vmem:[#allocation9 + $0x390] sm:$0xf]
        %v6101 = vld [vmem:[#allocation9 + $0x394] sm:$0xf]
        %v6102 = vld [vmem:[#allocation9 + $0x398] sm:$0xf]
        %v6103 = vld [vmem:[#allocation9 + $0x39c] sm:$0xf]
        %v6112 = vunpack.c.l.b16 %v6096
        %v6113 = vunpack.c.l.b16 %v6097
        %v6114 = vunpack.c.l.b16 %v6098
        %v6115 = vunpack.c.l.b16 %v6099
        %v6116 = vunpack.c.l.b16 %v6100
        %v6117 = vunpack.c.l.b16 %v6101
        %v6118 = vunpack.c.l.b16 %v6102
        %v6119 = vunpack.c.l.b16 %v6103
        %v6120 = vpack.c.b16 %v6113, %v6112
        %v6121 = vpack.c.b16 %v6115, %v6114
        %v6122 = vpack.c.b16 %v6117, %v6116
        %v6123 = vpack.c.b16 %v6119, %v6118
        %v6129 = vsel %vm2566, %v6095, 0
        %6131 = vmatprep.subr.bf16.mxu0 0
        %6132 = vmatpush1.bf16.msra.mxu0 %v6120
        %6133 = vmatprep.subr.bf16.mxu0 0
        %6134 = vmatpush1.bf16.msra.mxu0 %v6121
        %6135 = vmatprep.subr.bf16.mxu0 0
        %6136 = vmatpush1.bf16.msra.mxu0 %v6122
        %6137 = vmatprep.subr.bf16.mxu0 0
        %6138 = vmatpush1.bf16.msra.mxu0 %v6123
        %6139 = vmatprep.subr.bf16.mxu0 0
        %6140 = vmatpush1.bf16.msra.mxu0 0
        %6141 = vmatprep.subr.bf16.mxu0 0
        %6142 = vmatpush1.bf16.msra.mxu0 0
        %6143 = vmatprep.subr.bf16.mxu0 0
        %6144 = vmatpush1.bf16.msra.mxu0 0
        %6145 = vmatprep.subr.bf16.mxu0 0
        %6146 = vmatpush1.bf16.msra.mxu0 0
        %6147 = vmatprep.subr.bf16.mxu0 0
        %6148 = vmatpush1.bf16.msra.mxu0 0
        %6149 = vmatprep.subr.bf16.mxu0 0
        %6150 = vmatpush1.bf16.msra.mxu0 0
        %6151 = vmatprep.subr.bf16.mxu0 0
        %6152 = vmatpush1.bf16.msra.mxu0 0
        %6153 = vmatprep.subr.bf16.mxu0 0
        %6154 = vmatpush1.bf16.msra.mxu0 0
        %6155 = vmatprep.subr.bf16.mxu0 0
        %6156 = vmatpush1.bf16.msra.mxu0 0
        %6157 = vmatprep.subr.bf16.mxu0 0
        %6158 = vmatpush1.bf16.msra.mxu0 0
        %6159 = vmatprep.subr.bf16.mxu0 0
        %6160 = vmatpush1.bf16.msra.mxu0 0
        %6161 = vmatprep.subr.bf16.mxu0 0
        %6162 = vmatpush1.bf16.msra.mxu0 0
        %6163 = vmatprep.mubr.bf16.mxu0 0
        %6164 = vmatmul.mubr.bf16.gmra.mrb[0].mxu0 %v6129
        %v6165 = vpop.f32.mrb[0].mxu0
        %v6166 = vadd.f32 0.0, %v6165
        %v6167 = vpop.f32.mrb[0].mxu0
        %v6168 = vpop.f32.mrb[0].mxu0
        %v6169 = vpop.f32.mrb[0].mxu0
        %6170 = vdwg.mxu0
        %v6171 = vadd.f32 %v6093, %v6166
        %v6172 = vld [vmem:[#allocation5 + $0x1d] sm:$0x1]
        %v6173 = vpack.c.bf16 %v6172, %v6172
        %v6174 = vld [vmem:[#allocation9 + $0x3a0] sm:$0xf]
        %v6175 = vld [vmem:[#allocation9 + $0x3a4] sm:$0xf]
        %v6176 = vld [vmem:[#allocation9 + $0x3a8] sm:$0xf]
        %v6177 = vld [vmem:[#allocation9 + $0x3ac] sm:$0xf]
        %v6178 = vld [vmem:[#allocation9 + $0x3b0] sm:$0xf]
        %v6179 = vld [vmem:[#allocation9 + $0x3b4] sm:$0xf]
        %v6180 = vld [vmem:[#allocation9 + $0x3b8] sm:$0xf]
        %v6181 = vld [vmem:[#allocation9 + $0x3bc] sm:$0xf]
        %v6190 = vunpack.c.l.b16 %v6174
        %v6191 = vunpack.c.l.b16 %v6175
        %v6192 = vunpack.c.l.b16 %v6176
        %v6193 = vunpack.c.l.b16 %v6177
        %v6194 = vunpack.c.l.b16 %v6178
        %v6195 = vunpack.c.l.b16 %v6179
        %v6196 = vunpack.c.l.b16 %v6180
        %v6197 = vunpack.c.l.b16 %v6181
        %v6198 = vpack.c.b16 %v6191, %v6190
        %v6199 = vpack.c.b16 %v6193, %v6192
        %v6200 = vpack.c.b16 %v6195, %v6194
        %v6201 = vpack.c.b16 %v6197, %v6196
        %v6207 = vsel %vm2566, %v6173, 0
        %6209 = vmatprep.subr.bf16.mxu0 0
        %6210 = vmatpush1.bf16.msra.mxu0 %v6198
        %6211 = vmatprep.subr.bf16.mxu0 0
        %6212 = vmatpush1.bf16.msra.mxu0 %v6199
        %6213 = vmatprep.subr.bf16.mxu0 0
        %6214 = vmatpush1.bf16.msra.mxu0 %v6200
        %6215 = vmatprep.subr.bf16.mxu0 0
        %6216 = vmatpush1.bf16.msra.mxu0 %v6201
        %6217 = vmatprep.subr.bf16.mxu0 0
        %6218 = vmatpush1.bf16.msra.mxu0 0
        %6219 = vmatprep.subr.bf16.mxu0 0
        %6220 = vmatpush1.bf16.msra.mxu0 0
        %6221 = vmatprep.subr.bf16.mxu0 0
        %6222 = vmatpush1.bf16.msra.mxu0 0
        %6223 = vmatprep.subr.bf16.mxu0 0
        %6224 = vmatpush1.bf16.msra.mxu0 0
        %6225 = vmatprep.subr.bf16.mxu0 0
        %6226 = vmatpush1.bf16.msra.mxu0 0
        %6227 = vmatprep.subr.bf16.mxu0 0
        %6228 = vmatpush1.bf16.msra.mxu0 0
        %6229 = vmatprep.subr.bf16.mxu0 0
        %6230 = vmatpush1.bf16.msra.mxu0 0
        %6231 = vmatprep.subr.bf16.mxu0 0
        %6232 = vmatpush1.bf16.msra.mxu0 0
        %6233 = vmatprep.subr.bf16.mxu0 0
        %6234 = vmatpush1.bf16.msra.mxu0 0
        %6235 = vmatprep.subr.bf16.mxu0 0
        %6236 = vmatpush1.bf16.msra.mxu0 0
        %6237 = vmatprep.subr.bf16.mxu0 0
        %6238 = vmatpush1.bf16.msra.mxu0 0
        %6239 = vmatprep.subr.bf16.mxu0 0
        %6240 = vmatpush1.bf16.msra.mxu0 0
        %6241 = vmatprep.mubr.bf16.mxu0 0
        %6242 = vmatmul.mubr.bf16.gmra.mrb[0].mxu0 %v6207
        %v6243 = vpop.f32.mrb[0].mxu0
        %v6244 = vadd.f32 0.0, %v6243
        %v6245 = vpop.f32.mrb[0].mxu0
        %v6246 = vpop.f32.mrb[0].mxu0
        %v6247 = vpop.f32.mrb[0].mxu0
        %6248 = vdwg.mxu0
        %v6249 = vadd.f32 %v6171, %v6244
        %v6250 = vld [vmem:[#allocation5 + $0x1e] sm:$0x1]
        %v6251 = vpack.c.bf16 %v6250, %v6250
        %v6252 = vld [vmem:[#allocation9 + $0x3c0] sm:$0xf]
        %v6253 = vld [vmem:[#allocation9 + $0x3c4] sm:$0xf]
        %v6254 = vld [vmem:[#allocation9 + $0x3c8] sm:$0xf]
        %v6255 = vld [vmem:[#allocation9 + $0x3cc] sm:$0xf]
        %v6256 = vld [vmem:[#allocation9 + $0x3d0] sm:$0xf]
        %v6257 = vld [vmem:[#allocation9 + $0x3d4] sm:$0xf]
        %v6258 = vld [vmem:[#allocation9 + $0x3d8] sm:$0xf]
        %v6259 = vld [vmem:[#allocation9 + $0x3dc] sm:$0xf]
        %v6268 = vunpack.c.l.b16 %v6252
        %v6269 = vunpack.c.l.b16 %v6253
        %v6270 = vunpack.c.l.b16 %v6254
        %v6271 = vunpack.c.l.b16 %v6255
        %v6272 = vunpack.c.l.b16 %v6256
        %v6273 = vunpack.c.l.b16 %v6257
        %v6274 = vunpack.c.l.b16 %v6258
        %v6275 = vunpack.c.l.b16 %v6259
        %v6276 = vpack.c.b16 %v6269, %v6268
        %v6277 = vpack.c.b16 %v6271, %v6270
        %v6278 = vpack.c.b16 %v6273, %v6272
        %v6279 = vpack.c.b16 %v6275, %v6274
        %v6285 = vsel %vm2566, %v6251, 0
        %6287 = vmatprep.subr.bf16.mxu0 0
        %6288 = vmatpush1.bf16.msra.mxu0 %v6276
        %6289 = vmatprep.subr.bf16.mxu0 0
        %6290 = vmatpush1.bf16.msra.mxu0 %v6277
        %6291 = vmatprep.subr.bf16.mxu0 0
        %6292 = vmatpush1.bf16.msra.mxu0 %v6278
        %6293 = vmatprep.subr.bf16.mxu0 0
        %6294 = vmatpush1.bf16.msra.mxu0 %v6279
        %6295 = vmatprep.subr.bf16.mxu0 0
        %6296 = vmatpush1.bf16.msra.mxu0 0
        %6297 = vmatprep.subr.bf16.mxu0 0
        %6298 = vmatpush1.bf16.msra.mxu0 0
        %6299 = vmatprep.subr.bf16.mxu0 0
        %6300 = vmatpush1.bf16.msra.mxu0 0
        %6301 = vmatprep.subr.bf16.mxu0 0
        %6302 = vmatpush1.bf16.msra.mxu0 0
        %6303 = vmatprep.subr.bf16.mxu0 0
        %6304 = vmatpush1.bf16.msra.mxu0 0
        %6305 = vmatprep.subr.bf16.mxu0 0
        %6306 = vmatpush1.bf16.msra.mxu0 0
        %6307 = vmatprep.subr.bf16.mxu0 0
        %6308 = vmatpush1.bf16.msra.mxu0 0
        %6309 = vmatprep.subr.bf16.mxu0 0
        %6310 = vmatpush1.bf16.msra.mxu0 0
        %6311 = vmatprep.subr.bf16.mxu0 0
        %6312 = vmatpush1.bf16.msra.mxu0 0
        %6313 = vmatprep.subr.bf16.mxu0 0
        %6314 = vmatpush1.bf16.msra.mxu0 0
        %6315 = vmatprep.subr.bf16.mxu0 0
        %6316 = vmatpush1.bf16.msra.mxu0 0
        %6317 = vmatprep.subr.bf16.mxu0 0
        %6318 = vmatpush1.bf16.msra.mxu0 0
        %6319 = vmatprep.mubr.bf16.mxu0 0
        %6320 = vmatmul.mubr.bf16.gmra.mrb[0].mxu0 %v6285
        %v6321 = vpop.f32.mrb[0].mxu0
        %v6322 = vadd.f32 0.0, %v6321
        %v6323 = vpop.f32.mrb[0].mxu0
        %v6324 = vpop.f32.mrb[0].mxu0
        %v6325 = vpop.f32.mrb[0].mxu0
        %6326 = vdwg.mxu0
        %v6327 = vadd.f32 %v6249, %v6322
        %v6328 = vld [vmem:[#allocation5 + $0x1f] sm:$0x1]
        %v6329 = vpack.c.bf16 %v6328, %v6328
        %v6330 = vld [vmem:[#allocation9 + $0x3e0] sm:$0xf]
        %v6331 = vld [vmem:[#allocation9 + $0x3e4] sm:$0xf]
        %v6332 = vld [vmem:[#allocation9 + $0x3e8] sm:$0xf]
        %v6333 = vld [vmem:[#allocation9 + $0x3ec] sm:$0xf]
        %v6334 = vld [vmem:[#allocation9 + $0x3f0] sm:$0xf]
        %v6335 = vld [vmem:[#allocation9 + $0x3f4] sm:$0xf]
        %v6336 = vld [vmem:[#allocation9 + $0x3f8] sm:$0xf]
        %v6337 = vld [vmem:[#allocation9 + $0x3fc] sm:$0xf]
        %v6346 = vunpack.c.l.b16 %v6330
        %v6347 = vunpack.c.l.b16 %v6331
        %v6348 = vunpack.c.l.b16 %v6332
        %v6349 = vunpack.c.l.b16 %v6333
        %v6350 = vunpack.c.l.b16 %v6334
        %v6351 = vunpack.c.l.b16 %v6335
        %v6352 = vunpack.c.l.b16 %v6336
        %v6353 = vunpack.c.l.b16 %v6337
        %v6354 = vpack.c.b16 %v6347, %v6346
        %v6355 = vpack.c.b16 %v6349, %v6348
        %v6356 = vpack.c.b16 %v6351, %v6350
        %v6357 = vpack.c.b16 %v6353, %v6352
        %v6363 = vsel %vm2566, %v6329, 0
        %6365 = vmatprep.subr.bf16.mxu0 0
        %6366 = vmatpush1.bf16.msra.mxu0 %v6354
        %6367 = vmatprep.subr.bf16.mxu0 0
        %6368 = vmatpush1.bf16.msra.mxu0 %v6355
        %6369 = vmatprep.subr.bf16.mxu0 0
        %6370 = vmatpush1.bf16.msra.mxu0 %v6356
        %6371 = vmatprep.subr.bf16.mxu0 0
        %6372 = vmatpush1.bf16.msra.mxu0 %v6357
        %6373 = vmatprep.subr.bf16.mxu0 0
        %6374 = vmatpush1.bf16.msra.mxu0 0
        %6375 = vmatprep.subr.bf16.mxu0 0
        %6376 = vmatpush1.bf16.msra.mxu0 0
        %6377 = vmatprep.subr.bf16.mxu0 0
        %6378 = vmatpush1.bf16.msra.mxu0 0
        %6379 = vmatprep.subr.bf16.mxu0 0
        %6380 = vmatpush1.bf16.msra.mxu0 0
        %6381 = vmatprep.subr.bf16.mxu0 0
        %6382 = vmatpush1.bf16.msra.mxu0 0
        %6383 = vmatprep.subr.bf16.mxu0 0
        %6384 = vmatpush1.bf16.msra.mxu0 0
        %6385 = vmatprep.subr.bf16.mxu0 0
        %6386 = vmatpush1.bf16.msra.mxu0 0
        %6387 = vmatprep.subr.bf16.mxu0 0
        %6388 = vmatpush1.bf16.msra.mxu0 0
        %6389 = vmatprep.subr.bf16.mxu0 0
        %6390 = vmatpush1.bf16.msra.mxu0 0
        %6391 = vmatprep.subr.bf16.mxu0 0
        %6392 = vmatpush1.bf16.msra.mxu0 0
        %6393 = vmatprep.subr.bf16.mxu0 0
        %6394 = vmatpush1.bf16.msra.mxu0 0
        %6395 = vmatprep.subr.bf16.mxu0 0
        %6396 = vmatpush1.bf16.msra.mxu0 0
        %6397 = vmatprep.mubr.bf16.mxu0 0
        %6398 = vmatmul.mubr.bf16.gmra.mrb[0].mxu0 %v6363
        %v6399 = vpop.f32.mrb[0].mxu0
        %v6400 = vadd.f32 0.0, %v6399
        %v6401 = vpop.f32.mrb[0].mxu0
        %v6402 = vpop.f32.mrb[0].mxu0
        %v6403 = vpop.f32.mrb[0].mxu0
        %6404 = vdwg.mxu0
        %v6405 = vadd.f32 %v6327, %v6400
        %v6406 = vld [vmem:[#allocation5 + $0x20] sm:$0x1]
        %v6407 = vpack.c.bf16 %v6406, %v6406
        %v6408 = vld [vmem:[#allocation9 + $0x400] sm:$0xf]
        %v6409 = vld [vmem:[#allocation9 + $0x404] sm:$0xf]
        %v6410 = vld [vmem:[#allocation9 + $0x408] sm:$0xf]
        %v6411 = vld [vmem:[#allocation9 + $0x40c] sm:$0xf]
        %v6412 = vld [vmem:[#allocation9 + $0x410] sm:$0xf]
        %v6413 = vld [vmem:[#allocation9 + $0x414] sm:$0xf]
        %v6414 = vld [vmem:[#allocation9 + $0x418] sm:$0xf]
        %v6415 = vld [vmem:[#allocation9 + $0x41c] sm:$0xf]
        %v6424 = vunpack.c.l.b16 %v6408
        %v6425 = vunpack.c.l.b16 %v6409
        %v6426 = vunpack.c.l.b16 %v6410
        %v6427 = vunpack.c.l.b16 %v6411
        %v6428 = vunpack.c.l.b16 %v6412
        %v6429 = vunpack.c.l.b16 %v6413
        %v6430 = vunpack.c.l.b16 %v6414
        %v6431 = vunpack.c.l.b16 %v6415
        %v6432 = vpack.c.b16 %v6425, %v6424
        %v6433 = vpack.c.b16 %v6427, %v6426
        %v6434 = vpack.c.b16 %v6429, %v6428
        %v6435 = vpack.c.b16 %v6431, %v6430
        %v6441 = vsel %vm2566, %v6407, 0
        %6443 = vmatprep.subr.bf16.mxu0 0
        %6444 = vmatpush1.bf16.msra.mxu0 %v6432
        %6445 = vmatprep.subr.bf16.mxu0 0
        %6446 = vmatpush1.bf16.msra.mxu0 %v6433
        %6447 = vmatprep.subr.bf16.mxu0 0
        %6448 = vmatpush1.bf16.msra.mxu0 %v6434
        %6449 = vmatprep.subr.bf16.mxu0 0
        %6450 = vmatpush1.bf16.msra.mxu0 %v6435
        %6451 = vmatprep.subr.bf16.mxu0 0
        %6452 = vmatpush1.bf16.msra.mxu0 0
        %6453 = vmatprep.subr.bf16.mxu0 0
        %6454 = vmatpush1.bf16.msra.mxu0 0
        %6455 = vmatprep.subr.bf16.mxu0 0
        %6456 = vmatpush1.bf16.msra.mxu0 0
        %6457 = vmatprep.subr.bf16.mxu0 0
        %6458 = vmatpush1.bf16.msra.mxu0 0
        %6459 = vmatprep.subr.bf16.mxu0 0
        %6460 = vmatpush1.bf16.msra.mxu0 0
        %6461 = vmatprep.subr.bf16.mxu0 0
        %6462 = vmatpush1.bf16.msra.mxu0 0
        %6463 = vmatprep.subr.bf16.mxu0 0
        %6464 = vmatpush1.bf16.msra.mxu0 0
        %6465 = vmatprep.subr.bf16.mxu0 0
        %6466 = vmatpush1.bf16.msra.mxu0 0
        %6467 = vmatprep.subr.bf16.mxu0 0
        %6468 = vmatpush1.bf16.msra.mxu0 0
        %6469 = vmatprep.subr.bf16.mxu0 0
        %6470 = vmatpush1.bf16.msra.mxu0 0
        %6471 = vmatprep.subr.bf16.mxu0 0
        %6472 = vmatpush1.bf16.msra.mxu0 0
        %6473 = vmatprep.subr.bf16.mxu0 0
        %6474 = vmatpush1.bf16.msra.mxu0 0
        %6475 = vmatprep.mubr.bf16.mxu0 0
        %6476 = vmatmul.mubr.bf16.gmra.mrb[0].mxu0 %v6441
        %v6477 = vpop.f32.mrb[0].mxu0
        %v6478 = vadd.f32 0.0, %v6477
        %v6479 = vpop.f32.mrb[0].mxu0
        %v6480 = vpop.f32.mrb[0].mxu0
        %v6481 = vpop.f32.mrb[0].mxu0
        %6482 = vdwg.mxu0
        %v6483 = vadd.f32 %v6405, %v6478
        %v6484 = vld [vmem:[#allocation5 + $0x21] sm:$0x1]
        %v6485 = vpack.c.bf16 %v6484, %v6484
        %v6486 = vld [vmem:[#allocation9 + $0x420] sm:$0xf]
        %v6487 = vld [vmem:[#allocation9 + $0x424] sm:$0xf]
        %v6488 = vld [vmem:[#allocation9 + $0x428] sm:$0xf]
        %v6489 = vld [vmem:[#allocation9 + $0x42c] sm:$0xf]
        %v6490 = vld [vmem:[#allocation9 + $0x430] sm:$0xf]
        %v6491 = vld [vmem:[#allocation9 + $0x434] sm:$0xf]
        %v6492 = vld [vmem:[#allocation9 + $0x438] sm:$0xf]
        %v6493 = vld [vmem:[#allocation9 + $0x43c] sm:$0xf]
        %v6502 = vunpack.c.l.b16 %v6486
        %v6503 = vunpack.c.l.b16 %v6487
        %v6504 = vunpack.c.l.b16 %v6488
        %v6505 = vunpack.c.l.b16 %v6489
        %v6506 = vunpack.c.l.b16 %v6490
        %v6507 = vunpack.c.l.b16 %v6491
        %v6508 = vunpack.c.l.b16 %v6492
        %v6509 = vunpack.c.l.b16 %v6493
        %v6510 = vpack.c.b16 %v6503, %v6502
        %v6511 = vpack.c.b16 %v6505, %v6504
        %v6512 = vpack.c.b16 %v6507, %v6506
        %v6513 = vpack.c.b16 %v6509, %v6508
        %v6519 = vsel %vm2566, %v6485, 0
        %6521 = vmatprep.subr.bf16.mxu0 0
        %6522 = vmatpush1.bf16.msra.mxu0 %v6510
        %6523 = vmatprep.subr.bf16.mxu0 0
        %6524 = vmatpush1.bf16.msra.mxu0 %v6511
        %6525 = vmatprep.subr.bf16.mxu0 0
        %6526 = vmatpush1.bf16.msra.mxu0 %v6512
        %6527 = vmatprep.subr.bf16.mxu0 0
        %6528 = vmatpush1.bf16.msra.mxu0 %v6513
        %6529 = vmatprep.subr.bf16.mxu0 0
        %6530 = vmatpush1.bf16.msra.mxu0 0
        %6531 = vmatprep.subr.bf16.mxu0 0
        %6532 = vmatpush1.bf16.msra.mxu0 0
        %6533 = vmatprep.subr.bf16.mxu0 0
        %6534 = vmatpush1.bf16.msra.mxu0 0
        %6535 = vmatprep.subr.bf16.mxu0 0
        %6536 = vmatpush1.bf16.msra.mxu0 0
        %6537 = vmatprep.subr.bf16.mxu0 0
        %6538 = vmatpush1.bf16.msra.mxu0 0
        %6539 = vmatprep.subr.bf16.mxu0 0
        %6540 = vmatpush1.bf16.msra.mxu0 0
        %6541 = vmatprep.subr.bf16.mxu0 0
        %6542 = vmatpush1.bf16.msra.mxu0 0
        %6543 = vmatprep.subr.bf16.mxu0 0
        %6544 = vmatpush1.bf16.msra.mxu0 0
        %6545 = vmatprep.subr.bf16.mxu0 0
        %6546 = vmatpush1.bf16.msra.mxu0 0
        %6547 = vmatprep.subr.bf16.mxu0 0
        %6548 = vmatpush1.bf16.msra.mxu0 0
        %6549 = vmatprep.subr.bf16.mxu0 0
        %6550 = vmatpush1.bf16.msra.mxu0 0
        %6551 = vmatprep.subr.bf16.mxu0 0
        %6552 = vmatpush1.bf16.msra.mxu0 0
        %6553 = vmatprep.mubr.bf16.mxu0 0
        %6554 = vmatmul.mubr.bf16.gmra.mrb[0].mxu0 %v6519
        %v6555 = vpop.f32.mrb[0].mxu0
        %v6556 = vadd.f32 0.0, %v6555
        %v6557 = vpop.f32.mrb[0].mxu0
        %v6558 = vpop.f32.mrb[0].mxu0
        %v6559 = vpop.f32.mrb[0].mxu0
        %6560 = vdwg.mxu0
        %v6561 = vadd.f32 %v6483, %v6556
        %v6562 = vld [vmem:[#allocation5 + $0x22] sm:$0x1]
        %v6563 = vpack.c.bf16 %v6562, %v6562
        %v6564 = vld [vmem:[#allocation9 + $0x440] sm:$0xf]
        %v6565 = vld [vmem:[#allocation9 + $0x444] sm:$0xf]
        %v6566 = vld [vmem:[#allocation9 + $0x448] sm:$0xf]
        %v6567 = vld [vmem:[#allocation9 + $0x44c] sm:$0xf]
        %v6568 = vld [vmem:[#allocation9 + $0x450] sm:$0xf]
        %v6569 = vld [vmem:[#allocation9 + $0x454] sm:$0xf]
        %v6570 = vld [vmem:[#allocation9 + $0x458] sm:$0xf]
        %v6571 = vld [vmem:[#allocation9 + $0x45c] sm:$0xf]
        %v6580 = vunpack.c.l.b16 %v6564
        %v6581 = vunpack.c.l.b16 %v6565
        %v6582 = vunpack.c.l.b16 %v6566
        %v6583 = vunpack.c.l.b16 %v6567
        %v6584 = vunpack.c.l.b16 %v6568
        %v6585 = vunpack.c.l.b16 %v6569
        %v6586 = vunpack.c.l.b16 %v6570
        %v6587 = vunpack.c.l.b16 %v6571
        %v6588 = vpack.c.b16 %v6581, %v6580
        %v6589 = vpack.c.b16 %v6583, %v6582
        %v6590 = vpack.c.b16 %v6585, %v6584
        %v6591 = vpack.c.b16 %v6587, %v6586
        %v6597 = vsel %vm2566, %v6563, 0
        %6599 = vmatprep.subr.bf16.mxu0 0
        %6600 = vmatpush1.bf16.msra.mxu0 %v6588
        %6601 = vmatprep.subr.bf16.mxu0 0
        %6602 = vmatpush1.bf16.msra.mxu0 %v6589
        %6603 = vmatprep.subr.bf16.mxu0 0
        %6604 = vmatpush1.bf16.msra.mxu0 %v6590
        %6605 = vmatprep.subr.bf16.mxu0 0
        %6606 = vmatpush1.bf16.msra.mxu0 %v6591
        %6607 = vmatprep.subr.bf16.mxu0 0
        %6608 = vmatpush1.bf16.msra.mxu0 0
        %6609 = vmatprep.subr.bf16.mxu0 0
        %6610 = vmatpush1.bf16.msra.mxu0 0
        %6611 = vmatprep.subr.bf16.mxu0 0
        %6612 = vmatpush1.bf16.msra.mxu0 0
        %6613 = vmatprep.subr.bf16.mxu0 0
        %6614 = vmatpush1.bf16.msra.mxu0 0
        %6615 = vmatprep.subr.bf16.mxu0 0
        %6616 = vmatpush1.bf16.msra.mxu0 0
        %6617 = vmatprep.subr.bf16.mxu0 0
        %6618 = vmatpush1.bf16.msra.mxu0 0
        %6619 = vmatprep.subr.bf16.mxu0 0
        %6620 = vmatpush1.bf16.msra.mxu0 0
        %6621 = vmatprep.subr.bf16.mxu0 0
        %6622 = vmatpush1.bf16.msra.mxu0 0
        %6623 = vmatprep.subr.bf16.mxu0 0
        %6624 = vmatpush1.bf16.msra.mxu0 0
        %6625 = vmatprep.subr.bf16.mxu0 0
        %6626 = vmatpush1.bf16.msra.mxu0 0
        %6627 = vmatprep.subr.bf16.mxu0 0
        %6628 = vmatpush1.bf16.msra.mxu0 0
        %6629 = vmatprep.subr.bf16.mxu0 0
        %6630 = vmatpush1.bf16.msra.mxu0 0
        %6631 = vmatprep.mubr.bf16.mxu0 0
        %6632 = vmatmul.mubr.bf16.gmra.mrb[0].mxu0 %v6597
        %v6633 = vpop.f32.mrb[0].mxu0
        %v6634 = vadd.f32 0.0, %v6633
        %v6635 = vpop.f32.mrb[0].mxu0
        %v6636 = vpop.f32.mrb[0].mxu0
        %v6637 = vpop.f32.mrb[0].mxu0
        %6638 = vdwg.mxu0
        %v6639 = vadd.f32 %v6561, %v6634
        %v6640 = vld [vmem:[#allocation5 + $0x23] sm:$0x1]
        %v6641 = vpack.c.bf16 %v6640, %v6640
        %v6642 = vld [vmem:[#allocation9 + $0x460] sm:$0xf]
        %v6643 = vld [vmem:[#allocation9 + $0x464] sm:$0xf]
        %v6644 = vld [vmem:[#allocation9 + $0x468] sm:$0xf]
        %v6645 = vld [vmem:[#allocation9 + $0x46c] sm:$0xf]
        %v6646 = vld [vmem:[#allocation9 + $0x470] sm:$0xf]
        %v6647 = vld [vmem:[#allocation9 + $0x474] sm:$0xf]
        %v6648 = vld [vmem:[#allocation9 + $0x478] sm:$0xf]
        %v6649 = vld [vmem:[#allocation9 + $0x47c] sm:$0xf]
        %v6658 = vunpack.c.l.b16 %v6642
        %v6659 = vunpack.c.l.b16 %v6643
        %v6660 = vunpack.c.l.b16 %v6644
        %v6661 = vunpack.c.l.b16 %v6645
        %v6662 = vunpack.c.l.b16 %v6646
        %v6663 = vunpack.c.l.b16 %v6647
        %v6664 = vunpack.c.l.b16 %v6648
        %v6665 = vunpack.c.l.b16 %v6649
        %v6666 = vpack.c.b16 %v6659, %v6658
        %v6667 = vpack.c.b16 %v6661, %v6660
        %v6668 = vpack.c.b16 %v6663, %v6662
        %v6669 = vpack.c.b16 %v6665, %v6664
        %v6675 = vsel %vm2566, %v6641, 0
        %6677 = vmatprep.subr.bf16.mxu0 0
        %6678 = vmatpush1.bf16.msra.mxu0 %v6666
        %6679 = vmatprep.subr.bf16.mxu0 0
        %6680 = vmatpush1.bf16.msra.mxu0 %v6667
        %6681 = vmatprep.subr.bf16.mxu0 0
        %6682 = vmatpush1.bf16.msra.mxu0 %v6668
        %6683 = vmatprep.subr.bf16.mxu0 0
        %6684 = vmatpush1.bf16.msra.mxu0 %v6669
        %6685 = vmatprep.subr.bf16.mxu0 0
        %6686 = vmatpush1.bf16.msra.mxu0 0
        %6687 = vmatprep.subr.bf16.mxu0 0
        %6688 = vmatpush1.bf16.msra.mxu0 0
        %6689 = vmatprep.subr.bf16.mxu0 0
        %6690 = vmatpush1.bf16.msra.mxu0 0
        %6691 = vmatprep.subr.bf16.mxu0 0
        %6692 = vmatpush1.bf16.msra.mxu0 0
        %6693 = vmatprep.subr.bf16.mxu0 0
        %6694 = vmatpush1.bf16.msra.mxu0 0
        %6695 = vmatprep.subr.bf16.mxu0 0
        %6696 = vmatpush1.bf16.msra.mxu0 0
        %6697 = vmatprep.subr.bf16.mxu0 0
        %6698 = vmatpush1.bf16.msra.mxu0 0
        %6699 = vmatprep.subr.bf16.mxu0 0
        %6700 = vmatpush1.bf16.msra.mxu0 0
        %6701 = vmatprep.subr.bf16.mxu0 0
        %6702 = vmatpush1.bf16.msra.mxu0 0
        %6703 = vmatprep.subr.bf16.mxu0 0
        %6704 = vmatpush1.bf16.msra.mxu0 0
        %6705 = vmatprep.subr.bf16.mxu0 0
        %6706 = vmatpush1.bf16.msra.mxu0 0
        %6707 = vmatprep.subr.bf16.mxu0 0
        %6708 = vmatpush1.bf16.msra.mxu0 0
        %6709 = vmatprep.mubr.bf16.mxu0 0
        %6710 = vmatmul.mubr.bf16.gmra.mrb[0].mxu0 %v6675
        %v6711 = vpop.f32.mrb[0].mxu0
        %v6712 = vadd.f32 0.0, %v6711
        %v6713 = vpop.f32.mrb[0].mxu0
        %v6714 = vpop.f32.mrb[0].mxu0
        %v6715 = vpop.f32.mrb[0].mxu0
        %6716 = vdwg.mxu0
        %v6717 = vadd.f32 %v6639, %v6712
        %v6718 = vld [vmem:[#allocation5 + $0x24] sm:$0x1]
        %v6719 = vpack.c.bf16 %v6718, %v6718
        %v6720 = vld [vmem:[#allocation9 + $0x480] sm:$0xf]
        %v6721 = vld [vmem:[#allocation9 + $0x484] sm:$0xf]
        %v6722 = vld [vmem:[#allocation9 + $0x488] sm:$0xf]
        %v6723 = vld [vmem:[#allocation9 + $0x48c] sm:$0xf]
        %v6724 = vld [vmem:[#allocation9 + $0x490] sm:$0xf]
        %v6725 = vld [vmem:[#allocation9 + $0x494] sm:$0xf]
        %v6726 = vld [vmem:[#allocation9 + $0x498] sm:$0xf]
        %v6727 = vld [vmem:[#allocation9 + $0x49c] sm:$0xf]
        %v6736 = vunpack.c.l.b16 %v6720
        %v6737 = vunpack.c.l.b16 %v6721
        %v6738 = vunpack.c.l.b16 %v6722
        %v6739 = vunpack.c.l.b16 %v6723
        %v6740 = vunpack.c.l.b16 %v6724
        %v6741 = vunpack.c.l.b16 %v6725
        %v6742 = vunpack.c.l.b16 %v6726
        %v6743 = vunpack.c.l.b16 %v6727
        %v6744 = vpack.c.b16 %v6737, %v6736
        %v6745 = vpack.c.b16 %v6739, %v6738
        %v6746 = vpack.c.b16 %v6741, %v6740
        %v6747 = vpack.c.b16 %v6743, %v6742
        %v6753 = vsel %vm2566, %v6719, 0
        %6755 = vmatprep.subr.bf16.mxu0 0
        %6756 = vmatpush1.bf16.msra.mxu0 %v6744
        %6757 = vmatprep.subr.bf16.mxu0 0
        %6758 = vmatpush1.bf16.msra.mxu0 %v6745
        %6759 = vmatprep.subr.bf16.mxu0 0
        %6760 = vmatpush1.bf16.msra.mxu0 %v6746
        %6761 = vmatprep.subr.bf16.mxu0 0
        %6762 = vmatpush1.bf16.msra.mxu0 %v6747
        %6763 = vmatprep.subr.bf16.mxu0 0
        %6764 = vmatpush1.bf16.msra.mxu0 0
        %6765 = vmatprep.subr.bf16.mxu0 0
        %6766 = vmatpush1.bf16.msra.mxu0 0
        %6767 = vmatprep.subr.bf16.mxu0 0
        %6768 = vmatpush1.bf16.msra.mxu0 0
        %6769 = vmatprep.subr.bf16.mxu0 0
        %6770 = vmatpush1.bf16.msra.mxu0 0
        %6771 = vmatprep.subr.bf16.mxu0 0
        %6772 = vmatpush1.bf16.msra.mxu0 0
        %6773 = vmatprep.subr.bf16.mxu0 0
        %6774 = vmatpush1.bf16.msra.mxu0 0
        %6775 = vmatprep.subr.bf16.mxu0 0
        %6776 = vmatpush1.bf16.msra.mxu0 0
        %6777 = vmatprep.subr.bf16.mxu0 0
        %6778 = vmatpush1.bf16.msra.mxu0 0
        %6779 = vmatprep.subr.bf16.mxu0 0
        %6780 = vmatpush1.bf16.msra.mxu0 0
        %6781 = vmatprep.subr.bf16.mxu0 0
        %6782 = vmatpush1.bf16.msra.mxu0 0
        %6783 = vmatprep.subr.bf16.mxu0 0
        %6784 = vmatpush1.bf16.msra.mxu0 0
        %6785 = vmatprep.subr.bf16.mxu0 0
        %6786 = vmatpush1.bf16.msra.mxu0 0
        %6787 = vmatprep.mubr.bf16.mxu0 0
        %6788 = vmatmul.mubr.bf16.gmra.mrb[0].mxu0 %v6753
        %v6789 = vpop.f32.mrb[0].mxu0
        %v6790 = vadd.f32 0.0, %v6789
        %v6791 = vpop.f32.mrb[0].mxu0
        %v6792 = vpop.f32.mrb[0].mxu0
        %v6793 = vpop.f32.mrb[0].mxu0
        %6794 = vdwg.mxu0
        %v6795 = vadd.f32 %v6717, %v6790
        %v6796 = vld [vmem:[#allocation5 + $0x25] sm:$0x1]
        %v6797 = vpack.c.bf16 %v6796, %v6796
        %v6798 = vld [vmem:[#allocation9 + $0x4a0] sm:$0xf]
        %v6799 = vld [vmem:[#allocation9 + $0x4a4] sm:$0xf]
        %v6800 = vld [vmem:[#allocation9 + $0x4a8] sm:$0xf]
        %v6801 = vld [vmem:[#allocation9 + $0x4ac] sm:$0xf]
        %v6802 = vld [vmem:[#allocation9 + $0x4b0] sm:$0xf]
        %v6803 = vld [vmem:[#allocation9 + $0x4b4] sm:$0xf]
        %v6804 = vld [vmem:[#allocation9 + $0x4b8] sm:$0xf]
        %v6805 = vld [vmem:[#allocation9 + $0x4bc] sm:$0xf]
        %v6814 = vunpack.c.l.b16 %v6798
        %v6815 = vunpack.c.l.b16 %v6799
        %v6816 = vunpack.c.l.b16 %v6800
        %v6817 = vunpack.c.l.b16 %v6801
        %v6818 = vunpack.c.l.b16 %v6802
        %v6819 = vunpack.c.l.b16 %v6803
        %v6820 = vunpack.c.l.b16 %v6804
        %v6821 = vunpack.c.l.b16 %v6805
        %v6822 = vpack.c.b16 %v6815, %v6814
        %v6823 = vpack.c.b16 %v6817, %v6816
        %v6824 = vpack.c.b16 %v6819, %v6818
        %v6825 = vpack.c.b16 %v6821, %v6820
        %v6831 = vsel %vm2566, %v6797, 0
        %6833 = vmatprep.subr.bf16.mxu0 0
        %6834 = vmatpush1.bf16.msra.mxu0 %v6822
        %6835 = vmatprep.subr.bf16.mxu0 0
        %6836 = vmatpush1.bf16.msra.mxu0 %v6823
        %6837 = vmatprep.subr.bf16.mxu0 0
        %6838 = vmatpush1.bf16.msra.mxu0 %v6824
        %6839 = vmatprep.subr.bf16.mxu0 0
        %6840 = vmatpush1.bf16.msra.mxu0 %v6825
        %6841 = vmatprep.subr.bf16.mxu0 0
        %6842 = vmatpush1.bf16.msra.mxu0 0
        %6843 = vmatprep.subr.bf16.mxu0 0
        %6844 = vmatpush1.bf16.msra.mxu0 0
        %6845 = vmatprep.subr.bf16.mxu0 0
        %6846 = vmatpush1.bf16.msra.mxu0 0
        %6847 = vmatprep.subr.bf16.mxu0 0
        %6848 = vmatpush1.bf16.msra.mxu0 0
        %6849 = vmatprep.subr.bf16.mxu0 0
        %6850 = vmatpush1.bf16.msra.mxu0 0
        %6851 = vmatprep.subr.bf16.mxu0 0
        %6852 = vmatpush1.bf16.msra.mxu0 0
        %6853 = vmatprep.subr.bf16.mxu0 0
        %6854 = vmatpush1.bf16.msra.mxu0 0
        %6855 = vmatprep.subr.bf16.mxu0 0
        %6856 = vmatpush1.bf16.msra.mxu0 0
        %6857 = vmatprep.subr.bf16.mxu0 0
        %6858 = vmatpush1.bf16.msra.mxu0 0
        %6859 = vmatprep.subr.bf16.mxu0 0
        %6860 = vmatpush1.bf16.msra.mxu0 0
        %6861 = vmatprep.subr.bf16.mxu0 0
        %6862 = vmatpush1.bf16.msra.mxu0 0
        %6863 = vmatprep.subr.bf16.mxu0 0
        %6864 = vmatpush1.bf16.msra.mxu0 0
        %6865 = vmatprep.mubr.bf16.mxu0 0
        %6866 = vmatmul.mubr.bf16.gmra.mrb[0].mxu0 %v6831
        %v6867 = vpop.f32.mrb[0].mxu0
        %v6868 = vadd.f32 0.0, %v6867
        %v6869 = vpop.f32.mrb[0].mxu0
        %v6870 = vpop.f32.mrb[0].mxu0
        %v6871 = vpop.f32.mrb[0].mxu0
        %6872 = vdwg.mxu0
        %v6873 = vadd.f32 %v6795, %v6868
        %v6874 = vld [vmem:[#allocation5 + $0x26] sm:$0x1]
        %v6875 = vpack.c.bf16 %v6874, %v6874
        %v6876 = vld [vmem:[#allocation9 + $0x4c0] sm:$0xf]
        %v6877 = vld [vmem:[#allocation9 + $0x4c4] sm:$0xf]
        %v6878 = vld [vmem:[#allocation9 + $0x4c8] sm:$0xf]
        %v6879 = vld [vmem:[#allocation9 + $0x4cc] sm:$0xf]
        %v6880 = vld [vmem:[#allocation9 + $0x4d0] sm:$0xf]
        %v6881 = vld [vmem:[#allocation9 + $0x4d4] sm:$0xf]
        %v6882 = vld [vmem:[#allocation9 + $0x4d8] sm:$0xf]
        %v6883 = vld [vmem:[#allocation9 + $0x4dc] sm:$0xf]
        %v6892 = vunpack.c.l.b16 %v6876
        %v6893 = vunpack.c.l.b16 %v6877
        %v6894 = vunpack.c.l.b16 %v6878
        %v6895 = vunpack.c.l.b16 %v6879
        %v6896 = vunpack.c.l.b16 %v6880
        %v6897 = vunpack.c.l.b16 %v6881
        %v6898 = vunpack.c.l.b16 %v6882
        %v6899 = vunpack.c.l.b16 %v6883
        %v6900 = vpack.c.b16 %v6893, %v6892
        %v6901 = vpack.c.b16 %v6895, %v6894
        %v6902 = vpack.c.b16 %v6897, %v6896
        %v6903 = vpack.c.b16 %v6899, %v6898
        %v6909 = vsel %vm2566, %v6875, 0
        %6911 = vmatprep.subr.bf16.mxu0 0
        %6912 = vmatpush1.bf16.msra.mxu0 %v6900
        %6913 = vmatprep.subr.bf16.mxu0 0
        %6914 = vmatpush1.bf16.msra.mxu0 %v6901
        %6915 = vmatprep.subr.bf16.mxu0 0
        %6916 = vmatpush1.bf16.msra.mxu0 %v6902
        %6917 = vmatprep.subr.bf16.mxu0 0
        %6918 = vmatpush1.bf16.msra.mxu0 %v6903
        %6919 = vmatprep.subr.bf16.mxu0 0
        %6920 = vmatpush1.bf16.msra.mxu0 0
        %6921 = vmatprep.subr.bf16.mxu0 0
        %6922 = vmatpush1.bf16.msra.mxu0 0
        %6923 = vmatprep.subr.bf16.mxu0 0
        %6924 = vmatpush1.bf16.msra.mxu0 0
        %6925 = vmatprep.subr.bf16.mxu0 0
        %6926 = vmatpush1.bf16.msra.mxu0 0
        %6927 = vmatprep.subr.bf16.mxu0 0
        %6928 = vmatpush1.bf16.msra.mxu0 0
        %6929 = vmatprep.subr.bf16.mxu0 0
        %6930 = vmatpush1.bf16.msra.mxu0 0
        %6931 = vmatprep.subr.bf16.mxu0 0
        %6932 = vmatpush1.bf16.msra.mxu0 0
        %6933 = vmatprep.subr.bf16.mxu0 0
        %6934 = vmatpush1.bf16.msra.mxu0 0
        %6935 = vmatprep.subr.bf16.mxu0 0
        %6936 = vmatpush1.bf16.msra.mxu0 0
        %6937 = vmatprep.subr.bf16.mxu0 0
        %6938 = vmatpush1.bf16.msra.mxu0 0
        %6939 = vmatprep.subr.bf16.mxu0 0
        %6940 = vmatpush1.bf16.msra.mxu0 0
        %6941 = vmatprep.subr.bf16.mxu0 0
        %6942 = vmatpush1.bf16.msra.mxu0 0
        %6943 = vmatprep.mubr.bf16.mxu0 0
        %6944 = vmatmul.mubr.bf16.gmra.mrb[0].mxu0 %v6909
        %v6945 = vpop.f32.mrb[0].mxu0
        %v6946 = vadd.f32 0.0, %v6945
        %v6947 = vpop.f32.mrb[0].mxu0
        %v6948 = vpop.f32.mrb[0].mxu0
        %v6949 = vpop.f32.mrb[0].mxu0
        %6950 = vdwg.mxu0
        %v6951 = vadd.f32 %v6873, %v6946
        %v6952 = vld [vmem:[#allocation5 + $0x27] sm:$0x1]
        %v6953 = vpack.c.bf16 %v6952, %v6952
        %v6954 = vld [vmem:[#allocation9 + $0x4e0] sm:$0xf]
        %v6955 = vld [vmem:[#allocation9 + $0x4e4] sm:$0xf]
        %v6956 = vld [vmem:[#allocation9 + $0x4e8] sm:$0xf]
        %v6957 = vld [vmem:[#allocation9 + $0x4ec] sm:$0xf]
        %v6958 = vld [vmem:[#allocation9 + $0x4f0] sm:$0xf]
        %v6959 = vld [vmem:[#allocation9 + $0x4f4] sm:$0xf]
        %v6960 = vld [vmem:[#allocation9 + $0x4f8] sm:$0xf]
        %v6961 = vld [vmem:[#allocation9 + $0x4fc] sm:$0xf]
        %v6970 = vunpack.c.l.b16 %v6954
        %v6971 = vunpack.c.l.b16 %v6955
        %v6972 = vunpack.c.l.b16 %v6956
        %v6973 = vunpack.c.l.b16 %v6957
        %v6974 = vunpack.c.l.b16 %v6958
        %v6975 = vunpack.c.l.b16 %v6959
        %v6976 = vunpack.c.l.b16 %v6960
        %v6977 = vunpack.c.l.b16 %v6961
        %v6978 = vpack.c.b16 %v6971, %v6970
        %v6979 = vpack.c.b16 %v6973, %v6972
        %v6980 = vpack.c.b16 %v6975, %v6974
        %v6981 = vpack.c.b16 %v6977, %v6976
        %v6987 = vsel %vm2566, %v6953, 0
        %6989 = vmatprep.subr.bf16.mxu0 0
        %6990 = vmatpush1.bf16.msra.mxu0 %v6978
        %6991 = vmatprep.subr.bf16.mxu0 0
        %6992 = vmatpush1.bf16.msra.mxu0 %v6979
        %6993 = vmatprep.subr.bf16.mxu0 0
        %6994 = vmatpush1.bf16.msra.mxu0 %v6980
        %6995 = vmatprep.subr.bf16.mxu0 0
        %6996 = vmatpush1.bf16.msra.mxu0 %v6981
        %6997 = vmatprep.subr.bf16.mxu0 0
        %6998 = vmatpush1.bf16.msra.mxu0 0
        %6999 = vmatprep.subr.bf16.mxu0 0
        %7000 = vmatpush1.bf16.msra.mxu0 0
        %7001 = vmatprep.subr.bf16.mxu0 0
        %7002 = vmatpush1.bf16.msra.mxu0 0
        %7003 = vmatprep.subr.bf16.mxu0 0
        %7004 = vmatpush1.bf16.msra.mxu0 0
        %7005 = vmatprep.subr.bf16.mxu0 0
        %7006 = vmatpush1.bf16.msra.mxu0 0
        %7007 = vmatprep.subr.bf16.mxu0 0
        %7008 = vmatpush1.bf16.msra.mxu0 0
        %7009 = vmatprep.subr.bf16.mxu0 0
        %7010 = vmatpush1.bf16.msra.mxu0 0
        %7011 = vmatprep.subr.bf16.mxu0 0
        %7012 = vmatpush1.bf16.msra.mxu0 0
        %7013 = vmatprep.subr.bf16.mxu0 0
        %7014 = vmatpush1.bf16.msra.mxu0 0
        %7015 = vmatprep.subr.bf16.mxu0 0
        %7016 = vmatpush1.bf16.msra.mxu0 0
        %7017 = vmatprep.subr.bf16.mxu0 0
        %7018 = vmatpush1.bf16.msra.mxu0 0
        %7019 = vmatprep.subr.bf16.mxu0 0
        %7020 = vmatpush1.bf16.msra.mxu0 0
        %7021 = vmatprep.mubr.bf16.mxu0 0
        %7022 = vmatmul.mubr.bf16.gmra.mrb[0].mxu0 %v6987
        %v7023 = vpop.f32.mrb[0].mxu0
        %v7024 = vadd.f32 0.0, %v7023
        %v7025 = vpop.f32.mrb[0].mxu0
        %v7026 = vpop.f32.mrb[0].mxu0
        %v7027 = vpop.f32.mrb[0].mxu0
        %7028 = vdwg.mxu0
        %v7029 = vadd.f32 %v6951, %v7024
        %v7030 = vld [vmem:[#allocation5 + $0x28] sm:$0x1]
        %v7031 = vpack.c.bf16 %v7030, %v7030
        %v7032 = vld [vmem:[#allocation9 + $0x500] sm:$0xf]
        %v7033 = vld [vmem:[#allocation9 + $0x504] sm:$0xf]
        %v7034 = vld [vmem:[#allocation9 + $0x508] sm:$0xf]
        %v7035 = vld [vmem:[#allocation9 + $0x50c] sm:$0xf]
        %v7036 = vld [vmem:[#allocation9 + $0x510] sm:$0xf]
        %v7037 = vld [vmem:[#allocation9 + $0x514] sm:$0xf]
        %v7038 = vld [vmem:[#allocation9 + $0x518] sm:$0xf]
        %v7039 = vld [vmem:[#allocation9 + $0x51c] sm:$0xf]
        %v7048 = vunpack.c.l.b16 %v7032
        %v7049 = vunpack.c.l.b16 %v7033
        %v7050 = vunpack.c.l.b16 %v7034
        %v7051 = vunpack.c.l.b16 %v7035
        %v7052 = vunpack.c.l.b16 %v7036
        %v7053 = vunpack.c.l.b16 %v7037
        %v7054 = vunpack.c.l.b16 %v7038
        %v7055 = vunpack.c.l.b16 %v7039
        %v7056 = vpack.c.b16 %v7049, %v7048
        %v7057 = vpack.c.b16 %v7051, %v7050
        %v7058 = vpack.c.b16 %v7053, %v7052
        %v7059 = vpack.c.b16 %v7055, %v7054
        %v7065 = vsel %vm2566, %v7031, 0
        %7067 = vmatprep.subr.bf16.mxu0 0
        %7068 = vmatpush1.bf16.msra.mxu0 %v7056
        %7069 = vmatprep.subr.bf16.mxu0 0
        %7070 = vmatpush1.bf16.msra.mxu0 %v7057
        %7071 = vmatprep.subr.bf16.mxu0 0
        %7072 = vmatpush1.bf16.msra.mxu0 %v7058
        %7073 = vmatprep.subr.bf16.mxu0 0
        %7074 = vmatpush1.bf16.msra.mxu0 %v7059
        %7075 = vmatprep.subr.bf16.mxu0 0
        %7076 = vmatpush1.bf16.msra.mxu0 0
        %7077 = vmatprep.subr.bf16.mxu0 0
        %7078 = vmatpush1.bf16.msra.mxu0 0
        %7079 = vmatprep.subr.bf16.mxu0 0
        %7080 = vmatpush1.bf16.msra.mxu0 0
        %7081 = vmatprep.subr.bf16.mxu0 0
        %7082 = vmatpush1.bf16.msra.mxu0 0
        %7083 = vmatprep.subr.bf16.mxu0 0
        %7084 = vmatpush1.bf16.msra.mxu0 0
        %7085 = vmatprep.subr.bf16.mxu0 0
        %7086 = vmatpush1.bf16.msra.mxu0 0
        %7087 = vmatprep.subr.bf16.mxu0 0
        %7088 = vmatpush1.bf16.msra.mxu0 0
        %7089 = vmatprep.subr.bf16.mxu0 0
        %7090 = vmatpush1.bf16.msra.mxu0 0
        %7091 = vmatprep.subr.bf16.mxu0 0
        %7092 = vmatpush1.bf16.msra.mxu0 0
        %7093 = vmatprep.subr.bf16.mxu0 0
        %7094 = vmatpush1.bf16.msra.mxu0 0
        %7095 = vmatprep.subr.bf16.mxu0 0
        %7096 = vmatpush1.bf16.msra.mxu0 0
        %7097 = vmatprep.subr.bf16.mxu0 0
        %7098 = vmatpush1.bf16.msra.mxu0 0
        %7099 = vmatprep.mubr.bf16.mxu0 0
        %7100 = vmatmul.mubr.bf16.gmra.mrb[0].mxu0 %v7065
        %v7101 = vpop.f32.mrb[0].mxu0
        %v7102 = vadd.f32 0.0, %v7101
        %v7103 = vpop.f32.mrb[0].mxu0
        %v7104 = vpop.f32.mrb[0].mxu0
        %v7105 = vpop.f32.mrb[0].mxu0
        %7106 = vdwg.mxu0
        %v7107 = vadd.f32 %v7029, %v7102
        %v7108 = vld [vmem:[#allocation5 + $0x29] sm:$0x1]
        %v7109 = vpack.c.bf16 %v7108, %v7108
        %v7110 = vld [vmem:[#allocation9 + $0x520] sm:$0xf]
        %v7111 = vld [vmem:[#allocation9 + $0x524] sm:$0xf]
        %v7112 = vld [vmem:[#allocation9 + $0x528] sm:$0xf]
        %v7113 = vld [vmem:[#allocation9 + $0x52c] sm:$0xf]
        %v7114 = vld [vmem:[#allocation9 + $0x530] sm:$0xf]
        %v7115 = vld [vmem:[#allocation9 + $0x534] sm:$0xf]
        %v7116 = vld [vmem:[#allocation9 + $0x538] sm:$0xf]
        %v7117 = vld [vmem:[#allocation9 + $0x53c] sm:$0xf]
        %v7126 = vunpack.c.l.b16 %v7110
        %v7127 = vunpack.c.l.b16 %v7111
        %v7128 = vunpack.c.l.b16 %v7112
        %v7129 = vunpack.c.l.b16 %v7113
        %v7130 = vunpack.c.l.b16 %v7114
        %v7131 = vunpack.c.l.b16 %v7115
        %v7132 = vunpack.c.l.b16 %v7116
        %v7133 = vunpack.c.l.b16 %v7117
        %v7134 = vpack.c.b16 %v7127, %v7126
        %v7135 = vpack.c.b16 %v7129, %v7128
        %v7136 = vpack.c.b16 %v7131, %v7130
        %v7137 = vpack.c.b16 %v7133, %v7132
        %v7143 = vsel %vm2566, %v7109, 0
        %7145 = vmatprep.subr.bf16.mxu0 0
        %7146 = vmatpush1.bf16.msra.mxu0 %v7134
        %7147 = vmatprep.subr.bf16.mxu0 0
        %7148 = vmatpush1.bf16.msra.mxu0 %v7135
        %7149 = vmatprep.subr.bf16.mxu0 0
        %7150 = vmatpush1.bf16.msra.mxu0 %v7136
        %7151 = vmatprep.subr.bf16.mxu0 0
        %7152 = vmatpush1.bf16.msra.mxu0 %v7137
        %7153 = vmatprep.subr.bf16.mxu0 0
        %7154 = vmatpush1.bf16.msra.mxu0 0
        %7155 = vmatprep.subr.bf16.mxu0 0
        %7156 = vmatpush1.bf16.msra.mxu0 0
        %7157 = vmatprep.subr.bf16.mxu0 0
        %7158 = vmatpush1.bf16.msra.mxu0 0
        %7159 = vmatprep.subr.bf16.mxu0 0
        %7160 = vmatpush1.bf16.msra.mxu0 0
        %7161 = vmatprep.subr.bf16.mxu0 0
        %7162 = vmatpush1.bf16.msra.mxu0 0
        %7163 = vmatprep.subr.bf16.mxu0 0
        %7164 = vmatpush1.bf16.msra.mxu0 0
        %7165 = vmatprep.subr.bf16.mxu0 0
        %7166 = vmatpush1.bf16.msra.mxu0 0
        %7167 = vmatprep.subr.bf16.mxu0 0
        %7168 = vmatpush1.bf16.msra.mxu0 0
        %7169 = vmatprep.subr.bf16.mxu0 0
        %7170 = vmatpush1.bf16.msra.mxu0 0
        %7171 = vmatprep.subr.bf16.mxu0 0
        %7172 = vmatpush1.bf16.msra.mxu0 0
        %7173 = vmatprep.subr.bf16.mxu0 0
        %7174 = vmatpush1.bf16.msra.mxu0 0
        %7175 = vmatprep.subr.bf16.mxu0 0
        %7176 = vmatpush1.bf16.msra.mxu0 0
        %7177 = vmatprep.mubr.bf16.mxu0 0
        %7178 = vmatmul.mubr.bf16.gmra.mrb[0].mxu0 %v7143
        %v7179 = vpop.f32.mrb[0].mxu0
        %v7180 = vadd.f32 0.0, %v7179
        %v7181 = vpop.f32.mrb[0].mxu0
        %v7182 = vpop.f32.mrb[0].mxu0
        %v7183 = vpop.f32.mrb[0].mxu0
        %7184 = vdwg.mxu0
        %v7185 = vadd.f32 %v7107, %v7180
        %v7186 = vld [vmem:[#allocation5 + $0x2a] sm:$0x1]
        %v7187 = vpack.c.bf16 %v7186, %v7186
        %v7188 = vld [vmem:[#allocation9 + $0x540] sm:$0xf]
        %v7189 = vld [vmem:[#allocation9 + $0x544] sm:$0xf]
        %v7190 = vld [vmem:[#allocation9 + $0x548] sm:$0xf]
        %v7191 = vld [vmem:[#allocation9 + $0x54c] sm:$0xf]
        %v7192 = vld [vmem:[#allocation9 + $0x550] sm:$0xf]
        %v7193 = vld [vmem:[#allocation9 + $0x554] sm:$0xf]
        %v7194 = vld [vmem:[#allocation9 + $0x558] sm:$0xf]
        %v7195 = vld [vmem:[#allocation9 + $0x55c] sm:$0xf]
        %v7204 = vunpack.c.l.b16 %v7188
        %v7205 = vunpack.c.l.b16 %v7189
        %v7206 = vunpack.c.l.b16 %v7190
        %v7207 = vunpack.c.l.b16 %v7191
        %v7208 = vunpack.c.l.b16 %v7192
        %v7209 = vunpack.c.l.b16 %v7193
        %v7210 = vunpack.c.l.b16 %v7194
        %v7211 = vunpack.c.l.b16 %v7195
        %v7212 = vpack.c.b16 %v7205, %v7204
        %v7213 = vpack.c.b16 %v7207, %v7206
        %v7214 = vpack.c.b16 %v7209, %v7208
        %v7215 = vpack.c.b16 %v7211, %v7210
        %v7221 = vsel %vm2566, %v7187, 0
        %7223 = vmatprep.subr.bf16.mxu0 0
        %7224 = vmatpush1.bf16.msra.mxu0 %v7212
        %7225 = vmatprep.subr.bf16.mxu0 0
        %7226 = vmatpush1.bf16.msra.mxu0 %v7213
        %7227 = vmatprep.subr.bf16.mxu0 0
        %7228 = vmatpush1.bf16.msra.mxu0 %v7214
        %7229 = vmatprep.subr.bf16.mxu0 0
        %7230 = vmatpush1.bf16.msra.mxu0 %v7215
        %7231 = vmatprep.subr.bf16.mxu0 0
        %7232 = vmatpush1.bf16.msra.mxu0 0
        %7233 = vmatprep.subr.bf16.mxu0 0
        %7234 = vmatpush1.bf16.msra.mxu0 0
        %7235 = vmatprep.subr.bf16.mxu0 0
        %7236 = vmatpush1.bf16.msra.mxu0 0
        %7237 = vmatprep.subr.bf16.mxu0 0
        %7238 = vmatpush1.bf16.msra.mxu0 0
        %7239 = vmatprep.subr.bf16.mxu0 0
        %7240 = vmatpush1.bf16.msra.mxu0 0
        %7241 = vmatprep.subr.bf16.mxu0 0
        %7242 = vmatpush1.bf16.msra.mxu0 0
        %7243 = vmatprep.subr.bf16.mxu0 0
        %7244 = vmatpush1.bf16.msra.mxu0 0
        %7245 = vmatprep.subr.bf16.mxu0 0
        %7246 = vmatpush1.bf16.msra.mxu0 0
        %7247 = vmatprep.subr.bf16.mxu0 0
        %7248 = vmatpush1.bf16.msra.mxu0 0
        %7249 = vmatprep.subr.bf16.mxu0 0
        %7250 = vmatpush1.bf16.msra.mxu0 0
        %7251 = vmatprep.subr.bf16.mxu0 0
        %7252 = vmatpush1.bf16.msra.mxu0 0
        %7253 = vmatprep.subr.bf16.mxu0 0
        %7254 = vmatpush1.bf16.msra.mxu0 0
        %7255 = vmatprep.mubr.bf16.mxu0 0
        %7256 = vmatmul.mubr.bf16.gmra.mrb[0].mxu0 %v7221
        %v7257 = vpop.f32.mrb[0].mxu0
        %v7258 = vadd.f32 0.0, %v7257
        %v7259 = vpop.f32.mrb[0].mxu0
        %v7260 = vpop.f32.mrb[0].mxu0
        %v7261 = vpop.f32.mrb[0].mxu0
        %7262 = vdwg.mxu0
        %v7263 = vadd.f32 %v7185, %v7258
        %v7264 = vld [vmem:[#allocation5 + $0x2b] sm:$0x1]
        %v7265 = vpack.c.bf16 %v7264, %v7264
        %v7266 = vld [vmem:[#allocation9 + $0x560] sm:$0xf]
        %v7267 = vld [vmem:[#allocation9 + $0x564] sm:$0xf]
        %v7268 = vld [vmem:[#allocation9 + $0x568] sm:$0xf]
        %v7269 = vld [vmem:[#allocation9 + $0x56c] sm:$0xf]
        %v7270 = vld [vmem:[#allocation9 + $0x570] sm:$0xf]
        %v7271 = vld [vmem:[#allocation9 + $0x574] sm:$0xf]
        %v7272 = vld [vmem:[#allocation9 + $0x578] sm:$0xf]
        %v7273 = vld [vmem:[#allocation9 + $0x57c] sm:$0xf]
        %v7282 = vunpack.c.l.b16 %v7266
        %v7283 = vunpack.c.l.b16 %v7267
        %v7284 = vunpack.c.l.b16 %v7268
        %v7285 = vunpack.c.l.b16 %v7269
        %v7286 = vunpack.c.l.b16 %v7270
        %v7287 = vunpack.c.l.b16 %v7271
        %v7288 = vunpack.c.l.b16 %v7272
        %v7289 = vunpack.c.l.b16 %v7273
        %v7290 = vpack.c.b16 %v7283, %v7282
        %v7291 = vpack.c.b16 %v7285, %v7284
        %v7292 = vpack.c.b16 %v7287, %v7286
        %v7293 = vpack.c.b16 %v7289, %v7288
        %v7299 = vsel %vm2566, %v7265, 0
        %7301 = vmatprep.subr.bf16.mxu0 0
        %7302 = vmatpush1.bf16.msra.mxu0 %v7290
        %7303 = vmatprep.subr.bf16.mxu0 0
        %7304 = vmatpush1.bf16.msra.mxu0 %v7291
        %7305 = vmatprep.subr.bf16.mxu0 0
        %7306 = vmatpush1.bf16.msra.mxu0 %v7292
        %7307 = vmatprep.subr.bf16.mxu0 0
        %7308 = vmatpush1.bf16.msra.mxu0 %v7293
        %7309 = vmatprep.subr.bf16.mxu0 0
        %7310 = vmatpush1.bf16.msra.mxu0 0
        %7311 = vmatprep.subr.bf16.mxu0 0
        %7312 = vmatpush1.bf16.msra.mxu0 0
        %7313 = vmatprep.subr.bf16.mxu0 0
        %7314 = vmatpush1.bf16.msra.mxu0 0
        %7315 = vmatprep.subr.bf16.mxu0 0
        %7316 = vmatpush1.bf16.msra.mxu0 0
        %7317 = vmatprep.subr.bf16.mxu0 0
        %7318 = vmatpush1.bf16.msra.mxu0 0
        %7319 = vmatprep.subr.bf16.mxu0 0
        %7320 = vmatpush1.bf16.msra.mxu0 0
        %7321 = vmatprep.subr.bf16.mxu0 0
        %7322 = vmatpush1.bf16.msra.mxu0 0
        %7323 = vmatprep.subr.bf16.mxu0 0
        %7324 = vmatpush1.bf16.msra.mxu0 0
        %7325 = vmatprep.subr.bf16.mxu0 0
        %7326 = vmatpush1.bf16.msra.mxu0 0
        %7327 = vmatprep.subr.bf16.mxu0 0
        %7328 = vmatpush1.bf16.msra.mxu0 0
        %7329 = vmatprep.subr.bf16.mxu0 0
        %7330 = vmatpush1.bf16.msra.mxu0 0
        %7331 = vmatprep.subr.bf16.mxu0 0
        %7332 = vmatpush1.bf16.msra.mxu0 0
        %7333 = vmatprep.mubr.bf16.mxu0 0
        %7334 = vmatmul.mubr.bf16.gmra.mrb[0].mxu0 %v7299
        %v7335 = vpop.f32.mrb[0].mxu0
        %v7336 = vadd.f32 0.0, %v7335
        %v7337 = vpop.f32.mrb[0].mxu0
        %v7338 = vpop.f32.mrb[0].mxu0
        %v7339 = vpop.f32.mrb[0].mxu0
        %7340 = vdwg.mxu0
        %v7341 = vadd.f32 %v7263, %v7336
        %v7342 = vld [vmem:[#allocation5 + $0x2c] sm:$0x1]
        %v7343 = vpack.c.bf16 %v7342, %v7342
        %v7344 = vld [vmem:[#allocation9 + $0x580] sm:$0xf]
        %v7345 = vld [vmem:[#allocation9 + $0x584] sm:$0xf]
        %v7346 = vld [vmem:[#allocation9 + $0x588] sm:$0xf]
        %v7347 = vld [vmem:[#allocation9 + $0x58c] sm:$0xf]
        %v7348 = vld [vmem:[#allocation9 + $0x590] sm:$0xf]
        %v7349 = vld [vmem:[#allocation9 + $0x594] sm:$0xf]
        %v7350 = vld [vmem:[#allocation9 + $0x598] sm:$0xf]
        %v7351 = vld [vmem:[#allocation9 + $0x59c] sm:$0xf]
        %v7360 = vunpack.c.l.b16 %v7344
        %v7361 = vunpack.c.l.b16 %v7345
        %v7362 = vunpack.c.l.b16 %v7346
        %v7363 = vunpack.c.l.b16 %v7347
        %v7364 = vunpack.c.l.b16 %v7348
        %v7365 = vunpack.c.l.b16 %v7349
        %v7366 = vunpack.c.l.b16 %v7350
        %v7367 = vunpack.c.l.b16 %v7351
        %v7368 = vpack.c.b16 %v7361, %v7360
        %v7369 = vpack.c.b16 %v7363, %v7362
        %v7370 = vpack.c.b16 %v7365, %v7364
        %v7371 = vpack.c.b16 %v7367, %v7366
        %v7377 = vsel %vm2566, %v7343, 0
        %7379 = vmatprep.subr.bf16.mxu0 0
        %7380 = vmatpush1.bf16.msra.mxu0 %v7368
        %7381 = vmatprep.subr.bf16.mxu0 0
        %7382 = vmatpush1.bf16.msra.mxu0 %v7369
        %7383 = vmatprep.subr.bf16.mxu0 0
        %7384 = vmatpush1.bf16.msra.mxu0 %v7370
        %7385 = vmatprep.subr.bf16.mxu0 0
        %7386 = vmatpush1.bf16.msra.mxu0 %v7371
        %7387 = vmatprep.subr.bf16.mxu0 0
        %7388 = vmatpush1.bf16.msra.mxu0 0
        %7389 = vmatprep.subr.bf16.mxu0 0
        %7390 = vmatpush1.bf16.msra.mxu0 0
        %7391 = vmatprep.subr.bf16.mxu0 0
        %7392 = vmatpush1.bf16.msra.mxu0 0
        %7393 = vmatprep.subr.bf16.mxu0 0
        %7394 = vmatpush1.bf16.msra.mxu0 0
        %7395 = vmatprep.subr.bf16.mxu0 0
        %7396 = vmatpush1.bf16.msra.mxu0 0
        %7397 = vmatprep.subr.bf16.mxu0 0
        %7398 = vmatpush1.bf16.msra.mxu0 0
        %7399 = vmatprep.subr.bf16.mxu0 0
        %7400 = vmatpush1.bf16.msra.mxu0 0
        %7401 = vmatprep.subr.bf16.mxu0 0
        %7402 = vmatpush1.bf16.msra.mxu0 0
        %7403 = vmatprep.subr.bf16.mxu0 0
        %7404 = vmatpush1.bf16.msra.mxu0 0
        %7405 = vmatprep.subr.bf16.mxu0 0
        %7406 = vmatpush1.bf16.msra.mxu0 0
        %7407 = vmatprep.subr.bf16.mxu0 0
        %7408 = vmatpush1.bf16.msra.mxu0 0
        %7409 = vmatprep.subr.bf16.mxu0 0
        %7410 = vmatpush1.bf16.msra.mxu0 0
        %7411 = vmatprep.mubr.bf16.mxu0 0
        %7412 = vmatmul.mubr.bf16.gmra.mrb[0].mxu0 %v7377
        %v7413 = vpop.f32.mrb[0].mxu0
        %v7414 = vadd.f32 0.0, %v7413
        %v7415 = vpop.f32.mrb[0].mxu0
        %v7416 = vpop.f32.mrb[0].mxu0
        %v7417 = vpop.f32.mrb[0].mxu0
        %7418 = vdwg.mxu0
        %v7419 = vadd.f32 %v7341, %v7414
        %v7420 = vld [vmem:[#allocation5 + $0x2d] sm:$0x1]
        %v7421 = vpack.c.bf16 %v7420, %v7420
        %v7422 = vld [vmem:[#allocation9 + $0x5a0] sm:$0xf]
        %v7423 = vld [vmem:[#allocation9 + $0x5a4] sm:$0xf]
        %v7424 = vld [vmem:[#allocation9 + $0x5a8] sm:$0xf]
        %v7425 = vld [vmem:[#allocation9 + $0x5ac] sm:$0xf]
        %v7426 = vld [vmem:[#allocation9 + $0x5b0] sm:$0xf]
        %v7427 = vld [vmem:[#allocation9 + $0x5b4] sm:$0xf]
        %v7428 = vld [vmem:[#allocation9 + $0x5b8] sm:$0xf]
        %v7429 = vld [vmem:[#allocation9 + $0x5bc] sm:$0xf]
        %v7438 = vunpack.c.l.b16 %v7422
        %v7439 = vunpack.c.l.b16 %v7423
        %v7440 = vunpack.c.l.b16 %v7424
        %v7441 = vunpack.c.l.b16 %v7425
        %v7442 = vunpack.c.l.b16 %v7426
        %v7443 = vunpack.c.l.b16 %v7427
        %v7444 = vunpack.c.l.b16 %v7428
        %v7445 = vunpack.c.l.b16 %v7429
        %v7446 = vpack.c.b16 %v7439, %v7438
        %v7447 = vpack.c.b16 %v7441, %v7440
        %v7448 = vpack.c.b16 %v7443, %v7442
        %v7449 = vpack.c.b16 %v7445, %v7444
        %v7455 = vsel %vm2566, %v7421, 0
        %7457 = vmatprep.subr.bf16.mxu0 0
        %7458 = vmatpush1.bf16.msra.mxu0 %v7446
        %7459 = vmatprep.subr.bf16.mxu0 0
        %7460 = vmatpush1.bf16.msra.mxu0 %v7447
        %7461 = vmatprep.subr.bf16.mxu0 0
        %7462 = vmatpush1.bf16.msra.mxu0 %v7448
        %7463 = vmatprep.subr.bf16.mxu0 0
        %7464 = vmatpush1.bf16.msra.mxu0 %v7449
        %7465 = vmatprep.subr.bf16.mxu0 0
        %7466 = vmatpush1.bf16.msra.mxu0 0
        %7467 = vmatprep.subr.bf16.mxu0 0
        %7468 = vmatpush1.bf16.msra.mxu0 0
        %7469 = vmatprep.subr.bf16.mxu0 0
        %7470 = vmatpush1.bf16.msra.mxu0 0
        %7471 = vmatprep.subr.bf16.mxu0 0
        %7472 = vmatpush1.bf16.msra.mxu0 0
        %7473 = vmatprep.subr.bf16.mxu0 0
        %7474 = vmatpush1.bf16.msra.mxu0 0
        %7475 = vmatprep.subr.bf16.mxu0 0
        %7476 = vmatpush1.bf16.msra.mxu0 0
        %7477 = vmatprep.subr.bf16.mxu0 0
        %7478 = vmatpush1.bf16.msra.mxu0 0
        %7479 = vmatprep.subr.bf16.mxu0 0
        %7480 = vmatpush1.bf16.msra.mxu0 0
        %7481 = vmatprep.subr.bf16.mxu0 0
        %7482 = vmatpush1.bf16.msra.mxu0 0
        %7483 = vmatprep.subr.bf16.mxu0 0
        %7484 = vmatpush1.bf16.msra.mxu0 0
        %7485 = vmatprep.subr.bf16.mxu0 0
        %7486 = vmatpush1.bf16.msra.mxu0 0
        %7487 = vmatprep.subr.bf16.mxu0 0
        %7488 = vmatpush1.bf16.msra.mxu0 0
        %7489 = vmatprep.mubr.bf16.mxu0 0
        %7490 = vmatmul.mubr.bf16.gmra.mrb[0].mxu0 %v7455
        %v7491 = vpop.f32.mrb[0].mxu0
        %v7492 = vadd.f32 0.0, %v7491
        %v7493 = vpop.f32.mrb[0].mxu0
        %v7494 = vpop.f32.mrb[0].mxu0
        %v7495 = vpop.f32.mrb[0].mxu0
        %7496 = vdwg.mxu0
        %v7497 = vadd.f32 %v7419, %v7492
        %v7498 = vld [vmem:[#allocation5 + $0x2e] sm:$0x1]
        %v7499 = vpack.c.bf16 %v7498, %v7498
        %v7500 = vld [vmem:[#allocation9 + $0x5c0] sm:$0xf]
        %v7501 = vld [vmem:[#allocation9 + $0x5c4] sm:$0xf]
        %v7502 = vld [vmem:[#allocation9 + $0x5c8] sm:$0xf]
        %v7503 = vld [vmem:[#allocation9 + $0x5cc] sm:$0xf]
        %v7504 = vld [vmem:[#allocation9 + $0x5d0] sm:$0xf]
        %v7505 = vld [vmem:[#allocation9 + $0x5d4] sm:$0xf]
        %v7506 = vld [vmem:[#allocation9 + $0x5d8] sm:$0xf]
        %v7507 = vld [vmem:[#allocation9 + $0x5dc] sm:$0xf]
        %v7516 = vunpack.c.l.b16 %v7500
        %v7517 = vunpack.c.l.b16 %v7501
        %v7518 = vunpack.c.l.b16 %v7502
        %v7519 = vunpack.c.l.b16 %v7503
        %v7520 = vunpack.c.l.b16 %v7504
        %v7521 = vunpack.c.l.b16 %v7505
        %v7522 = vunpack.c.l.b16 %v7506
        %v7523 = vunpack.c.l.b16 %v7507
        %v7524 = vpack.c.b16 %v7517, %v7516
        %v7525 = vpack.c.b16 %v7519, %v7518
        %v7526 = vpack.c.b16 %v7521, %v7520
        %v7527 = vpack.c.b16 %v7523, %v7522
        %v7533 = vsel %vm2566, %v7499, 0
        %7535 = vmatprep.subr.bf16.mxu0 0
        %7536 = vmatpush1.bf16.msra.mxu0 %v7524
        %7537 = vmatprep.subr.bf16.mxu0 0
        %7538 = vmatpush1.bf16.msra.mxu0 %v7525
        %7539 = vmatprep.subr.bf16.mxu0 0
        %7540 = vmatpush1.bf16.msra.mxu0 %v7526
        %7541 = vmatprep.subr.bf16.mxu0 0
        %7542 = vmatpush1.bf16.msra.mxu0 %v7527
        %7543 = vmatprep.subr.bf16.mxu0 0
        %7544 = vmatpush1.bf16.msra.mxu0 0
        %7545 = vmatprep.subr.bf16.mxu0 0
        %7546 = vmatpush1.bf16.msra.mxu0 0
        %7547 = vmatprep.subr.bf16.mxu0 0
        %7548 = vmatpush1.bf16.msra.mxu0 0
        %7549 = vmatprep.subr.bf16.mxu0 0
        %7550 = vmatpush1.bf16.msra.mxu0 0
        %7551 = vmatprep.subr.bf16.mxu0 0
        %7552 = vmatpush1.bf16.msra.mxu0 0
        %7553 = vmatprep.subr.bf16.mxu0 0
        %7554 = vmatpush1.bf16.msra.mxu0 0
        %7555 = vmatprep.subr.bf16.mxu0 0
        %7556 = vmatpush1.bf16.msra.mxu0 0
        %7557 = vmatprep.subr.bf16.mxu0 0
        %7558 = vmatpush1.bf16.msra.mxu0 0
        %7559 = vmatprep.subr.bf16.mxu0 0
        %7560 = vmatpush1.bf16.msra.mxu0 0
        %7561 = vmatprep.subr.bf16.mxu0 0
        %7562 = vmatpush1.bf16.msra.mxu0 0
        %7563 = vmatprep.subr.bf16.mxu0 0
        %7564 = vmatpush1.bf16.msra.mxu0 0
        %7565 = vmatprep.subr.bf16.mxu0 0
        %7566 = vmatpush1.bf16.msra.mxu0 0
        %7567 = vmatprep.mubr.bf16.mxu0 0
        %7568 = vmatmul.mubr.bf16.gmra.mrb[0].mxu0 %v7533
        %v7569 = vpop.f32.mrb[0].mxu0
        %v7570 = vadd.f32 0.0, %v7569
        %v7571 = vpop.f32.mrb[0].mxu0
        %v7572 = vpop.f32.mrb[0].mxu0
        %v7573 = vpop.f32.mrb[0].mxu0
        %7574 = vdwg.mxu0
        %v7575 = vadd.f32 %v7497, %v7570
        %v7576 = vld [vmem:[#allocation5 + $0x2f] sm:$0x1]
        %v7577 = vpack.c.bf16 %v7576, %v7576
        %v7578 = vld [vmem:[#allocation9 + $0x5e0] sm:$0xf]
        %v7579 = vld [vmem:[#allocation9 + $0x5e4] sm:$0xf]
        %v7580 = vld [vmem:[#allocation9 + $0x5e8] sm:$0xf]
        %v7581 = vld [vmem:[#allocation9 + $0x5ec] sm:$0xf]
        %v7582 = vld [vmem:[#allocation9 + $0x5f0] sm:$0xf]
        %v7583 = vld [vmem:[#allocation9 + $0x5f4] sm:$0xf]
        %v7584 = vld [vmem:[#allocation9 + $0x5f8] sm:$0xf]
        %v7585 = vld [vmem:[#allocation9 + $0x5fc] sm:$0xf]
        %v7594 = vunpack.c.l.b16 %v7578
        %v7595 = vunpack.c.l.b16 %v7579
        %v7596 = vunpack.c.l.b16 %v7580
        %v7597 = vunpack.c.l.b16 %v7581
        %v7598 = vunpack.c.l.b16 %v7582
        %v7599 = vunpack.c.l.b16 %v7583
        %v7600 = vunpack.c.l.b16 %v7584
        %v7601 = vunpack.c.l.b16 %v7585
        %v7602 = vpack.c.b16 %v7595, %v7594
        %v7603 = vpack.c.b16 %v7597, %v7596
        %v7604 = vpack.c.b16 %v7599, %v7598
        %v7605 = vpack.c.b16 %v7601, %v7600
        %v7611 = vsel %vm2566, %v7577, 0
        %7613 = vmatprep.subr.bf16.mxu0 0
        %7614 = vmatpush1.bf16.msra.mxu0 %v7602
        %7615 = vmatprep.subr.bf16.mxu0 0
        %7616 = vmatpush1.bf16.msra.mxu0 %v7603
        %7617 = vmatprep.subr.bf16.mxu0 0
        %7618 = vmatpush1.bf16.msra.mxu0 %v7604
        %7619 = vmatprep.subr.bf16.mxu0 0
        %7620 = vmatpush1.bf16.msra.mxu0 %v7605
        %7621 = vmatprep.subr.bf16.mxu0 0
        %7622 = vmatpush1.bf16.msra.mxu0 0
        %7623 = vmatprep.subr.bf16.mxu0 0
        %7624 = vmatpush1.bf16.msra.mxu0 0
        %7625 = vmatprep.subr.bf16.mxu0 0
        %7626 = vmatpush1.bf16.msra.mxu0 0
        %7627 = vmatprep.subr.bf16.mxu0 0
        %7628 = vmatpush1.bf16.msra.mxu0 0
        %7629 = vmatprep.subr.bf16.mxu0 0
        %7630 = vmatpush1.bf16.msra.mxu0 0
        %7631 = vmatprep.subr.bf16.mxu0 0
        %7632 = vmatpush1.bf16.msra.mxu0 0
        %7633 = vmatprep.subr.bf16.mxu0 0
        %7634 = vmatpush1.bf16.msra.mxu0 0
        %7635 = vmatprep.subr.bf16.mxu0 0
        %7636 = vmatpush1.bf16.msra.mxu0 0
        %7637 = vmatprep.subr.bf16.mxu0 0
        %7638 = vmatpush1.bf16.msra.mxu0 0
        %7639 = vmatprep.subr.bf16.mxu0 0
        %7640 = vmatpush1.bf16.msra.mxu0 0
        %7641 = vmatprep.subr.bf16.mxu0 0
        %7642 = vmatpush1.bf16.msra.mxu0 0
        %7643 = vmatprep.subr.bf16.mxu0 0
        %7644 = vmatpush1.bf16.msra.mxu0 0
        %7645 = vmatprep.mubr.bf16.mxu0 0
        %7646 = vmatmul.mubr.bf16.gmra.mrb[0].mxu0 %v7611
        %v7647 = vpop.f32.mrb[0].mxu0
        %v7648 = vadd.f32 0.0, %v7647
        %v7649 = vpop.f32.mrb[0].mxu0
        %v7650 = vpop.f32.mrb[0].mxu0
        %v7651 = vpop.f32.mrb[0].mxu0
        %7652 = vdwg.mxu0
        %v7653 = vadd.f32 %v7575, %v7648
        %v7654 = vld [vmem:[#allocation5 + $0x30] sm:$0x1]
        %v7655 = vpack.c.bf16 %v7654, %v7654
        %v7656 = vld [vmem:[#allocation9 + $0x600] sm:$0xf]
        %v7657 = vld [vmem:[#allocation9 + $0x604] sm:$0xf]
        %v7658 = vld [vmem:[#allocation9 + $0x608] sm:$0xf]
        %v7659 = vld [vmem:[#allocation9 + $0x60c] sm:$0xf]
        %v7660 = vld [vmem:[#allocation9 + $0x610] sm:$0xf]
        %v7661 = vld [vmem:[#allocation9 + $0x614] sm:$0xf]
        %v7662 = vld [vmem:[#allocation9 + $0x618] sm:$0xf]
        %v7663 = vld [vmem:[#allocation9 + $0x61c] sm:$0xf]
        %v7672 = vunpack.c.l.b16 %v7656
        %v7673 = vunpack.c.l.b16 %v7657
        %v7674 = vunpack.c.l.b16 %v7658
        %v7675 = vunpack.c.l.b16 %v7659
        %v7676 = vunpack.c.l.b16 %v7660
        %v7677 = vunpack.c.l.b16 %v7661
        %v7678 = vunpack.c.l.b16 %v7662
        %v7679 = vunpack.c.l.b16 %v7663
        %v7680 = vpack.c.b16 %v7673, %v7672
        %v7681 = vpack.c.b16 %v7675, %v7674
        %v7682 = vpack.c.b16 %v7677, %v7676
        %v7683 = vpack.c.b16 %v7679, %v7678
        %v7689 = vsel %vm2566, %v7655, 0
        %7691 = vmatprep.subr.bf16.mxu0 0
        %7692 = vmatpush1.bf16.msra.mxu0 %v7680
        %7693 = vmatprep.subr.bf16.mxu0 0
        %7694 = vmatpush1.bf16.msra.mxu0 %v7681
        %7695 = vmatprep.subr.bf16.mxu0 0
        %7696 = vmatpush1.bf16.msra.mxu0 %v7682
        %7697 = vmatprep.subr.bf16.mxu0 0
        %7698 = vmatpush1.bf16.msra.mxu0 %v7683
        %7699 = vmatprep.subr.bf16.mxu0 0
        %7700 = vmatpush1.bf16.msra.mxu0 0
        %7701 = vmatprep.subr.bf16.mxu0 0
        %7702 = vmatpush1.bf16.msra.mxu0 0
        %7703 = vmatprep.subr.bf16.mxu0 0
        %7704 = vmatpush1.bf16.msra.mxu0 0
        %7705 = vmatprep.subr.bf16.mxu0 0
        %7706 = vmatpush1.bf16.msra.mxu0 0
        %7707 = vmatprep.subr.bf16.mxu0 0
        %7708 = vmatpush1.bf16.msra.mxu0 0
        %7709 = vmatprep.subr.bf16.mxu0 0
        %7710 = vmatpush1.bf16.msra.mxu0 0
        %7711 = vmatprep.subr.bf16.mxu0 0
        %7712 = vmatpush1.bf16.msra.mxu0 0
        %7713 = vmatprep.subr.bf16.mxu0 0
        %7714 = vmatpush1.bf16.msra.mxu0 0
        %7715 = vmatprep.subr.bf16.mxu0 0
        %7716 = vmatpush1.bf16.msra.mxu0 0
        %7717 = vmatprep.subr.bf16.mxu0 0
        %7718 = vmatpush1.bf16.msra.mxu0 0
        %7719 = vmatprep.subr.bf16.mxu0 0
        %7720 = vmatpush1.bf16.msra.mxu0 0
        %7721 = vmatprep.subr.bf16.mxu0 0
        %7722 = vmatpush1.bf16.msra.mxu0 0
        %7723 = vmatprep.mubr.bf16.mxu0 0
        %7724 = vmatmul.mubr.bf16.gmra.mrb[0].mxu0 %v7689
        %v7725 = vpop.f32.mrb[0].mxu0
        %v7726 = vadd.f32 0.0, %v7725
        %v7727 = vpop.f32.mrb[0].mxu0
        %v7728 = vpop.f32.mrb[0].mxu0
        %v7729 = vpop.f32.mrb[0].mxu0
        %7730 = vdwg.mxu0
        %v7731 = vadd.f32 %v7653, %v7726
        %v7732 = vld [vmem:[#allocation5 + $0x31] sm:$0x1]
        %v7733 = vpack.c.bf16 %v7732, %v7732
        %v7734 = vld [vmem:[#allocation9 + $0x620] sm:$0xf]
        %v7735 = vld [vmem:[#allocation9 + $0x624] sm:$0xf]
        %v7736 = vld [vmem:[#allocation9 + $0x628] sm:$0xf]
        %v7737 = vld [vmem:[#allocation9 + $0x62c] sm:$0xf]
        %v7738 = vld [vmem:[#allocation9 + $0x630] sm:$0xf]
        %v7739 = vld [vmem:[#allocation9 + $0x634] sm:$0xf]
        %v7740 = vld [vmem:[#allocation9 + $0x638] sm:$0xf]
        %v7741 = vld [vmem:[#allocation9 + $0x63c] sm:$0xf]
        %v7750 = vunpack.c.l.b16 %v7734
        %v7751 = vunpack.c.l.b16 %v7735
        %v7752 = vunpack.c.l.b16 %v7736
        %v7753 = vunpack.c.l.b16 %v7737
        %v7754 = vunpack.c.l.b16 %v7738
        %v7755 = vunpack.c.l.b16 %v7739
        %v7756 = vunpack.c.l.b16 %v7740
        %v7757 = vunpack.c.l.b16 %v7741
        %v7758 = vpack.c.b16 %v7751, %v7750
        %v7759 = vpack.c.b16 %v7753, %v7752
        %v7760 = vpack.c.b16 %v7755, %v7754
        %v7761 = vpack.c.b16 %v7757, %v7756
        %v7767 = vsel %vm2566, %v7733, 0
        %7769 = vmatprep.subr.bf16.mxu0 0
        %7770 = vmatpush1.bf16.msra.mxu0 %v7758
        %7771 = vmatprep.subr.bf16.mxu0 0
        %7772 = vmatpush1.bf16.msra.mxu0 %v7759
        %7773 = vmatprep.subr.bf16.mxu0 0
        %7774 = vmatpush1.bf16.msra.mxu0 %v7760
        %7775 = vmatprep.subr.bf16.mxu0 0
        %7776 = vmatpush1.bf16.msra.mxu0 %v7761
        %7777 = vmatprep.subr.bf16.mxu0 0
        %7778 = vmatpush1.bf16.msra.mxu0 0
        %7779 = vmatprep.subr.bf16.mxu0 0
        %7780 = vmatpush1.bf16.msra.mxu0 0
        %7781 = vmatprep.subr.bf16.mxu0 0
        %7782 = vmatpush1.bf16.msra.mxu0 0
        %7783 = vmatprep.subr.bf16.mxu0 0
        %7784 = vmatpush1.bf16.msra.mxu0 0
        %7785 = vmatprep.subr.bf16.mxu0 0
        %7786 = vmatpush1.bf16.msra.mxu0 0
        %7787 = vmatprep.subr.bf16.mxu0 0
        %7788 = vmatpush1.bf16.msra.mxu0 0
        %7789 = vmatprep.subr.bf16.mxu0 0
        %7790 = vmatpush1.bf16.msra.mxu0 0
        %7791 = vmatprep.subr.bf16.mxu0 0
        %7792 = vmatpush1.bf16.msra.mxu0 0
        %7793 = vmatprep.subr.bf16.mxu0 0
        %7794 = vmatpush1.bf16.msra.mxu0 0
        %7795 = vmatprep.subr.bf16.mxu0 0
        %7796 = vmatpush1.bf16.msra.mxu0 0
        %7797 = vmatprep.subr.bf16.mxu0 0
        %7798 = vmatpush1.bf16.msra.mxu0 0
        %7799 = vmatprep.subr.bf16.mxu0 0
        %7800 = vmatpush1.bf16.msra.mxu0 0
        %7801 = vmatprep.mubr.bf16.mxu0 0
        %7802 = vmatmul.mubr.bf16.gmra.mrb[0].mxu0 %v7767
        %v7803 = vpop.f32.mrb[0].mxu0
        %v7804 = vadd.f32 0.0, %v7803
        %v7805 = vpop.f32.mrb[0].mxu0
        %v7806 = vpop.f32.mrb[0].mxu0
        %v7807 = vpop.f32.mrb[0].mxu0
        %7808 = vdwg.mxu0
        %v7809 = vadd.f32 %v7731, %v7804
        %v7810 = vld [vmem:[#allocation5 + $0x32] sm:$0x1]
        %v7811 = vpack.c.bf16 %v7810, %v7810
        %v7812 = vld [vmem:[#allocation9 + $0x640] sm:$0xf]
        %v7813 = vld [vmem:[#allocation9 + $0x644] sm:$0xf]
        %v7814 = vld [vmem:[#allocation9 + $0x648] sm:$0xf]
        %v7815 = vld [vmem:[#allocation9 + $0x64c] sm:$0xf]
        %v7816 = vld [vmem:[#allocation9 + $0x650] sm:$0xf]
        %v7817 = vld [vmem:[#allocation9 + $0x654] sm:$0xf]
        %v7818 = vld [vmem:[#allocation9 + $0x658] sm:$0xf]
        %v7819 = vld [vmem:[#allocation9 + $0x65c] sm:$0xf]
        %v7828 = vunpack.c.l.b16 %v7812
        %v7829 = vunpack.c.l.b16 %v7813
        %v7830 = vunpack.c.l.b16 %v7814
        %v7831 = vunpack.c.l.b16 %v7815
        %v7832 = vunpack.c.l.b16 %v7816
        %v7833 = vunpack.c.l.b16 %v7817
        %v7834 = vunpack.c.l.b16 %v7818
        %v7835 = vunpack.c.l.b16 %v7819
        %v7836 = vpack.c.b16 %v7829, %v7828
        %v7837 = vpack.c.b16 %v7831, %v7830
        %v7838 = vpack.c.b16 %v7833, %v7832
        %v7839 = vpack.c.b16 %v7835, %v7834
        %v7845 = vsel %vm2566, %v7811, 0
        %7847 = vmatprep.subr.bf16.mxu0 0
        %7848 = vmatpush1.bf16.msra.mxu0 %v7836
        %7849 = vmatprep.subr.bf16.mxu0 0
        %7850 = vmatpush1.bf16.msra.mxu0 %v7837
        %7851 = vmatprep.subr.bf16.mxu0 0
        %7852 = vmatpush1.bf16.msra.mxu0 %v7838
        %7853 = vmatprep.subr.bf16.mxu0 0
        %7854 = vmatpush1.bf16.msra.mxu0 %v7839
        %7855 = vmatprep.subr.bf16.mxu0 0
        %7856 = vmatpush1.bf16.msra.mxu0 0
        %7857 = vmatprep.subr.bf16.mxu0 0
        %7858 = vmatpush1.bf16.msra.mxu0 0
        %7859 = vmatprep.subr.bf16.mxu0 0
        %7860 = vmatpush1.bf16.msra.mxu0 0
        %7861 = vmatprep.subr.bf16.mxu0 0
        %7862 = vmatpush1.bf16.msra.mxu0 0
        %7863 = vmatprep.subr.bf16.mxu0 0
        %7864 = vmatpush1.bf16.msra.mxu0 0
        %7865 = vmatprep.subr.bf16.mxu0 0
        %7866 = vmatpush1.bf16.msra.mxu0 0
        %7867 = vmatprep.subr.bf16.mxu0 0
        %7868 = vmatpush1.bf16.msra.mxu0 0
        %7869 = vmatprep.subr.bf16.mxu0 0
        %7870 = vmatpush1.bf16.msra.mxu0 0
        %7871 = vmatprep.subr.bf16.mxu0 0
        %7872 = vmatpush1.bf16.msra.mxu0 0
        %7873 = vmatprep.subr.bf16.mxu0 0
        %7874 = vmatpush1.bf16.msra.mxu0 0
        %7875 = vmatprep.subr.bf16.mxu0 0
        %7876 = vmatpush1.bf16.msra.mxu0 0
        %7877 = vmatprep.subr.bf16.mxu0 0
        %7878 = vmatpush1.bf16.msra.mxu0 0
        %7879 = vmatprep.mubr.bf16.mxu0 0
        %7880 = vmatmul.mubr.bf16.gmra.mrb[0].mxu0 %v7845
        %v7881 = vpop.f32.mrb[0].mxu0
        %v7882 = vadd.f32 0.0, %v7881
        %v7883 = vpop.f32.mrb[0].mxu0
        %v7884 = vpop.f32.mrb[0].mxu0
        %v7885 = vpop.f32.mrb[0].mxu0
        %7886 = vdwg.mxu0
        %v7887 = vadd.f32 %v7809, %v7882
        %v7888 = vld [vmem:[#allocation5 + $0x33] sm:$0x1]
        %v7889 = vpack.c.bf16 %v7888, %v7888
        %v7890 = vld [vmem:[#allocation9 + $0x660] sm:$0xf]
        %v7891 = vld [vmem:[#allocation9 + $0x664] sm:$0xf]
        %v7892 = vld [vmem:[#allocation9 + $0x668] sm:$0xf]
        %v7893 = vld [vmem:[#allocation9 + $0x66c] sm:$0xf]
        %v7894 = vld [vmem:[#allocation9 + $0x670] sm:$0xf]
        %v7895 = vld [vmem:[#allocation9 + $0x674] sm:$0xf]
        %v7896 = vld [vmem:[#allocation9 + $0x678] sm:$0xf]
        %v7897 = vld [vmem:[#allocation9 + $0x67c] sm:$0xf]
        %v7906 = vunpack.c.l.b16 %v7890
        %v7907 = vunpack.c.l.b16 %v7891
        %v7908 = vunpack.c.l.b16 %v7892
        %v7909 = vunpack.c.l.b16 %v7893
        %v7910 = vunpack.c.l.b16 %v7894
        %v7911 = vunpack.c.l.b16 %v7895
        %v7912 = vunpack.c.l.b16 %v7896
        %v7913 = vunpack.c.l.b16 %v7897
        %v7914 = vpack.c.b16 %v7907, %v7906
        %v7915 = vpack.c.b16 %v7909, %v7908
        %v7916 = vpack.c.b16 %v7911, %v7910
        %v7917 = vpack.c.b16 %v7913, %v7912
        %v7923 = vsel %vm2566, %v7889, 0
        %7925 = vmatprep.subr.bf16.mxu0 0
        %7926 = vmatpush1.bf16.msra.mxu0 %v7914
        %7927 = vmatprep.subr.bf16.mxu0 0
        %7928 = vmatpush1.bf16.msra.mxu0 %v7915
        %7929 = vmatprep.subr.bf16.mxu0 0
        %7930 = vmatpush1.bf16.msra.mxu0 %v7916
        %7931 = vmatprep.subr.bf16.mxu0 0
        %7932 = vmatpush1.bf16.msra.mxu0 %v7917
        %7933 = vmatprep.subr.bf16.mxu0 0
        %7934 = vmatpush1.bf16.msra.mxu0 0
        %7935 = vmatprep.subr.bf16.mxu0 0
        %7936 = vmatpush1.bf16.msra.mxu0 0
        %7937 = vmatprep.subr.bf16.mxu0 0
        %7938 = vmatpush1.bf16.msra.mxu0 0
        %7939 = vmatprep.subr.bf16.mxu0 0
        %7940 = vmatpush1.bf16.msra.mxu0 0
        %7941 = vmatprep.subr.bf16.mxu0 0
        %7942 = vmatpush1.bf16.msra.mxu0 0
        %7943 = vmatprep.subr.bf16.mxu0 0
        %7944 = vmatpush1.bf16.msra.mxu0 0
        %7945 = vmatprep.subr.bf16.mxu0 0
        %7946 = vmatpush1.bf16.msra.mxu0 0
        %7947 = vmatprep.subr.bf16.mxu0 0
        %7948 = vmatpush1.bf16.msra.mxu0 0
        %7949 = vmatprep.subr.bf16.mxu0 0
        %7950 = vmatpush1.bf16.msra.mxu0 0
        %7951 = vmatprep.subr.bf16.mxu0 0
        %7952 = vmatpush1.bf16.msra.mxu0 0
        %7953 = vmatprep.subr.bf16.mxu0 0
        %7954 = vmatpush1.bf16.msra.mxu0 0
        %7955 = vmatprep.subr.bf16.mxu0 0
        %7956 = vmatpush1.bf16.msra.mxu0 0
        %7957 = vmatprep.mubr.bf16.mxu0 0
        %7958 = vmatmul.mubr.bf16.gmra.mrb[0].mxu0 %v7923
        %v7959 = vpop.f32.mrb[0].mxu0
        %v7960 = vadd.f32 0.0, %v7959
        %v7961 = vpop.f32.mrb[0].mxu0
        %v7962 = vpop.f32.mrb[0].mxu0
        %v7963 = vpop.f32.mrb[0].mxu0
        %7964 = vdwg.mxu0
        %v7965 = vadd.f32 %v7887, %v7960
        %v7966 = vld [vmem:[#allocation5 + $0x34] sm:$0x1]
        %v7967 = vpack.c.bf16 %v7966, %v7966
        %v7968 = vld [vmem:[#allocation9 + $0x680] sm:$0xf]
        %v7969 = vld [vmem:[#allocation9 + $0x684] sm:$0xf]
        %v7970 = vld [vmem:[#allocation9 + $0x688] sm:$0xf]
        %v7971 = vld [vmem:[#allocation9 + $0x68c] sm:$0xf]
        %v7972 = vld [vmem:[#allocation9 + $0x690] sm:$0xf]
        %v7973 = vld [vmem:[#allocation9 + $0x694] sm:$0xf]
        %v7974 = vld [vmem:[#allocation9 + $0x698] sm:$0xf]
        %v7975 = vld [vmem:[#allocation9 + $0x69c] sm:$0xf]
        %v7984 = vunpack.c.l.b16 %v7968
        %v7985 = vunpack.c.l.b16 %v7969
        %v7986 = vunpack.c.l.b16 %v7970
        %v7987 = vunpack.c.l.b16 %v7971
        %v7988 = vunpack.c.l.b16 %v7972
        %v7989 = vunpack.c.l.b16 %v7973
        %v7990 = vunpack.c.l.b16 %v7974
        %v7991 = vunpack.c.l.b16 %v7975
        %v7992 = vpack.c.b16 %v7985, %v7984
        %v7993 = vpack.c.b16 %v7987, %v7986
        %v7994 = vpack.c.b16 %v7989, %v7988
        %v7995 = vpack.c.b16 %v7991, %v7990
        %v8001 = vsel %vm2566, %v7967, 0
        %8003 = vmatprep.subr.bf16.mxu0 0
        %8004 = vmatpush1.bf16.msra.mxu0 %v7992
        %8005 = vmatprep.subr.bf16.mxu0 0
        %8006 = vmatpush1.bf16.msra.mxu0 %v7993
        %8007 = vmatprep.subr.bf16.mxu0 0
        %8008 = vmatpush1.bf16.msra.mxu0 %v7994
        %8009 = vmatprep.subr.bf16.mxu0 0
        %8010 = vmatpush1.bf16.msra.mxu0 %v7995
        %8011 = vmatprep.subr.bf16.mxu0 0
        %8012 = vmatpush1.bf16.msra.mxu0 0
        %8013 = vmatprep.subr.bf16.mxu0 0
        %8014 = vmatpush1.bf16.msra.mxu0 0
        %8015 = vmatprep.subr.bf16.mxu0 0
        %8016 = vmatpush1.bf16.msra.mxu0 0
        %8017 = vmatprep.subr.bf16.mxu0 0
        %8018 = vmatpush1.bf16.msra.mxu0 0
        %8019 = vmatprep.subr.bf16.mxu0 0
        %8020 = vmatpush1.bf16.msra.mxu0 0
        %8021 = vmatprep.subr.bf16.mxu0 0
        %8022 = vmatpush1.bf16.msra.mxu0 0
        %8023 = vmatprep.subr.bf16.mxu0 0
        %8024 = vmatpush1.bf16.msra.mxu0 0
        %8025 = vmatprep.subr.bf16.mxu0 0
        %8026 = vmatpush1.bf16.msra.mxu0 0
        %8027 = vmatprep.subr.bf16.mxu0 0
        %8028 = vmatpush1.bf16.msra.mxu0 0
        %8029 = vmatprep.subr.bf16.mxu0 0
        %8030 = vmatpush1.bf16.msra.mxu0 0
        %8031 = vmatprep.subr.bf16.mxu0 0
        %8032 = vmatpush1.bf16.msra.mxu0 0
        %8033 = vmatprep.subr.bf16.mxu0 0
        %8034 = vmatpush1.bf16.msra.mxu0 0
        %8035 = vmatprep.mubr.bf16.mxu0 0
        %8036 = vmatmul.mubr.bf16.gmra.mrb[0].mxu0 %v8001
        %v8037 = vpop.f32.mrb[0].mxu0
        %v8038 = vadd.f32 0.0, %v8037
        %v8039 = vpop.f32.mrb[0].mxu0
        %v8040 = vpop.f32.mrb[0].mxu0
        %v8041 = vpop.f32.mrb[0].mxu0
        %8042 = vdwg.mxu0
        %v8043 = vadd.f32 %v7965, %v8038
        %v8044 = vld [vmem:[#allocation5 + $0x35] sm:$0x1]
        %v8045 = vpack.c.bf16 %v8044, %v8044
        %v8046 = vld [vmem:[#allocation9 + $0x6a0] sm:$0xf]
        %v8047 = vld [vmem:[#allocation9 + $0x6a4] sm:$0xf]
        %v8048 = vld [vmem:[#allocation9 + $0x6a8] sm:$0xf]
        %v8049 = vld [vmem:[#allocation9 + $0x6ac] sm:$0xf]
        %v8050 = vld [vmem:[#allocation9 + $0x6b0] sm:$0xf]
        %v8051 = vld [vmem:[#allocation9 + $0x6b4] sm:$0xf]
        %v8052 = vld [vmem:[#allocation9 + $0x6b8] sm:$0xf]
        %v8053 = vld [vmem:[#allocation9 + $0x6bc] sm:$0xf]
        %v8062 = vunpack.c.l.b16 %v8046
        %v8063 = vunpack.c.l.b16 %v8047
        %v8064 = vunpack.c.l.b16 %v8048
        %v8065 = vunpack.c.l.b16 %v8049
        %v8066 = vunpack.c.l.b16 %v8050
        %v8067 = vunpack.c.l.b16 %v8051
        %v8068 = vunpack.c.l.b16 %v8052
        %v8069 = vunpack.c.l.b16 %v8053
        %v8070 = vpack.c.b16 %v8063, %v8062
        %v8071 = vpack.c.b16 %v8065, %v8064
        %v8072 = vpack.c.b16 %v8067, %v8066
        %v8073 = vpack.c.b16 %v8069, %v8068
        %v8079 = vsel %vm2566, %v8045, 0
        %8081 = vmatprep.subr.bf16.mxu0 0
        %8082 = vmatpush1.bf16.msra.mxu0 %v8070
        %8083 = vmatprep.subr.bf16.mxu0 0
        %8084 = vmatpush1.bf16.msra.mxu0 %v8071
        %8085 = vmatprep.subr.bf16.mxu0 0
        %8086 = vmatpush1.bf16.msra.mxu0 %v8072
        %8087 = vmatprep.subr.bf16.mxu0 0
        %8088 = vmatpush1.bf16.msra.mxu0 %v8073
        %8089 = vmatprep.subr.bf16.mxu0 0
        %8090 = vmatpush1.bf16.msra.mxu0 0
        %8091 = vmatprep.subr.bf16.mxu0 0
        %8092 = vmatpush1.bf16.msra.mxu0 0
        %8093 = vmatprep.subr.bf16.mxu0 0
        %8094 = vmatpush1.bf16.msra.mxu0 0
        %8095 = vmatprep.subr.bf16.mxu0 0
        %8096 = vmatpush1.bf16.msra.mxu0 0
        %8097 = vmatprep.subr.bf16.mxu0 0
        %8098 = vmatpush1.bf16.msra.mxu0 0
        %8099 = vmatprep.subr.bf16.mxu0 0
        %8100 = vmatpush1.bf16.msra.mxu0 0
        %8101 = vmatprep.subr.bf16.mxu0 0
        %8102 = vmatpush1.bf16.msra.mxu0 0
        %8103 = vmatprep.subr.bf16.mxu0 0
        %8104 = vmatpush1.bf16.msra.mxu0 0
        %8105 = vmatprep.subr.bf16.mxu0 0
        %8106 = vmatpush1.bf16.msra.mxu0 0
        %8107 = vmatprep.subr.bf16.mxu0 0
        %8108 = vmatpush1.bf16.msra.mxu0 0
        %8109 = vmatprep.subr.bf16.mxu0 0
        %8110 = vmatpush1.bf16.msra.mxu0 0
        %8111 = vmatprep.subr.bf16.mxu0 0
        %8112 = vmatpush1.bf16.msra.mxu0 0
        %8113 = vmatprep.mubr.bf16.mxu0 0
        %8114 = vmatmul.mubr.bf16.gmra.mrb[0].mxu0 %v8079
        %v8115 = vpop.f32.mrb[0].mxu0
        %v8116 = vadd.f32 0.0, %v8115
        %v8117 = vpop.f32.mrb[0].mxu0
        %v8118 = vpop.f32.mrb[0].mxu0
        %v8119 = vpop.f32.mrb[0].mxu0
        %8120 = vdwg.mxu0
        %v8121 = vadd.f32 %v8043, %v8116
        %v8122 = vld [vmem:[#allocation5 + $0x36] sm:$0x1]
        %v8123 = vpack.c.bf16 %v8122, %v8122
        %v8124 = vld [vmem:[#allocation9 + $0x6c0] sm:$0xf]
        %v8125 = vld [vmem:[#allocation9 + $0x6c4] sm:$0xf]
        %v8126 = vld [vmem:[#allocation9 + $0x6c8] sm:$0xf]
        %v8127 = vld [vmem:[#allocation9 + $0x6cc] sm:$0xf]
        %v8128 = vld [vmem:[#allocation9 + $0x6d0] sm:$0xf]
        %v8129 = vld [vmem:[#allocation9 + $0x6d4] sm:$0xf]
        %v8130 = vld [vmem:[#allocation9 + $0x6d8] sm:$0xf]
        %v8131 = vld [vmem:[#allocation9 + $0x6dc] sm:$0xf]
        %v8140 = vunpack.c.l.b16 %v8124
        %v8141 = vunpack.c.l.b16 %v8125
        %v8142 = vunpack.c.l.b16 %v8126
        %v8143 = vunpack.c.l.b16 %v8127
        %v8144 = vunpack.c.l.b16 %v8128
        %v8145 = vunpack.c.l.b16 %v8129
        %v8146 = vunpack.c.l.b16 %v8130
        %v8147 = vunpack.c.l.b16 %v8131
        %v8148 = vpack.c.b16 %v8141, %v8140
        %v8149 = vpack.c.b16 %v8143, %v8142
        %v8150 = vpack.c.b16 %v8145, %v8144
        %v8151 = vpack.c.b16 %v8147, %v8146
        %v8157 = vsel %vm2566, %v8123, 0
        %8159 = vmatprep.subr.bf16.mxu0 0
        %8160 = vmatpush1.bf16.msra.mxu0 %v8148
        %8161 = vmatprep.subr.bf16.mxu0 0
        %8162 = vmatpush1.bf16.msra.mxu0 %v8149
        %8163 = vmatprep.subr.bf16.mxu0 0
        %8164 = vmatpush1.bf16.msra.mxu0 %v8150
        %8165 = vmatprep.subr.bf16.mxu0 0
        %8166 = vmatpush1.bf16.msra.mxu0 %v8151
        %8167 = vmatprep.subr.bf16.mxu0 0
        %8168 = vmatpush1.bf16.msra.mxu0 0
        %8169 = vmatprep.subr.bf16.mxu0 0
        %8170 = vmatpush1.bf16.msra.mxu0 0
        %8171 = vmatprep.subr.bf16.mxu0 0
        %8172 = vmatpush1.bf16.msra.mxu0 0
        %8173 = vmatprep.subr.bf16.mxu0 0
        %8174 = vmatpush1.bf16.msra.mxu0 0
        %8175 = vmatprep.subr.bf16.mxu0 0
        %8176 = vmatpush1.bf16.msra.mxu0 0
        %8177 = vmatprep.subr.bf16.mxu0 0
        %8178 = vmatpush1.bf16.msra.mxu0 0
        %8179 = vmatprep.subr.bf16.mxu0 0
        %8180 = vmatpush1.bf16.msra.mxu0 0
        %8181 = vmatprep.subr.bf16.mxu0 0
        %8182 = vmatpush1.bf16.msra.mxu0 0
        %8183 = vmatprep.subr.bf16.mxu0 0
        %8184 = vmatpush1.bf16.msra.mxu0 0
        %8185 = vmatprep.subr.bf16.mxu0 0
        %8186 = vmatpush1.bf16.msra.mxu0 0
        %8187 = vmatprep.subr.bf16.mxu0 0
        %8188 = vmatpush1.bf16.msra.mxu0 0
        %8189 = vmatprep.subr.bf16.mxu0 0
        %8190 = vmatpush1.bf16.msra.mxu0 0
        %8191 = vmatprep.mubr.bf16.mxu0 0
        %8192 = vmatmul.mubr.bf16.gmra.mrb[0].mxu0 %v8157
        %v8193 = vpop.f32.mrb[0].mxu0
        %v8194 = vadd.f32 0.0, %v8193
        %v8195 = vpop.f32.mrb[0].mxu0
        %v8196 = vpop.f32.mrb[0].mxu0
        %v8197 = vpop.f32.mrb[0].mxu0
        %8198 = vdwg.mxu0
        %v8199 = vadd.f32 %v8121, %v8194
        %v8200 = vld [vmem:[#allocation5 + $0x37] sm:$0x1]
        %v8201 = vpack.c.bf16 %v8200, %v8200
        %v8202 = vld [vmem:[#allocation9 + $0x6e0] sm:$0xf]
        %v8203 = vld [vmem:[#allocation9 + $0x6e4] sm:$0xf]
        %v8204 = vld [vmem:[#allocation9 + $0x6e8] sm:$0xf]
        %v8205 = vld [vmem:[#allocation9 + $0x6ec] sm:$0xf]
        %v8206 = vld [vmem:[#allocation9 + $0x6f0] sm:$0xf]
        %v8207 = vld [vmem:[#allocation9 + $0x6f4] sm:$0xf]
        %v8208 = vld [vmem:[#allocation9 + $0x6f8] sm:$0xf]
        %v8209 = vld [vmem:[#allocation9 + $0x6fc] sm:$0xf]
        %v8218 = vunpack.c.l.b16 %v8202
        %v8219 = vunpack.c.l.b16 %v8203
        %v8220 = vunpack.c.l.b16 %v8204
        %v8221 = vunpack.c.l.b16 %v8205
        %v8222 = vunpack.c.l.b16 %v8206
        %v8223 = vunpack.c.l.b16 %v8207
        %v8224 = vunpack.c.l.b16 %v8208
        %v8225 = vunpack.c.l.b16 %v8209
        %v8226 = vpack.c.b16 %v8219, %v8218
        %v8227 = vpack.c.b16 %v8221, %v8220
        %v8228 = vpack.c.b16 %v8223, %v8222
        %v8229 = vpack.c.b16 %v8225, %v8224
        %v8235 = vsel %vm2566, %v8201, 0
        %8237 = vmatprep.subr.bf16.mxu0 0
        %8238 = vmatpush1.bf16.msra.mxu0 %v8226
        %8239 = vmatprep.subr.bf16.mxu0 0
        %8240 = vmatpush1.bf16.msra.mxu0 %v8227
        %8241 = vmatprep.subr.bf16.mxu0 0
        %8242 = vmatpush1.bf16.msra.mxu0 %v8228
        %8243 = vmatprep.subr.bf16.mxu0 0
        %8244 = vmatpush1.bf16.msra.mxu0 %v8229
        %8245 = vmatprep.subr.bf16.mxu0 0
        %8246 = vmatpush1.bf16.msra.mxu0 0
        %8247 = vmatprep.subr.bf16.mxu0 0
        %8248 = vmatpush1.bf16.msra.mxu0 0
        %8249 = vmatprep.subr.bf16.mxu0 0
        %8250 = vmatpush1.bf16.msra.mxu0 0
        %8251 = vmatprep.subr.bf16.mxu0 0
        %8252 = vmatpush1.bf16.msra.mxu0 0
        %8253 = vmatprep.subr.bf16.mxu0 0
        %8254 = vmatpush1.bf16.msra.mxu0 0
        %8255 = vmatprep.subr.bf16.mxu0 0
        %8256 = vmatpush1.bf16.msra.mxu0 0
        %8257 = vmatprep.subr.bf16.mxu0 0
        %8258 = vmatpush1.bf16.msra.mxu0 0
        %8259 = vmatprep.subr.bf16.mxu0 0
        %8260 = vmatpush1.bf16.msra.mxu0 0
        %8261 = vmatprep.subr.bf16.mxu0 0
        %8262 = vmatpush1.bf16.msra.mxu0 0
        %8263 = vmatprep.subr.bf16.mxu0 0
        %8264 = vmatpush1.bf16.msra.mxu0 0
        %8265 = vmatprep.subr.bf16.mxu0 0
        %8266 = vmatpush1.bf16.msra.mxu0 0
        %8267 = vmatprep.subr.bf16.mxu0 0
        %8268 = vmatpush1.bf16.msra.mxu0 0
        %8269 = vmatprep.mubr.bf16.mxu0 0
        %8270 = vmatmul.mubr.bf16.gmra.mrb[0].mxu0 %v8235
        %v8271 = vpop.f32.mrb[0].mxu0
        %v8272 = vadd.f32 0.0, %v8271
        %v8273 = vpop.f32.mrb[0].mxu0
        %v8274 = vpop.f32.mrb[0].mxu0
        %v8275 = vpop.f32.mrb[0].mxu0
        %8276 = vdwg.mxu0
        %v8277 = vadd.f32 %v8199, %v8272
        %v8278 = vld [vmem:[#allocation5 + $0x38] sm:$0x1]
        %v8279 = vpack.c.bf16 %v8278, %v8278
        %v8280 = vld [vmem:[#allocation9 + $0x700] sm:$0xf]
        %v8281 = vld [vmem:[#allocation9 + $0x704] sm:$0xf]
        %v8282 = vld [vmem:[#allocation9 + $0x708] sm:$0xf]
        %v8283 = vld [vmem:[#allocation9 + $0x70c] sm:$0xf]
        %v8284 = vld [vmem:[#allocation9 + $0x710] sm:$0xf]
        %v8285 = vld [vmem:[#allocation9 + $0x714] sm:$0xf]
        %v8286 = vld [vmem:[#allocation9 + $0x718] sm:$0xf]
        %v8287 = vld [vmem:[#allocation9 + $0x71c] sm:$0xf]
        %v8296 = vunpack.c.l.b16 %v8280
        %v8297 = vunpack.c.l.b16 %v8281
        %v8298 = vunpack.c.l.b16 %v8282
        %v8299 = vunpack.c.l.b16 %v8283
        %v8300 = vunpack.c.l.b16 %v8284
        %v8301 = vunpack.c.l.b16 %v8285
        %v8302 = vunpack.c.l.b16 %v8286
        %v8303 = vunpack.c.l.b16 %v8287
        %v8304 = vpack.c.b16 %v8297, %v8296
        %v8305 = vpack.c.b16 %v8299, %v8298
        %v8306 = vpack.c.b16 %v8301, %v8300
        %v8307 = vpack.c.b16 %v8303, %v8302
        %v8313 = vsel %vm2566, %v8279, 0
        %8315 = vmatprep.subr.bf16.mxu0 0
        %8316 = vmatpush1.bf16.msra.mxu0 %v8304
        %8317 = vmatprep.subr.bf16.mxu0 0
        %8318 = vmatpush1.bf16.msra.mxu0 %v8305
        %8319 = vmatprep.subr.bf16.mxu0 0
        %8320 = vmatpush1.bf16.msra.mxu0 %v8306
        %8321 = vmatprep.subr.bf16.mxu0 0
        %8322 = vmatpush1.bf16.msra.mxu0 %v8307
        %8323 = vmatprep.subr.bf16.mxu0 0
        %8324 = vmatpush1.bf16.msra.mxu0 0
        %8325 = vmatprep.subr.bf16.mxu0 0
        %8326 = vmatpush1.bf16.msra.mxu0 0
        %8327 = vmatprep.subr.bf16.mxu0 0
        %8328 = vmatpush1.bf16.msra.mxu0 0
        %8329 = vmatprep.subr.bf16.mxu0 0
        %8330 = vmatpush1.bf16.msra.mxu0 0
        %8331 = vmatprep.subr.bf16.mxu0 0
        %8332 = vmatpush1.bf16.msra.mxu0 0
        %8333 = vmatprep.subr.bf16.mxu0 0
        %8334 = vmatpush1.bf16.msra.mxu0 0
        %8335 = vmatprep.subr.bf16.mxu0 0
        %8336 = vmatpush1.bf16.msra.mxu0 0
        %8337 = vmatprep.subr.bf16.mxu0 0
        %8338 = vmatpush1.bf16.msra.mxu0 0
        %8339 = vmatprep.subr.bf16.mxu0 0
        %8340 = vmatpush1.bf16.msra.mxu0 0
        %8341 = vmatprep.subr.bf16.mxu0 0
        %8342 = vmatpush1.bf16.msra.mxu0 0
        %8343 = vmatprep.subr.bf16.mxu0 0
        %8344 = vmatpush1.bf16.msra.mxu0 0
        %8345 = vmatprep.subr.bf16.mxu0 0
        %8346 = vmatpush1.bf16.msra.mxu0 0
        %8347 = vmatprep.mubr.bf16.mxu0 0
        %8348 = vmatmul.mubr.bf16.gmra.mrb[0].mxu0 %v8313
        %v8349 = vpop.f32.mrb[0].mxu0
        %v8350 = vadd.f32 0.0, %v8349
        %v8351 = vpop.f32.mrb[0].mxu0
        %v8352 = vpop.f32.mrb[0].mxu0
        %v8353 = vpop.f32.mrb[0].mxu0
        %8354 = vdwg.mxu0
        %v8355 = vadd.f32 %v8277, %v8350
        %v8356 = vld [vmem:[#allocation5 + $0x39] sm:$0x1]
        %v8357 = vpack.c.bf16 %v8356, %v8356
        %v8358 = vld [vmem:[#allocation9 + $0x720] sm:$0xf]
        %v8359 = vld [vmem:[#allocation9 + $0x724] sm:$0xf]
        %v8360 = vld [vmem:[#allocation9 + $0x728] sm:$0xf]
        %v8361 = vld [vmem:[#allocation9 + $0x72c] sm:$0xf]
        %v8362 = vld [vmem:[#allocation9 + $0x730] sm:$0xf]
        %v8363 = vld [vmem:[#allocation9 + $0x734] sm:$0xf]
        %v8364 = vld [vmem:[#allocation9 + $0x738] sm:$0xf]
        %v8365 = vld [vmem:[#allocation9 + $0x73c] sm:$0xf]
        %v8374 = vunpack.c.l.b16 %v8358
        %v8375 = vunpack.c.l.b16 %v8359
        %v8376 = vunpack.c.l.b16 %v8360
        %v8377 = vunpack.c.l.b16 %v8361
        %v8378 = vunpack.c.l.b16 %v8362
        %v8379 = vunpack.c.l.b16 %v8363
        %v8380 = vunpack.c.l.b16 %v8364
        %v8381 = vunpack.c.l.b16 %v8365
        %v8382 = vpack.c.b16 %v8375, %v8374
        %v8383 = vpack.c.b16 %v8377, %v8376
        %v8384 = vpack.c.b16 %v8379, %v8378
        %v8385 = vpack.c.b16 %v8381, %v8380
        %v8391 = vsel %vm2566, %v8357, 0
        %8393 = vmatprep.subr.bf16.mxu0 0
        %8394 = vmatpush1.bf16.msra.mxu0 %v8382
        %8395 = vmatprep.subr.bf16.mxu0 0
        %8396 = vmatpush1.bf16.msra.mxu0 %v8383
        %8397 = vmatprep.subr.bf16.mxu0 0
        %8398 = vmatpush1.bf16.msra.mxu0 %v8384
        %8399 = vmatprep.subr.bf16.mxu0 0
        %8400 = vmatpush1.bf16.msra.mxu0 %v8385
        %8401 = vmatprep.subr.bf16.mxu0 0
        %8402 = vmatpush1.bf16.msra.mxu0 0
        %8403 = vmatprep.subr.bf16.mxu0 0
        %8404 = vmatpush1.bf16.msra.mxu0 0
        %8405 = vmatprep.subr.bf16.mxu0 0
        %8406 = vmatpush1.bf16.msra.mxu0 0
        %8407 = vmatprep.subr.bf16.mxu0 0
        %8408 = vmatpush1.bf16.msra.mxu0 0
        %8409 = vmatprep.subr.bf16.mxu0 0
        %8410 = vmatpush1.bf16.msra.mxu0 0
        %8411 = vmatprep.subr.bf16.mxu0 0
        %8412 = vmatpush1.bf16.msra.mxu0 0
        %8413 = vmatprep.subr.bf16.mxu0 0
        %8414 = vmatpush1.bf16.msra.mxu0 0
        %8415 = vmatprep.subr.bf16.mxu0 0
        %8416 = vmatpush1.bf16.msra.mxu0 0
        %8417 = vmatprep.subr.bf16.mxu0 0
        %8418 = vmatpush1.bf16.msra.mxu0 0
        %8419 = vmatprep.subr.bf16.mxu0 0
        %8420 = vmatpush1.bf16.msra.mxu0 0
        %8421 = vmatprep.subr.bf16.mxu0 0
        %8422 = vmatpush1.bf16.msra.mxu0 0
        %8423 = vmatprep.subr.bf16.mxu0 0
        %8424 = vmatpush1.bf16.msra.mxu0 0
        %8425 = vmatprep.mubr.bf16.mxu0 0
        %8426 = vmatmul.mubr.bf16.gmra.mrb[0].mxu0 %v8391
        %v8427 = vpop.f32.mrb[0].mxu0
        %v8428 = vadd.f32 0.0, %v8427
        %v8429 = vpop.f32.mrb[0].mxu0
        %v8430 = vpop.f32.mrb[0].mxu0
        %v8431 = vpop.f32.mrb[0].mxu0
        %8432 = vdwg.mxu0
        %v8433 = vadd.f32 %v8355, %v8428
        %v8434 = vld [vmem:[#allocation5 + $0x3a] sm:$0x1]
        %v8435 = vpack.c.bf16 %v8434, %v8434
        %v8436 = vld [vmem:[#allocation9 + $0x740] sm:$0xf]
        %v8437 = vld [vmem:[#allocation9 + $0x744] sm:$0xf]
        %v8438 = vld [vmem:[#allocation9 + $0x748] sm:$0xf]
        %v8439 = vld [vmem:[#allocation9 + $0x74c] sm:$0xf]
        %v8440 = vld [vmem:[#allocation9 + $0x750] sm:$0xf]
        %v8441 = vld [vmem:[#allocation9 + $0x754] sm:$0xf]
        %v8442 = vld [vmem:[#allocation9 + $0x758] sm:$0xf]
        %v8443 = vld [vmem:[#allocation9 + $0x75c] sm:$0xf]
        %v8452 = vunpack.c.l.b16 %v8436
        %v8453 = vunpack.c.l.b16 %v8437
        %v8454 = vunpack.c.l.b16 %v8438
        %v8455 = vunpack.c.l.b16 %v8439
        %v8456 = vunpack.c.l.b16 %v8440
        %v8457 = vunpack.c.l.b16 %v8441
        %v8458 = vunpack.c.l.b16 %v8442
        %v8459 = vunpack.c.l.b16 %v8443
        %v8460 = vpack.c.b16 %v8453, %v8452
        %v8461 = vpack.c.b16 %v8455, %v8454
        %v8462 = vpack.c.b16 %v8457, %v8456
        %v8463 = vpack.c.b16 %v8459, %v8458
        %v8469 = vsel %vm2566, %v8435, 0
        %8471 = vmatprep.subr.bf16.mxu0 0
        %8472 = vmatpush1.bf16.msra.mxu0 %v8460
        %8473 = vmatprep.subr.bf16.mxu0 0
        %8474 = vmatpush1.bf16.msra.mxu0 %v8461
        %8475 = vmatprep.subr.bf16.mxu0 0
        %8476 = vmatpush1.bf16.msra.mxu0 %v8462
        %8477 = vmatprep.subr.bf16.mxu0 0
        %8478 = vmatpush1.bf16.msra.mxu0 %v8463
        %8479 = vmatprep.subr.bf16.mxu0 0
        %8480 = vmatpush1.bf16.msra.mxu0 0
        %8481 = vmatprep.subr.bf16.mxu0 0
        %8482 = vmatpush1.bf16.msra.mxu0 0
        %8483 = vmatprep.subr.bf16.mxu0 0
        %8484 = vmatpush1.bf16.msra.mxu0 0
        %8485 = vmatprep.subr.bf16.mxu0 0
        %8486 = vmatpush1.bf16.msra.mxu0 0
        %8487 = vmatprep.subr.bf16.mxu0 0
        %8488 = vmatpush1.bf16.msra.mxu0 0
        %8489 = vmatprep.subr.bf16.mxu0 0
        %8490 = vmatpush1.bf16.msra.mxu0 0
        %8491 = vmatprep.subr.bf16.mxu0 0
        %8492 = vmatpush1.bf16.msra.mxu0 0
        %8493 = vmatprep.subr.bf16.mxu0 0
        %8494 = vmatpush1.bf16.msra.mxu0 0
        %8495 = vmatprep.subr.bf16.mxu0 0
        %8496 = vmatpush1.bf16.msra.mxu0 0
        %8497 = vmatprep.subr.bf16.mxu0 0
        %8498 = vmatpush1.bf16.msra.mxu0 0
        %8499 = vmatprep.subr.bf16.mxu0 0
        %8500 = vmatpush1.bf16.msra.mxu0 0
        %8501 = vmatprep.subr.bf16.mxu0 0
        %8502 = vmatpush1.bf16.msra.mxu0 0
        %8503 = vmatprep.mubr.bf16.mxu0 0
        %8504 = vmatmul.mubr.bf16.gmra.mrb[0].mxu0 %v8469
        %v8505 = vpop.f32.mrb[0].mxu0
        %v8506 = vadd.f32 0.0, %v8505
        %v8507 = vpop.f32.mrb[0].mxu0
        %v8508 = vpop.f32.mrb[0].mxu0
        %v8509 = vpop.f32.mrb[0].mxu0
        %8510 = vdwg.mxu0
        %v8511 = vadd.f32 %v8433, %v8506
        %v8512 = vld [vmem:[#allocation5 + $0x3b] sm:$0x1]
        %v8513 = vpack.c.bf16 %v8512, %v8512
        %v8514 = vld [vmem:[#allocation9 + $0x760] sm:$0xf]
        %v8515 = vld [vmem:[#allocation9 + $0x764] sm:$0xf]
        %v8516 = vld [vmem:[#allocation9 + $0x768] sm:$0xf]
        %v8517 = vld [vmem:[#allocation9 + $0x76c] sm:$0xf]
        %v8518 = vld [vmem:[#allocation9 + $0x770] sm:$0xf]
        %v8519 = vld [vmem:[#allocation9 + $0x774] sm:$0xf]
        %v8520 = vld [vmem:[#allocation9 + $0x778] sm:$0xf]
        %v8521 = vld [vmem:[#allocation9 + $0x77c] sm:$0xf]
        %v8530 = vunpack.c.l.b16 %v8514
        %v8531 = vunpack.c.l.b16 %v8515
        %v8532 = vunpack.c.l.b16 %v8516
        %v8533 = vunpack.c.l.b16 %v8517
        %v8534 = vunpack.c.l.b16 %v8518
        %v8535 = vunpack.c.l.b16 %v8519
        %v8536 = vunpack.c.l.b16 %v8520
        %v8537 = vunpack.c.l.b16 %v8521
        %v8538 = vpack.c.b16 %v8531, %v8530
        %v8539 = vpack.c.b16 %v8533, %v8532
        %v8540 = vpack.c.b16 %v8535, %v8534
        %v8541 = vpack.c.b16 %v8537, %v8536
        %v8547 = vsel %vm2566, %v8513, 0
        %8549 = vmatprep.subr.bf16.mxu0 0
        %8550 = vmatpush1.bf16.msra.mxu0 %v8538
        %8551 = vmatprep.subr.bf16.mxu0 0
        %8552 = vmatpush1.bf16.msra.mxu0 %v8539
        %8553 = vmatprep.subr.bf16.mxu0 0
        %8554 = vmatpush1.bf16.msra.mxu0 %v8540
        %8555 = vmatprep.subr.bf16.mxu0 0
        %8556 = vmatpush1.bf16.msra.mxu0 %v8541
        %8557 = vmatprep.subr.bf16.mxu0 0
        %8558 = vmatpush1.bf16.msra.mxu0 0
        %8559 = vmatprep.subr.bf16.mxu0 0
        %8560 = vmatpush1.bf16.msra.mxu0 0
        %8561 = vmatprep.subr.bf16.mxu0 0
        %8562 = vmatpush1.bf16.msra.mxu0 0
        %8563 = vmatprep.subr.bf16.mxu0 0
        %8564 = vmatpush1.bf16.msra.mxu0 0
        %8565 = vmatprep.subr.bf16.mxu0 0
        %8566 = vmatpush1.bf16.msra.mxu0 0
        %8567 = vmatprep.subr.bf16.mxu0 0
        %8568 = vmatpush1.bf16.msra.mxu0 0
        %8569 = vmatprep.subr.bf16.mxu0 0
        %8570 = vmatpush1.bf16.msra.mxu0 0
        %8571 = vmatprep.subr.bf16.mxu0 0
        %8572 = vmatpush1.bf16.msra.mxu0 0
        %8573 = vmatprep.subr.bf16.mxu0 0
        %8574 = vmatpush1.bf16.msra.mxu0 0
        %8575 = vmatprep.subr.bf16.mxu0 0
        %8576 = vmatpush1.bf16.msra.mxu0 0
        %8577 = vmatprep.subr.bf16.mxu0 0
        %8578 = vmatpush1.bf16.msra.mxu0 0
        %8579 = vmatprep.subr.bf16.mxu0 0
        %8580 = vmatpush1.bf16.msra.mxu0 0
        %8581 = vmatprep.mubr.bf16.mxu0 0
        %8582 = vmatmul.mubr.bf16.gmra.mrb[0].mxu0 %v8547
        %v8583 = vpop.f32.mrb[0].mxu0
        %v8584 = vadd.f32 0.0, %v8583
        %v8585 = vpop.f32.mrb[0].mxu0
        %v8586 = vpop.f32.mrb[0].mxu0
        %v8587 = vpop.f32.mrb[0].mxu0
        %8588 = vdwg.mxu0
        %v8589 = vadd.f32 %v8511, %v8584
        %v8590 = vld [vmem:[#allocation5 + $0x3c] sm:$0x1]
        %v8591 = vpack.c.bf16 %v8590, %v8590
        %v8592 = vld [vmem:[#allocation9 + $0x780] sm:$0xf]
        %v8593 = vld [vmem:[#allocation9 + $0x784] sm:$0xf]
        %v8594 = vld [vmem:[#allocation9 + $0x788] sm:$0xf]
        %v8595 = vld [vmem:[#allocation9 + $0x78c] sm:$0xf]
        %v8596 = vld [vmem:[#allocation9 + $0x790] sm:$0xf]
        %v8597 = vld [vmem:[#allocation9 + $0x794] sm:$0xf]
        %v8598 = vld [vmem:[#allocation9 + $0x798] sm:$0xf]
        %v8599 = vld [vmem:[#allocation9 + $0x79c] sm:$0xf]
        %v8608 = vunpack.c.l.b16 %v8592
        %v8609 = vunpack.c.l.b16 %v8593
        %v8610 = vunpack.c.l.b16 %v8594
        %v8611 = vunpack.c.l.b16 %v8595
        %v8612 = vunpack.c.l.b16 %v8596
        %v8613 = vunpack.c.l.b16 %v8597
        %v8614 = vunpack.c.l.b16 %v8598
        %v8615 = vunpack.c.l.b16 %v8599
        %v8616 = vpack.c.b16 %v8609, %v8608
        %v8617 = vpack.c.b16 %v8611, %v8610
        %v8618 = vpack.c.b16 %v8613, %v8612
        %v8619 = vpack.c.b16 %v8615, %v8614
        %v8625 = vsel %vm2566, %v8591, 0
        %8627 = vmatprep.subr.bf16.mxu0 0
        %8628 = vmatpush1.bf16.msra.mxu0 %v8616
        %8629 = vmatprep.subr.bf16.mxu0 0
        %8630 = vmatpush1.bf16.msra.mxu0 %v8617
        %8631 = vmatprep.subr.bf16.mxu0 0
        %8632 = vmatpush1.bf16.msra.mxu0 %v8618
        %8633 = vmatprep.subr.bf16.mxu0 0
        %8634 = vmatpush1.bf16.msra.mxu0 %v8619
        %8635 = vmatprep.subr.bf16.mxu0 0
        %8636 = vmatpush1.bf16.msra.mxu0 0
        %8637 = vmatprep.subr.bf16.mxu0 0
        %8638 = vmatpush1.bf16.msra.mxu0 0
        %8639 = vmatprep.subr.bf16.mxu0 0
        %8640 = vmatpush1.bf16.msra.mxu0 0
        %8641 = vmatprep.subr.bf16.mxu0 0
        %8642 = vmatpush1.bf16.msra.mxu0 0
        %8643 = vmatprep.subr.bf16.mxu0 0
        %8644 = vmatpush1.bf16.msra.mxu0 0
        %8645 = vmatprep.subr.bf16.mxu0 0
        %8646 = vmatpush1.bf16.msra.mxu0 0
        %8647 = vmatprep.subr.bf16.mxu0 0
        %8648 = vmatpush1.bf16.msra.mxu0 0
        %8649 = vmatprep.subr.bf16.mxu0 0
        %8650 = vmatpush1.bf16.msra.mxu0 0
        %8651 = vmatprep.subr.bf16.mxu0 0
        %8652 = vmatpush1.bf16.msra.mxu0 0
        %8653 = vmatprep.subr.bf16.mxu0 0
        %8654 = vmatpush1.bf16.msra.mxu0 0
        %8655 = vmatprep.subr.bf16.mxu0 0
        %8656 = vmatpush1.bf16.msra.mxu0 0
        %8657 = vmatprep.subr.bf16.mxu0 0
        %8658 = vmatpush1.bf16.msra.mxu0 0
        %8659 = vmatprep.mubr.bf16.mxu0 0
        %8660 = vmatmul.mubr.bf16.gmra.mrb[0].mxu0 %v8625
        %v8661 = vpop.f32.mrb[0].mxu0
        %v8662 = vadd.f32 0.0, %v8661
        %v8663 = vpop.f32.mrb[0].mxu0
        %v8664 = vpop.f32.mrb[0].mxu0
        %v8665 = vpop.f32.mrb[0].mxu0
        %8666 = vdwg.mxu0
        %v8667 = vadd.f32 %v8589, %v8662
        %v8668 = vld [vmem:[#allocation5 + $0x3d] sm:$0x1]
        %v8669 = vpack.c.bf16 %v8668, %v8668
        %v8670 = vld [vmem:[#allocation9 + $0x7a0] sm:$0xf]
        %v8671 = vld [vmem:[#allocation9 + $0x7a4] sm:$0xf]
        %v8672 = vld [vmem:[#allocation9 + $0x7a8] sm:$0xf]
        %v8673 = vld [vmem:[#allocation9 + $0x7ac] sm:$0xf]
        %v8674 = vld [vmem:[#allocation9 + $0x7b0] sm:$0xf]
        %v8675 = vld [vmem:[#allocation9 + $0x7b4] sm:$0xf]
        %v8676 = vld [vmem:[#allocation9 + $0x7b8] sm:$0xf]
        %v8677 = vld [vmem:[#allocation9 + $0x7bc] sm:$0xf]
        %v8686 = vunpack.c.l.b16 %v8670
        %v8687 = vunpack.c.l.b16 %v8671
        %v8688 = vunpack.c.l.b16 %v8672
        %v8689 = vunpack.c.l.b16 %v8673
        %v8690 = vunpack.c.l.b16 %v8674
        %v8691 = vunpack.c.l.b16 %v8675
        %v8692 = vunpack.c.l.b16 %v8676
        %v8693 = vunpack.c.l.b16 %v8677
        %v8694 = vpack.c.b16 %v8687, %v8686
        %v8695 = vpack.c.b16 %v8689, %v8688
        %v8696 = vpack.c.b16 %v8691, %v8690
        %v8697 = vpack.c.b16 %v8693, %v8692
        %v8703 = vsel %vm2566, %v8669, 0
        %8705 = vmatprep.subr.bf16.mxu0 0
        %8706 = vmatpush1.bf16.msra.mxu0 %v8694
        %8707 = vmatprep.subr.bf16.mxu0 0
        %8708 = vmatpush1.bf16.msra.mxu0 %v8695
        %8709 = vmatprep.subr.bf16.mxu0 0
        %8710 = vmatpush1.bf16.msra.mxu0 %v8696
        %8711 = vmatprep.subr.bf16.mxu0 0
        %8712 = vmatpush1.bf16.msra.mxu0 %v8697
        %8713 = vmatprep.subr.bf16.mxu0 0
        %8714 = vmatpush1.bf16.msra.mxu0 0
        %8715 = vmatprep.subr.bf16.mxu0 0
        %8716 = vmatpush1.bf16.msra.mxu0 0
        %8717 = vmatprep.subr.bf16.mxu0 0
        %8718 = vmatpush1.bf16.msra.mxu0 0
        %8719 = vmatprep.subr.bf16.mxu0 0
        %8720 = vmatpush1.bf16.msra.mxu0 0
        %8721 = vmatprep.subr.bf16.mxu0 0
        %8722 = vmatpush1.bf16.msra.mxu0 0
        %8723 = vmatprep.subr.bf16.mxu0 0
        %8724 = vmatpush1.bf16.msra.mxu0 0
        %8725 = vmatprep.subr.bf16.mxu0 0
        %8726 = vmatpush1.bf16.msra.mxu0 0
        %8727 = vmatprep.subr.bf16.mxu0 0
        %8728 = vmatpush1.bf16.msra.mxu0 0
        %8729 = vmatprep.subr.bf16.mxu0 0
        %8730 = vmatpush1.bf16.msra.mxu0 0
        %8731 = vmatprep.subr.bf16.mxu0 0
        %8732 = vmatpush1.bf16.msra.mxu0 0
        %8733 = vmatprep.subr.bf16.mxu0 0
        %8734 = vmatpush1.bf16.msra.mxu0 0
        %8735 = vmatprep.subr.bf16.mxu0 0
        %8736 = vmatpush1.bf16.msra.mxu0 0
        %8737 = vmatprep.mubr.bf16.mxu0 0
        %8738 = vmatmul.mubr.bf16.gmra.mrb[0].mxu0 %v8703
        %v8739 = vpop.f32.mrb[0].mxu0
        %v8740 = vadd.f32 0.0, %v8739
        %v8741 = vpop.f32.mrb[0].mxu0
        %v8742 = vpop.f32.mrb[0].mxu0
        %v8743 = vpop.f32.mrb[0].mxu0
        %8744 = vdwg.mxu0
        %v8745 = vadd.f32 %v8667, %v8740
        %v8746 = vld [vmem:[#allocation5 + $0x3e] sm:$0x1]
        %v8747 = vpack.c.bf16 %v8746, %v8746
        %v8748 = vld [vmem:[#allocation9 + $0x7c0] sm:$0xf]
        %v8749 = vld [vmem:[#allocation9 + $0x7c4] sm:$0xf]
        %v8750 = vld [vmem:[#allocation9 + $0x7c8] sm:$0xf]
        %v8751 = vld [vmem:[#allocation9 + $0x7cc] sm:$0xf]
        %v8752 = vld [vmem:[#allocation9 + $0x7d0] sm:$0xf]
        %v8753 = vld [vmem:[#allocation9 + $0x7d4] sm:$0xf]
        %v8754 = vld [vmem:[#allocation9 + $0x7d8] sm:$0xf]
        %v8755 = vld [vmem:[#allocation9 + $0x7dc] sm:$0xf]
        %v8764 = vunpack.c.l.b16 %v8748
        %v8765 = vunpack.c.l.b16 %v8749
        %v8766 = vunpack.c.l.b16 %v8750
        %v8767 = vunpack.c.l.b16 %v8751
        %v8768 = vunpack.c.l.b16 %v8752
        %v8769 = vunpack.c.l.b16 %v8753
        %v8770 = vunpack.c.l.b16 %v8754
        %v8771 = vunpack.c.l.b16 %v8755
        %v8772 = vpack.c.b16 %v8765, %v8764
        %v8773 = vpack.c.b16 %v8767, %v8766
        %v8774 = vpack.c.b16 %v8769, %v8768
        %v8775 = vpack.c.b16 %v8771, %v8770
        %v8781 = vsel %vm2566, %v8747, 0
        %8783 = vmatprep.subr.bf16.mxu0 0
        %8784 = vmatpush1.bf16.msra.mxu0 %v8772
        %8785 = vmatprep.subr.bf16.mxu0 0
        %8786 = vmatpush1.bf16.msra.mxu0 %v8773
        %8787 = vmatprep.subr.bf16.mxu0 0
        %8788 = vmatpush1.bf16.msra.mxu0 %v8774
        %8789 = vmatprep.subr.bf16.mxu0 0
        %8790 = vmatpush1.bf16.msra.mxu0 %v8775
        %8791 = vmatprep.subr.bf16.mxu0 0
        %8792 = vmatpush1.bf16.msra.mxu0 0
        %8793 = vmatprep.subr.bf16.mxu0 0
        %8794 = vmatpush1.bf16.msra.mxu0 0
        %8795 = vmatprep.subr.bf16.mxu0 0
        %8796 = vmatpush1.bf16.msra.mxu0 0
        %8797 = vmatprep.subr.bf16.mxu0 0
        %8798 = vmatpush1.bf16.msra.mxu0 0
        %8799 = vmatprep.subr.bf16.mxu0 0
        %8800 = vmatpush1.bf16.msra.mxu0 0
        %8801 = vmatprep.subr.bf16.mxu0 0
        %8802 = vmatpush1.bf16.msra.mxu0 0
        %8803 = vmatprep.subr.bf16.mxu0 0
        %8804 = vmatpush1.bf16.msra.mxu0 0
        %8805 = vmatprep.subr.bf16.mxu0 0
        %8806 = vmatpush1.bf16.msra.mxu0 0
        %8807 = vmatprep.subr.bf16.mxu0 0
        %8808 = vmatpush1.bf16.msra.mxu0 0
        %8809 = vmatprep.subr.bf16.mxu0 0
        %8810 = vmatpush1.bf16.msra.mxu0 0
        %8811 = vmatprep.subr.bf16.mxu0 0
        %8812 = vmatpush1.bf16.msra.mxu0 0
        %8813 = vmatprep.subr.bf16.mxu0 0
        %8814 = vmatpush1.bf16.msra.mxu0 0
        %8815 = vmatprep.mubr.bf16.mxu0 0
        %8816 = vmatmul.mubr.bf16.gmra.mrb[0].mxu0 %v8781
        %v8817 = vpop.f32.mrb[0].mxu0
        %v8818 = vadd.f32 0.0, %v8817
        %v8819 = vpop.f32.mrb[0].mxu0
        %v8820 = vpop.f32.mrb[0].mxu0
        %v8821 = vpop.f32.mrb[0].mxu0
        %8822 = vdwg.mxu0
        %v8823 = vadd.f32 %v8745, %v8818
        %v8824 = vld [vmem:[#allocation5 + $0x3f] sm:$0x1]
        %v8825 = vpack.c.bf16 %v8824, %v8824
        %v8826 = vld [vmem:[#allocation9 + $0x7e0] sm:$0xf]
        %v8827 = vld [vmem:[#allocation9 + $0x7e4] sm:$0xf]
        %v8828 = vld [vmem:[#allocation9 + $0x7e8] sm:$0xf]
        %v8829 = vld [vmem:[#allocation9 + $0x7ec] sm:$0xf]
        %v8830 = vld [vmem:[#allocation9 + $0x7f0] sm:$0xf]
        %v8831 = vld [vmem:[#allocation9 + $0x7f4] sm:$0xf]
        %v8832 = vld [vmem:[#allocation9 + $0x7f8] sm:$0xf]
        %v8833 = vld [vmem:[#allocation9 + $0x7fc] sm:$0xf]
        %v8842 = vunpack.c.l.b16 %v8826
        %v8843 = vunpack.c.l.b16 %v8827
        %v8844 = vunpack.c.l.b16 %v8828
        %v8845 = vunpack.c.l.b16 %v8829
        %v8846 = vunpack.c.l.b16 %v8830
        %v8847 = vunpack.c.l.b16 %v8831
        %v8848 = vunpack.c.l.b16 %v8832
        %v8849 = vunpack.c.l.b16 %v8833
        %v8850 = vpack.c.b16 %v8843, %v8842
        %v8851 = vpack.c.b16 %v8845, %v8844
        %v8852 = vpack.c.b16 %v8847, %v8846
        %v8853 = vpack.c.b16 %v8849, %v8848
        %v8859 = vsel %vm2566, %v8825, 0
        %8861 = vmatprep.subr.bf16.mxu0 0
        %8862 = vmatpush1.bf16.msra.mxu0 %v8850
        %8863 = vmatprep.subr.bf16.mxu0 0
        %8864 = vmatpush1.bf16.msra.mxu0 %v8851
        %8865 = vmatprep.subr.bf16.mxu0 0
        %8866 = vmatpush1.bf16.msra.mxu0 %v8852
        %8867 = vmatprep.subr.bf16.mxu0 0
        %8868 = vmatpush1.bf16.msra.mxu0 %v8853
        %8869 = vmatprep.subr.bf16.mxu0 0
        %8870 = vmatpush1.bf16.msra.mxu0 0
        %8871 = vmatprep.subr.bf16.mxu0 0
        %8872 = vmatpush1.bf16.msra.mxu0 0
        %8873 = vmatprep.subr.bf16.mxu0 0
        %8874 = vmatpush1.bf16.msra.mxu0 0
        %8875 = vmatprep.subr.bf16.mxu0 0
        %8876 = vmatpush1.bf16.msra.mxu0 0
        %8877 = vmatprep.subr.bf16.mxu0 0
        %8878 = vmatpush1.bf16.msra.mxu0 0
        %8879 = vmatprep.subr.bf16.mxu0 0
        %8880 = vmatpush1.bf16.msra.mxu0 0
        %8881 = vmatprep.subr.bf16.mxu0 0
        %8882 = vmatpush1.bf16.msra.mxu0 0
        %8883 = vmatprep.subr.bf16.mxu0 0
        %8884 = vmatpush1.bf16.msra.mxu0 0
        %8885 = vmatprep.subr.bf16.mxu0 0
        %8886 = vmatpush1.bf16.msra.mxu0 0
        %8887 = vmatprep.subr.bf16.mxu0 0
        %8888 = vmatpush1.bf16.msra.mxu0 0
        %8889 = vmatprep.subr.bf16.mxu0 0
        %8890 = vmatpush1.bf16.msra.mxu0 0
        %8891 = vmatprep.subr.bf16.mxu0 0
        %8892 = vmatpush1.bf16.msra.mxu0 0
        %8893 = vmatprep.mubr.bf16.mxu0 0
        %8894 = vmatmul.mubr.bf16.gmra.mrb[0].mxu0 %v8859
        %v8895 = vpop.f32.mrb[0].mxu0
        %v8896 = vadd.f32 0.0, %v8895
        %v8897 = vpop.f32.mrb[0].mxu0
        %v8898 = vpop.f32.mrb[0].mxu0
        %v8899 = vpop.f32.mrb[0].mxu0
        %8900 = vdwg.mxu0
        %v8901 = vadd.f32 %v8823, %v8896
        %v8902 = vld [vmem:[%s12] sm:$0x1]
        %v8903 = vadd.f32 %v8901, %v8902
        %v8904 = vmax.f32 %v8903, 0.0
        %v8905 = vpack.c.bf16 %v8904, %v8904
        %v8906 = vld [vmem:[%s13] sm:$0xf]
        %v8907 = vld [vmem:[%s13 + $0x4] sm:$0xf]
        %v8908 = vld [vmem:[%s13 + $0x8] sm:$0xf]
        %v8909 = vld [vmem:[%s13 + $0xc] sm:$0xf]
        %v8910 = vld [vmem:[%s13 + $0x10] sm:$0xf]
        %v8911 = vld [vmem:[%s13 + $0x14] sm:$0xf]
        %v8912 = vld [vmem:[%s13 + $0x18] sm:$0xf]
        %v8913 = vld [vmem:[%s13 + $0x1c] sm:$0xf]
        %v8914 = vld [vmem:[%s13 + $0x20] sm:$0xf]
        %v8915 = vld [vmem:[%s13 + $0x24] sm:$0xf]
        %v8916 = vld [vmem:[%s13 + $0x28] sm:$0xf]
        %v8917 = vld [vmem:[%s13 + $0x2c] sm:$0xf]
        %v8918 = vld [vmem:[%s13 + $0x30] sm:$0xf]
        %v8919 = vld [vmem:[%s13 + $0x34] sm:$0xf]
        %v8920 = vld [vmem:[%s13 + $0x38] sm:$0xf]
        %v8921 = vld [vmem:[%s13 + $0x3c] sm:$0xf]
        %v8922 = vld [vmem:[%s14] sm:$0x1]
        %v8939 = vunpack.c.l.b16 %v8906
        %v8940 = vunpack.c.l.b16 %v8907
        %v8941 = vunpack.c.l.b16 %v8908
        %v8942 = vunpack.c.l.b16 %v8909
        %v8943 = vunpack.c.l.b16 %v8910
        %v8944 = vunpack.c.l.b16 %v8911
        %v8945 = vunpack.c.l.b16 %v8912
        %v8946 = vunpack.c.l.b16 %v8913
        %v8947 = vunpack.c.l.b16 %v8914
        %v8948 = vunpack.c.l.b16 %v8915
        %v8949 = vunpack.c.l.b16 %v8916
        %v8950 = vunpack.c.l.b16 %v8917
        %v8951 = vunpack.c.l.b16 %v8918
        %v8952 = vunpack.c.l.b16 %v8919
        %v8953 = vunpack.c.l.b16 %v8920
        %v8954 = vunpack.c.l.b16 %v8921
        %v8955 = vpack.c.b16 %v8940, %v8939
        %v8956 = vpack.c.b16 %v8942, %v8941
        %v8957 = vpack.c.b16 %v8944, %v8943
        %v8958 = vpack.c.b16 %v8946, %v8945
        %v8959 = vpack.c.b16 %v8948, %v8947
        %v8960 = vpack.c.b16 %v8950, %v8949
        %v8961 = vpack.c.b16 %v8952, %v8951
        %v8962 = vpack.c.b16 %v8954, %v8953
        %8971 = vmatprep.subr.bf16.mxu0 0
        %8972 = vmatpush1.bf16.msra.mxu0 %v8955
        %8973 = vmatprep.subr.bf16.mxu0 0
        %8974 = vmatpush1.bf16.msra.mxu0 %v8956
        %8975 = vmatprep.subr.bf16.mxu0 0
        %8976 = vmatpush1.bf16.msra.mxu0 %v8957
        %8977 = vmatprep.subr.bf16.mxu0 0
        %8978 = vmatpush1.bf16.msra.mxu0 %v8958
        %8979 = vmatprep.subr.bf16.mxu0 0
        %8980 = vmatpush1.bf16.msra.mxu0 %v8959
        %8981 = vmatprep.subr.bf16.mxu0 0
        %8982 = vmatpush1.bf16.msra.mxu0 %v8960
        %8983 = vmatprep.subr.bf16.mxu0 0
        %8984 = vmatpush1.bf16.msra.mxu0 %v8961
        %8985 = vmatprep.subr.bf16.mxu0 0
        %8986 = vmatpush1.bf16.msra.mxu0 %v8962
        %8987 = vmatprep.subr.bf16.mxu0 0
        %8988 = vmatpush1.bf16.msra.mxu0 0
        %8989 = vmatprep.subr.bf16.mxu0 0
        %8990 = vmatpush1.bf16.msra.mxu0 0
        %8991 = vmatprep.subr.bf16.mxu0 0
        %8992 = vmatpush1.bf16.msra.mxu0 0
        %8993 = vmatprep.subr.bf16.mxu0 0
        %8994 = vmatpush1.bf16.msra.mxu0 0
        %8995 = vmatprep.subr.bf16.mxu0 0
        %8996 = vmatpush1.bf16.msra.mxu0 0
        %8997 = vmatprep.subr.bf16.mxu0 0
        %8998 = vmatpush1.bf16.msra.mxu0 0
        %8999 = vmatprep.subr.bf16.mxu0 0
        %9000 = vmatpush1.bf16.msra.mxu0 0
        %9001 = vmatprep.subr.bf16.mxu0 0
        %9002 = vmatpush1.bf16.msra.mxu0 0
        %9003 = vmatprep.mubr.bf16.mxu0 0
        %9004 = vmatmul.mubr.bf16.gmra.mrb[0].mxu0 %v8905
        %v9005 = vpop.f32.mrb[0].mxu0
        %v9006 = vadd.f32 %v8922, %v9005
        %v9007 = vpop.f32.mrb[0].mxu0
        %v9008 = vpop.f32.mrb[0].mxu0
        %v9009 = vpop.f32.mrb[0].mxu0
        %9010 = vdwg.mxu0
        %vm9011 = vcmask 40960
        %9012 = vst.msk [vmem:[%s527] sm:$0x1] %vm9011, %v9006
        %s9013 = sand.u32 %s364, 1
        %s9014 = scalar_lea.sflag [#allocation8], %s9013
        %s9015 = sand.u32 %s364, 1
        %s9016 = scalar_lea.vmem [#allocation11], %s9015
        // Predicated region
        $region89: #{tpu_custom_call.1} parent=79 // pred_check
          %p9017 = pneg %p374
        $region90: #{tpu_custom_call.1} parent=79 // pred_check_branch
          %9019 = sbr.rel (%p9017) target = $region92
        $region91: #{tpu_custom_call.1} parent=79 // pred_region
          %s9021 = ssub.s32 16, 16
          %9022 = vsyncadd %s9014, %s9021
          %s9023 = smul.addr %s31, 16
          %s9024 = scalar_lea.hbm %s15, %s9023
          %s9026 = sshll.u32 %s9016, 4
          %s9027 = int_to_ptr.vmem [resolvable:$true] %s9026
          %9029 = dma.vmem_to_hbm [thread:$0]  %s9027, 16, %s9024, %s9014
        $region92: #{tpu_custom_call.1} parent=79 // pred_fallthru
          _
      $region80: #{tpu_custom_call.1} parent=5 // pred_fallthru
        _
      %p9030 = scmp.le.s32.totalorder 2, %s26
      // Predicated region
      $region93: #{tpu_custom_call.1} parent=5 // pred_check
        %p9031 = pneg %p9030
      $region94: #{tpu_custom_call.1} parent=5 // pred_check_branch
        %9033 = sbr.rel (%p9031) target = $region96
      $region95: #{tpu_custom_call.1} parent=5 // pred_region
        %s9034 = ssub.s32 %s26, 2
        // Predicated region
        $region97: #{tpu_custom_call.1} parent=95 // pred_check
          %p9035 = pneg %p380
        $region98: #{tpu_custom_call.1} parent=95 // pred_check_branch
          %9037 = sbr.rel (%p9035) target = $region100
        $region99: #{tpu_custom_call.1} parent=95 // pred_region
          %s9038 = sand.u32 %s365, 1
          %s9039 = scalar_lea.sflag [#allocation8], %s9038
          %s9040 = sand.u32 %s365, 1
          %s9041 = scalar_lea.vmem [#allocation11], %s9040
          %9042 = dma.done %s9039, 16
        $region100: #{tpu_custom_call.1} parent=95 // pred_fallthru
          _
      $region96: #{tpu_custom_call.1} parent=5 // pred_fallthru
        _
    $region6: #{tpu_custom_call.1} parent=1 // loop_footer
      %s30 = sadd.s32 1, %s26
    $region7: #{tpu_custom_call.1} parent=1 // loop_footer_branch
      %25 = sbr.rel target = $region3
    $region8: #{tpu_custom_call.1} parent=1 // loop_exit
      _
    %9043 = vsyncpa [#allocation7], 1
    %s9044 = scalar_lea.sflag [#allocation7], 1
    %9045 = vsyncpa %s9044, 1
    %9046 = vsyncpa [#allocation10], 1
    %9047 = vsyncpa [#allocation8], 1
    %s9048 = scalar_lea.sflag [#allocation8], 1
    %9049 = vsyncpa %s9048, 1

</llo_original>
